<compile_context>
chip_gen: v5e
topology: v5e:2x2
jax: 0.10.0
libtpu: 0.0.40
codegen_flags: <defaults>
</compile_context>

<pallas_src>
import functools

import jax
import jax.numpy as jnp
import numpy as np
from jax import lax
from jax.experimental import pallas as pl
from jax.experimental.pallas import tpu as pltpu


# ----------------------------------------------------------------------------
# Fused kernel
# ----------------------------------------------------------------------------
def _rdb_fused_kernel(x_ref, wconv_ref, bconv_ref, wlff_ref, blff_ref, o_ref,
                      stack_ref, *, G0, G, C):
    # x_ref    : (1, H, W, G0)   one image (block input)
    # wconv_ref: (C, 9, Ct, G)   3x3 conv weights, zero padded to Ct in-chans
    # bconv_ref: (C, 1, G)       conv biases
    # wlff_ref : (Ct, G0)        1x1 LFF weights
    # blff_ref : (1, G0)         LFF bias
    # o_ref    : (1, H, W, G0)   output tile
    # stack_ref: (H+2, W+2, Ct)  VMEM-resident padded dense feature stack
    _, H, W, _ = x_ref.shape
    Ct = stack_ref.shape[-1]
    HW = H * W

    # Zero the padded stack (padding ring must be zero every grid step so the
    # "SAME" conv semantics hold), then drop the block input into the interior
    # at channel offset 0.
    stack_ref[...] = jnp.zeros_like(stack_ref)
    stack_ref[1:H + 1, 1:W + 1, 0:G0] = x_ref[0]

    # C dense conv layers.  Each layer: 9 shifted (HW, Ct) x (Ct, G) matmuls
    # on the MXU.  Weight rows >= the layer's true Cin are zero, so stack
    # channels that have not been produced yet contribute nothing.
    for c in range(C):
        off = G0 + c * G
        acc = jnp.zeros((HW, G), jnp.float32)
        for ky in range(3):
            for kx in range(3):
                patch = stack_ref[ky:ky + H, kx:kx + W, :]      # (H, W, Ct)
                acc = acc + jnp.dot(patch.reshape(HW, Ct),
                                    wconv_ref[c, ky * 3 + kx],
                                    preferred_element_type=jnp.float32)
        out = jnp.maximum(acc + bconv_ref[c], 0.0)              # bias + ReLU
        # Dense "concat": write the new G channels at their channel offset.
        stack_ref[1:H + 1, 1:W + 1, off:off + G] = out.reshape(H, W, G)

    # LFF (1x1 conv over the full stack) + residual with the block input
    # (which is exactly channels [0:G0] of the stack interior).
    xc = stack_ref[1:H + 1, 1:W + 1, :].reshape(HW, Ct)
    y = jnp.dot(xc, wlff_ref[...], preferred_element_type=jnp.float32)
    y = y + blff_ref[...] + xc[:, 0:G0]
    o_ref[0] = y.reshape(H, W, G0).astype(o_ref.dtype)


# ----------------------------------------------------------------------------
# Wrapper
# ----------------------------------------------------------------------------
def rdb_forward(x, params):
    """Fused RDB forward.  x: (N, H, W, G0) -> (N, H, W, G0)."""
    N, H, W, G0 = x.shape
    convs = params["convs"]
    C = len(convs)
    G = convs[0][0].shape[-1]
    Ct = G0 + C * G

    # Pack conv weights/biases once into zero-padded tensors so every layer
    # uses the same (Ct, G) matmul RHS shape (done at trace time; fused by
    # XLA when jitted).
    wconv = jnp.zeros((C, 9, Ct, G), jnp.float32)
    bconv = jnp.zeros((C, 1, G), jnp.float32)
    for c, (w, b) in enumerate(convs):
        Cin = w.shape[2]
        wconv = wconv.at[c, :, :Cin, :].set(w.reshape(9, Cin, G))
        bconv = bconv.at[c, 0, :].set(b)
    wlff = params["lff_w"]
    blff = params["lff_b"].reshape(1, G0)

    kernel = functools.partial(_rdb_fused_kernel, G0=G0, G=G, C=C)
    return pl.pallas_call(
        kernel,
        out_shape=jax.ShapeDtypeStruct((N, H, W, G0), x.dtype),
        grid_spec=pltpu.PrefetchScalarGridSpec(
            num_scalar_prefetch=0,
            grid=(N,),
            in_specs=[
                pl.BlockSpec((1, H, W, G0), lambda n: (n, 0, 0, 0)),   # x
                pl.BlockSpec((C, 9, Ct, G), lambda n: (0, 0, 0, 0)),   # conv W
                pl.BlockSpec((C, 1, G), lambda n: (0, 0, 0)),          # conv b
                pl.BlockSpec((Ct, G0), lambda n: (0, 0)),              # LFF W
                pl.BlockSpec((1, G0), lambda n: (0, 0)),               # LFF b
            ],
            out_specs=pl.BlockSpec((1, H, W, G0), lambda n: (n, 0, 0, 0)),
            scratch_shapes=[pltpu.VMEM((H + 2, W + 2, Ct), jnp.float32)],
        ),
        compiler_params=pltpu.CompilerParams(
            dimension_semantics=("parallel",)),
    )(x, wconv, bconv, wlff, blff)


# ----------------------------------------------------------------------------
# Deterministic parameter init (matches nn.Conv2d shapes; synthetic values)
# ----------------------------------------------------------------------------
def init_rdb_params(key, G0, G, C, kSize=3):
    params = {"convs": []}
    for c in range(C):
        Cin = G0 + c * G
        key, kw, kb = jax.random.split(key, 3)
        bound = 1.0 / np.sqrt(Cin * kSize * kSize)
        w = jax.random.uniform(kw, (kSize, kSize, Cin, G), jnp.float32,
                               -bound, bound)
        b = jax.random.uniform(kb, (G,), jnp.float32, -bound, bound)
        params["convs"].append((w, b))
    Ct = G0 + C * G
    key, kw, kb = jax.random.split(key, 3)
    bound = 1.0 / np.sqrt(Ct)
    params["lff_w"] = jax.random.uniform(kw, (Ct, G0), jnp.float32, -bound, bound)
    params["lff_b"] = jax.random.uniform(kb, (G0,), jnp.float32, -bound, bound)
    return params


# ----------------------------------------------------------------------------
# Pure-JAX reference (for correctness check only)
# ----------------------------------------------------------------------------
def rdb_reference(x, params):
    dn = ("NHWC", "HWIO", "NHWC")
    feats = x
    for (w, b) in params["convs"]:
        out = lax.conv_general_dilated(feats, w, (1, 1), "SAME",
                                       dimension_numbers=dn)
        out = jnp.maximum(out + b[None, None, None, :], 0.0)
        feats = jnp.concatenate([feats, out], axis=-1)
    w = params["lff_w"][None, None]   # (1,1,Ct,G0)
    y = lax.conv_general_dilated(feats, w, (1, 1), "VALID",
                                 dimension_numbers=dn)
    return y + params["lff_b"][None, None, None, :] + x


# ----------------------------------------------------------------------------
if __name__ == "__main__":
    # Small shapes consistent with the module: N=2, G0=8, G=8, C=3, H=W=16
    N, H, W = 2, 16, 16
    G0, G, C = 8, 8, 3

    key = jax.random.PRNGKey(0)
    key, kx = jax.random.split(key)
    x = jax.random.normal(kx, (N, H, W, G0), jnp.float32)   # NHWC activations

    params = init_rdb_params(key, G0, G, C)

    y = jax.jit(rdb_forward)(x, params)
    y = jax.block_until_ready(y)

    y_ref = rdb_reference(x, params)
    np.testing.assert_allclose(np.asarray(y), np.asarray(y_ref),
                               rtol=1e-4, atol=1e-4)
    print("KERNEL_OK")
</pallas_src>

<mosaic_0001>
module attributes {stable_mosaic.version = 11 : i64} {
  func.func @_rdb_fused_kernel(%arg0: i32, %arg1: memref<1x16x16x8xf32, #tpu.memory_space<vmem>>, %arg2: memref<3x9x32x8xf32, #tpu.memory_space<vmem>>, %arg3: memref<3x1x8xf32, #tpu.memory_space<vmem>>, %arg4: memref<32x8xf32, #tpu.memory_space<vmem>>, %arg5: memref<1x8xf32, #tpu.memory_space<vmem>>, %arg6: memref<1x16x16x8xf32, #tpu.memory_space<vmem>>, %arg7: memref<18x18x32xf32, #tpu.memory_space<vmem>>) attributes {dimension_semantics = [#tpu.dimension_semantics<parallel>], iteration_bounds = array<i64: 2>, scalar_prefetch = 0 : i64, scratch_operands = 1 : i64, tpu.core_type = #tpu.core_type<tc>, window_params = [{transform_indices = @transform_0, window_bounds = array<i64: 1, 16, 16, 8>}, {pipeline_mode = #tpu.pipeline_mode<synchronous>, transform_indices = @transform_1, window_bounds = array<i64: 3, 9, 32, 8>}, {pipeline_mode = #tpu.pipeline_mode<synchronous>, transform_indices = @transform_2, window_bounds = array<i64: 3, 1, 8>}, {pipeline_mode = #tpu.pipeline_mode<synchronous>, transform_indices = @transform_3, window_bounds = array<i64: 32, 8>}, {pipeline_mode = #tpu.pipeline_mode<synchronous>, transform_indices = @transform_4, window_bounds = array<i64: 1, 8>}, {transform_indices = @transform_5, window_bounds = array<i64: 1, 16, 16, 8>}]} {
    %cst = arith.constant 0.000000e+00 : f32
    %0 = vector.broadcast %cst : f32 to vector<18x18x32xf32>
    %c0 = arith.constant 0 : index
    %c0_0 = arith.constant 0 : index
    %c0_1 = arith.constant 0 : index
    %1 = vector.load %arg7[%c0, %c0_0, %c0_1] : memref<18x18x32xf32, #tpu.memory_space<vmem>>, vector<18x18x32xf32>
    tpu.vector_store %arg7[%c0, %c0_0, %c0_1], %0 {strides = array<i32>} : memref<18x18x32xf32, #tpu.memory_space<vmem>>, vector<18x18x32xf32>,
    %c0_2 = arith.constant 0 : index
    %c0_3 = arith.constant 0 : index
    %c0_4 = arith.constant 0 : index
    %c0_5 = arith.constant 0 : index
    %2 = vector.load %arg1[%c0_2, %c0_3, %c0_4, %c0_5] : memref<1x16x16x8xf32, #tpu.memory_space<vmem>>, vector<1x16x16x8xf32>
    %3 = vector.shape_cast %2 : vector<1x16x16x8xf32> to vector<16x16x8xf32>
    %c1 = arith.constant 1 : index
    %c1_6 = arith.constant 1 : index
    %c0_7 = arith.constant 0 : index
    %4 = vector.load %arg7[%c1, %c1_6, %c0_7] : memref<18x18x32xf32, #tpu.memory_space<vmem>>, vector<16x16x8xf32>
    tpu.vector_store %arg7[%c1, %c1_6, %c0_7], %3 {strides = array<i32>} : memref<18x18x32xf32, #tpu.memory_space<vmem>>, vector<16x16x8xf32>,
    %cst_8 = arith.constant 0.000000e+00 : f32
    %5 = vector.broadcast %cst_8 : f32 to vector<256x8xf32>
    %c0_9 = arith.constant 0 : index
    %c0_10 = arith.constant 0 : index
    %c0_11 = arith.constant 0 : index
    %6 = vector.load %arg7[%c0_9, %c0_10, %c0_11] : memref<18x18x32xf32, #tpu.memory_space<vmem>>, vector<16x16x32xf32>
    %7 = vector.shape_cast %6 : vector<16x16x32xf32> to vector<256x32xf32>
    %c0_12 = arith.constant 0 : index
    %c0_13 = arith.constant 0 : index
    %c0_14 = arith.constant 0 : index
    %c0_15 = arith.constant 0 : index
    %8 = vector.load %arg2[%c0_12, %c0_13, %c0_14, %c0_15] : memref<3x9x32x8xf32, #tpu.memory_space<vmem>>, vector<1x1x32x8xf32>
    %9 = vector.shape_cast %8 : vector<1x1x32x8xf32> to vector<32x8xf32>
    %cst_16 = arith.constant dense<0.000000e+00> : vector<256x8xf32>
    %10 = tpu.matmul %7, %9, %cst_16 {dimension_numbers = #tpu.dot_dimension_numbers<[1], [0], [0], [1], [0, 0, 1, 1], [], []>} : vector<256x32xf32>, vector<32x8xf32>, vector<256x8xf32> -> vector<256x8xf32>
    %11 = arith.addf %5, %10 : vector<256x8xf32>
    %c0_17 = arith.constant 0 : index
    %c1_18 = arith.constant 1 : index
    %c0_19 = arith.constant 0 : index
    %12 = vector.load %arg7[%c0_17, %c1_18, %c0_19] : memref<18x18x32xf32, #tpu.memory_space<vmem>>, vector<16x16x32xf32>
    %13 = vector.shape_cast %12 : vector<16x16x32xf32> to vector<256x32xf32>
    %c0_20 = arith.constant 0 : index
    %c1_21 = arith.constant 1 : index
    %c0_22 = arith.constant 0 : index
    %c0_23 = arith.constant 0 : index
    %14 = vector.load %arg2[%c0_20, %c1_21, %c0_22, %c0_23] : memref<3x9x32x8xf32, #tpu.memory_space<vmem>>, vector<1x1x32x8xf32>
    %15 = vector.shape_cast %14 : vector<1x1x32x8xf32> to vector<32x8xf32>
    %cst_24 = arith.constant dense<0.000000e+00> : vector<256x8xf32>
    %16 = tpu.matmul %13, %15, %cst_24 {dimension_numbers = #tpu.dot_dimension_numbers<[1], [0], [0], [1], [0, 0, 1, 1], [], []>} : vector<256x32xf32>, vector<32x8xf32>, vector<256x8xf32> -> vector<256x8xf32>
    %17 = arith.addf %11, %16 : vector<256x8xf32>
    %c0_25 = arith.constant 0 : index
    %c2 = arith.constant 2 : index
    %c0_26 = arith.constant 0 : index
    %18 = vector.load %arg7[%c0_25, %c2, %c0_26] : memref<18x18x32xf32, #tpu.memory_space<vmem>>, vector<16x16x32xf32>
    %19 = vector.shape_cast %18 : vector<16x16x32xf32> to vector<256x32xf32>
    %c0_27 = arith.constant 0 : index
    %c2_28 = arith.constant 2 : index
    %c0_29 = arith.constant 0 : index
    %c0_30 = arith.constant 0 : index
    %20 = vector.load %arg2[%c0_27, %c2_28, %c0_29, %c0_30] : memref<3x9x32x8xf32, #tpu.memory_space<vmem>>, vector<1x1x32x8xf32>
    %21 = vector.shape_cast %20 : vector<1x1x32x8xf32> to vector<32x8xf32>
    %cst_31 = arith.constant dense<0.000000e+00> : vector<256x8xf32>
    %22 = tpu.matmul %19, %21, %cst_31 {dimension_numbers = #tpu.dot_dimension_numbers<[1], [0], [0], [1], [0, 0, 1, 1], [], []>} : vector<256x32xf32>, vector<32x8xf32>, vector<256x8xf32> -> vector<256x8xf32>
    %23 = arith.addf %17, %22 : vector<256x8xf32>
    %c1_32 = arith.constant 1 : index
    %c0_33 = arith.constant 0 : index
    %c0_34 = arith.constant 0 : index
    %24 = vector.load %arg7[%c1_32, %c0_33, %c0_34] : memref<18x18x32xf32, #tpu.memory_space<vmem>>, vector<16x16x32xf32>
    %25 = vector.shape_cast %24 : vector<16x16x32xf32> to vector<256x32xf32>
    %c0_35 = arith.constant 0 : index
    %c3 = arith.constant 3 : index
    %c0_36 = arith.constant 0 : index
    %c0_37 = arith.constant 0 : index
    %26 = vector.load %arg2[%c0_35, %c3, %c0_36, %c0_37] : memref<3x9x32x8xf32, #tpu.memory_space<vmem>>, vector<1x1x32x8xf32>
    %27 = vector.shape_cast %26 : vector<1x1x32x8xf32> to vector<32x8xf32>
    %cst_38 = arith.constant dense<0.000000e+00> : vector<256x8xf32>
    %28 = tpu.matmul %25, %27, %cst_38 {dimension_numbers = #tpu.dot_dimension_numbers<[1], [0], [0], [1], [0, 0, 1, 1], [], []>} : vector<256x32xf32>, vector<32x8xf32>, vector<256x8xf32> -> vector<256x8xf32>
    %29 = arith.addf %23, %28 : vector<256x8xf32>
    %c1_39 = arith.constant 1 : index
    %c1_40 = arith.constant 1 : index
    %c0_41 = arith.constant 0 : index
    %30 = vector.load %arg7[%c1_39, %c1_40, %c0_41] : memref<18x18x32xf32, #tpu.memory_space<vmem>>, vector<16x16x32xf32>
    %31 = vector.shape_cast %30 : vector<16x16x32xf32> to vector<256x32xf32>
    %c0_42 = arith.constant 0 : index
    %c4 = arith.constant 4 : index
    %c0_43 = arith.constant 0 : index
    %c0_44 = arith.constant 0 : index
    %32 = vector.load %arg2[%c0_42, %c4, %c0_43, %c0_44] : memref<3x9x32x8xf32, #tpu.memory_space<vmem>>, vector<1x1x32x8xf32>
    %33 = vector.shape_cast %32 : vector<1x1x32x8xf32> to vector<32x8xf32>
    %cst_45 = arith.constant dense<0.000000e+00> : vector<256x8xf32>
    %34 = tpu.matmul %31, %33, %cst_45 {dimension_numbers = #tpu.dot_dimension_numbers<[1], [0], [0], [1], [0, 0, 1, 1], [], []>} : vector<256x32xf32>, vector<32x8xf32>, vector<256x8xf32> -> vector<256x8xf32>
    %35 = arith.addf %29, %34 : vector<256x8xf32>
    %c1_46 = arith.constant 1 : index
    %c2_47 = arith.constant 2 : index
    %c0_48 = arith.constant 0 : index
    %36 = vector.load %arg7[%c1_46, %c2_47, %c0_48] : memref<18x18x32xf32, #tpu.memory_space<vmem>>, vector<16x16x32xf32>
    %37 = vector.shape_cast %36 : vector<16x16x32xf32> to vector<256x32xf32>
    %c0_49 = arith.constant 0 : index
    %c5 = arith.constant 5 : index
    %c0_50 = arith.constant 0 : index
    %c0_51 = arith.constant 0 : index
    %38 = vector.load %arg2[%c0_49, %c5, %c0_50, %c0_51] : memref<3x9x32x8xf32, #tpu.memory_space<vmem>>, vector<1x1x32x8xf32>
    %39 = vector.shape_cast %38 : vector<1x1x32x8xf32> to vector<32x8xf32>
    %cst_52 = arith.constant dense<0.000000e+00> : vector<256x8xf32>
    %40 = tpu.matmul %37, %39, %cst_52 {dimension_numbers = #tpu.dot_dimension_numbers<[1], [0], [0], [1], [0, 0, 1, 1], [], []>} : vector<256x32xf32>, vector<32x8xf32>, vector<256x8xf32> -> vector<256x8xf32>
    %41 = arith.addf %35, %40 : vector<256x8xf32>
    %c2_53 = arith.constant 2 : index
    %c0_54 = arith.constant 0 : index
    %c0_55 = arith.constant 0 : index
    %42 = vector.load %arg7[%c2_53, %c0_54, %c0_55] : memref<18x18x32xf32, #tpu.memory_space<vmem>>, vector<16x16x32xf32>
    %43 = vector.shape_cast %42 : vector<16x16x32xf32> to vector<256x32xf32>
    %c0_56 = arith.constant 0 : index
    %c6 = arith.constant 6 : index
    %c0_57 = arith.constant 0 : index
    %c0_58 = arith.constant 0 : index
    %44 = vector.load %arg2[%c0_56, %c6, %c0_57, %c0_58] : memref<3x9x32x8xf32, #tpu.memory_space<vmem>>, vector<1x1x32x8xf32>
    %45 = vector.shape_cast %44 : vector<1x1x32x8xf32> to vector<32x8xf32>
    %cst_59 = arith.constant dense<0.000000e+00> : vector<256x8xf32>
    %46 = tpu.matmul %43, %45, %cst_59 {dimension_numbers = #tpu.dot_dimension_numbers<[1], [0], [0], [1], [0, 0, 1, 1], [], []>} : vector<256x32xf32>, vector<32x8xf32>, vector<256x8xf32> -> vector<256x8xf32>
    %47 = arith.addf %41, %46 : vector<256x8xf32>
    %c2_60 = arith.constant 2 : index
    %c1_61 = arith.constant 1 : index
    %c0_62 = arith.constant 0 : index
    %48 = vector.load %arg7[%c2_60, %c1_61, %c0_62] : memref<18x18x32xf32, #tpu.memory_space<vmem>>, vector<16x16x32xf32>
    %49 = vector.shape_cast %48 : vector<16x16x32xf32> to vector<256x32xf32>
    %c0_63 = arith.constant 0 : index
    %c7 = arith.constant 7 : index
    %c0_64 = arith.constant 0 : index
    %c0_65 = arith.constant 0 : index
    %50 = vector.load %arg2[%c0_63, %c7, %c0_64, %c0_65] : memref<3x9x32x8xf32, #tpu.memory_space<vmem>>, vector<1x1x32x8xf32>
    %51 = vector.shape_cast %50 : vector<1x1x32x8xf32> to vector<32x8xf32>
    %cst_66 = arith.constant dense<0.000000e+00> : vector<256x8xf32>
    %52 = tpu.matmul %49, %51, %cst_66 {dimension_numbers = #tpu.dot_dimension_numbers<[1], [0], [0], [1], [0, 0, 1, 1], [], []>} : vector<256x32xf32>, vector<32x8xf32>, vector<256x8xf32> -> vector<256x8xf32>
    %53 = arith.addf %47, %52 : vector<256x8xf32>
    %c2_67 = arith.constant 2 : index
    %c2_68 = arith.constant 2 : index
    %c0_69 = arith.constant 0 : index
    %54 = vector.load %arg7[%c2_67, %c2_68, %c0_69] : memref<18x18x32xf32, #tpu.memory_space<vmem>>, vector<16x16x32xf32>
    %55 = vector.shape_cast %54 : vector<16x16x32xf32> to vector<256x32xf32>
    %c0_70 = arith.constant 0 : index
    %c8 = arith.constant 8 : index
    %c0_71 = arith.constant 0 : index
    %c0_72 = arith.constant 0 : index
    %56 = vector.load %arg2[%c0_70, %c8, %c0_71, %c0_72] : memref<3x9x32x8xf32, #tpu.memory_space<vmem>>, vector<1x1x32x8xf32>
    %57 = vector.shape_cast %56 : vector<1x1x32x8xf32> to vector<32x8xf32>
    %cst_73 = arith.constant dense<0.000000e+00> : vector<256x8xf32>
    %58 = tpu.matmul %55, %57, %cst_73 {dimension_numbers = #tpu.dot_dimension_numbers<[1], [0], [0], [1], [0, 0, 1, 1], [], []>} : vector<256x32xf32>, vector<32x8xf32>, vector<256x8xf32> -> vector<256x8xf32>
    %59 = arith.addf %53, %58 : vector<256x8xf32>
    %c0_74 = arith.constant 0 : index
    %c0_75 = arith.constant 0 : index
    %c0_76 = arith.constant 0 : index
    %60 = vector.load %arg3[%c0_74, %c0_75, %c0_76] : memref<3x1x8xf32, #tpu.memory_space<vmem>>, vector<1x1x8xf32>
    %61 = vector.shape_cast %60 : vector<1x1x8xf32> to vector<1x8xf32>
    %62 = vector.broadcast %61 : vector<1x8xf32> to vector<256x8xf32>
    %63 = arith.addf %59, %62 : vector<256x8xf32>
    %cst_77 = arith.constant 0.000000e+00 : f32
    %64 = vector.broadcast %cst_77 : f32 to vector<256x8xf32>
    %65 = arith.maximumf %63, %64 : vector<256x8xf32>
    %66 = vector.shape_cast %65 : vector<256x8xf32> to vector<16x16x8xf32>
    %c1_78 = arith.constant 1 : index
    %c1_79 = arith.constant 1 : index
    %c8_80 = arith.constant 8 : index
    %67 = vector.load %arg7[%c1_78, %c1_79, %c8_80] : memref<18x18x32xf32, #tpu.memory_space<vmem>>, vector<16x16x8xf32>
    tpu.vector_store %arg7[%c1_78, %c1_79, %c8_80], %66 {strides = array<i32>} : memref<18x18x32xf32, #tpu.memory_space<vmem>>, vector<16x16x8xf32>,
    %cst_81 = arith.constant 0.000000e+00 : f32
    %68 = vector.broadcast %cst_81 : f32 to vector<256x8xf32>
    %c0_82 = arith.constant 0 : index
    %c0_83 = arith.constant 0 : index
    %c0_84 = arith.constant 0 : index
    %69 = vector.load %arg7[%c0_82, %c0_83, %c0_84] : memref<18x18x32xf32, #tpu.memory_space<vmem>>, vector<16x16x32xf32>
    %70 = vector.shape_cast %69 : vector<16x16x32xf32> to vector<256x32xf32>
    %c1_85 = arith.constant 1 : index
    %c0_86 = arith.constant 0 : index
    %c0_87 = arith.constant 0 : index
    %c0_88 = arith.constant 0 : index
    %71 = vector.load %arg2[%c1_85, %c0_86, %c0_87, %c0_88] : memref<3x9x32x8xf32, #tpu.memory_space<vmem>>, vector<1x1x32x8xf32>
    %72 = vector.shape_cast %71 : vector<1x1x32x8xf32> to vector<32x8xf32>
    %cst_89 = arith.constant dense<0.000000e+00> : vector<256x8xf32>
    %73 = tpu.matmul %70, %72, %cst_89 {dimension_numbers = #tpu.dot_dimension_numbers<[1], [0], [0], [1], [0, 0, 1, 1], [], []>} : vector<256x32xf32>, vector<32x8xf32>, vector<256x8xf32> -> vector<256x8xf32>
    %74 = arith.addf %68, %73 : vector<256x8xf32>
    %c0_90 = arith.constant 0 : index
    %c1_91 = arith.constant 1 : index
    %c0_92 = arith.constant 0 : index
    %75 = vector.load %arg7[%c0_90, %c1_91, %c0_92] : memref<18x18x32xf32, #tpu.memory_space<vmem>>, vector<16x16x32xf32>
    %76 = vector.shape_cast %75 : vector<16x16x32xf32> to vector<256x32xf32>
    %c1_93 = arith.constant 1 : index
    %c1_94 = arith.constant 1 : index
    %c0_95 = arith.constant 0 : index
    %c0_96 = arith.constant 0 : index
    %77 = vector.load %arg2[%c1_93, %c1_94, %c0_95, %c0_96] : memref<3x9x32x8xf32, #tpu.memory_space<vmem>>, vector<1x1x32x8xf32>
    %78 = vector.shape_cast %77 : vector<1x1x32x8xf32> to vector<32x8xf32>
    %cst_97 = arith.constant dense<0.000000e+00> : vector<256x8xf32>
    %79 = tpu.matmul %76, %78, %cst_97 {dimension_numbers = #tpu.dot_dimension_numbers<[1], [0], [0], [1], [0, 0, 1, 1], [], []>} : vector<256x32xf32>, vector<32x8xf32>, vector<256x8xf32> -> vector<256x8xf32>
    %80 = arith.addf %74, %79 : vector<256x8xf32>
    %c0_98 = arith.constant 0 : index
    %c2_99 = arith.constant 2 : index
    %c0_100 = arith.constant 0 : index
    %81 = vector.load %arg7[%c0_98, %c2_99, %c0_100] : memref<18x18x32xf32, #tpu.memory_space<vmem>>, vector<16x16x32xf32>
    %82 = vector.shape_cast %81 : vector<16x16x32xf32> to vector<256x32xf32>
    %c1_101 = arith.constant 1 : index
    %c2_102 = arith.constant 2 : index
    %c0_103 = arith.constant 0 : index
    %c0_104 = arith.constant 0 : index
    %83 = vector.load %arg2[%c1_101, %c2_102, %c0_103, %c0_104] : memref<3x9x32x8xf32, #tpu.memory_space<vmem>>, vector<1x1x32x8xf32>
    %84 = vector.shape_cast %83 : vector<1x1x32x8xf32> to vector<32x8xf32>
    %cst_105 = arith.constant dense<0.000000e+00> : vector<256x8xf32>
    %85 = tpu.matmul %82, %84, %cst_105 {dimension_numbers = #tpu.dot_dimension_numbers<[1], [0], [0], [1], [0, 0, 1, 1], [], []>} : vector<256x32xf32>, vector<32x8xf32>, vector<256x8xf32> -> vector<256x8xf32>
    %86 = arith.addf %80, %85 : vector<256x8xf32>
    %c1_106 = arith.constant 1 : index
    %c0_107 = arith.constant 0 : index
    %c0_108 = arith.constant 0 : index
    %87 = vector.load %arg7[%c1_106, %c0_107, %c0_108] : memref<18x18x32xf32, #tpu.memory_space<vmem>>, vector<16x16x32xf32>
    %88 = vector.shape_cast %87 : vector<16x16x32xf32> to vector<256x32xf32>
    %c1_109 = arith.constant 1 : index
    %c3_110 = arith.constant 3 : index
    %c0_111 = arith.constant 0 : index
    %c0_112 = arith.constant 0 : index
    %89 = vector.load %arg2[%c1_109, %c3_110, %c0_111, %c0_112] : memref<3x9x32x8xf32, #tpu.memory_space<vmem>>, vector<1x1x32x8xf32>
    %90 = vector.shape_cast %89 : vector<1x1x32x8xf32> to vector<32x8xf32>
    %cst_113 = arith.constant dense<0.000000e+00> : vector<256x8xf32>
    %91 = tpu.matmul %88, %90, %cst_113 {dimension_numbers = #tpu.dot_dimension_numbers<[1], [0], [0], [1], [0, 0, 1, 1], [], []>} : vector<256x32xf32>, vector<32x8xf32>, vector<256x8xf32> -> vector<256x8xf32>
    %92 = arith.addf %86, %91 : vector<256x8xf32>
    %c1_114 = arith.constant 1 : index
    %c1_115 = arith.constant 1 : index
    %c0_116 = arith.constant 0 : index
    %93 = vector.load %arg7[%c1_114, %c1_115, %c0_116] : memref<18x18x32xf32, #tpu.memory_space<vmem>>, vector<16x16x32xf32>
    %94 = vector.shape_cast %93 : vector<16x16x32xf32> to vector<256x32xf32>
    %c1_117 = arith.constant 1 : index
    %c4_118 = arith.constant 4 : index
    %c0_119 = arith.constant 0 : index
    %c0_120 = arith.constant 0 : index
    %95 = vector.load %arg2[%c1_117, %c4_118, %c0_119, %c0_120] : memref<3x9x32x8xf32, #tpu.memory_space<vmem>>, vector<1x1x32x8xf32>
    %96 = vector.shape_cast %95 : vector<1x1x32x8xf32> to vector<32x8xf32>
    %cst_121 = arith.constant dense<0.000000e+00> : vector<256x8xf32>
    %97 = tpu.matmul %94, %96, %cst_121 {dimension_numbers = #tpu.dot_dimension_numbers<[1], [0], [0], [1], [0, 0, 1, 1], [], []>} : vector<256x32xf32>, vector<32x8xf32>, vector<256x8xf32> -> vector<256x8xf32>
    %98 = arith.addf %92, %97 : vector<256x8xf32>
    %c1_122 = arith.constant 1 : index
    %c2_123 = arith.constant 2 : index
    %c0_124 = arith.constant 0 : index
    %99 = vector.load %arg7[%c1_122, %c2_123, %c0_124] : memref<18x18x32xf32, #tpu.memory_space<vmem>>, vector<16x16x32xf32>
    %100 = vector.shape_cast %99 : vector<16x16x32xf32> to vector<256x32xf32>
    %c1_125 = arith.constant 1 : index
    %c5_126 = arith.constant 5 : index
    %c0_127 = arith.constant 0 : index
    %c0_128 = arith.constant 0 : index
    %101 = vector.load %arg2[%c1_125, %c5_126, %c0_127, %c0_128] : memref<3x9x32x8xf32, #tpu.memory_space<vmem>>, vector<1x1x32x8xf32>
    %102 = vector.shape_cast %101 : vector<1x1x32x8xf32> to vector<32x8xf32>
    %cst_129 = arith.constant dense<0.000000e+00> : vector<256x8xf32>
    %103 = tpu.matmul %100, %102, %cst_129 {dimension_numbers = #tpu.dot_dimension_numbers<[1], [0], [0], [1], [0, 0, 1, 1], [], []>} : vector<256x32xf32>, vector<32x8xf32>, vector<256x8xf32> -> vector<256x8xf32>
    %104 = arith.addf %98, %103 : vector<256x8xf32>
    %c2_130 = arith.constant 2 : index
    %c0_131 = arith.constant 0 : index
    %c0_132 = arith.constant 0 : index
    %105 = vector.load %arg7[%c2_130, %c0_131, %c0_132] : memref<18x18x32xf32, #tpu.memory_space<vmem>>, vector<16x16x32xf32>
    %106 = vector.shape_cast %105 : vector<16x16x32xf32> to vector<256x32xf32>
    %c1_133 = arith.constant 1 : index
    %c6_134 = arith.constant 6 : index
    %c0_135 = arith.constant 0 : index
    %c0_136 = arith.constant 0 : index
    %107 = vector.load %arg2[%c1_133, %c6_134, %c0_135, %c0_136] : memref<3x9x32x8xf32, #tpu.memory_space<vmem>>, vector<1x1x32x8xf32>
    %108 = vector.shape_cast %107 : vector<1x1x32x8xf32> to vector<32x8xf32>
    %cst_137 = arith.constant dense<0.000000e+00> : vector<256x8xf32>
    %109 = tpu.matmul %106, %108, %cst_137 {dimension_numbers = #tpu.dot_dimension_numbers<[1], [0], [0], [1], [0, 0, 1, 1], [], []>} : vector<256x32xf32>, vector<32x8xf32>, vector<256x8xf32> -> vector<256x8xf32>
    %110 = arith.addf %104, %109 : vector<256x8xf32>
    %c2_138 = arith.constant 2 : index
    %c1_139 = arith.constant 1 : index
    %c0_140 = arith.constant 0 : index
    %111 = vector.load %arg7[%c2_138, %c1_139, %c0_140] : memref<18x18x32xf32, #tpu.memory_space<vmem>>, vector<16x16x32xf32>
    %112 = vector.shape_cast %111 : vector<16x16x32xf32> to vector<256x32xf32>
    %c1_141 = arith.constant 1 : index
    %c7_142 = arith.constant 7 : index
    %c0_143 = arith.constant 0 : index
    %c0_144 = arith.constant 0 : index
    %113 = vector.load %arg2[%c1_141, %c7_142, %c0_143, %c0_144] : memref<3x9x32x8xf32, #tpu.memory_space<vmem>>, vector<1x1x32x8xf32>
    %114 = vector.shape_cast %113 : vector<1x1x32x8xf32> to vector<32x8xf32>
    %cst_145 = arith.constant dense<0.000000e+00> : vector<256x8xf32>
    %115 = tpu.matmul %112, %114, %cst_145 {dimension_numbers = #tpu.dot_dimension_numbers<[1], [0], [0], [1], [0, 0, 1, 1], [], []>} : vector<256x32xf32>, vector<32x8xf32>, vector<256x8xf32> -> vector<256x8xf32>
    %116 = arith.addf %110, %115 : vector<256x8xf32>
    %c2_146 = arith.constant 2 : index
    %c2_147 = arith.constant 2 : index
    %c0_148 = arith.constant 0 : index
    %117 = vector.load %arg7[%c2_146, %c2_147, %c0_148] : memref<18x18x32xf32, #tpu.memory_space<vmem>>, vector<16x16x32xf32>
    %118 = vector.shape_cast %117 : vector<16x16x32xf32> to vector<256x32xf32>
    %c1_149 = arith.constant 1 : index
    %c8_150 = arith.constant 8 : index
    %c0_151 = arith.constant 0 : index
    %c0_152 = arith.constant 0 : index
    %119 = vector.load %arg2[%c1_149, %c8_150, %c0_151, %c0_152] : memref<3x9x32x8xf32, #tpu.memory_space<vmem>>, vector<1x1x32x8xf32>
    %120 = vector.shape_cast %119 : vector<1x1x32x8xf32> to vector<32x8xf32>
    %cst_153 = arith.constant dense<0.000000e+00> : vector<256x8xf32>
    %121 = tpu.matmul %118, %120, %cst_153 {dimension_numbers = #tpu.dot_dimension_numbers<[1], [0], [0], [1], [0, 0, 1, 1], [], []>} : vector<256x32xf32>, vector<32x8xf32>, vector<256x8xf32> -> vector<256x8xf32>
    %122 = arith.addf %116, %121 : vector<256x8xf32>
    %c1_154 = arith.constant 1 : index
    %c0_155 = arith.constant 0 : index
    %c0_156 = arith.constant 0 : index
    %123 = vector.load %arg3[%c1_154, %c0_155, %c0_156] : memref<3x1x8xf32, #tpu.memory_space<vmem>>, vector<1x1x8xf32>
    %124 = vector.shape_cast %123 : vector<1x1x8xf32> to vector<1x8xf32>
    %125 = vector.broadcast %124 : vector<1x8xf32> to vector<256x8xf32>
    %126 = arith.addf %122, %125 : vector<256x8xf32>
    %cst_157 = arith.constant 0.000000e+00 : f32
    %127 = vector.broadcast %cst_157 : f32 to vector<256x8xf32>
    %128 = arith.maximumf %126, %127 : vector<256x8xf32>
    %129 = vector.shape_cast %128 : vector<256x8xf32> to vector<16x16x8xf32>
    %c1_158 = arith.constant 1 : index
    %c1_159 = arith.constant 1 : index
    %c16 = arith.constant 16 : index
    %130 = vector.load %arg7[%c1_158, %c1_159, %c16] : memref<18x18x32xf32, #tpu.memory_space<vmem>>, vector<16x16x8xf32>
    tpu.vector_store %arg7[%c1_158, %c1_159, %c16], %129 {strides = array<i32>} : memref<18x18x32xf32, #tpu.memory_space<vmem>>, vector<16x16x8xf32>,
    %cst_160 = arith.constant 0.000000e+00 : f32
    %131 = vector.broadcast %cst_160 : f32 to vector<256x8xf32>
    %c0_161 = arith.constant 0 : index
    %c0_162 = arith.constant 0 : index
    %c0_163 = arith.constant 0 : index
    %132 = vector.load %arg7[%c0_161, %c0_162, %c0_163] : memref<18x18x32xf32, #tpu.memory_space<vmem>>, vector<16x16x32xf32>
    %133 = vector.shape_cast %132 : vector<16x16x32xf32> to vector<256x32xf32>
    %c2_164 = arith.constant 2 : index
    %c0_165 = arith.constant 0 : index
    %c0_166 = arith.constant 0 : index
    %c0_167 = arith.constant 0 : index
    %134 = vector.load %arg2[%c2_164, %c0_165, %c0_166, %c0_167] : memref<3x9x32x8xf32, #tpu.memory_space<vmem>>, vector<1x1x32x8xf32>
    %135 = vector.shape_cast %134 : vector<1x1x32x8xf32> to vector<32x8xf32>
    %cst_168 = arith.constant dense<0.000000e+00> : vector<256x8xf32>
    %136 = tpu.matmul %133, %135, %cst_168 {dimension_numbers = #tpu.dot_dimension_numbers<[1], [0], [0], [1], [0, 0, 1, 1], [], []>} : vector<256x32xf32>, vector<32x8xf32>, vector<256x8xf32> -> vector<256x8xf32>
    %137 = arith.addf %131, %136 : vector<256x8xf32>
    %c0_169 = arith.constant 0 : index
    %c1_170 = arith.constant 1 : index
    %c0_171 = arith.constant 0 : index
    %138 = vector.load %arg7[%c0_169, %c1_170, %c0_171] : memref<18x18x32xf32, #tpu.memory_space<vmem>>, vector<16x16x32xf32>
    %139 = vector.shape_cast %138 : vector<16x16x32xf32> to vector<256x32xf32>
    %c2_172 = arith.constant 2 : index
    %c1_173 = arith.constant 1 : index
    %c0_174 = arith.constant 0 : index
    %c0_175 = arith.constant 0 : index
    %140 = vector.load %arg2[%c2_172, %c1_173, %c0_174, %c0_175] : memref<3x9x32x8xf32, #tpu.memory_space<vmem>>, vector<1x1x32x8xf32>
    %141 = vector.shape_cast %140 : vector<1x1x32x8xf32> to vector<32x8xf32>
    %cst_176 = arith.constant dense<0.000000e+00> : vector<256x8xf32>
    %142 = tpu.matmul %139, %141, %cst_176 {dimension_numbers = #tpu.dot_dimension_numbers<[1], [0], [0], [1], [0, 0, 1, 1], [], []>} : vector<256x32xf32>, vector<32x8xf32>, vector<256x8xf32> -> vector<256x8xf32>
    %143 = arith.addf %137, %142 : vector<256x8xf32>
    %c0_177 = arith.constant 0 : index
    %c2_178 = arith.constant 2 : index
    %c0_179 = arith.constant 0 : index
    %144 = vector.load %arg7[%c0_177, %c2_178, %c0_179] : memref<18x18x32xf32, #tpu.memory_space<vmem>>, vector<16x16x32xf32>
    %145 = vector.shape_cast %144 : vector<16x16x32xf32> to vector<256x32xf32>
    %c2_180 = arith.constant 2 : index
    %c2_181 = arith.constant 2 : index
    %c0_182 = arith.constant 0 : index
    %c0_183 = arith.constant 0 : index
    %146 = vector.load %arg2[%c2_180, %c2_181, %c0_182, %c0_183] : memref<3x9x32x8xf32, #tpu.memory_space<vmem>>, vector<1x1x32x8xf32>
    %147 = vector.shape_cast %146 : vector<1x1x32x8xf32> to vector<32x8xf32>
    %cst_184 = arith.constant dense<0.000000e+00> : vector<256x8xf32>
    %148 = tpu.matmul %145, %147, %cst_184 {dimension_numbers = #tpu.dot_dimension_numbers<[1], [0], [0], [1], [0, 0, 1, 1], [], []>} : vector<256x32xf32>, vector<32x8xf32>, vector<256x8xf32> -> vector<256x8xf32>
    %149 = arith.addf %143, %148 : vector<256x8xf32>
    %c1_185 = arith.constant 1 : index
    %c0_186 = arith.constant 0 : index
    %c0_187 = arith.constant 0 : index
    %150 = vector.load %arg7[%c1_185, %c0_186, %c0_187] : memref<18x18x32xf32, #tpu.memory_space<vmem>>, vector<16x16x32xf32>
    %151 = vector.shape_cast %150 : vector<16x16x32xf32> to vector<256x32xf32>
    %c2_188 = arith.constant 2 : index
    %c3_189 = arith.constant 3 : index
    %c0_190 = arith.constant 0 : index
    %c0_191 = arith.constant 0 : index
    %152 = vector.load %arg2[%c2_188, %c3_189, %c0_190, %c0_191] : memref<3x9x32x8xf32, #tpu.memory_space<vmem>>, vector<1x1x32x8xf32>
    %153 = vector.shape_cast %152 : vector<1x1x32x8xf32> to vector<32x8xf32>
    %cst_192 = arith.constant dense<0.000000e+00> : vector<256x8xf32>
    %154 = tpu.matmul %151, %153, %cst_192 {dimension_numbers = #tpu.dot_dimension_numbers<[1], [0], [0], [1], [0, 0, 1, 1], [], []>} : vector<256x32xf32>, vector<32x8xf32>, vector<256x8xf32> -> vector<256x8xf32>
    %155 = arith.addf %149, %154 : vector<256x8xf32>
    %c1_193 = arith.constant 1 : index
    %c1_194 = arith.constant 1 : index
    %c0_195 = arith.constant 0 : index
    %156 = vector.load %arg7[%c1_193, %c1_194, %c0_195] : memref<18x18x32xf32, #tpu.memory_space<vmem>>, vector<16x16x32xf32>
    %157 = vector.shape_cast %156 : vector<16x16x32xf32> to vector<256x32xf32>
    %c2_196 = arith.constant 2 : index
    %c4_197 = arith.constant 4 : index
    %c0_198 = arith.constant 0 : index
    %c0_199 = arith.constant 0 : index
    %158 = vector.load %arg2[%c2_196, %c4_197, %c0_198, %c0_199] : memref<3x9x32x8xf32, #tpu.memory_space<vmem>>, vector<1x1x32x8xf32>
    %159 = vector.shape_cast %158 : vector<1x1x32x8xf32> to vector<32x8xf32>
    %cst_200 = arith.constant dense<0.000000e+00> : vector<256x8xf32>
    %160 = tpu.matmul %157, %159, %cst_200 {dimension_numbers = #tpu.dot_dimension_numbers<[1], [0], [0], [1], [0, 0, 1, 1], [], []>} : vector<256x32xf32>, vector<32x8xf32>, vector<256x8xf32> -> vector<256x8xf32>
    %161 = arith.addf %155, %160 : vector<256x8xf32>
    %c1_201 = arith.constant 1 : index
    %c2_202 = arith.constant 2 : index
    %c0_203 = arith.constant 0 : index
    %162 = vector.load %arg7[%c1_201, %c2_202, %c0_203] : memref<18x18x32xf32, #tpu.memory_space<vmem>>, vector<16x16x32xf32>
    %163 = vector.shape_cast %162 : vector<16x16x32xf32> to vector<256x32xf32>
    %c2_204 = arith.constant 2 : index
    %c5_205 = arith.constant 5 : index
    %c0_206 = arith.constant 0 : index
    %c0_207 = arith.constant 0 : index
    %164 = vector.load %arg2[%c2_204, %c5_205, %c0_206, %c0_207] : memref<3x9x32x8xf32, #tpu.memory_space<vmem>>, vector<1x1x32x8xf32>
    %165 = vector.shape_cast %164 : vector<1x1x32x8xf32> to vector<32x8xf32>
    %cst_208 = arith.constant dense<0.000000e+00> : vector<256x8xf32>
    %166 = tpu.matmul %163, %165, %cst_208 {dimension_numbers = #tpu.dot_dimension_numbers<[1], [0], [0], [1], [0, 0, 1, 1], [], []>} : vector<256x32xf32>, vector<32x8xf32>, vector<256x8xf32> -> vector<256x8xf32>
    %167 = arith.addf %161, %166 : vector<256x8xf32>
    %c2_209 = arith.constant 2 : index
    %c0_210 = arith.constant 0 : index
    %c0_211 = arith.constant 0 : index
    %168 = vector.load %arg7[%c2_209, %c0_210, %c0_211] : memref<18x18x32xf32, #tpu.memory_space<vmem>>, vector<16x16x32xf32>
    %169 = vector.shape_cast %168 : vector<16x16x32xf32> to vector<256x32xf32>
    %c2_212 = arith.constant 2 : index
    %c6_213 = arith.constant 6 : index
    %c0_214 = arith.constant 0 : index
    %c0_215 = arith.constant 0 : index
    %170 = vector.load %arg2[%c2_212, %c6_213, %c0_214, %c0_215] : memref<3x9x32x8xf32, #tpu.memory_space<vmem>>, vector<1x1x32x8xf32>
    %171 = vector.shape_cast %170 : vector<1x1x32x8xf32> to vector<32x8xf32>
    %cst_216 = arith.constant dense<0.000000e+00> : vector<256x8xf32>
    %172 = tpu.matmul %169, %171, %cst_216 {dimension_numbers = #tpu.dot_dimension_numbers<[1], [0], [0], [1], [0, 0, 1, 1], [], []>} : vector<256x32xf32>, vector<32x8xf32>, vector<256x8xf32> -> vector<256x8xf32>
    %173 = arith.addf %167, %172 : vector<256x8xf32>
    %c2_217 = arith.constant 2 : index
    %c1_218 = arith.constant 1 : index
    %c0_219 = arith.constant 0 : index
    %174 = vector.load %arg7[%c2_217, %c1_218, %c0_219] : memref<18x18x32xf32, #tpu.memory_space<vmem>>, vector<16x16x32xf32>
    %175 = vector.shape_cast %174 : vector<16x16x32xf32> to vector<256x32xf32>
    %c2_220 = arith.constant 2 : index
    %c7_221 = arith.constant 7 : index
    %c0_222 = arith.constant 0 : index
    %c0_223 = arith.constant 0 : index
    %176 = vector.load %arg2[%c2_220, %c7_221, %c0_222, %c0_223] : memref<3x9x32x8xf32, #tpu.memory_space<vmem>>, vector<1x1x32x8xf32>
    %177 = vector.shape_cast %176 : vector<1x1x32x8xf32> to vector<32x8xf32>
    %cst_224 = arith.constant dense<0.000000e+00> : vector<256x8xf32>
    %178 = tpu.matmul %175, %177, %cst_224 {dimension_numbers = #tpu.dot_dimension_numbers<[1], [0], [0], [1], [0, 0, 1, 1], [], []>} : vector<256x32xf32>, vector<32x8xf32>, vector<256x8xf32> -> vector<256x8xf32>
    %179 = arith.addf %173, %178 : vector<256x8xf32>
    %c2_225 = arith.constant 2 : index
    %c2_226 = arith.constant 2 : index
    %c0_227 = arith.constant 0 : index
    %180 = vector.load %arg7[%c2_225, %c2_226, %c0_227] : memref<18x18x32xf32, #tpu.memory_space<vmem>>, vector<16x16x32xf32>
    %181 = vector.shape_cast %180 : vector<16x16x32xf32> to vector<256x32xf32>
    %c2_228 = arith.constant 2 : index
    %c8_229 = arith.constant 8 : index
    %c0_230 = arith.constant 0 : index
    %c0_231 = arith.constant 0 : index
    %182 = vector.load %arg2[%c2_228, %c8_229, %c0_230, %c0_231] : memref<3x9x32x8xf32, #tpu.memory_space<vmem>>, vector<1x1x32x8xf32>
    %183 = vector.shape_cast %182 : vector<1x1x32x8xf32> to vector<32x8xf32>
    %cst_232 = arith.constant dense<0.000000e+00> : vector<256x8xf32>
    %184 = tpu.matmul %181, %183, %cst_232 {dimension_numbers = #tpu.dot_dimension_numbers<[1], [0], [0], [1], [0, 0, 1, 1], [], []>} : vector<256x32xf32>, vector<32x8xf32>, vector<256x8xf32> -> vector<256x8xf32>
    %185 = arith.addf %179, %184 : vector<256x8xf32>
    %c2_233 = arith.constant 2 : index
    %c0_234 = arith.constant 0 : index
    %c0_235 = arith.constant 0 : index
    %186 = vector.load %arg3[%c2_233, %c0_234, %c0_235] : memref<3x1x8xf32, #tpu.memory_space<vmem>>, vector<1x1x8xf32>
    %187 = vector.shape_cast %186 : vector<1x1x8xf32> to vector<1x8xf32>
    %188 = vector.broadcast %187 : vector<1x8xf32> to vector<256x8xf32>
    %189 = arith.addf %185, %188 : vector<256x8xf32>
    %cst_236 = arith.constant 0.000000e+00 : f32
    %190 = vector.broadcast %cst_236 : f32 to vector<256x8xf32>
    %191 = arith.maximumf %189, %190 : vector<256x8xf32>
    %192 = vector.shape_cast %191 : vector<256x8xf32> to vector<16x16x8xf32>
    %c1_237 = arith.constant 1 : index
    %c1_238 = arith.constant 1 : index
    %c24 = arith.constant 24 : index
    %193 = vector.load %arg7[%c1_237, %c1_238, %c24] : memref<18x18x32xf32, #tpu.memory_space<vmem>>, vector<16x16x8xf32>
    tpu.vector_store %arg7[%c1_237, %c1_238, %c24], %192 {strides = array<i32>} : memref<18x18x32xf32, #tpu.memory_space<vmem>>, vector<16x16x8xf32>,
    %c1_239 = arith.constant 1 : index
    %c1_240 = arith.constant 1 : index
    %c0_241 = arith.constant 0 : index
    %194 = vector.load %arg7[%c1_239, %c1_240, %c0_241] : memref<18x18x32xf32, #tpu.memory_space<vmem>>, vector<16x16x32xf32>
    %195 = vector.shape_cast %194 : vector<16x16x32xf32> to vector<256x32xf32>
    %c0_242 = arith.constant 0 : index
    %c0_243 = arith.constant 0 : index
    %196 = vector.load %arg4[%c0_242, %c0_243] : memref<32x8xf32, #tpu.memory_space<vmem>>, vector<32x8xf32>
    %cst_244 = arith.constant dense<0.000000e+00> : vector<256x8xf32>
    %197 = tpu.matmul %195, %196, %cst_244 {dimension_numbers = #tpu.dot_dimension_numbers<[1], [0], [0], [1], [0, 0, 1, 1], [], []>} : vector<256x32xf32>, vector<32x8xf32>, vector<256x8xf32> -> vector<256x8xf32>
    %c0_245 = arith.constant 0 : index
    %c0_246 = arith.constant 0 : index
    %198 = vector.load %arg5[%c0_245, %c0_246] : memref<1x8xf32, #tpu.memory_space<vmem>>, vector<1x8xf32>
    %199 = vector.broadcast %198 : vector<1x8xf32> to vector<256x8xf32>
    %200 = arith.addf %197, %199 : vector<256x8xf32>
    %201 = vector.extract_strided_slice %195 {offsets = [0, 0], sizes = [256, 8], strides = [1, 1]} : vector<256x32xf32> to vector<256x8xf32>
    %202 = arith.addf %200, %201 : vector<256x8xf32>
    %203 = vector.shape_cast %202 : vector<256x8xf32> to vector<16x16x8xf32>
    %c0_247 = arith.constant 0 : index
    %c0_248 = arith.constant 0 : index
    %c0_249 = arith.constant 0 : index
    %c0_250 = arith.constant 0 : index
    %204 = vector.load %arg6[%c0_247, %c0_248, %c0_249, %c0_250] : memref<1x16x16x8xf32, #tpu.memory_space<vmem>>, vector<1x16x16x8xf32>
    %205 = vector.shape_cast %204 : vector<1x16x16x8xf32> to vector<16x16x8xf32>
    %206 = vector.shape_cast %203 : vector<16x16x8xf32> to vector<1x16x16x8xf32>
    tpu.vector_store %arg6[%c0_247, %c0_248, %c0_249, %c0_250], %206 {strides = array<i32>} : memref<1x16x16x8xf32, #tpu.memory_space<vmem>>, vector<1x16x16x8xf32>,
    return
  }
  func.func @transform_0(%arg0: i32) -> (i32, i32, i32, i32) {
    %c0_i32 = arith.constant 0 : i32
    %c0_i32_0 = arith.constant 0 : i32
    %c0_i32_1 = arith.constant 0 : i32
    %c0_i32_2 = arith.constant 0 : i32
    return %arg0, %c0_i32, %c0_i32_0, %c0_i32_1 : i32, i32, i32, i32
  }
  func.func @transform_1(%arg0: i32) -> (i32, i32, i32, i32) {
    %c0_i32 = arith.constant 0 : i32
    %c0_i32_0 = arith.constant 0 : i32
    %c0_i32_1 = arith.constant 0 : i32
    %c0_i32_2 = arith.constant 0 : i32
    %c0_i32_3 = arith.constant 0 : i32
    return %c0_i32, %c0_i32_0, %c0_i32_1, %c0_i32_2 : i32, i32, i32, i32
  }
  func.func @transform_2(%arg0: i32) -> (i32, i32, i32) {
    %c0_i32 = arith.constant 0 : i32
    %c0_i32_0 = arith.constant 0 : i32
    %c0_i32_1 = arith.constant 0 : i32
    %c0_i32_2 = arith.constant 0 : i32
    return %c0_i32, %c0_i32_0, %c0_i32_1 : i32, i32, i32
  }
  func.func @transform_3(%arg0: i32) -> (i32, i32) {
    %c0_i32 = arith.constant 0 : i32
    %c0_i32_0 = arith.constant 0 : i32
    %c0_i32_1 = arith.constant 0 : i32
    return %c0_i32, %c0_i32_0 : i32, i32
  }
  func.func @transform_4(%arg0: i32) -> (i32, i32) {
    %c0_i32 = arith.constant 0 : i32
    %c0_i32_0 = arith.constant 0 : i32
    %c0_i32_1 = arith.constant 0 : i32
    return %c0_i32, %c0_i32_0 : i32, i32
  }
  func.func @transform_5(%arg0: i32) -> (i32, i32, i32, i32) {
    %c0_i32 = arith.constant 0 : i32
    %c0_i32_0 = arith.constant 0 : i32
    %c0_i32_1 = arith.constant 0 : i32
    %c0_i32_2 = arith.constant 0 : i32
    return %arg0, %c0_i32, %c0_i32_0, %c0_i32_1 : i32, i32, i32, i32
  }
}

</mosaic_0001>

<llo_original>
// kernel: rdb_forward.1
$region0: #{rdb_forward.1}
  #allocation0 [shape = 'u32[]', space=smem, size = 0x4, offset = 0x4, fixed_abs, tag = 'smem constant byte address 0x4 - core index']
  #allocation1 [shape = 'u32[72,128]{1,0:T(1,128)}', space=vmem, size = 0x9000, scoped, tag = 'internal scratch']
  #allocation2 [shape = 'f32[18,18,32]{2,1,0:T(8,128)}', space=vmem, size = 0x36000, scoped, tag = 'scratch operand']
  %s0 = inlined_call_operand.vmem [shape: f32[2,16,16,8], index: 0, kind: input, shape index: {}]
  %s1 = inlined_call_operand.vmem [shape: f32[3,9,32,8], index: 1, kind: input, shape index: {}]
  %s2 = inlined_call_operand.vmem [shape: f32[3,1,8], index: 2, kind: input, shape index: {}]
  %s3 = inlined_call_operand.vmem [shape: f32[32,8], index: 3, kind: input, shape index: {}]
  %s4 = inlined_call_operand.vmem [shape: f32[1,8], index: 4, kind: input, shape index: {}]
  %s5 = inlined_call_operand.vmem [shape: f32[2,16,16,8], index: 5, kind: output, shape index: {}]
  %s6 = sld [smem:[#allocation0]]
  $region53: #{rdb_forward.1} parent=0
    _
  %s8 = ssub.s32 1, %s6
  %s9 = scalar_select 0, %s8, %s6
  loop: start=0, step=1, limit=4
  $region2: #{rdb_forward.1} parent=0 // loop_pre_header
    _
  $region3: #{rdb_forward.1} parent=0 // loop_header
    %s11 = sphi 0, %s15
    %p12 = scmp.ge.s32.totalorder %s11, 4
    %s21 = sphi 0, %s23
    %s24 = sphi 0, %s21
    %s25 = sphi 0, %s24
    %s41 = sphi 0, %s25
    %s45 = sphi 0, %s45
    %s47 = sphi 0, %s45
    %s48 = sphi 0, %s47
    %s62 = sphi 0, %s48
    %s66 = sphi 0, %s66
    %s68 = sphi 0, %s66
    %s69 = sphi 0, %s68
    %s83 = sphi 0, %s69
    %s87 = sphi 0, %s87
    %s89 = sphi 0, %s87
    %s90 = sphi 0, %s89
    %s104 = sphi 0, %s90
    %s108 = sphi 0, %s108
    %s110 = sphi 0, %s108
    %s111 = sphi 0, %s110
    %s125 = sphi 0, %s111
    %s131 = sphi 0, %s133
    %s134 = sphi 0, %s131
    %s135 = sphi 0, %s134
    %s151 = sphi 0, %s135
  $region4: #{rdb_forward.1} parent=0 // loop_header_branch
    %14 = sbr.rel (%p12) target = $region8
  $region5: #{rdb_forward.1} parent=0 // loop_body
    %s16 = ssub.s32 %s11, 1
    %s17 = ssub.s32 %s11, 2
    %s18 = sadd.s32 %s11, 1
    %s19 = ssub.s32 %s11, %s18
    %p20 = scmp.eq.s32.totalorder %s19, 0
    %s22 = sadd.s32 %s21, 1
    %s23 = scalar_select %p20, %s21, %s22
    %p26 = pneg %p20
    %p27 = scmp.eq.s32.totalorder %s11, 1
    %p28 = por %p26, %p27
    %p29 = scmp.ne.s32.totalorder %s21, %s24
    %p30 = scmp.eq.s32.totalorder %s11, 0
    %p31 = por %p29, %p30
    %p32 = scmp.ne.s32.totalorder %s21, %s24
    %p33 = scmp.eq.s32.totalorder %s16, 1
    %p34 = por %p32, %p33
    %p35 = scmp.ne.s32.totalorder %s24, %s25
    %p36 = scmp.eq.s32.totalorder %s16, 0
    %p37 = por %p35, %p36
    %p38 = scmp.ne.s32.totalorder %s24, %s25
    %p39 = scmp.eq.s32.totalorder %s17, 1
    %p40 = por %p38, %p39
    %p42 = scmp.ne.s32.totalorder %s25, %s41
    %p43 = scmp.eq.s32.totalorder %s17, 0
    %p44 = por %p42, %p43
    %s46 = sadd.s32 %s45, 1
    %p49 = scmp.eq.s32.totalorder %s11, 1
    %p50 = scmp.ne.s32.totalorder %s45, %s47
    %p51 = scmp.eq.s32.totalorder %s11, 0
    %p52 = por %p50, %p51
    %p53 = scmp.ne.s32.totalorder %s45, %s47
    %p54 = scmp.eq.s32.totalorder %s16, 1
    %p55 = por %p53, %p54
    %p56 = scmp.ne.s32.totalorder %s47, %s48
    %p57 = scmp.eq.s32.totalorder %s16, 0
    %p58 = por %p56, %p57
    %p59 = scmp.ne.s32.totalorder %s47, %s48
    %p60 = scmp.eq.s32.totalorder %s17, 1
    %p61 = por %p59, %p60
    %p63 = scmp.ne.s32.totalorder %s48, %s62
    %p64 = scmp.eq.s32.totalorder %s17, 0
    %p65 = por %p63, %p64
    %s67 = sadd.s32 %s66, 1
    %p70 = scmp.eq.s32.totalorder %s11, 1
    %p71 = scmp.ne.s32.totalorder %s66, %s68
    %p72 = scmp.eq.s32.totalorder %s11, 0
    %p73 = por %p71, %p72
    %p74 = scmp.ne.s32.totalorder %s66, %s68
    %p75 = scmp.eq.s32.totalorder %s16, 1
    %p76 = por %p74, %p75
    %p77 = scmp.ne.s32.totalorder %s68, %s69
    %p78 = scmp.eq.s32.totalorder %s16, 0
    %p79 = por %p77, %p78
    %p80 = scmp.ne.s32.totalorder %s68, %s69
    %p81 = scmp.eq.s32.totalorder %s17, 1
    %p82 = por %p80, %p81
    %p84 = scmp.ne.s32.totalorder %s69, %s83
    %p85 = scmp.eq.s32.totalorder %s17, 0
    %p86 = por %p84, %p85
    %s88 = sadd.s32 %s87, 1
    %p91 = scmp.eq.s32.totalorder %s11, 1
    %p92 = scmp.ne.s32.totalorder %s87, %s89
    %p93 = scmp.eq.s32.totalorder %s11, 0
    %p94 = por %p92, %p93
    %p95 = scmp.ne.s32.totalorder %s87, %s89
    %p96 = scmp.eq.s32.totalorder %s16, 1
    %p97 = por %p95, %p96
    %p98 = scmp.ne.s32.totalorder %s89, %s90
    %p99 = scmp.eq.s32.totalorder %s16, 0
    %p100 = por %p98, %p99
    %p101 = scmp.ne.s32.totalorder %s89, %s90
    %p102 = scmp.eq.s32.totalorder %s17, 1
    %p103 = por %p101, %p102
    %p105 = scmp.ne.s32.totalorder %s90, %s104
    %p106 = scmp.eq.s32.totalorder %s17, 0
    %p107 = por %p105, %p106
    %s109 = sadd.s32 %s108, 1
    %p112 = scmp.eq.s32.totalorder %s11, 1
    %p113 = scmp.ne.s32.totalorder %s108, %s110
    %p114 = scmp.eq.s32.totalorder %s11, 0
    %p115 = por %p113, %p114
    %p116 = scmp.ne.s32.totalorder %s108, %s110
    %p117 = scmp.eq.s32.totalorder %s16, 1
    %p118 = por %p116, %p117
    %p119 = scmp.ne.s32.totalorder %s110, %s111
    %p120 = scmp.eq.s32.totalorder %s16, 0
    %p121 = por %p119, %p120
    %p122 = scmp.ne.s32.totalorder %s110, %s111
    %p123 = scmp.eq.s32.totalorder %s17, 1
    %p124 = por %p122, %p123
    %p126 = scmp.ne.s32.totalorder %s111, %s125
    %p127 = scmp.eq.s32.totalorder %s17, 0
    %p128 = por %p126, %p127
    %s129 = ssub.s32 %s11, %s18
    %p130 = scmp.eq.s32.totalorder %s129, 0
    %s132 = sadd.s32 %s131, 1
    %s133 = scalar_select %p130, %s131, %s132
    %p136 = pneg %p130
    %p137 = scmp.eq.s32.totalorder %s11, 1
    %p138 = por %p136, %p137
    %p139 = scmp.ne.s32.totalorder %s131, %s134
    %p140 = scmp.eq.s32.totalorder %s11, 0
    %p141 = por %p139, %p140
    %p142 = scmp.ne.s32.totalorder %s131, %s134
    %p143 = scmp.eq.s32.totalorder %s16, 1
    %p144 = por %p142, %p143
    %p145 = scmp.ne.s32.totalorder %s134, %s135
    %p146 = scmp.eq.s32.totalorder %s16, 0
    %p147 = por %p145, %p146
    %p148 = scmp.ne.s32.totalorder %s134, %s135
    %p149 = scmp.eq.s32.totalorder %s17, 1
    %p150 = por %p148, %p149
    %p152 = scmp.ne.s32.totalorder %s135, %s151
    %p153 = scmp.eq.s32.totalorder %s17, 0
    %p154 = por %p152, %p153
    %p155 = scmp.le.s32.totalorder 1, %s11
    %p156 = scmp.lt.s32.totalorder %s11, 3
    %p157 = pnand %p155, %p156
    %p158 = pneg %p157
    // Predicated region
    $region9: #{rdb_forward.1} parent=5 // pred_check
      _
    $region10: #{rdb_forward.1} parent=5 // pred_check_branch
      %160 = sbr.rel (%p157) target = $region12
    $region11: #{rdb_forward.1} parent=5 // pred_region
      %s161 = ssub.s32 %s11, 1
      // Predicated region
      $region13: #{rdb_forward.1} parent=11 // pred_check
        %p162 = pneg %p58
      $region14: #{rdb_forward.1} parent=11 // pred_check_branch
        %164 = sbr.rel (%p162) target = $region16
      $region15: #{rdb_forward.1} parent=11 // pred_region
        _
      $region16: #{rdb_forward.1} parent=11 // pred_fallthru
        _
      // Predicated region
      $region17: #{rdb_forward.1} parent=11 // pred_check
        %p165 = pneg %p79
      $region18: #{rdb_forward.1} parent=11 // pred_check_branch
        %167 = sbr.rel (%p165) target = $region20
      $region19: #{rdb_forward.1} parent=11 // pred_region
        _
      $region20: #{rdb_forward.1} parent=11 // pred_fallthru
        _
      // Predicated region
      $region21: #{rdb_forward.1} parent=11 // pred_check
        %p168 = pneg %p100
      $region22: #{rdb_forward.1} parent=11 // pred_check_branch
        %170 = sbr.rel (%p168) target = $region24
      $region23: #{rdb_forward.1} parent=11 // pred_region
        _
      $region24: #{rdb_forward.1} parent=11 // pred_fallthru
        _
      // Predicated region
      $region25: #{rdb_forward.1} parent=11 // pred_check
        %p171 = pneg %p121
      $region26: #{rdb_forward.1} parent=11 // pred_check_branch
        %173 = sbr.rel (%p171) target = $region28
      $region27: #{rdb_forward.1} parent=11 // pred_region
        _
      $region28: #{rdb_forward.1} parent=11 // pred_fallthru
        _
    $region12: #{rdb_forward.1} parent=5 // pred_fallthru
      _
    %p174 = scmp.lt.s32.totalorder %s11, 2
    // Predicated region
    $region29: #{rdb_forward.1} parent=5 // pred_check
      %p175 = pneg %p174
    $region30: #{rdb_forward.1} parent=5 // pred_check_branch
      %177 = sbr.rel (%p175) target = $region32
    $region31: #{rdb_forward.1} parent=5 // pred_region
      // Predicated region
      $region33: #{rdb_forward.1} parent=31 // pred_check
        %p178 = pneg %p31
      $region34: #{rdb_forward.1} parent=31 // pred_check_branch
        %180 = sbr.rel (%p178) target = $region36
      $region35: #{rdb_forward.1} parent=31 // pred_region
        %p181 = scmp.lt.s32.totalorder %s11, 1
        %s182 = scalar_select %p181, %s11, 1
        %s183 = smul.addr %s182, 32
        %s184 = smul.addr %s183, 8
        %s185 = scalar_lea.vmem %s0, %s184
      $region36: #{rdb_forward.1} parent=31 // pred_fallthru
        _
    $region32: #{rdb_forward.1} parent=5 // pred_fallthru
      _
    %p186 = scmp.le.s32.totalorder 1, %s11
    %p187 = scmp.lt.s32.totalorder %s11, 3
    %p188 = pnand %p186, %p187
    %p189 = pneg %p188
    // Predicated region
    $region37: #{rdb_forward.1} parent=5 // pred_check
      _
    $region38: #{rdb_forward.1} parent=5 // pred_check_branch
      %191 = sbr.rel (%p188) target = $region40
    $region39: #{rdb_forward.1} parent=5 // pred_region
      %s192 = ssub.s32 %s11, 1
      %p193 = scmp.lt.s32.totalorder %s16, 1
      %s194 = scalar_select %p193, %s16, 1
      %s195 = smul.addr %s194, 32
      %s196 = smul.addr %s195, 8
      %s197 = scalar_lea.vmem %s0, %s196
      %p198 = pneg %p37
      %p199 = pneg %p34
      %p200 = pneg %p58
      %p201 = pneg %p55
      %p202 = pneg %p79
      %p203 = pneg %p76
      %p204 = pneg %p100
      %p205 = pneg %p97
      %p206 = pneg %p121
      %p207 = pneg %p118
      %p208 = pneg %p147
      %p209 = pneg %p144
      %p210 = scmp.lt.s32.totalorder %s16, 1
      %s211 = scalar_select %p210, %s16, 1
      %s212 = smul.addr %s211, 32
      %s213 = smul.addr %s212, 8
      %s214 = scalar_lea.vmem %s5, %s213
      %p215 = scmp.lt.s32.totalorder %s16, 1
      %s216 = scalar_select %p215, %s16, 1
      %s217 = smul.addr %s216, 32
      %s218 = smul.addr %s217, 8
      %s219 = scalar_lea.vmem %s0, %s218
      %p220 = scmp.lt.s32.totalorder %s16, 1
      %s221 = scalar_select %p220, %s16, 1
      %s222 = smul.addr %s221, 32
      %s223 = smul.addr %s222, 8
      %s224 = scalar_lea.vmem %s5, %s223
      %vm225 = vcmask 261120
      %226 = vst.msk [vmem:[#allocation2] sm:$0xff] %vm225, 0.0
      %227 = vst.msk [vmem:[#allocation2 + $0x8] sm:$0xff] %vm225, 0.0
      %vm228 = vcmask 254976
      %229 = vst.msk [vmem:[#allocation2 + $0x10] sm:$0x3] %vm228, 0.0
      %230 = vst.msk [vmem:[#allocation2 + $0x18] sm:$0xff] %vm225, 0.0
      %231 = vst.msk [vmem:[#allocation2 + $0x20] sm:$0xff] %vm225, 0.0
      %232 = vst.msk [vmem:[#allocation2 + $0x28] sm:$0x3] %vm228, 0.0
      %233 = vst.msk [vmem:[#allocation2 + $0x30] sm:$0xff] %vm225, 0.0
      %234 = vst.msk [vmem:[#allocation2 + $0x38] sm:$0xff] %vm225, 0.0
      %235 = vst.msk [vmem:[#allocation2 + $0x40] sm:$0x3] %vm228, 0.0
      %236 = vst.msk [vmem:[#allocation2 + $0x48] sm:$0xff] %vm225, 0.0
      %237 = vst.msk [vmem:[#allocation2 + $0x50] sm:$0xff] %vm225, 0.0
      %238 = vst.msk [vmem:[#allocation2 + $0x58] sm:$0x3] %vm228, 0.0
      %239 = vst.msk [vmem:[#allocation2 + $0x60] sm:$0xff] %vm225, 0.0
      %240 = vst.msk [vmem:[#allocation2 + $0x68] sm:$0xff] %vm225, 0.0
      %241 = vst.msk [vmem:[#allocation2 + $0x70] sm:$0x3] %vm228, 0.0
      %242 = vst.msk [vmem:[#allocation2 + $0x78] sm:$0xff] %vm225, 0.0
      %243 = vst.msk [vmem:[#allocation2 + $0x80] sm:$0xff] %vm225, 0.0
      %244 = vst.msk [vmem:[#allocation2 + $0x88] sm:$0x3] %vm228, 0.0
      %245 = vst.msk [vmem:[#allocation2 + $0x90] sm:$0xff] %vm225, 0.0
      %246 = vst.msk [vmem:[#allocation2 + $0x98] sm:$0xff] %vm225, 0.0
      %247 = vst.msk [vmem:[#allocation2 + $0xa0] sm:$0x3] %vm228, 0.0
      %248 = vst.msk [vmem:[#allocation2 + $0xa8] sm:$0xff] %vm225, 0.0
      %249 = vst.msk [vmem:[#allocation2 + $0xb0] sm:$0xff] %vm225, 0.0
      %250 = vst.msk [vmem:[#allocation2 + $0xb8] sm:$0x3] %vm228, 0.0
      %251 = vst.msk [vmem:[#allocation2 + $0xc0] sm:$0xff] %vm225, 0.0
      %252 = vst.msk [vmem:[#allocation2 + $0xc8] sm:$0xff] %vm225, 0.0
      %253 = vst.msk [vmem:[#allocation2 + $0xd0] sm:$0x3] %vm228, 0.0
      %254 = vst.msk [vmem:[#allocation2 + $0xd8] sm:$0xff] %vm225, 0.0
      %255 = vst.msk [vmem:[#allocation2 + $0xe0] sm:$0xff] %vm225, 0.0
      %256 = vst.msk [vmem:[#allocation2 + $0xe8] sm:$0x3] %vm228, 0.0
      %257 = vst.msk [vmem:[#allocation2 + $0xf0] sm:$0xff] %vm225, 0.0
      %258 = vst.msk [vmem:[#allocation2 + $0xf8] sm:$0xff] %vm225, 0.0
      %259 = vst.msk [vmem:[#allocation2 + $0x100] sm:$0x3] %vm228, 0.0
      %260 = vst.msk [vmem:[#allocation2 + $0x108] sm:$0xff] %vm225, 0.0
      %261 = vst.msk [vmem:[#allocation2 + $0x110] sm:$0xff] %vm225, 0.0
      %262 = vst.msk [vmem:[#allocation2 + $0x118] sm:$0x3] %vm228, 0.0
      %263 = vst.msk [vmem:[#allocation2 + $0x120] sm:$0xff] %vm225, 0.0
      %264 = vst.msk [vmem:[#allocation2 + $0x128] sm:$0xff] %vm225, 0.0
      %265 = vst.msk [vmem:[#allocation2 + $0x130] sm:$0x3] %vm228, 0.0
      %266 = vst.msk [vmem:[#allocation2 + $0x138] sm:$0xff] %vm225, 0.0
      %267 = vst.msk [vmem:[#allocation2 + $0x140] sm:$0xff] %vm225, 0.0
      %268 = vst.msk [vmem:[#allocation2 + $0x148] sm:$0x3] %vm228, 0.0
      %269 = vst.msk [vmem:[#allocation2 + $0x150] sm:$0xff] %vm225, 0.0
      %270 = vst.msk [vmem:[#allocation2 + $0x158] sm:$0xff] %vm225, 0.0
      %271 = vst.msk [vmem:[#allocation2 + $0x160] sm:$0x3] %vm228, 0.0
      %272 = vst.msk [vmem:[#allocation2 + $0x168] sm:$0xff] %vm225, 0.0
      %273 = vst.msk [vmem:[#allocation2 + $0x170] sm:$0xff] %vm225, 0.0
      %274 = vst.msk [vmem:[#allocation2 + $0x178] sm:$0x3] %vm228, 0.0
      %275 = vst.msk [vmem:[#allocation2 + $0x180] sm:$0xff] %vm225, 0.0
      %276 = vst.msk [vmem:[#allocation2 + $0x188] sm:$0xff] %vm225, 0.0
      %277 = vst.msk [vmem:[#allocation2 + $0x190] sm:$0x3] %vm228, 0.0
      %278 = vst.msk [vmem:[#allocation2 + $0x198] sm:$0xff] %vm225, 0.0
      %279 = vst.msk [vmem:[#allocation2 + $0x1a0] sm:$0xff] %vm225, 0.0
      %280 = vst.msk [vmem:[#allocation2 + $0x1a8] sm:$0x3] %vm228, 0.0
      %v281 = vld [vmem:[%s219] sm:$0xff]
      %v282 = vld [vmem:[%s219 + $0x8] sm:$0xff]
      %v283 = vld [vmem:[%s219 + $0x10] sm:$0xff]
      %v284 = vld [vmem:[%s219 + $0x18] sm:$0xff]
      %v285 = vld [vmem:[%s219 + $0x20] sm:$0xff]
      %v286 = vld [vmem:[%s219 + $0x28] sm:$0xff]
      %v287 = vld [vmem:[%s219 + $0x30] sm:$0xff]
      %v288 = vld [vmem:[%s219 + $0x38] sm:$0xff]
      %v289 = vld [vmem:[%s219 + $0x40] sm:$0xff]
      %v290 = vld [vmem:[%s219 + $0x48] sm:$0xff]
      %v291 = vld [vmem:[%s219 + $0x50] sm:$0xff]
      %v292 = vld [vmem:[%s219 + $0x58] sm:$0xff]
      %v293 = vld [vmem:[%s219 + $0x60] sm:$0xff]
      %v294 = vld [vmem:[%s219 + $0x68] sm:$0xff]
      %v295 = vld [vmem:[%s219 + $0x70] sm:$0xff]
      %v296 = vld [vmem:[%s219 + $0x78] sm:$0xff]
      %v297 = vld [vmem:[%s219 + $0x80] sm:$0xff]
      %v298 = vld [vmem:[%s219 + $0x88] sm:$0xff]
      %v299 = vld [vmem:[%s219 + $0x90] sm:$0xff]
      %v300 = vld [vmem:[%s219 + $0x98] sm:$0xff]
      %v301 = vld [vmem:[%s219 + $0xa0] sm:$0xff]
      %v302 = vld [vmem:[%s219 + $0xa8] sm:$0xff]
      %v303 = vld [vmem:[%s219 + $0xb0] sm:$0xff]
      %v304 = vld [vmem:[%s219 + $0xb8] sm:$0xff]
      %v305 = vld [vmem:[%s219 + $0xc0] sm:$0xff]
      %v306 = vld [vmem:[%s219 + $0xc8] sm:$0xff]
      %v307 = vld [vmem:[%s219 + $0xd0] sm:$0xff]
      %v308 = vld [vmem:[%s219 + $0xd8] sm:$0xff]
      %v309 = vld [vmem:[%s219 + $0xe0] sm:$0xff]
      %v310 = vld [vmem:[%s219 + $0xe8] sm:$0xff]
      %v311 = vld [vmem:[%s219 + $0xf0] sm:$0xff]
      %v312 = vld [vmem:[%s219 + $0xf8] sm:$0xff]
      %s313 = scalar_lea.vmem [#allocation2], 24
      %vm314 = vcmask 64512
      %315 = vst.msk [vmem:[%s313 + $0x1] sm:$0xff] %vm314, %v281
      %316 = vst.msk [vmem:[%s313 + $0x9] sm:$0xff] %vm314, %v282
      %317 = vst.msk [vmem:[%s313 + $0x19] sm:$0xff] %vm314, %v283
      %318 = vst.msk [vmem:[%s313 + $0x21] sm:$0xff] %vm314, %v284
      %319 = vst.msk [vmem:[%s313 + $0x31] sm:$0xff] %vm314, %v285
      %320 = vst.msk [vmem:[%s313 + $0x39] sm:$0xff] %vm314, %v286
      %321 = vst.msk [vmem:[%s313 + $0x49] sm:$0xff] %vm314, %v287
      %322 = vst.msk [vmem:[%s313 + $0x51] sm:$0xff] %vm314, %v288
      %323 = vst.msk [vmem:[%s313 + $0x61] sm:$0xff] %vm314, %v289
      %324 = vst.msk [vmem:[%s313 + $0x69] sm:$0xff] %vm314, %v290
      %325 = vst.msk [vmem:[%s313 + $0x79] sm:$0xff] %vm314, %v291
      %326 = vst.msk [vmem:[%s313 + $0x81] sm:$0xff] %vm314, %v292
      %327 = vst.msk [vmem:[%s313 + $0x91] sm:$0xff] %vm314, %v293
      %328 = vst.msk [vmem:[%s313 + $0x99] sm:$0xff] %vm314, %v294
      %329 = vst.msk [vmem:[%s313 + $0xa9] sm:$0xff] %vm314, %v295
      %330 = vst.msk [vmem:[%s313 + $0xb1] sm:$0xff] %vm314, %v296
      %331 = vst.msk [vmem:[%s313 + $0xc1] sm:$0xff] %vm314, %v297
      %332 = vst.msk [vmem:[%s313 + $0xc9] sm:$0xff] %vm314, %v298
      %333 = vst.msk [vmem:[%s313 + $0xd9] sm:$0xff] %vm314, %v299
      %334 = vst.msk [vmem:[%s313 + $0xe1] sm:$0xff] %vm314, %v300
      %335 = vst.msk [vmem:[%s313 + $0xf1] sm:$0xff] %vm314, %v301
      %336 = vst.msk [vmem:[%s313 + $0xf9] sm:$0xff] %vm314, %v302
      %337 = vst.msk [vmem:[%s313 + $0x109] sm:$0xff] %vm314, %v303
      %338 = vst.msk [vmem:[%s313 + $0x111] sm:$0xff] %vm314, %v304
      %339 = vst.msk [vmem:[%s313 + $0x121] sm:$0xff] %vm314, %v305
      %340 = vst.msk [vmem:[%s313 + $0x129] sm:$0xff] %vm314, %v306
      %341 = vst.msk [vmem:[%s313 + $0x139] sm:$0xff] %vm314, %v307
      %342 = vst.msk [vmem:[%s313 + $0x141] sm:$0xff] %vm314, %v308
      %343 = vst.msk [vmem:[%s313 + $0x151] sm:$0xff] %vm314, %v309
      %344 = vst.msk [vmem:[%s313 + $0x159] sm:$0xff] %vm314, %v310
      %345 = vst.msk [vmem:[%s313 + $0x169] sm:$0xff] %vm314, %v311
      %346 = vst.msk [vmem:[%s313 + $0x171] sm:$0xff] %vm314, %v312
      %v347 = vld [vmem:[#allocation2] sm:$0xff]
      %v348 = vld [vmem:[#allocation2 + $0x8] sm:$0xff]
      %v349 = vld [vmem:[#allocation2 + $0x18] sm:$0xff]
      %v350 = vld [vmem:[#allocation2 + $0x20] sm:$0xff]
      %v351 = vld [vmem:[#allocation2 + $0x30] sm:$0xff]
      %v352 = vld [vmem:[#allocation2 + $0x38] sm:$0xff]
      %v353 = vld [vmem:[#allocation2 + $0x48] sm:$0xff]
      %v354 = vld [vmem:[#allocation2 + $0x50] sm:$0xff]
      %v355 = vld [vmem:[#allocation2 + $0x60] sm:$0xff]
      %v356 = vld [vmem:[#allocation2 + $0x68] sm:$0xff]
      %v357 = vld [vmem:[#allocation2 + $0x78] sm:$0xff]
      %v358 = vld [vmem:[#allocation2 + $0x80] sm:$0xff]
      %v359 = vld [vmem:[#allocation2 + $0x90] sm:$0xff]
      %v360 = vld [vmem:[#allocation2 + $0x98] sm:$0xff]
      %v361 = vld [vmem:[#allocation2 + $0xa8] sm:$0xff]
      %v362 = vld [vmem:[#allocation2 + $0xb0] sm:$0xff]
      %v363 = vld [vmem:[#allocation2 + $0xc0] sm:$0xff]
      %v364 = vld [vmem:[#allocation2 + $0xc8] sm:$0xff]
      %v365 = vld [vmem:[#allocation2 + $0xd8] sm:$0xff]
      %v366 = vld [vmem:[#allocation2 + $0xe0] sm:$0xff]
      %v367 = vld [vmem:[#allocation2 + $0xf0] sm:$0xff]
      %v368 = vld [vmem:[#allocation2 + $0xf8] sm:$0xff]
      %v369 = vld [vmem:[#allocation2 + $0x108] sm:$0xff]
      %v370 = vld [vmem:[#allocation2 + $0x110] sm:$0xff]
      %v371 = vld [vmem:[#allocation2 + $0x120] sm:$0xff]
      %v372 = vld [vmem:[#allocation2 + $0x128] sm:$0xff]
      %v373 = vld [vmem:[#allocation2 + $0x138] sm:$0xff]
      %v374 = vld [vmem:[#allocation2 + $0x140] sm:$0xff]
      %v375 = vld [vmem:[#allocation2 + $0x150] sm:$0xff]
      %v376 = vld [vmem:[#allocation2 + $0x158] sm:$0xff]
      %v377 = vld [vmem:[#allocation2 + $0x168] sm:$0xff]
      %v378 = vld [vmem:[#allocation2 + $0x170] sm:$0xff]
      %v379 = vld [vmem:[%s1] sm:$0xff]
      %v380 = vld [vmem:[%s1 + $0x8] sm:$0xff]
      %v381 = vld [vmem:[%s1 + $0x10] sm:$0xff]
      %v382 = vld [vmem:[%s1 + $0x18] sm:$0xff]
      %v383 = vld [vmem:[#allocation2 + $0x1] sm:$0xff]
      %v384 = vld [vmem:[#allocation2 + $0x9] sm:$0xff]
      %v385 = vld [vmem:[#allocation2 + $0x19] sm:$0xff]
      %v386 = vld [vmem:[#allocation2 + $0x21] sm:$0xff]
      %v387 = vld [vmem:[#allocation2 + $0x31] sm:$0xff]
      %v388 = vld [vmem:[#allocation2 + $0x39] sm:$0xff]
      %v389 = vld [vmem:[#allocation2 + $0x49] sm:$0xff]
      %v390 = vld [vmem:[#allocation2 + $0x51] sm:$0xff]
      %v391 = vld [vmem:[#allocation2 + $0x61] sm:$0xff]
      %v392 = vld [vmem:[#allocation2 + $0x69] sm:$0xff]
      %v393 = vld [vmem:[#allocation2 + $0x79] sm:$0xff]
      %v394 = vld [vmem:[#allocation2 + $0x81] sm:$0xff]
      %v395 = vld [vmem:[#allocation2 + $0x91] sm:$0xff]
      %v396 = vld [vmem:[#allocation2 + $0x99] sm:$0xff]
      %v397 = vld [vmem:[#allocation2 + $0xa9] sm:$0xff]
      %v398 = vld [vmem:[#allocation2 + $0xb1] sm:$0xff]
      %v399 = vld [vmem:[#allocation2 + $0xc1] sm:$0xff]
      %v400 = vld [vmem:[#allocation2 + $0xc9] sm:$0xff]
      %v401 = vld [vmem:[#allocation2 + $0xd9] sm:$0xff]
      %v402 = vld [vmem:[#allocation2 + $0xe1] sm:$0xff]
      %v403 = vld [vmem:[#allocation2 + $0xf1] sm:$0xff]
      %v404 = vld [vmem:[#allocation2 + $0xf9] sm:$0xff]
      %v405 = vld [vmem:[#allocation2 + $0x109] sm:$0xff]
      %v406 = vld [vmem:[#allocation2 + $0x111] sm:$0xff]
      %v407 = vld [vmem:[#allocation2 + $0x121] sm:$0xff]
      %v408 = vld [vmem:[#allocation2 + $0x129] sm:$0xff]
      %v409 = vld [vmem:[#allocation2 + $0x139] sm:$0xff]
      %v410 = vld [vmem:[#allocation2 + $0x141] sm:$0xff]
      %v411 = vld [vmem:[#allocation2 + $0x151] sm:$0xff]
      %v412 = vld [vmem:[#allocation2 + $0x159] sm:$0xff]
      %v413 = vld [vmem:[#allocation2 + $0x169] sm:$0xff]
      %v414 = vld [vmem:[#allocation2 + $0x171] sm:$0xff]
      %s415 = scalar_lea.vmem %s1, 32
      %v416 = vld [vmem:[%s415] sm:$0xff]
      %v417 = vld [vmem:[%s415 + $0x8] sm:$0xff]
      %v418 = vld [vmem:[%s415 + $0x10] sm:$0xff]
      %v419 = vld [vmem:[%s415 + $0x18] sm:$0xff]
      %v421 = vsel %vm225, %v383, 0
      %v424 = vsel %vm225, %v384, 0
      %v427 = vsel %vm225, %v385, 0
      %v430 = vsel %vm225, %v386, 0
      %v433 = vsel %vm225, %v387, 0
      %v436 = vsel %vm225, %v388, 0
      %v439 = vsel %vm225, %v389, 0
      %v442 = vsel %vm225, %v390, 0
      %v445 = vsel %vm225, %v391, 0
      %v448 = vsel %vm225, %v392, 0
      %v451 = vsel %vm225, %v393, 0
      %v454 = vsel %vm225, %v394, 0
      %v457 = vsel %vm225, %v395, 0
      %v460 = vsel %vm225, %v396, 0
      %v463 = vsel %vm225, %v397, 0
      %v466 = vsel %vm225, %v398, 0
      %v469 = vsel %vm225, %v399, 0
      %v472 = vsel %vm225, %v400, 0
      %v475 = vsel %vm225, %v401, 0
      %v478 = vsel %vm225, %v402, 0
      %v481 = vsel %vm225, %v403, 0
      %v484 = vsel %vm225, %v404, 0
      %v487 = vsel %vm225, %v405, 0
      %v490 = vsel %vm225, %v406, 0
      %v493 = vsel %vm225, %v407, 0
      %v496 = vsel %vm225, %v408, 0
      %v499 = vsel %vm225, %v409, 0
      %v502 = vsel %vm225, %v410, 0
      %v505 = vsel %vm225, %v411, 0
      %v508 = vsel %vm225, %v412, 0
      %v511 = vsel %vm225, %v413, 0
      %v514 = vsel %vm225, %v414, 0
      %516 = vmatpush.msra.mxu0 0.0
      %517 = vmatpush.msra.mxu0 0.0
      %518 = vmatpush.msra.mxu0 0.0
      %519 = vmatpush.msra.mxu0 0.0
      %520 = vmatpush.msra.mxu0 0.0
      %521 = vmatpush.msra.mxu0 0.0
      %522 = vmatpush.msra.mxu0 0.0
      %523 = vmatpush.msra.mxu0 0.0
      %524 = vmatpush.msra.mxu0 0.0
      %525 = vmatpush.msra.mxu0 0.0
      %526 = vmatpush.msra.mxu0 0.0
      %527 = vmatpush.msra.mxu0 0.0
      %528 = vmatpush.msra.mxu0 %v419
      %529 = vmatpush.msra.mxu0 %v418
      %530 = vmatpush.msra.mxu0 %v417
      %531 = vmatpush.msra.mxu0 %v416
      %532 = vmatmul.f32.gmra.mxu0 %v421
      %v533 = vpop.f32.mrf.mxu0
      %v534 = vadd.f32 0.0, %v533
      %535 = vmatmul.f32.gmra.mxu0 %v424
      %v536 = vpop.f32.mrf.mxu0
      %v537 = vadd.f32 0.0, %v536
      %538 = vmatmul.f32.gmra.mxu0 %v427
      %v539 = vpop.f32.mrf.mxu0
      %v540 = vadd.f32 0.0, %v539
      %541 = vmatmul.f32.gmra.mxu0 %v430
      %v542 = vpop.f32.mrf.mxu0
      %v543 = vadd.f32 0.0, %v542
      %544 = vmatmul.f32.gmra.mxu0 %v433
      %v545 = vpop.f32.mrf.mxu0
      %v546 = vadd.f32 0.0, %v545
      %547 = vmatmul.f32.gmra.mxu0 %v436
      %v548 = vpop.f32.mrf.mxu0
      %v549 = vadd.f32 0.0, %v548
      %550 = vmatmul.f32.gmra.mxu0 %v439
      %v551 = vpop.f32.mrf.mxu0
      %v552 = vadd.f32 0.0, %v551
      %553 = vmatmul.f32.gmra.mxu0 %v442
      %v554 = vpop.f32.mrf.mxu0
      %v555 = vadd.f32 0.0, %v554
      %556 = vmatmul.f32.gmra.mxu0 %v445
      %v557 = vpop.f32.mrf.mxu0
      %v558 = vadd.f32 0.0, %v557
      %559 = vmatmul.f32.gmra.mxu0 %v448
      %v560 = vpop.f32.mrf.mxu0
      %v561 = vadd.f32 0.0, %v560
      %562 = vmatmul.f32.gmra.mxu0 %v451
      %v563 = vpop.f32.mrf.mxu0
      %v564 = vadd.f32 0.0, %v563
      %565 = vmatmul.f32.gmra.mxu0 %v454
      %v566 = vpop.f32.mrf.mxu0
      %v567 = vadd.f32 0.0, %v566
      %568 = vmatmul.f32.gmra.mxu0 %v457
      %v569 = vpop.f32.mrf.mxu0
      %v570 = vadd.f32 0.0, %v569
      %571 = vmatmul.f32.gmra.mxu0 %v460
      %v572 = vpop.f32.mrf.mxu0
      %v573 = vadd.f32 0.0, %v572
      %574 = vmatmul.f32.gmra.mxu0 %v463
      %v575 = vpop.f32.mrf.mxu0
      %v576 = vadd.f32 0.0, %v575
      %577 = vmatmul.f32.gmra.mxu0 %v466
      %v578 = vpop.f32.mrf.mxu0
      %v579 = vadd.f32 0.0, %v578
      %580 = vmatmul.f32.gmra.mxu0 %v469
      %v581 = vpop.f32.mrf.mxu0
      %v582 = vadd.f32 0.0, %v581
      %583 = vmatmul.f32.gmra.mxu0 %v472
      %v584 = vpop.f32.mrf.mxu0
      %v585 = vadd.f32 0.0, %v584
      %586 = vmatmul.f32.gmra.mxu0 %v475
      %v587 = vpop.f32.mrf.mxu0
      %v588 = vadd.f32 0.0, %v587
      %589 = vmatmul.f32.gmra.mxu0 %v478
      %v590 = vpop.f32.mrf.mxu0
      %v591 = vadd.f32 0.0, %v590
      %592 = vmatmul.f32.gmra.mxu0 %v481
      %v593 = vpop.f32.mrf.mxu0
      %v594 = vadd.f32 0.0, %v593
      %595 = vmatmul.f32.gmra.mxu0 %v484
      %v596 = vpop.f32.mrf.mxu0
      %v597 = vadd.f32 0.0, %v596
      %598 = vmatmul.f32.gmra.mxu0 %v487
      %v599 = vpop.f32.mrf.mxu0
      %v600 = vadd.f32 0.0, %v599
      %601 = vmatmul.f32.gmra.mxu0 %v490
      %v602 = vpop.f32.mrf.mxu0
      %v603 = vadd.f32 0.0, %v602
      %604 = vmatmul.f32.gmra.mxu0 %v493
      %v605 = vpop.f32.mrf.mxu0
      %v606 = vadd.f32 0.0, %v605
      %607 = vmatmul.f32.gmra.mxu0 %v496
      %v608 = vpop.f32.mrf.mxu0
      %v609 = vadd.f32 0.0, %v608
      %610 = vmatmul.f32.gmra.mxu0 %v499
      %v611 = vpop.f32.mrf.mxu0
      %v612 = vadd.f32 0.0, %v611
      %613 = vmatmul.f32.gmra.mxu0 %v502
      %v614 = vpop.f32.mrf.mxu0
      %v615 = vadd.f32 0.0, %v614
      %616 = vmatmul.f32.gmra.mxu0 %v505
      %v617 = vpop.f32.mrf.mxu0
      %v618 = vadd.f32 0.0, %v617
      %619 = vmatmul.f32.gmra.mxu0 %v508
      %v620 = vpop.f32.mrf.mxu0
      %v621 = vadd.f32 0.0, %v620
      %622 = vmatmul.f32.gmra.mxu0 %v511
      %v623 = vpop.f32.mrf.mxu0
      %v624 = vadd.f32 0.0, %v623
      %625 = vmatmul.f32.gmra.mxu0 %v514
      %v626 = vpop.f32.mrf.mxu0
      %v627 = vadd.f32 0.0, %v626
      %628 = vdwg.mxu0
      %v630 = vsel %vm225, %v347, 0
      %v633 = vsel %vm225, %v348, 0
      %v636 = vsel %vm225, %v349, 0
      %v639 = vsel %vm225, %v350, 0
      %v642 = vsel %vm225, %v351, 0
      %v645 = vsel %vm225, %v352, 0
      %v648 = vsel %vm225, %v353, 0
      %v651 = vsel %vm225, %v354, 0
      %v654 = vsel %vm225, %v355, 0
      %v657 = vsel %vm225, %v356, 0
      %v660 = vsel %vm225, %v357, 0
      %v663 = vsel %vm225, %v358, 0
      %v666 = vsel %vm225, %v359, 0
      %v669 = vsel %vm225, %v360, 0
      %v672 = vsel %vm225, %v361, 0
      %v675 = vsel %vm225, %v362, 0
      %v678 = vsel %vm225, %v363, 0
      %v681 = vsel %vm225, %v364, 0
      %v684 = vsel %vm225, %v365, 0
      %v687 = vsel %vm225, %v366, 0
      %v690 = vsel %vm225, %v367, 0
      %v693 = vsel %vm225, %v368, 0
      %v696 = vsel %vm225, %v369, 0
      %v699 = vsel %vm225, %v370, 0
      %v702 = vsel %vm225, %v371, 0
      %v705 = vsel %vm225, %v372, 0
      %v708 = vsel %vm225, %v373, 0
      %v711 = vsel %vm225, %v374, 0
      %v714 = vsel %vm225, %v375, 0
      %v717 = vsel %vm225, %v376, 0
      %v720 = vsel %vm225, %v377, 0
      %v723 = vsel %vm225, %v378, 0
      %725 = vmatpush.msra.mxu0 0.0
      %726 = vmatpush.msra.mxu0 0.0
      %727 = vmatpush.msra.mxu0 0.0
      %728 = vmatpush.msra.mxu0 0.0
      %729 = vmatpush.msra.mxu0 0.0
      %730 = vmatpush.msra.mxu0 0.0
      %731 = vmatpush.msra.mxu0 0.0
      %732 = vmatpush.msra.mxu0 0.0
      %733 = vmatpush.msra.mxu0 0.0
      %734 = vmatpush.msra.mxu0 0.0
      %735 = vmatpush.msra.mxu0 0.0
      %736 = vmatpush.msra.mxu0 0.0
      %737 = vmatpush.msra.mxu0 %v382
      %738 = vmatpush.msra.mxu0 %v381
      %739 = vmatpush.msra.mxu0 %v380
      %740 = vmatpush.msra.mxu0 %v379
      %741 = vmatmul.f32.gmra.mxu0 %v630
      %v742 = vpop.f32.mrf.mxu0
      %v743 = vadd.f32 %v534, %v742
      %744 = vmatmul.f32.gmra.mxu0 %v633
      %v745 = vpop.f32.mrf.mxu0
      %v746 = vadd.f32 %v537, %v745
      %747 = vmatmul.f32.gmra.mxu0 %v636
      %v748 = vpop.f32.mrf.mxu0
      %v749 = vadd.f32 %v540, %v748
      %750 = vmatmul.f32.gmra.mxu0 %v639
      %v751 = vpop.f32.mrf.mxu0
      %v752 = vadd.f32 %v543, %v751
      %753 = vmatmul.f32.gmra.mxu0 %v642
      %v754 = vpop.f32.mrf.mxu0
      %v755 = vadd.f32 %v546, %v754
      %756 = vmatmul.f32.gmra.mxu0 %v645
      %v757 = vpop.f32.mrf.mxu0
      %v758 = vadd.f32 %v549, %v757
      %759 = vmatmul.f32.gmra.mxu0 %v648
      %v760 = vpop.f32.mrf.mxu0
      %v761 = vadd.f32 %v552, %v760
      %762 = vmatmul.f32.gmra.mxu0 %v651
      %v763 = vpop.f32.mrf.mxu0
      %v764 = vadd.f32 %v555, %v763
      %765 = vmatmul.f32.gmra.mxu0 %v654
      %v766 = vpop.f32.mrf.mxu0
      %v767 = vadd.f32 %v558, %v766
      %768 = vmatmul.f32.gmra.mxu0 %v657
      %v769 = vpop.f32.mrf.mxu0
      %v770 = vadd.f32 %v561, %v769
      %771 = vmatmul.f32.gmra.mxu0 %v660
      %v772 = vpop.f32.mrf.mxu0
      %v773 = vadd.f32 %v564, %v772
      %774 = vmatmul.f32.gmra.mxu0 %v663
      %v775 = vpop.f32.mrf.mxu0
      %v776 = vadd.f32 %v567, %v775
      %777 = vmatmul.f32.gmra.mxu0 %v666
      %v778 = vpop.f32.mrf.mxu0
      %v779 = vadd.f32 %v570, %v778
      %780 = vmatmul.f32.gmra.mxu0 %v669
      %v781 = vpop.f32.mrf.mxu0
      %v782 = vadd.f32 %v573, %v781
      %783 = vmatmul.f32.gmra.mxu0 %v672
      %v784 = vpop.f32.mrf.mxu0
      %v785 = vadd.f32 %v576, %v784
      %786 = vmatmul.f32.gmra.mxu0 %v675
      %v787 = vpop.f32.mrf.mxu0
      %v788 = vadd.f32 %v579, %v787
      %789 = vmatmul.f32.gmra.mxu0 %v678
      %v790 = vpop.f32.mrf.mxu0
      %v791 = vadd.f32 %v582, %v790
      %792 = vmatmul.f32.gmra.mxu0 %v681
      %v793 = vpop.f32.mrf.mxu0
      %v794 = vadd.f32 %v585, %v793
      %795 = vmatmul.f32.gmra.mxu0 %v684
      %v796 = vpop.f32.mrf.mxu0
      %v797 = vadd.f32 %v588, %v796
      %798 = vmatmul.f32.gmra.mxu0 %v687
      %v799 = vpop.f32.mrf.mxu0
      %v800 = vadd.f32 %v591, %v799
      %801 = vmatmul.f32.gmra.mxu0 %v690
      %v802 = vpop.f32.mrf.mxu0
      %v803 = vadd.f32 %v594, %v802
      %804 = vmatmul.f32.gmra.mxu0 %v693
      %v805 = vpop.f32.mrf.mxu0
      %v806 = vadd.f32 %v597, %v805
      %807 = vmatmul.f32.gmra.mxu0 %v696
      %v808 = vpop.f32.mrf.mxu0
      %v809 = vadd.f32 %v600, %v808
      %810 = vmatmul.f32.gmra.mxu0 %v699
      %v811 = vpop.f32.mrf.mxu0
      %v812 = vadd.f32 %v603, %v811
      %813 = vmatmul.f32.gmra.mxu0 %v702
      %v814 = vpop.f32.mrf.mxu0
      %v815 = vadd.f32 %v606, %v814
      %816 = vmatmul.f32.gmra.mxu0 %v705
      %v817 = vpop.f32.mrf.mxu0
      %v818 = vadd.f32 %v609, %v817
      %819 = vmatmul.f32.gmra.mxu0 %v708
      %v820 = vpop.f32.mrf.mxu0
      %v821 = vadd.f32 %v612, %v820
      %822 = vmatmul.f32.gmra.mxu0 %v711
      %v823 = vpop.f32.mrf.mxu0
      %v824 = vadd.f32 %v615, %v823
      %825 = vmatmul.f32.gmra.mxu0 %v714
      %v826 = vpop.f32.mrf.mxu0
      %v827 = vadd.f32 %v618, %v826
      %828 = vmatmul.f32.gmra.mxu0 %v717
      %v829 = vpop.f32.mrf.mxu0
      %v830 = vadd.f32 %v621, %v829
      %831 = vmatmul.f32.gmra.mxu0 %v720
      %v832 = vpop.f32.mrf.mxu0
      %v833 = vadd.f32 %v624, %v832
      %834 = vmatmul.f32.gmra.mxu0 %v723
      %v835 = vpop.f32.mrf.mxu0
      %v836 = vadd.f32 %v627, %v835
      %837 = vdwg.mxu0
      %v838 = vld [vmem:[#allocation2 + $0x2] sm:$0xff]
      %v839 = vld [vmem:[#allocation2 + $0xa] sm:$0xff]
      %v840 = vld [vmem:[#allocation2 + $0x1a] sm:$0xff]
      %v841 = vld [vmem:[#allocation2 + $0x22] sm:$0xff]
      %v842 = vld [vmem:[#allocation2 + $0x32] sm:$0xff]
      %v843 = vld [vmem:[#allocation2 + $0x3a] sm:$0xff]
      %v844 = vld [vmem:[#allocation2 + $0x4a] sm:$0xff]
      %v845 = vld [vmem:[#allocation2 + $0x52] sm:$0xff]
      %v846 = vld [vmem:[#allocation2 + $0x62] sm:$0xff]
      %v847 = vld [vmem:[#allocation2 + $0x6a] sm:$0xff]
      %v848 = vld [vmem:[#allocation2 + $0x7a] sm:$0xff]
      %v849 = vld [vmem:[#allocation2 + $0x82] sm:$0xff]
      %v850 = vld [vmem:[#allocation2 + $0x92] sm:$0xff]
      %v851 = vld [vmem:[#allocation2 + $0x9a] sm:$0xff]
      %v852 = vld [vmem:[#allocation2 + $0xaa] sm:$0xff]
      %v853 = vld [vmem:[#allocation2 + $0xb2] sm:$0xff]
      %v854 = vld [vmem:[#allocation2 + $0xc2] sm:$0xff]
      %v855 = vld [vmem:[#allocation2 + $0xca] sm:$0xff]
      %v856 = vld [vmem:[#allocation2 + $0xda] sm:$0xff]
      %v857 = vld [vmem:[#allocation2 + $0xe2] sm:$0xff]
      %v858 = vld [vmem:[#allocation2 + $0xf2] sm:$0xff]
      %v859 = vld [vmem:[#allocation2 + $0xfa] sm:$0xff]
      %v860 = vld [vmem:[#allocation2 + $0x10a] sm:$0xff]
      %v861 = vld [vmem:[#allocation2 + $0x112] sm:$0xff]
      %v862 = vld [vmem:[#allocation2 + $0x122] sm:$0xff]
      %v863 = vld [vmem:[#allocation2 + $0x12a] sm:$0xff]
      %v864 = vld [vmem:[#allocation2 + $0x13a] sm:$0xff]
      %v865 = vld [vmem:[#allocation2 + $0x142] sm:$0xff]
      %v866 = vld [vmem:[#allocation2 + $0x152] sm:$0xff]
      %v867 = vld [vmem:[#allocation2 + $0x15a] sm:$0xff]
      %v868 = vld [vmem:[#allocation2 + $0x16a] sm:$0xff]
      %v869 = vld [vmem:[#allocation2 + $0x172] sm:$0xff]
      %s870 = scalar_lea.vmem %s1, 64
      %v871 = vld [vmem:[%s870] sm:$0xff]
      %v872 = vld [vmem:[%s870 + $0x8] sm:$0xff]
      %v873 = vld [vmem:[%s870 + $0x10] sm:$0xff]
      %v874 = vld [vmem:[%s870 + $0x18] sm:$0xff]
      %v876 = vsel %vm225, %v838, 0
      %v879 = vsel %vm225, %v839, 0
      %v882 = vsel %vm225, %v840, 0
      %v885 = vsel %vm225, %v841, 0
      %v888 = vsel %vm225, %v842, 0
      %v891 = vsel %vm225, %v843, 0
      %v894 = vsel %vm225, %v844, 0
      %v897 = vsel %vm225, %v845, 0
      %v900 = vsel %vm225, %v846, 0
      %v903 = vsel %vm225, %v847, 0
      %v906 = vsel %vm225, %v848, 0
      %v909 = vsel %vm225, %v849, 0
      %v912 = vsel %vm225, %v850, 0
      %v915 = vsel %vm225, %v851, 0
      %v918 = vsel %vm225, %v852, 0
      %v921 = vsel %vm225, %v853, 0
      %v924 = vsel %vm225, %v854, 0
      %v927 = vsel %vm225, %v855, 0
      %v930 = vsel %vm225, %v856, 0
      %v933 = vsel %vm225, %v857, 0
      %v936 = vsel %vm225, %v858, 0
      %v939 = vsel %vm225, %v859, 0
      %v942 = vsel %vm225, %v860, 0
      %v945 = vsel %vm225, %v861, 0
      %v948 = vsel %vm225, %v862, 0
      %v951 = vsel %vm225, %v863, 0
      %v954 = vsel %vm225, %v864, 0
      %v957 = vsel %vm225, %v865, 0
      %v960 = vsel %vm225, %v866, 0
      %v963 = vsel %vm225, %v867, 0
      %v966 = vsel %vm225, %v868, 0
      %v969 = vsel %vm225, %v869, 0
      %971 = vmatpush.msra.mxu0 0.0
      %972 = vmatpush.msra.mxu0 0.0
      %973 = vmatpush.msra.mxu0 0.0
      %974 = vmatpush.msra.mxu0 0.0
      %975 = vmatpush.msra.mxu0 0.0
      %976 = vmatpush.msra.mxu0 0.0
      %977 = vmatpush.msra.mxu0 0.0
      %978 = vmatpush.msra.mxu0 0.0
      %979 = vmatpush.msra.mxu0 0.0
      %980 = vmatpush.msra.mxu0 0.0
      %981 = vmatpush.msra.mxu0 0.0
      %982 = vmatpush.msra.mxu0 0.0
      %983 = vmatpush.msra.mxu0 %v874
      %984 = vmatpush.msra.mxu0 %v873
      %985 = vmatpush.msra.mxu0 %v872
      %986 = vmatpush.msra.mxu0 %v871
      %987 = vmatmul.f32.gmra.mxu0 %v876
      %v988 = vpop.f32.mrf.mxu0
      %v989 = vadd.f32 0.0, %v988
      %990 = vmatmul.f32.gmra.mxu0 %v879
      %v991 = vpop.f32.mrf.mxu0
      %v992 = vadd.f32 0.0, %v991
      %993 = vmatmul.f32.gmra.mxu0 %v882
      %v994 = vpop.f32.mrf.mxu0
      %v995 = vadd.f32 0.0, %v994
      %996 = vmatmul.f32.gmra.mxu0 %v885
      %v997 = vpop.f32.mrf.mxu0
      %v998 = vadd.f32 0.0, %v997
      %999 = vmatmul.f32.gmra.mxu0 %v888
      %v1000 = vpop.f32.mrf.mxu0
      %v1001 = vadd.f32 0.0, %v1000
      %1002 = vmatmul.f32.gmra.mxu0 %v891
      %v1003 = vpop.f32.mrf.mxu0
      %v1004 = vadd.f32 0.0, %v1003
      %1005 = vmatmul.f32.gmra.mxu0 %v894
      %v1006 = vpop.f32.mrf.mxu0
      %v1007 = vadd.f32 0.0, %v1006
      %1008 = vmatmul.f32.gmra.mxu0 %v897
      %v1009 = vpop.f32.mrf.mxu0
      %v1010 = vadd.f32 0.0, %v1009
      %1011 = vmatmul.f32.gmra.mxu0 %v900
      %v1012 = vpop.f32.mrf.mxu0
      %v1013 = vadd.f32 0.0, %v1012
      %1014 = vmatmul.f32.gmra.mxu0 %v903
      %v1015 = vpop.f32.mrf.mxu0
      %v1016 = vadd.f32 0.0, %v1015
      %1017 = vmatmul.f32.gmra.mxu0 %v906
      %v1018 = vpop.f32.mrf.mxu0
      %v1019 = vadd.f32 0.0, %v1018
      %1020 = vmatmul.f32.gmra.mxu0 %v909
      %v1021 = vpop.f32.mrf.mxu0
      %v1022 = vadd.f32 0.0, %v1021
      %1023 = vmatmul.f32.gmra.mxu0 %v912
      %v1024 = vpop.f32.mrf.mxu0
      %v1025 = vadd.f32 0.0, %v1024
      %1026 = vmatmul.f32.gmra.mxu0 %v915
      %v1027 = vpop.f32.mrf.mxu0
      %v1028 = vadd.f32 0.0, %v1027
      %1029 = vmatmul.f32.gmra.mxu0 %v918
      %v1030 = vpop.f32.mrf.mxu0
      %v1031 = vadd.f32 0.0, %v1030
      %1032 = vmatmul.f32.gmra.mxu0 %v921
      %v1033 = vpop.f32.mrf.mxu0
      %v1034 = vadd.f32 0.0, %v1033
      %1035 = vmatmul.f32.gmra.mxu0 %v924
      %v1036 = vpop.f32.mrf.mxu0
      %v1037 = vadd.f32 0.0, %v1036
      %1038 = vmatmul.f32.gmra.mxu0 %v927
      %v1039 = vpop.f32.mrf.mxu0
      %v1040 = vadd.f32 0.0, %v1039
      %1041 = vmatmul.f32.gmra.mxu0 %v930
      %v1042 = vpop.f32.mrf.mxu0
      %v1043 = vadd.f32 0.0, %v1042
      %1044 = vmatmul.f32.gmra.mxu0 %v933
      %v1045 = vpop.f32.mrf.mxu0
      %v1046 = vadd.f32 0.0, %v1045
      %1047 = vmatmul.f32.gmra.mxu0 %v936
      %v1048 = vpop.f32.mrf.mxu0
      %v1049 = vadd.f32 0.0, %v1048
      %1050 = vmatmul.f32.gmra.mxu0 %v939
      %v1051 = vpop.f32.mrf.mxu0
      %v1052 = vadd.f32 0.0, %v1051
      %1053 = vmatmul.f32.gmra.mxu0 %v942
      %v1054 = vpop.f32.mrf.mxu0
      %v1055 = vadd.f32 0.0, %v1054
      %1056 = vmatmul.f32.gmra.mxu0 %v945
      %v1057 = vpop.f32.mrf.mxu0
      %v1058 = vadd.f32 0.0, %v1057
      %1059 = vmatmul.f32.gmra.mxu0 %v948
      %v1060 = vpop.f32.mrf.mxu0
      %v1061 = vadd.f32 0.0, %v1060
      %1062 = vmatmul.f32.gmra.mxu0 %v951
      %v1063 = vpop.f32.mrf.mxu0
      %v1064 = vadd.f32 0.0, %v1063
      %1065 = vmatmul.f32.gmra.mxu0 %v954
      %v1066 = vpop.f32.mrf.mxu0
      %v1067 = vadd.f32 0.0, %v1066
      %1068 = vmatmul.f32.gmra.mxu0 %v957
      %v1069 = vpop.f32.mrf.mxu0
      %v1070 = vadd.f32 0.0, %v1069
      %1071 = vmatmul.f32.gmra.mxu0 %v960
      %v1072 = vpop.f32.mrf.mxu0
      %v1073 = vadd.f32 0.0, %v1072
      %1074 = vmatmul.f32.gmra.mxu0 %v963
      %v1075 = vpop.f32.mrf.mxu0
      %v1076 = vadd.f32 0.0, %v1075
      %1077 = vmatmul.f32.gmra.mxu0 %v966
      %v1078 = vpop.f32.mrf.mxu0
      %v1079 = vadd.f32 0.0, %v1078
      %1080 = vmatmul.f32.gmra.mxu0 %v969
      %v1081 = vpop.f32.mrf.mxu0
      %v1082 = vadd.f32 0.0, %v1081
      %1083 = vdwg.mxu0
      %v1084 = vadd.f32 %v743, %v989
      %v1085 = vadd.f32 %v746, %v992
      %v1086 = vadd.f32 %v749, %v995
      %v1087 = vadd.f32 %v752, %v998
      %v1088 = vadd.f32 %v755, %v1001
      %v1089 = vadd.f32 %v758, %v1004
      %v1090 = vadd.f32 %v761, %v1007
      %v1091 = vadd.f32 %v764, %v1010
      %v1092 = vadd.f32 %v767, %v1013
      %v1093 = vadd.f32 %v770, %v1016
      %v1094 = vadd.f32 %v773, %v1019
      %v1095 = vadd.f32 %v776, %v1022
      %v1096 = vadd.f32 %v779, %v1025
      %v1097 = vadd.f32 %v782, %v1028
      %v1098 = vadd.f32 %v785, %v1031
      %v1099 = vadd.f32 %v788, %v1034
      %v1100 = vadd.f32 %v791, %v1037
      %v1101 = vadd.f32 %v794, %v1040
      %v1102 = vadd.f32 %v797, %v1043
      %v1103 = vadd.f32 %v800, %v1046
      %v1104 = vadd.f32 %v803, %v1049
      %v1105 = vadd.f32 %v806, %v1052
      %v1106 = vadd.f32 %v809, %v1055
      %v1107 = vadd.f32 %v812, %v1058
      %v1108 = vadd.f32 %v815, %v1061
      %v1109 = vadd.f32 %v818, %v1064
      %v1110 = vadd.f32 %v821, %v1067
      %v1111 = vadd.f32 %v824, %v1070
      %v1112 = vadd.f32 %v827, %v1073
      %v1113 = vadd.f32 %v830, %v1076
      %v1114 = vadd.f32 %v833, %v1079
      %v1115 = vadd.f32 %v836, %v1082
      %v1116 = vld [vmem:[%s313] sm:$0xff]
      %v1117 = vld [vmem:[%s313 + $0x8] sm:$0xff]
      %v1118 = vld [vmem:[%s313 + $0x18] sm:$0xff]
      %v1119 = vld [vmem:[%s313 + $0x20] sm:$0xff]
      %v1120 = vld [vmem:[%s313 + $0x30] sm:$0xff]
      %v1121 = vld [vmem:[%s313 + $0x38] sm:$0xff]
      %v1122 = vld [vmem:[%s313 + $0x48] sm:$0xff]
      %v1123 = vld [vmem:[%s313 + $0x50] sm:$0xff]
      %v1124 = vld [vmem:[%s313 + $0x60] sm:$0xff]
      %v1125 = vld [vmem:[%s313 + $0x68] sm:$0xff]
      %v1126 = vld [vmem:[%s313 + $0x78] sm:$0xff]
      %v1127 = vld [vmem:[%s313 + $0x80] sm:$0xff]
      %v1128 = vld [vmem:[%s313 + $0x90] sm:$0xff]
      %v1129 = vld [vmem:[%s313 + $0x98] sm:$0xff]
      %v1130 = vld [vmem:[%s313 + $0xa8] sm:$0xff]
      %v1131 = vld [vmem:[%s313 + $0xb0] sm:$0xff]
      %v1132 = vld [vmem:[%s313 + $0xc0] sm:$0xff]
      %v1133 = vld [vmem:[%s313 + $0xc8] sm:$0xff]
      %v1134 = vld [vmem:[%s313 + $0xd8] sm:$0xff]
      %v1135 = vld [vmem:[%s313 + $0xe0] sm:$0xff]
      %v1136 = vld [vmem:[%s313 + $0xf0] sm:$0xff]
      %v1137 = vld [vmem:[%s313 + $0xf8] sm:$0xff]
      %v1138 = vld [vmem:[%s313 + $0x108] sm:$0xff]
      %v1139 = vld [vmem:[%s313 + $0x110] sm:$0xff]
      %v1140 = vld [vmem:[%s313 + $0x120] sm:$0xff]
      %v1141 = vld [vmem:[%s313 + $0x128] sm:$0xff]
      %v1142 = vld [vmem:[%s313 + $0x138] sm:$0xff]
      %v1143 = vld [vmem:[%s313 + $0x140] sm:$0xff]
      %v1144 = vld [vmem:[%s313 + $0x150] sm:$0xff]
      %v1145 = vld [vmem:[%s313 + $0x158] sm:$0xff]
      %v1146 = vld [vmem:[%s313 + $0x168] sm:$0xff]
      %v1147 = vld [vmem:[%s313 + $0x170] sm:$0xff]
      %s1148 = scalar_lea.vmem %s1, 96
      %v1149 = vld [vmem:[%s1148] sm:$0xff]
      %v1150 = vld [vmem:[%s1148 + $0x8] sm:$0xff]
      %v1151 = vld [vmem:[%s1148 + $0x10] sm:$0xff]
      %v1152 = vld [vmem:[%s1148 + $0x18] sm:$0xff]
      %v1154 = vsel %vm225, %v1116, 0
      %v1157 = vsel %vm225, %v1117, 0
      %v1160 = vsel %vm225, %v1118, 0
      %v1163 = vsel %vm225, %v1119, 0
      %v1166 = vsel %vm225, %v1120, 0
      %v1169 = vsel %vm225, %v1121, 0
      %v1172 = vsel %vm225, %v1122, 0
      %v1175 = vsel %vm225, %v1123, 0
      %v1178 = vsel %vm225, %v1124, 0
      %v1181 = vsel %vm225, %v1125, 0
      %v1184 = vsel %vm225, %v1126, 0
      %v1187 = vsel %vm225, %v1127, 0
      %v1190 = vsel %vm225, %v1128, 0
      %v1193 = vsel %vm225, %v1129, 0
      %v1196 = vsel %vm225, %v1130, 0
      %v1199 = vsel %vm225, %v1131, 0
      %v1202 = vsel %vm225, %v1132, 0
      %v1205 = vsel %vm225, %v1133, 0
      %v1208 = vsel %vm225, %v1134, 0
      %v1211 = vsel %vm225, %v1135, 0
      %v1214 = vsel %vm225, %v1136, 0
      %v1217 = vsel %vm225, %v1137, 0
      %v1220 = vsel %vm225, %v1138, 0
      %v1223 = vsel %vm225, %v1139, 0
      %v1226 = vsel %vm225, %v1140, 0
      %v1229 = vsel %vm225, %v1141, 0
      %v1232 = vsel %vm225, %v1142, 0
      %v1235 = vsel %vm225, %v1143, 0
      %v1238 = vsel %vm225, %v1144, 0
      %v1241 = vsel %vm225, %v1145, 0
      %v1244 = vsel %vm225, %v1146, 0
      %v1247 = vsel %vm225, %v1147, 0
      %1249 = vmatpush.msra.mxu0 0.0
      %1250 = vmatpush.msra.mxu0 0.0
      %1251 = vmatpush.msra.mxu0 0.0
      %1252 = vmatpush.msra.mxu0 0.0
      %1253 = vmatpush.msra.mxu0 0.0
      %1254 = vmatpush.msra.mxu0 0.0
      %1255 = vmatpush.msra.mxu0 0.0
      %1256 = vmatpush.msra.mxu0 0.0
      %1257 = vmatpush.msra.mxu0 0.0
      %1258 = vmatpush.msra.mxu0 0.0
      %1259 = vmatpush.msra.mxu0 0.0
      %1260 = vmatpush.msra.mxu0 0.0
      %1261 = vmatpush.msra.mxu0 %v1152
      %1262 = vmatpush.msra.mxu0 %v1151
      %1263 = vmatpush.msra.mxu0 %v1150
      %1264 = vmatpush.msra.mxu0 %v1149
      %1265 = vmatmul.f32.gmra.mxu0 %v1154
      %v1266 = vpop.f32.mrf.mxu0
      %v1267 = vadd.f32 0.0, %v1266
      %1268 = vmatmul.f32.gmra.mxu0 %v1157
      %v1269 = vpop.f32.mrf.mxu0
      %v1270 = vadd.f32 0.0, %v1269
      %1271 = vmatmul.f32.gmra.mxu0 %v1160
      %v1272 = vpop.f32.mrf.mxu0
      %v1273 = vadd.f32 0.0, %v1272
      %1274 = vmatmul.f32.gmra.mxu0 %v1163
      %v1275 = vpop.f32.mrf.mxu0
      %v1276 = vadd.f32 0.0, %v1275
      %1277 = vmatmul.f32.gmra.mxu0 %v1166
      %v1278 = vpop.f32.mrf.mxu0
      %v1279 = vadd.f32 0.0, %v1278
      %1280 = vmatmul.f32.gmra.mxu0 %v1169
      %v1281 = vpop.f32.mrf.mxu0
      %v1282 = vadd.f32 0.0, %v1281
      %1283 = vmatmul.f32.gmra.mxu0 %v1172
      %v1284 = vpop.f32.mrf.mxu0
      %v1285 = vadd.f32 0.0, %v1284
      %1286 = vmatmul.f32.gmra.mxu0 %v1175
      %v1287 = vpop.f32.mrf.mxu0
      %v1288 = vadd.f32 0.0, %v1287
      %1289 = vmatmul.f32.gmra.mxu0 %v1178
      %v1290 = vpop.f32.mrf.mxu0
      %v1291 = vadd.f32 0.0, %v1290
      %1292 = vmatmul.f32.gmra.mxu0 %v1181
      %v1293 = vpop.f32.mrf.mxu0
      %v1294 = vadd.f32 0.0, %v1293
      %1295 = vmatmul.f32.gmra.mxu0 %v1184
      %v1296 = vpop.f32.mrf.mxu0
      %v1297 = vadd.f32 0.0, %v1296
      %1298 = vmatmul.f32.gmra.mxu0 %v1187
      %v1299 = vpop.f32.mrf.mxu0
      %v1300 = vadd.f32 0.0, %v1299
      %1301 = vmatmul.f32.gmra.mxu0 %v1190
      %v1302 = vpop.f32.mrf.mxu0
      %v1303 = vadd.f32 0.0, %v1302
      %1304 = vmatmul.f32.gmra.mxu0 %v1193
      %v1305 = vpop.f32.mrf.mxu0
      %v1306 = vadd.f32 0.0, %v1305
      %1307 = vmatmul.f32.gmra.mxu0 %v1196
      %v1308 = vpop.f32.mrf.mxu0
      %v1309 = vadd.f32 0.0, %v1308
      %1310 = vmatmul.f32.gmra.mxu0 %v1199
      %v1311 = vpop.f32.mrf.mxu0
      %v1312 = vadd.f32 0.0, %v1311
      %1313 = vmatmul.f32.gmra.mxu0 %v1202
      %v1314 = vpop.f32.mrf.mxu0
      %v1315 = vadd.f32 0.0, %v1314
      %1316 = vmatmul.f32.gmra.mxu0 %v1205
      %v1317 = vpop.f32.mrf.mxu0
      %v1318 = vadd.f32 0.0, %v1317
      %1319 = vmatmul.f32.gmra.mxu0 %v1208
      %v1320 = vpop.f32.mrf.mxu0
      %v1321 = vadd.f32 0.0, %v1320
      %1322 = vmatmul.f32.gmra.mxu0 %v1211
      %v1323 = vpop.f32.mrf.mxu0
      %v1324 = vadd.f32 0.0, %v1323
      %1325 = vmatmul.f32.gmra.mxu0 %v1214
      %v1326 = vpop.f32.mrf.mxu0
      %v1327 = vadd.f32 0.0, %v1326
      %1328 = vmatmul.f32.gmra.mxu0 %v1217
      %v1329 = vpop.f32.mrf.mxu0
      %v1330 = vadd.f32 0.0, %v1329
      %1331 = vmatmul.f32.gmra.mxu0 %v1220
      %v1332 = vpop.f32.mrf.mxu0
      %v1333 = vadd.f32 0.0, %v1332
      %1334 = vmatmul.f32.gmra.mxu0 %v1223
      %v1335 = vpop.f32.mrf.mxu0
      %v1336 = vadd.f32 0.0, %v1335
      %1337 = vmatmul.f32.gmra.mxu0 %v1226
      %v1338 = vpop.f32.mrf.mxu0
      %v1339 = vadd.f32 0.0, %v1338
      %1340 = vmatmul.f32.gmra.mxu0 %v1229
      %v1341 = vpop.f32.mrf.mxu0
      %v1342 = vadd.f32 0.0, %v1341
      %1343 = vmatmul.f32.gmra.mxu0 %v1232
      %v1344 = vpop.f32.mrf.mxu0
      %v1345 = vadd.f32 0.0, %v1344
      %1346 = vmatmul.f32.gmra.mxu0 %v1235
      %v1347 = vpop.f32.mrf.mxu0
      %v1348 = vadd.f32 0.0, %v1347
      %1349 = vmatmul.f32.gmra.mxu0 %v1238
      %v1350 = vpop.f32.mrf.mxu0
      %v1351 = vadd.f32 0.0, %v1350
      %1352 = vmatmul.f32.gmra.mxu0 %v1241
      %v1353 = vpop.f32.mrf.mxu0
      %v1354 = vadd.f32 0.0, %v1353
      %1355 = vmatmul.f32.gmra.mxu0 %v1244
      %v1356 = vpop.f32.mrf.mxu0
      %v1357 = vadd.f32 0.0, %v1356
      %1358 = vmatmul.f32.gmra.mxu0 %v1247
      %v1359 = vpop.f32.mrf.mxu0
      %v1360 = vadd.f32 0.0, %v1359
      %1361 = vdwg.mxu0
      %v1362 = vadd.f32 %v1084, %v1267
      %v1363 = vadd.f32 %v1085, %v1270
      %v1364 = vadd.f32 %v1086, %v1273
      %v1365 = vadd.f32 %v1087, %v1276
      %v1366 = vadd.f32 %v1088, %v1279
      %v1367 = vadd.f32 %v1089, %v1282
      %v1368 = vadd.f32 %v1090, %v1285
      %v1369 = vadd.f32 %v1091, %v1288
      %v1370 = vadd.f32 %v1092, %v1291
      %v1371 = vadd.f32 %v1093, %v1294
      %v1372 = vadd.f32 %v1094, %v1297
      %v1373 = vadd.f32 %v1095, %v1300
      %v1374 = vadd.f32 %v1096, %v1303
      %v1375 = vadd.f32 %v1097, %v1306
      %v1376 = vadd.f32 %v1098, %v1309
      %v1377 = vadd.f32 %v1099, %v1312
      %v1378 = vadd.f32 %v1100, %v1315
      %v1379 = vadd.f32 %v1101, %v1318
      %v1380 = vadd.f32 %v1102, %v1321
      %v1381 = vadd.f32 %v1103, %v1324
      %v1382 = vadd.f32 %v1104, %v1327
      %v1383 = vadd.f32 %v1105, %v1330
      %v1384 = vadd.f32 %v1106, %v1333
      %v1385 = vadd.f32 %v1107, %v1336
      %v1386 = vadd.f32 %v1108, %v1339
      %v1387 = vadd.f32 %v1109, %v1342
      %v1388 = vadd.f32 %v1110, %v1345
      %v1389 = vadd.f32 %v1111, %v1348
      %v1390 = vadd.f32 %v1112, %v1351
      %v1391 = vadd.f32 %v1113, %v1354
      %v1392 = vadd.f32 %v1114, %v1357
      %v1393 = vadd.f32 %v1115, %v1360
      %v1394 = vld [vmem:[%s313 + $0x1] sm:$0xff]
      %v1395 = vld [vmem:[%s313 + $0x9] sm:$0xff]
      %v1396 = vld [vmem:[%s313 + $0x19] sm:$0xff]
      %v1397 = vld [vmem:[%s313 + $0x21] sm:$0xff]
      %v1398 = vld [vmem:[%s313 + $0x31] sm:$0xff]
      %v1399 = vld [vmem:[%s313 + $0x39] sm:$0xff]
      %v1400 = vld [vmem:[%s313 + $0x49] sm:$0xff]
      %v1401 = vld [vmem:[%s313 + $0x51] sm:$0xff]
      %v1402 = vld [vmem:[%s313 + $0x61] sm:$0xff]
      %v1403 = vld [vmem:[%s313 + $0x69] sm:$0xff]
      %v1404 = vld [vmem:[%s313 + $0x79] sm:$0xff]
      %v1405 = vld [vmem:[%s313 + $0x81] sm:$0xff]
      %v1406 = vld [vmem:[%s313 + $0x91] sm:$0xff]
      %v1407 = vld [vmem:[%s313 + $0x99] sm:$0xff]
      %v1408 = vld [vmem:[%s313 + $0xa9] sm:$0xff]
      %v1409 = vld [vmem:[%s313 + $0xb1] sm:$0xff]
      %v1410 = vld [vmem:[%s313 + $0xc1] sm:$0xff]
      %v1411 = vld [vmem:[%s313 + $0xc9] sm:$0xff]
      %v1412 = vld [vmem:[%s313 + $0xd9] sm:$0xff]
      %v1413 = vld [vmem:[%s313 + $0xe1] sm:$0xff]
      %v1414 = vld [vmem:[%s313 + $0xf1] sm:$0xff]
      %v1415 = vld [vmem:[%s313 + $0xf9] sm:$0xff]
      %v1416 = vld [vmem:[%s313 + $0x109] sm:$0xff]
      %v1417 = vld [vmem:[%s313 + $0x111] sm:$0xff]
      %v1418 = vld [vmem:[%s313 + $0x121] sm:$0xff]
      %v1419 = vld [vmem:[%s313 + $0x129] sm:$0xff]
      %v1420 = vld [vmem:[%s313 + $0x139] sm:$0xff]
      %v1421 = vld [vmem:[%s313 + $0x141] sm:$0xff]
      %v1422 = vld [vmem:[%s313 + $0x151] sm:$0xff]
      %v1423 = vld [vmem:[%s313 + $0x159] sm:$0xff]
      %v1424 = vld [vmem:[%s313 + $0x169] sm:$0xff]
      %v1425 = vld [vmem:[%s313 + $0x171] sm:$0xff]
      %s1426 = scalar_lea.vmem %s1, 128
      %v1427 = vld [vmem:[%s1426] sm:$0xff]
      %v1428 = vld [vmem:[%s1426 + $0x8] sm:$0xff]
      %v1429 = vld [vmem:[%s1426 + $0x10] sm:$0xff]
      %v1430 = vld [vmem:[%s1426 + $0x18] sm:$0xff]
      %v1432 = vsel %vm225, %v1394, 0
      %v1435 = vsel %vm225, %v1395, 0
      %v1438 = vsel %vm225, %v1396, 0
      %v1441 = vsel %vm225, %v1397, 0
      %v1444 = vsel %vm225, %v1398, 0
      %v1447 = vsel %vm225, %v1399, 0
      %v1450 = vsel %vm225, %v1400, 0
      %v1453 = vsel %vm225, %v1401, 0
      %v1456 = vsel %vm225, %v1402, 0
      %v1459 = vsel %vm225, %v1403, 0
      %v1462 = vsel %vm225, %v1404, 0
      %v1465 = vsel %vm225, %v1405, 0
      %v1468 = vsel %vm225, %v1406, 0
      %v1471 = vsel %vm225, %v1407, 0
      %v1474 = vsel %vm225, %v1408, 0
      %v1477 = vsel %vm225, %v1409, 0
      %v1480 = vsel %vm225, %v1410, 0
      %v1483 = vsel %vm225, %v1411, 0
      %v1486 = vsel %vm225, %v1412, 0
      %v1489 = vsel %vm225, %v1413, 0
      %v1492 = vsel %vm225, %v1414, 0
      %v1495 = vsel %vm225, %v1415, 0
      %v1498 = vsel %vm225, %v1416, 0
      %v1501 = vsel %vm225, %v1417, 0
      %v1504 = vsel %vm225, %v1418, 0
      %v1507 = vsel %vm225, %v1419, 0
      %v1510 = vsel %vm225, %v1420, 0
      %v1513 = vsel %vm225, %v1421, 0
      %v1516 = vsel %vm225, %v1422, 0
      %v1519 = vsel %vm225, %v1423, 0
      %v1522 = vsel %vm225, %v1424, 0
      %v1525 = vsel %vm225, %v1425, 0
      %1527 = vmatpush.msra.mxu0 0.0
      %1528 = vmatpush.msra.mxu0 0.0
      %1529 = vmatpush.msra.mxu0 0.0
      %1530 = vmatpush.msra.mxu0 0.0
      %1531 = vmatpush.msra.mxu0 0.0
      %1532 = vmatpush.msra.mxu0 0.0
      %1533 = vmatpush.msra.mxu0 0.0
      %1534 = vmatpush.msra.mxu0 0.0
      %1535 = vmatpush.msra.mxu0 0.0
      %1536 = vmatpush.msra.mxu0 0.0
      %1537 = vmatpush.msra.mxu0 0.0
      %1538 = vmatpush.msra.mxu0 0.0
      %1539 = vmatpush.msra.mxu0 %v1430
      %1540 = vmatpush.msra.mxu0 %v1429
      %1541 = vmatpush.msra.mxu0 %v1428
      %1542 = vmatpush.msra.mxu0 %v1427
      %1543 = vmatmul.f32.gmra.mxu0 %v1432
      %v1544 = vpop.f32.mrf.mxu0
      %v1545 = vadd.f32 0.0, %v1544
      %1546 = vmatmul.f32.gmra.mxu0 %v1435
      %v1547 = vpop.f32.mrf.mxu0
      %v1548 = vadd.f32 0.0, %v1547
      %1549 = vmatmul.f32.gmra.mxu0 %v1438
      %v1550 = vpop.f32.mrf.mxu0
      %v1551 = vadd.f32 0.0, %v1550
      %1552 = vmatmul.f32.gmra.mxu0 %v1441
      %v1553 = vpop.f32.mrf.mxu0
      %v1554 = vadd.f32 0.0, %v1553
      %1555 = vmatmul.f32.gmra.mxu0 %v1444
      %v1556 = vpop.f32.mrf.mxu0
      %v1557 = vadd.f32 0.0, %v1556
      %1558 = vmatmul.f32.gmra.mxu0 %v1447
      %v1559 = vpop.f32.mrf.mxu0
      %v1560 = vadd.f32 0.0, %v1559
      %1561 = vmatmul.f32.gmra.mxu0 %v1450
      %v1562 = vpop.f32.mrf.mxu0
      %v1563 = vadd.f32 0.0, %v1562
      %1564 = vmatmul.f32.gmra.mxu0 %v1453
      %v1565 = vpop.f32.mrf.mxu0
      %v1566 = vadd.f32 0.0, %v1565
      %1567 = vmatmul.f32.gmra.mxu0 %v1456
      %v1568 = vpop.f32.mrf.mxu0
      %v1569 = vadd.f32 0.0, %v1568
      %1570 = vmatmul.f32.gmra.mxu0 %v1459
      %v1571 = vpop.f32.mrf.mxu0
      %v1572 = vadd.f32 0.0, %v1571
      %1573 = vmatmul.f32.gmra.mxu0 %v1462
      %v1574 = vpop.f32.mrf.mxu0
      %v1575 = vadd.f32 0.0, %v1574
      %1576 = vmatmul.f32.gmra.mxu0 %v1465
      %v1577 = vpop.f32.mrf.mxu0
      %v1578 = vadd.f32 0.0, %v1577
      %1579 = vmatmul.f32.gmra.mxu0 %v1468
      %v1580 = vpop.f32.mrf.mxu0
      %v1581 = vadd.f32 0.0, %v1580
      %1582 = vmatmul.f32.gmra.mxu0 %v1471
      %v1583 = vpop.f32.mrf.mxu0
      %v1584 = vadd.f32 0.0, %v1583
      %1585 = vmatmul.f32.gmra.mxu0 %v1474
      %v1586 = vpop.f32.mrf.mxu0
      %v1587 = vadd.f32 0.0, %v1586
      %1588 = vmatmul.f32.gmra.mxu0 %v1477
      %v1589 = vpop.f32.mrf.mxu0
      %v1590 = vadd.f32 0.0, %v1589
      %1591 = vmatmul.f32.gmra.mxu0 %v1480
      %v1592 = vpop.f32.mrf.mxu0
      %v1593 = vadd.f32 0.0, %v1592
      %1594 = vmatmul.f32.gmra.mxu0 %v1483
      %v1595 = vpop.f32.mrf.mxu0
      %v1596 = vadd.f32 0.0, %v1595
      %1597 = vmatmul.f32.gmra.mxu0 %v1486
      %v1598 = vpop.f32.mrf.mxu0
      %v1599 = vadd.f32 0.0, %v1598
      %1600 = vmatmul.f32.gmra.mxu0 %v1489
      %v1601 = vpop.f32.mrf.mxu0
      %v1602 = vadd.f32 0.0, %v1601
      %1603 = vmatmul.f32.gmra.mxu0 %v1492
      %v1604 = vpop.f32.mrf.mxu0
      %v1605 = vadd.f32 0.0, %v1604
      %1606 = vmatmul.f32.gmra.mxu0 %v1495
      %v1607 = vpop.f32.mrf.mxu0
      %v1608 = vadd.f32 0.0, %v1607
      %1609 = vmatmul.f32.gmra.mxu0 %v1498
      %v1610 = vpop.f32.mrf.mxu0
      %v1611 = vadd.f32 0.0, %v1610
      %1612 = vmatmul.f32.gmra.mxu0 %v1501
      %v1613 = vpop.f32.mrf.mxu0
      %v1614 = vadd.f32 0.0, %v1613
      %1615 = vmatmul.f32.gmra.mxu0 %v1504
      %v1616 = vpop.f32.mrf.mxu0
      %v1617 = vadd.f32 0.0, %v1616
      %1618 = vmatmul.f32.gmra.mxu0 %v1507
      %v1619 = vpop.f32.mrf.mxu0
      %v1620 = vadd.f32 0.0, %v1619
      %1621 = vmatmul.f32.gmra.mxu0 %v1510
      %v1622 = vpop.f32.mrf.mxu0
      %v1623 = vadd.f32 0.0, %v1622
      %1624 = vmatmul.f32.gmra.mxu0 %v1513
      %v1625 = vpop.f32.mrf.mxu0
      %v1626 = vadd.f32 0.0, %v1625
      %1627 = vmatmul.f32.gmra.mxu0 %v1516
      %v1628 = vpop.f32.mrf.mxu0
      %v1629 = vadd.f32 0.0, %v1628
      %1630 = vmatmul.f32.gmra.mxu0 %v1519
      %v1631 = vpop.f32.mrf.mxu0
      %v1632 = vadd.f32 0.0, %v1631
      %1633 = vmatmul.f32.gmra.mxu0 %v1522
      %v1634 = vpop.f32.mrf.mxu0
      %v1635 = vadd.f32 0.0, %v1634
      %1636 = vmatmul.f32.gmra.mxu0 %v1525
      %v1637 = vpop.f32.mrf.mxu0
      %v1638 = vadd.f32 0.0, %v1637
      %1639 = vdwg.mxu0
      %v1640 = vadd.f32 %v1362, %v1545
      %v1641 = vadd.f32 %v1363, %v1548
      %v1642 = vadd.f32 %v1364, %v1551
      %v1643 = vadd.f32 %v1365, %v1554
      %v1644 = vadd.f32 %v1366, %v1557
      %v1645 = vadd.f32 %v1367, %v1560
      %v1646 = vadd.f32 %v1368, %v1563
      %v1647 = vadd.f32 %v1369, %v1566
      %v1648 = vadd.f32 %v1370, %v1569
      %v1649 = vadd.f32 %v1371, %v1572
      %v1650 = vadd.f32 %v1372, %v1575
      %v1651 = vadd.f32 %v1373, %v1578
      %v1652 = vadd.f32 %v1374, %v1581
      %v1653 = vadd.f32 %v1375, %v1584
      %v1654 = vadd.f32 %v1376, %v1587
      %v1655 = vadd.f32 %v1377, %v1590
      %v1656 = vadd.f32 %v1378, %v1593
      %v1657 = vadd.f32 %v1379, %v1596
      %v1658 = vadd.f32 %v1380, %v1599
      %v1659 = vadd.f32 %v1381, %v1602
      %v1660 = vadd.f32 %v1382, %v1605
      %v1661 = vadd.f32 %v1383, %v1608
      %v1662 = vadd.f32 %v1384, %v1611
      %v1663 = vadd.f32 %v1385, %v1614
      %v1664 = vadd.f32 %v1386, %v1617
      %v1665 = vadd.f32 %v1387, %v1620
      %v1666 = vadd.f32 %v1388, %v1623
      %v1667 = vadd.f32 %v1389, %v1626
      %v1668 = vadd.f32 %v1390, %v1629
      %v1669 = vadd.f32 %v1391, %v1632
      %v1670 = vadd.f32 %v1392, %v1635
      %v1671 = vadd.f32 %v1393, %v1638
      %v1672 = vld [vmem:[%s313 + $0x2] sm:$0xff]
      %v1673 = vld [vmem:[%s313 + $0xa] sm:$0xff]
      %v1674 = vld [vmem:[%s313 + $0x1a] sm:$0xff]
      %v1675 = vld [vmem:[%s313 + $0x22] sm:$0xff]
      %v1676 = vld [vmem:[%s313 + $0x32] sm:$0xff]
      %v1677 = vld [vmem:[%s313 + $0x3a] sm:$0xff]
      %v1678 = vld [vmem:[%s313 + $0x4a] sm:$0xff]
      %v1679 = vld [vmem:[%s313 + $0x52] sm:$0xff]
      %v1680 = vld [vmem:[%s313 + $0x62] sm:$0xff]
      %v1681 = vld [vmem:[%s313 + $0x6a] sm:$0xff]
      %v1682 = vld [vmem:[%s313 + $0x7a] sm:$0xff]
      %v1683 = vld [vmem:[%s313 + $0x82] sm:$0xff]
      %v1684 = vld [vmem:[%s313 + $0x92] sm:$0xff]
      %v1685 = vld [vmem:[%s313 + $0x9a] sm:$0xff]
      %v1686 = vld [vmem:[%s313 + $0xaa] sm:$0xff]
      %v1687 = vld [vmem:[%s313 + $0xb2] sm:$0xff]
      %v1688 = vld [vmem:[%s313 + $0xc2] sm:$0xff]
      %v1689 = vld [vmem:[%s313 + $0xca] sm:$0xff]
      %v1690 = vld [vmem:[%s313 + $0xda] sm:$0xff]
      %v1691 = vld [vmem:[%s313 + $0xe2] sm:$0xff]
      %v1692 = vld [vmem:[%s313 + $0xf2] sm:$0xff]
      %v1693 = vld [vmem:[%s313 + $0xfa] sm:$0xff]
      %v1694 = vld [vmem:[%s313 + $0x10a] sm:$0xff]
      %v1695 = vld [vmem:[%s313 + $0x112] sm:$0xff]
      %v1696 = vld [vmem:[%s313 + $0x122] sm:$0xff]
      %v1697 = vld [vmem:[%s313 + $0x12a] sm:$0xff]
      %v1698 = vld [vmem:[%s313 + $0x13a] sm:$0xff]
      %v1699 = vld [vmem:[%s313 + $0x142] sm:$0xff]
      %v1700 = vld [vmem:[%s313 + $0x152] sm:$0xff]
      %v1701 = vld [vmem:[%s313 + $0x15a] sm:$0xff]
      %v1702 = vld [vmem:[%s313 + $0x16a] sm:$0xff]
      %v1703 = vld [vmem:[%s313 + $0x172] sm:$0xff]
      %s1704 = scalar_lea.vmem %s1, 160
      %v1705 = vld [vmem:[%s1704] sm:$0xff]
      %v1706 = vld [vmem:[%s1704 + $0x8] sm:$0xff]
      %v1707 = vld [vmem:[%s1704 + $0x10] sm:$0xff]
      %v1708 = vld [vmem:[%s1704 + $0x18] sm:$0xff]
      %v1710 = vsel %vm225, %v1672, 0
      %v1713 = vsel %vm225, %v1673, 0
      %v1716 = vsel %vm225, %v1674, 0
      %v1719 = vsel %vm225, %v1675, 0
      %v1722 = vsel %vm225, %v1676, 0
      %v1725 = vsel %vm225, %v1677, 0
      %v1728 = vsel %vm225, %v1678, 0
      %v1731 = vsel %vm225, %v1679, 0
      %v1734 = vsel %vm225, %v1680, 0
      %v1737 = vsel %vm225, %v1681, 0
      %v1740 = vsel %vm225, %v1682, 0
      %v1743 = vsel %vm225, %v1683, 0
      %v1746 = vsel %vm225, %v1684, 0
      %v1749 = vsel %vm225, %v1685, 0
      %v1752 = vsel %vm225, %v1686, 0
      %v1755 = vsel %vm225, %v1687, 0
      %v1758 = vsel %vm225, %v1688, 0
      %v1761 = vsel %vm225, %v1689, 0
      %v1764 = vsel %vm225, %v1690, 0
      %v1767 = vsel %vm225, %v1691, 0
      %v1770 = vsel %vm225, %v1692, 0
      %v1773 = vsel %vm225, %v1693, 0
      %v1776 = vsel %vm225, %v1694, 0
      %v1779 = vsel %vm225, %v1695, 0
      %v1782 = vsel %vm225, %v1696, 0
      %v1785 = vsel %vm225, %v1697, 0
      %v1788 = vsel %vm225, %v1698, 0
      %v1791 = vsel %vm225, %v1699, 0
      %v1794 = vsel %vm225, %v1700, 0
      %v1797 = vsel %vm225, %v1701, 0
      %v1800 = vsel %vm225, %v1702, 0
      %v1803 = vsel %vm225, %v1703, 0
      %1805 = vmatpush.msra.mxu0 0.0
      %1806 = vmatpush.msra.mxu0 0.0
      %1807 = vmatpush.msra.mxu0 0.0
      %1808 = vmatpush.msra.mxu0 0.0
      %1809 = vmatpush.msra.mxu0 0.0
      %1810 = vmatpush.msra.mxu0 0.0
      %1811 = vmatpush.msra.mxu0 0.0
      %1812 = vmatpush.msra.mxu0 0.0
      %1813 = vmatpush.msra.mxu0 0.0
      %1814 = vmatpush.msra.mxu0 0.0
      %1815 = vmatpush.msra.mxu0 0.0
      %1816 = vmatpush.msra.mxu0 0.0
      %1817 = vmatpush.msra.mxu0 %v1708
      %1818 = vmatpush.msra.mxu0 %v1707
      %1819 = vmatpush.msra.mxu0 %v1706
      %1820 = vmatpush.msra.mxu0 %v1705
      %1821 = vmatmul.f32.gmra.mxu0 %v1710
      %v1822 = vpop.f32.mrf.mxu0
      %v1823 = vadd.f32 0.0, %v1822
      %1824 = vmatmul.f32.gmra.mxu0 %v1713
      %v1825 = vpop.f32.mrf.mxu0
      %v1826 = vadd.f32 0.0, %v1825
      %1827 = vmatmul.f32.gmra.mxu0 %v1716
      %v1828 = vpop.f32.mrf.mxu0
      %v1829 = vadd.f32 0.0, %v1828
      %1830 = vmatmul.f32.gmra.mxu0 %v1719
      %v1831 = vpop.f32.mrf.mxu0
      %v1832 = vadd.f32 0.0, %v1831
      %1833 = vmatmul.f32.gmra.mxu0 %v1722
      %v1834 = vpop.f32.mrf.mxu0
      %v1835 = vadd.f32 0.0, %v1834
      %1836 = vmatmul.f32.gmra.mxu0 %v1725
      %v1837 = vpop.f32.mrf.mxu0
      %v1838 = vadd.f32 0.0, %v1837
      %1839 = vmatmul.f32.gmra.mxu0 %v1728
      %v1840 = vpop.f32.mrf.mxu0
      %v1841 = vadd.f32 0.0, %v1840
      %1842 = vmatmul.f32.gmra.mxu0 %v1731
      %v1843 = vpop.f32.mrf.mxu0
      %v1844 = vadd.f32 0.0, %v1843
      %1845 = vmatmul.f32.gmra.mxu0 %v1734
      %v1846 = vpop.f32.mrf.mxu0
      %v1847 = vadd.f32 0.0, %v1846
      %1848 = vmatmul.f32.gmra.mxu0 %v1737
      %v1849 = vpop.f32.mrf.mxu0
      %v1850 = vadd.f32 0.0, %v1849
      %1851 = vmatmul.f32.gmra.mxu0 %v1740
      %v1852 = vpop.f32.mrf.mxu0
      %v1853 = vadd.f32 0.0, %v1852
      %1854 = vmatmul.f32.gmra.mxu0 %v1743
      %v1855 = vpop.f32.mrf.mxu0
      %v1856 = vadd.f32 0.0, %v1855
      %1857 = vmatmul.f32.gmra.mxu0 %v1746
      %v1858 = vpop.f32.mrf.mxu0
      %v1859 = vadd.f32 0.0, %v1858
      %1860 = vmatmul.f32.gmra.mxu0 %v1749
      %v1861 = vpop.f32.mrf.mxu0
      %v1862 = vadd.f32 0.0, %v1861
      %1863 = vmatmul.f32.gmra.mxu0 %v1752
      %v1864 = vpop.f32.mrf.mxu0
      %v1865 = vadd.f32 0.0, %v1864
      %1866 = vmatmul.f32.gmra.mxu0 %v1755
      %v1867 = vpop.f32.mrf.mxu0
      %v1868 = vadd.f32 0.0, %v1867
      %1869 = vmatmul.f32.gmra.mxu0 %v1758
      %v1870 = vpop.f32.mrf.mxu0
      %v1871 = vadd.f32 0.0, %v1870
      %1872 = vmatmul.f32.gmra.mxu0 %v1761
      %v1873 = vpop.f32.mrf.mxu0
      %v1874 = vadd.f32 0.0, %v1873
      %1875 = vmatmul.f32.gmra.mxu0 %v1764
      %v1876 = vpop.f32.mrf.mxu0
      %v1877 = vadd.f32 0.0, %v1876
      %1878 = vmatmul.f32.gmra.mxu0 %v1767
      %v1879 = vpop.f32.mrf.mxu0
      %v1880 = vadd.f32 0.0, %v1879
      %1881 = vmatmul.f32.gmra.mxu0 %v1770
      %v1882 = vpop.f32.mrf.mxu0
      %v1883 = vadd.f32 0.0, %v1882
      %1884 = vmatmul.f32.gmra.mxu0 %v1773
      %v1885 = vpop.f32.mrf.mxu0
      %v1886 = vadd.f32 0.0, %v1885
      %1887 = vmatmul.f32.gmra.mxu0 %v1776
      %v1888 = vpop.f32.mrf.mxu0
      %v1889 = vadd.f32 0.0, %v1888
      %1890 = vmatmul.f32.gmra.mxu0 %v1779
      %v1891 = vpop.f32.mrf.mxu0
      %v1892 = vadd.f32 0.0, %v1891
      %1893 = vmatmul.f32.gmra.mxu0 %v1782
      %v1894 = vpop.f32.mrf.mxu0
      %v1895 = vadd.f32 0.0, %v1894
      %1896 = vmatmul.f32.gmra.mxu0 %v1785
      %v1897 = vpop.f32.mrf.mxu0
      %v1898 = vadd.f32 0.0, %v1897
      %1899 = vmatmul.f32.gmra.mxu0 %v1788
      %v1900 = vpop.f32.mrf.mxu0
      %v1901 = vadd.f32 0.0, %v1900
      %1902 = vmatmul.f32.gmra.mxu0 %v1791
      %v1903 = vpop.f32.mrf.mxu0
      %v1904 = vadd.f32 0.0, %v1903
      %1905 = vmatmul.f32.gmra.mxu0 %v1794
      %v1906 = vpop.f32.mrf.mxu0
      %v1907 = vadd.f32 0.0, %v1906
      %1908 = vmatmul.f32.gmra.mxu0 %v1797
      %v1909 = vpop.f32.mrf.mxu0
      %v1910 = vadd.f32 0.0, %v1909
      %1911 = vmatmul.f32.gmra.mxu0 %v1800
      %v1912 = vpop.f32.mrf.mxu0
      %v1913 = vadd.f32 0.0, %v1912
      %1914 = vmatmul.f32.gmra.mxu0 %v1803
      %v1915 = vpop.f32.mrf.mxu0
      %v1916 = vadd.f32 0.0, %v1915
      %1917 = vdwg.mxu0
      %v1918 = vadd.f32 %v1640, %v1823
      %v1919 = vadd.f32 %v1641, %v1826
      %v1920 = vadd.f32 %v1642, %v1829
      %v1921 = vadd.f32 %v1643, %v1832
      %v1922 = vadd.f32 %v1644, %v1835
      %v1923 = vadd.f32 %v1645, %v1838
      %v1924 = vadd.f32 %v1646, %v1841
      %v1925 = vadd.f32 %v1647, %v1844
      %v1926 = vadd.f32 %v1648, %v1847
      %v1927 = vadd.f32 %v1649, %v1850
      %v1928 = vadd.f32 %v1650, %v1853
      %v1929 = vadd.f32 %v1651, %v1856
      %v1930 = vadd.f32 %v1652, %v1859
      %v1931 = vadd.f32 %v1653, %v1862
      %v1932 = vadd.f32 %v1654, %v1865
      %v1933 = vadd.f32 %v1655, %v1868
      %v1934 = vadd.f32 %v1656, %v1871
      %v1935 = vadd.f32 %v1657, %v1874
      %v1936 = vadd.f32 %v1658, %v1877
      %v1937 = vadd.f32 %v1659, %v1880
      %v1938 = vadd.f32 %v1660, %v1883
      %v1939 = vadd.f32 %v1661, %v1886
      %v1940 = vadd.f32 %v1662, %v1889
      %v1941 = vadd.f32 %v1663, %v1892
      %v1942 = vadd.f32 %v1664, %v1895
      %v1943 = vadd.f32 %v1665, %v1898
      %v1944 = vadd.f32 %v1666, %v1901
      %v1945 = vadd.f32 %v1667, %v1904
      %v1946 = vadd.f32 %v1668, %v1907
      %v1947 = vadd.f32 %v1669, %v1910
      %v1948 = vadd.f32 %v1670, %v1913
      %v1949 = vadd.f32 %v1671, %v1916
      %s1950 = scalar_lea.vmem [#allocation2], 48
      %v1951 = vld [vmem:[%s1950] sm:$0xff]
      %v1952 = vld [vmem:[%s1950 + $0x8] sm:$0xff]
      %v1953 = vld [vmem:[%s1950 + $0x18] sm:$0xff]
      %v1954 = vld [vmem:[%s1950 + $0x20] sm:$0xff]
      %v1955 = vld [vmem:[%s1950 + $0x30] sm:$0xff]
      %v1956 = vld [vmem:[%s1950 + $0x38] sm:$0xff]
      %v1957 = vld [vmem:[%s1950 + $0x48] sm:$0xff]
      %v1958 = vld [vmem:[%s1950 + $0x50] sm:$0xff]
      %v1959 = vld [vmem:[%s1950 + $0x60] sm:$0xff]
      %v1960 = vld [vmem:[%s1950 + $0x68] sm:$0xff]
      %v1961 = vld [vmem:[%s1950 + $0x78] sm:$0xff]
      %v1962 = vld [vmem:[%s1950 + $0x80] sm:$0xff]
      %v1963 = vld [vmem:[%s1950 + $0x90] sm:$0xff]
      %v1964 = vld [vmem:[%s1950 + $0x98] sm:$0xff]
      %v1965 = vld [vmem:[%s1950 + $0xa8] sm:$0xff]
      %v1966 = vld [vmem:[%s1950 + $0xb0] sm:$0xff]
      %v1967 = vld [vmem:[%s1950 + $0xc0] sm:$0xff]
      %v1968 = vld [vmem:[%s1950 + $0xc8] sm:$0xff]
      %v1969 = vld [vmem:[%s1950 + $0xd8] sm:$0xff]
      %v1970 = vld [vmem:[%s1950 + $0xe0] sm:$0xff]
      %v1971 = vld [vmem:[%s1950 + $0xf0] sm:$0xff]
      %v1972 = vld [vmem:[%s1950 + $0xf8] sm:$0xff]
      %v1973 = vld [vmem:[%s1950 + $0x108] sm:$0xff]
      %v1974 = vld [vmem:[%s1950 + $0x110] sm:$0xff]
      %v1975 = vld [vmem:[%s1950 + $0x120] sm:$0xff]
      %v1976 = vld [vmem:[%s1950 + $0x128] sm:$0xff]
      %v1977 = vld [vmem:[%s1950 + $0x138] sm:$0xff]
      %v1978 = vld [vmem:[%s1950 + $0x140] sm:$0xff]
      %v1979 = vld [vmem:[%s1950 + $0x150] sm:$0xff]
      %v1980 = vld [vmem:[%s1950 + $0x158] sm:$0xff]
      %v1981 = vld [vmem:[%s1950 + $0x168] sm:$0xff]
      %v1982 = vld [vmem:[%s1950 + $0x170] sm:$0xff]
      %s1983 = scalar_lea.vmem %s1, 192
      %v1984 = vld [vmem:[%s1983] sm:$0xff]
      %v1985 = vld [vmem:[%s1983 + $0x8] sm:$0xff]
      %v1986 = vld [vmem:[%s1983 + $0x10] sm:$0xff]
      %v1987 = vld [vmem:[%s1983 + $0x18] sm:$0xff]
      %v1989 = vsel %vm225, %v1951, 0
      %v1992 = vsel %vm225, %v1952, 0
      %v1995 = vsel %vm225, %v1953, 0
      %v1998 = vsel %vm225, %v1954, 0
      %v2001 = vsel %vm225, %v1955, 0
      %v2004 = vsel %vm225, %v1956, 0
      %v2007 = vsel %vm225, %v1957, 0
      %v2010 = vsel %vm225, %v1958, 0
      %v2013 = vsel %vm225, %v1959, 0
      %v2016 = vsel %vm225, %v1960, 0
      %v2019 = vsel %vm225, %v1961, 0
      %v2022 = vsel %vm225, %v1962, 0
      %v2025 = vsel %vm225, %v1963, 0
      %v2028 = vsel %vm225, %v1964, 0
      %v2031 = vsel %vm225, %v1965, 0
      %v2034 = vsel %vm225, %v1966, 0
      %v2037 = vsel %vm225, %v1967, 0
      %v2040 = vsel %vm225, %v1968, 0
      %v2043 = vsel %vm225, %v1969, 0
      %v2046 = vsel %vm225, %v1970, 0
      %v2049 = vsel %vm225, %v1971, 0
      %v2052 = vsel %vm225, %v1972, 0
      %v2055 = vsel %vm225, %v1973, 0
      %v2058 = vsel %vm225, %v1974, 0
      %v2061 = vsel %vm225, %v1975, 0
      %v2064 = vsel %vm225, %v1976, 0
      %v2067 = vsel %vm225, %v1977, 0
      %v2070 = vsel %vm225, %v1978, 0
      %v2073 = vsel %vm225, %v1979, 0
      %v2076 = vsel %vm225, %v1980, 0
      %v2079 = vsel %vm225, %v1981, 0
      %v2082 = vsel %vm225, %v1982, 0
      %2084 = vmatpush.msra.mxu0 0.0
      %2085 = vmatpush.msra.mxu0 0.0
      %2086 = vmatpush.msra.mxu0 0.0
      %2087 = vmatpush.msra.mxu0 0.0
      %2088 = vmatpush.msra.mxu0 0.0
      %2089 = vmatpush.msra.mxu0 0.0
      %2090 = vmatpush.msra.mxu0 0.0
      %2091 = vmatpush.msra.mxu0 0.0
      %2092 = vmatpush.msra.mxu0 0.0
      %2093 = vmatpush.msra.mxu0 0.0
      %2094 = vmatpush.msra.mxu0 0.0
      %2095 = vmatpush.msra.mxu0 0.0
      %2096 = vmatpush.msra.mxu0 %v1987
      %2097 = vmatpush.msra.mxu0 %v1986
      %2098 = vmatpush.msra.mxu0 %v1985
      %2099 = vmatpush.msra.mxu0 %v1984
      %2100 = vmatmul.f32.gmra.mxu0 %v1989
      %v2101 = vpop.f32.mrf.mxu0
      %v2102 = vadd.f32 0.0, %v2101
      %2103 = vmatmul.f32.gmra.mxu0 %v1992
      %v2104 = vpop.f32.mrf.mxu0
      %v2105 = vadd.f32 0.0, %v2104
      %2106 = vmatmul.f32.gmra.mxu0 %v1995
      %v2107 = vpop.f32.mrf.mxu0
      %v2108 = vadd.f32 0.0, %v2107
      %2109 = vmatmul.f32.gmra.mxu0 %v1998
      %v2110 = vpop.f32.mrf.mxu0
      %v2111 = vadd.f32 0.0, %v2110
      %2112 = vmatmul.f32.gmra.mxu0 %v2001
      %v2113 = vpop.f32.mrf.mxu0
      %v2114 = vadd.f32 0.0, %v2113
      %2115 = vmatmul.f32.gmra.mxu0 %v2004
      %v2116 = vpop.f32.mrf.mxu0
      %v2117 = vadd.f32 0.0, %v2116
      %2118 = vmatmul.f32.gmra.mxu0 %v2007
      %v2119 = vpop.f32.mrf.mxu0
      %v2120 = vadd.f32 0.0, %v2119
      %2121 = vmatmul.f32.gmra.mxu0 %v2010
      %v2122 = vpop.f32.mrf.mxu0
      %v2123 = vadd.f32 0.0, %v2122
      %2124 = vmatmul.f32.gmra.mxu0 %v2013
      %v2125 = vpop.f32.mrf.mxu0
      %v2126 = vadd.f32 0.0, %v2125
      %2127 = vmatmul.f32.gmra.mxu0 %v2016
      %v2128 = vpop.f32.mrf.mxu0
      %v2129 = vadd.f32 0.0, %v2128
      %2130 = vmatmul.f32.gmra.mxu0 %v2019
      %v2131 = vpop.f32.mrf.mxu0
      %v2132 = vadd.f32 0.0, %v2131
      %2133 = vmatmul.f32.gmra.mxu0 %v2022
      %v2134 = vpop.f32.mrf.mxu0
      %v2135 = vadd.f32 0.0, %v2134
      %2136 = vmatmul.f32.gmra.mxu0 %v2025
      %v2137 = vpop.f32.mrf.mxu0
      %v2138 = vadd.f32 0.0, %v2137
      %2139 = vmatmul.f32.gmra.mxu0 %v2028
      %v2140 = vpop.f32.mrf.mxu0
      %v2141 = vadd.f32 0.0, %v2140
      %2142 = vmatmul.f32.gmra.mxu0 %v2031
      %v2143 = vpop.f32.mrf.mxu0
      %v2144 = vadd.f32 0.0, %v2143
      %2145 = vmatmul.f32.gmra.mxu0 %v2034
      %v2146 = vpop.f32.mrf.mxu0
      %v2147 = vadd.f32 0.0, %v2146
      %2148 = vmatmul.f32.gmra.mxu0 %v2037
      %v2149 = vpop.f32.mrf.mxu0
      %v2150 = vadd.f32 0.0, %v2149
      %2151 = vmatmul.f32.gmra.mxu0 %v2040
      %v2152 = vpop.f32.mrf.mxu0
      %v2153 = vadd.f32 0.0, %v2152
      %2154 = vmatmul.f32.gmra.mxu0 %v2043
      %v2155 = vpop.f32.mrf.mxu0
      %v2156 = vadd.f32 0.0, %v2155
      %2157 = vmatmul.f32.gmra.mxu0 %v2046
      %v2158 = vpop.f32.mrf.mxu0
      %v2159 = vadd.f32 0.0, %v2158
      %2160 = vmatmul.f32.gmra.mxu0 %v2049
      %v2161 = vpop.f32.mrf.mxu0
      %v2162 = vadd.f32 0.0, %v2161
      %2163 = vmatmul.f32.gmra.mxu0 %v2052
      %v2164 = vpop.f32.mrf.mxu0
      %v2165 = vadd.f32 0.0, %v2164
      %2166 = vmatmul.f32.gmra.mxu0 %v2055
      %v2167 = vpop.f32.mrf.mxu0
      %v2168 = vadd.f32 0.0, %v2167
      %2169 = vmatmul.f32.gmra.mxu0 %v2058
      %v2170 = vpop.f32.mrf.mxu0
      %v2171 = vadd.f32 0.0, %v2170
      %2172 = vmatmul.f32.gmra.mxu0 %v2061
      %v2173 = vpop.f32.mrf.mxu0
      %v2174 = vadd.f32 0.0, %v2173
      %2175 = vmatmul.f32.gmra.mxu0 %v2064
      %v2176 = vpop.f32.mrf.mxu0
      %v2177 = vadd.f32 0.0, %v2176
      %2178 = vmatmul.f32.gmra.mxu0 %v2067
      %v2179 = vpop.f32.mrf.mxu0
      %v2180 = vadd.f32 0.0, %v2179
      %2181 = vmatmul.f32.gmra.mxu0 %v2070
      %v2182 = vpop.f32.mrf.mxu0
      %v2183 = vadd.f32 0.0, %v2182
      %2184 = vmatmul.f32.gmra.mxu0 %v2073
      %v2185 = vpop.f32.mrf.mxu0
      %v2186 = vadd.f32 0.0, %v2185
      %2187 = vmatmul.f32.gmra.mxu0 %v2076
      %v2188 = vpop.f32.mrf.mxu0
      %v2189 = vadd.f32 0.0, %v2188
      %2190 = vmatmul.f32.gmra.mxu0 %v2079
      %v2191 = vpop.f32.mrf.mxu0
      %v2192 = vadd.f32 0.0, %v2191
      %2193 = vmatmul.f32.gmra.mxu0 %v2082
      %v2194 = vpop.f32.mrf.mxu0
      %v2195 = vadd.f32 0.0, %v2194
      %2196 = vdwg.mxu0
      %v2197 = vadd.f32 %v1918, %v2102
      %v2198 = vadd.f32 %v1919, %v2105
      %v2199 = vadd.f32 %v1920, %v2108
      %v2200 = vadd.f32 %v1921, %v2111
      %v2201 = vadd.f32 %v1922, %v2114
      %v2202 = vadd.f32 %v1923, %v2117
      %v2203 = vadd.f32 %v1924, %v2120
      %v2204 = vadd.f32 %v1925, %v2123
      %v2205 = vadd.f32 %v1926, %v2126
      %v2206 = vadd.f32 %v1927, %v2129
      %v2207 = vadd.f32 %v1928, %v2132
      %v2208 = vadd.f32 %v1929, %v2135
      %v2209 = vadd.f32 %v1930, %v2138
      %v2210 = vadd.f32 %v1931, %v2141
      %v2211 = vadd.f32 %v1932, %v2144
      %v2212 = vadd.f32 %v1933, %v2147
      %v2213 = vadd.f32 %v1934, %v2150
      %v2214 = vadd.f32 %v1935, %v2153
      %v2215 = vadd.f32 %v1936, %v2156
      %v2216 = vadd.f32 %v1937, %v2159
      %v2217 = vadd.f32 %v1938, %v2162
      %v2218 = vadd.f32 %v1939, %v2165
      %v2219 = vadd.f32 %v1940, %v2168
      %v2220 = vadd.f32 %v1941, %v2171
      %v2221 = vadd.f32 %v1942, %v2174
      %v2222 = vadd.f32 %v1943, %v2177
      %v2223 = vadd.f32 %v1944, %v2180
      %v2224 = vadd.f32 %v1945, %v2183
      %v2225 = vadd.f32 %v1946, %v2186
      %v2226 = vadd.f32 %v1947, %v2189
      %v2227 = vadd.f32 %v1948, %v2192
      %v2228 = vadd.f32 %v1949, %v2195
      %v2229 = vld [vmem:[%s1950 + $0x1] sm:$0xff]
      %v2230 = vld [vmem:[%s1950 + $0x9] sm:$0xff]
      %v2231 = vld [vmem:[%s1950 + $0x19] sm:$0xff]
      %v2232 = vld [vmem:[%s1950 + $0x21] sm:$0xff]
      %v2233 = vld [vmem:[%s1950 + $0x31] sm:$0xff]
      %v2234 = vld [vmem:[%s1950 + $0x39] sm:$0xff]
      %v2235 = vld [vmem:[%s1950 + $0x49] sm:$0xff]
      %v2236 = vld [vmem:[%s1950 + $0x51] sm:$0xff]
      %v2237 = vld [vmem:[%s1950 + $0x61] sm:$0xff]
      %v2238 = vld [vmem:[%s1950 + $0x69] sm:$0xff]
      %v2239 = vld [vmem:[%s1950 + $0x79] sm:$0xff]
      %v2240 = vld [vmem:[%s1950 + $0x81] sm:$0xff]
      %v2241 = vld [vmem:[%s1950 + $0x91] sm:$0xff]
      %v2242 = vld [vmem:[%s1950 + $0x99] sm:$0xff]
      %v2243 = vld [vmem:[%s1950 + $0xa9] sm:$0xff]
      %v2244 = vld [vmem:[%s1950 + $0xb1] sm:$0xff]
      %v2245 = vld [vmem:[%s1950 + $0xc1] sm:$0xff]
      %v2246 = vld [vmem:[%s1950 + $0xc9] sm:$0xff]
      %v2247 = vld [vmem:[%s1950 + $0xd9] sm:$0xff]
      %v2248 = vld [vmem:[%s1950 + $0xe1] sm:$0xff]
      %v2249 = vld [vmem:[%s1950 + $0xf1] sm:$0xff]
      %v2250 = vld [vmem:[%s1950 + $0xf9] sm:$0xff]
      %v2251 = vld [vmem:[%s1950 + $0x109] sm:$0xff]
      %v2252 = vld [vmem:[%s1950 + $0x111] sm:$0xff]
      %v2253 = vld [vmem:[%s1950 + $0x121] sm:$0xff]
      %v2254 = vld [vmem:[%s1950 + $0x129] sm:$0xff]
      %v2255 = vld [vmem:[%s1950 + $0x139] sm:$0xff]
      %v2256 = vld [vmem:[%s1950 + $0x141] sm:$0xff]
      %v2257 = vld [vmem:[%s1950 + $0x151] sm:$0xff]
      %v2258 = vld [vmem:[%s1950 + $0x159] sm:$0xff]
      %v2259 = vld [vmem:[%s1950 + $0x169] sm:$0xff]
      %v2260 = vld [vmem:[%s1950 + $0x171] sm:$0xff]
      %s2261 = scalar_lea.vmem %s1, 224
      %v2262 = vld [vmem:[%s2261] sm:$0xff]
      %v2263 = vld [vmem:[%s2261 + $0x8] sm:$0xff]
      %v2264 = vld [vmem:[%s2261 + $0x10] sm:$0xff]
      %v2265 = vld [vmem:[%s2261 + $0x18] sm:$0xff]
      %v2267 = vsel %vm225, %v2229, 0
      %v2270 = vsel %vm225, %v2230, 0
      %v2273 = vsel %vm225, %v2231, 0
      %v2276 = vsel %vm225, %v2232, 0
      %v2279 = vsel %vm225, %v2233, 0
      %v2282 = vsel %vm225, %v2234, 0
      %v2285 = vsel %vm225, %v2235, 0
      %v2288 = vsel %vm225, %v2236, 0
      %v2291 = vsel %vm225, %v2237, 0
      %v2294 = vsel %vm225, %v2238, 0
      %v2297 = vsel %vm225, %v2239, 0
      %v2300 = vsel %vm225, %v2240, 0
      %v2303 = vsel %vm225, %v2241, 0
      %v2306 = vsel %vm225, %v2242, 0
      %v2309 = vsel %vm225, %v2243, 0
      %v2312 = vsel %vm225, %v2244, 0
      %v2315 = vsel %vm225, %v2245, 0
      %v2318 = vsel %vm225, %v2246, 0
      %v2321 = vsel %vm225, %v2247, 0
      %v2324 = vsel %vm225, %v2248, 0
      %v2327 = vsel %vm225, %v2249, 0
      %v2330 = vsel %vm225, %v2250, 0
      %v2333 = vsel %vm225, %v2251, 0
      %v2336 = vsel %vm225, %v2252, 0
      %v2339 = vsel %vm225, %v2253, 0
      %v2342 = vsel %vm225, %v2254, 0
      %v2345 = vsel %vm225, %v2255, 0
      %v2348 = vsel %vm225, %v2256, 0
      %v2351 = vsel %vm225, %v2257, 0
      %v2354 = vsel %vm225, %v2258, 0
      %v2357 = vsel %vm225, %v2259, 0
      %v2360 = vsel %vm225, %v2260, 0
      %2362 = vmatpush.msra.mxu0 0.0
      %2363 = vmatpush.msra.mxu0 0.0
      %2364 = vmatpush.msra.mxu0 0.0
      %2365 = vmatpush.msra.mxu0 0.0
      %2366 = vmatpush.msra.mxu0 0.0
      %2367 = vmatpush.msra.mxu0 0.0
      %2368 = vmatpush.msra.mxu0 0.0
      %2369 = vmatpush.msra.mxu0 0.0
      %2370 = vmatpush.msra.mxu0 0.0
      %2371 = vmatpush.msra.mxu0 0.0
      %2372 = vmatpush.msra.mxu0 0.0
      %2373 = vmatpush.msra.mxu0 0.0
      %2374 = vmatpush.msra.mxu0 %v2265
      %2375 = vmatpush.msra.mxu0 %v2264
      %2376 = vmatpush.msra.mxu0 %v2263
      %2377 = vmatpush.msra.mxu0 %v2262
      %2378 = vmatmul.f32.gmra.mxu0 %v2267
      %v2379 = vpop.f32.mrf.mxu0
      %v2380 = vadd.f32 0.0, %v2379
      %2381 = vmatmul.f32.gmra.mxu0 %v2270
      %v2382 = vpop.f32.mrf.mxu0
      %v2383 = vadd.f32 0.0, %v2382
      %2384 = vmatmul.f32.gmra.mxu0 %v2273
      %v2385 = vpop.f32.mrf.mxu0
      %v2386 = vadd.f32 0.0, %v2385
      %2387 = vmatmul.f32.gmra.mxu0 %v2276
      %v2388 = vpop.f32.mrf.mxu0
      %v2389 = vadd.f32 0.0, %v2388
      %2390 = vmatmul.f32.gmra.mxu0 %v2279
      %v2391 = vpop.f32.mrf.mxu0
      %v2392 = vadd.f32 0.0, %v2391
      %2393 = vmatmul.f32.gmra.mxu0 %v2282
      %v2394 = vpop.f32.mrf.mxu0
      %v2395 = vadd.f32 0.0, %v2394
      %2396 = vmatmul.f32.gmra.mxu0 %v2285
      %v2397 = vpop.f32.mrf.mxu0
      %v2398 = vadd.f32 0.0, %v2397
      %2399 = vmatmul.f32.gmra.mxu0 %v2288
      %v2400 = vpop.f32.mrf.mxu0
      %v2401 = vadd.f32 0.0, %v2400
      %2402 = vmatmul.f32.gmra.mxu0 %v2291
      %v2403 = vpop.f32.mrf.mxu0
      %v2404 = vadd.f32 0.0, %v2403
      %2405 = vmatmul.f32.gmra.mxu0 %v2294
      %v2406 = vpop.f32.mrf.mxu0
      %v2407 = vadd.f32 0.0, %v2406
      %2408 = vmatmul.f32.gmra.mxu0 %v2297
      %v2409 = vpop.f32.mrf.mxu0
      %v2410 = vadd.f32 0.0, %v2409
      %2411 = vmatmul.f32.gmra.mxu0 %v2300
      %v2412 = vpop.f32.mrf.mxu0
      %v2413 = vadd.f32 0.0, %v2412
      %2414 = vmatmul.f32.gmra.mxu0 %v2303
      %v2415 = vpop.f32.mrf.mxu0
      %v2416 = vadd.f32 0.0, %v2415
      %2417 = vmatmul.f32.gmra.mxu0 %v2306
      %v2418 = vpop.f32.mrf.mxu0
      %v2419 = vadd.f32 0.0, %v2418
      %2420 = vmatmul.f32.gmra.mxu0 %v2309
      %v2421 = vpop.f32.mrf.mxu0
      %v2422 = vadd.f32 0.0, %v2421
      %2423 = vmatmul.f32.gmra.mxu0 %v2312
      %v2424 = vpop.f32.mrf.mxu0
      %v2425 = vadd.f32 0.0, %v2424
      %2426 = vmatmul.f32.gmra.mxu0 %v2315
      %v2427 = vpop.f32.mrf.mxu0
      %v2428 = vadd.f32 0.0, %v2427
      %2429 = vmatmul.f32.gmra.mxu0 %v2318
      %v2430 = vpop.f32.mrf.mxu0
      %v2431 = vadd.f32 0.0, %v2430
      %2432 = vmatmul.f32.gmra.mxu0 %v2321
      %v2433 = vpop.f32.mrf.mxu0
      %v2434 = vadd.f32 0.0, %v2433
      %2435 = vmatmul.f32.gmra.mxu0 %v2324
      %v2436 = vpop.f32.mrf.mxu0
      %v2437 = vadd.f32 0.0, %v2436
      %2438 = vmatmul.f32.gmra.mxu0 %v2327
      %v2439 = vpop.f32.mrf.mxu0
      %v2440 = vadd.f32 0.0, %v2439
      %2441 = vmatmul.f32.gmra.mxu0 %v2330
      %v2442 = vpop.f32.mrf.mxu0
      %v2443 = vadd.f32 0.0, %v2442
      %2444 = vmatmul.f32.gmra.mxu0 %v2333
      %v2445 = vpop.f32.mrf.mxu0
      %v2446 = vadd.f32 0.0, %v2445
      %2447 = vmatmul.f32.gmra.mxu0 %v2336
      %v2448 = vpop.f32.mrf.mxu0
      %v2449 = vadd.f32 0.0, %v2448
      %2450 = vmatmul.f32.gmra.mxu0 %v2339
      %v2451 = vpop.f32.mrf.mxu0
      %v2452 = vadd.f32 0.0, %v2451
      %2453 = vmatmul.f32.gmra.mxu0 %v2342
      %v2454 = vpop.f32.mrf.mxu0
      %v2455 = vadd.f32 0.0, %v2454
      %2456 = vmatmul.f32.gmra.mxu0 %v2345
      %v2457 = vpop.f32.mrf.mxu0
      %v2458 = vadd.f32 0.0, %v2457
      %2459 = vmatmul.f32.gmra.mxu0 %v2348
      %v2460 = vpop.f32.mrf.mxu0
      %v2461 = vadd.f32 0.0, %v2460
      %2462 = vmatmul.f32.gmra.mxu0 %v2351
      %v2463 = vpop.f32.mrf.mxu0
      %v2464 = vadd.f32 0.0, %v2463
      %2465 = vmatmul.f32.gmra.mxu0 %v2354
      %v2466 = vpop.f32.mrf.mxu0
      %v2467 = vadd.f32 0.0, %v2466
      %2468 = vmatmul.f32.gmra.mxu0 %v2357
      %v2469 = vpop.f32.mrf.mxu0
      %v2470 = vadd.f32 0.0, %v2469
      %2471 = vmatmul.f32.gmra.mxu0 %v2360
      %v2472 = vpop.f32.mrf.mxu0
      %v2473 = vadd.f32 0.0, %v2472
      %2474 = vdwg.mxu0
      %v2475 = vadd.f32 %v2197, %v2380
      %v2476 = vadd.f32 %v2198, %v2383
      %v2477 = vadd.f32 %v2199, %v2386
      %v2478 = vadd.f32 %v2200, %v2389
      %v2479 = vadd.f32 %v2201, %v2392
      %v2480 = vadd.f32 %v2202, %v2395
      %v2481 = vadd.f32 %v2203, %v2398
      %v2482 = vadd.f32 %v2204, %v2401
      %v2483 = vadd.f32 %v2205, %v2404
      %v2484 = vadd.f32 %v2206, %v2407
      %v2485 = vadd.f32 %v2207, %v2410
      %v2486 = vadd.f32 %v2208, %v2413
      %v2487 = vadd.f32 %v2209, %v2416
      %v2488 = vadd.f32 %v2210, %v2419
      %v2489 = vadd.f32 %v2211, %v2422
      %v2490 = vadd.f32 %v2212, %v2425
      %v2491 = vadd.f32 %v2213, %v2428
      %v2492 = vadd.f32 %v2214, %v2431
      %v2493 = vadd.f32 %v2215, %v2434
      %v2494 = vadd.f32 %v2216, %v2437
      %v2495 = vadd.f32 %v2217, %v2440
      %v2496 = vadd.f32 %v2218, %v2443
      %v2497 = vadd.f32 %v2219, %v2446
      %v2498 = vadd.f32 %v2220, %v2449
      %v2499 = vadd.f32 %v2221, %v2452
      %v2500 = vadd.f32 %v2222, %v2455
      %v2501 = vadd.f32 %v2223, %v2458
      %v2502 = vadd.f32 %v2224, %v2461
      %v2503 = vadd.f32 %v2225, %v2464
      %v2504 = vadd.f32 %v2226, %v2467
      %v2505 = vadd.f32 %v2227, %v2470
      %v2506 = vadd.f32 %v2228, %v2473
      %v2507 = vld [vmem:[%s1950 + $0x2] sm:$0xff]
      %v2508 = vld [vmem:[%s1950 + $0xa] sm:$0xff]
      %v2509 = vld [vmem:[%s1950 + $0x1a] sm:$0xff]
      %v2510 = vld [vmem:[%s1950 + $0x22] sm:$0xff]
      %v2511 = vld [vmem:[%s1950 + $0x32] sm:$0xff]
      %v2512 = vld [vmem:[%s1950 + $0x3a] sm:$0xff]
      %v2513 = vld [vmem:[%s1950 + $0x4a] sm:$0xff]
      %v2514 = vld [vmem:[%s1950 + $0x52] sm:$0xff]
      %v2515 = vld [vmem:[%s1950 + $0x62] sm:$0xff]
      %v2516 = vld [vmem:[%s1950 + $0x6a] sm:$0xff]
      %v2517 = vld [vmem:[%s1950 + $0x7a] sm:$0xff]
      %v2518 = vld [vmem:[%s1950 + $0x82] sm:$0xff]
      %v2519 = vld [vmem:[%s1950 + $0x92] sm:$0xff]
      %v2520 = vld [vmem:[%s1950 + $0x9a] sm:$0xff]
      %v2521 = vld [vmem:[%s1950 + $0xaa] sm:$0xff]
      %v2522 = vld [vmem:[%s1950 + $0xb2] sm:$0xff]
      %v2523 = vld [vmem:[%s1950 + $0xc2] sm:$0xff]
      %v2524 = vld [vmem:[%s1950 + $0xca] sm:$0xff]
      %v2525 = vld [vmem:[%s1950 + $0xda] sm:$0xff]
      %v2526 = vld [vmem:[%s1950 + $0xe2] sm:$0xff]
      %v2527 = vld [vmem:[%s1950 + $0xf2] sm:$0xff]
      %v2528 = vld [vmem:[%s1950 + $0xfa] sm:$0xff]
      %v2529 = vld [vmem:[%s1950 + $0x10a] sm:$0xff]
      %v2530 = vld [vmem:[%s1950 + $0x112] sm:$0xff]
      %v2531 = vld [vmem:[%s1950 + $0x122] sm:$0xff]
      %v2532 = vld [vmem:[%s1950 + $0x12a] sm:$0xff]
      %v2533 = vld [vmem:[%s1950 + $0x13a] sm:$0xff]
      %v2534 = vld [vmem:[%s1950 + $0x142] sm:$0xff]
      %v2535 = vld [vmem:[%s1950 + $0x152] sm:$0xff]
      %v2536 = vld [vmem:[%s1950 + $0x15a] sm:$0xff]
      %v2537 = vld [vmem:[%s1950 + $0x16a] sm:$0xff]
      %v2538 = vld [vmem:[%s1950 + $0x172] sm:$0xff]
      %s2539 = scalar_lea.vmem %s1, 256
      %v2540 = vld [vmem:[%s2539] sm:$0xff]
      %v2541 = vld [vmem:[%s2539 + $0x8] sm:$0xff]
      %v2542 = vld [vmem:[%s2539 + $0x10] sm:$0xff]
      %v2543 = vld [vmem:[%s2539 + $0x18] sm:$0xff]
      %v2545 = vsel %vm225, %v2507, 0
      %v2548 = vsel %vm225, %v2508, 0
      %v2551 = vsel %vm225, %v2509, 0
      %v2554 = vsel %vm225, %v2510, 0
      %v2557 = vsel %vm225, %v2511, 0
      %v2560 = vsel %vm225, %v2512, 0
      %v2563 = vsel %vm225, %v2513, 0
      %v2566 = vsel %vm225, %v2514, 0
      %v2569 = vsel %vm225, %v2515, 0
      %v2572 = vsel %vm225, %v2516, 0
      %v2575 = vsel %vm225, %v2517, 0
      %v2578 = vsel %vm225, %v2518, 0
      %v2581 = vsel %vm225, %v2519, 0
      %v2584 = vsel %vm225, %v2520, 0
      %v2587 = vsel %vm225, %v2521, 0
      %v2590 = vsel %vm225, %v2522, 0
      %v2593 = vsel %vm225, %v2523, 0
      %v2596 = vsel %vm225, %v2524, 0
      %v2599 = vsel %vm225, %v2525, 0
      %v2602 = vsel %vm225, %v2526, 0
      %v2605 = vsel %vm225, %v2527, 0
      %v2608 = vsel %vm225, %v2528, 0
      %v2611 = vsel %vm225, %v2529, 0
      %v2614 = vsel %vm225, %v2530, 0
      %v2617 = vsel %vm225, %v2531, 0
      %v2620 = vsel %vm225, %v2532, 0
      %v2623 = vsel %vm225, %v2533, 0
      %v2626 = vsel %vm225, %v2534, 0
      %v2629 = vsel %vm225, %v2535, 0
      %v2632 = vsel %vm225, %v2536, 0
      %v2635 = vsel %vm225, %v2537, 0
      %v2638 = vsel %vm225, %v2538, 0
      %2640 = vmatpush.msra.mxu0 0.0
      %2641 = vmatpush.msra.mxu0 0.0
      %2642 = vmatpush.msra.mxu0 0.0
      %2643 = vmatpush.msra.mxu0 0.0
      %2644 = vmatpush.msra.mxu0 0.0
      %2645 = vmatpush.msra.mxu0 0.0
      %2646 = vmatpush.msra.mxu0 0.0
      %2647 = vmatpush.msra.mxu0 0.0
      %2648 = vmatpush.msra.mxu0 0.0
      %2649 = vmatpush.msra.mxu0 0.0
      %2650 = vmatpush.msra.mxu0 0.0
      %2651 = vmatpush.msra.mxu0 0.0
      %2652 = vmatpush.msra.mxu0 %v2543
      %2653 = vmatpush.msra.mxu0 %v2542
      %2654 = vmatpush.msra.mxu0 %v2541
      %2655 = vmatpush.msra.mxu0 %v2540
      %2656 = vmatmul.f32.gmra.mxu0 %v2545
      %v2657 = vpop.f32.mrf.mxu0
      %v2658 = vadd.f32 0.0, %v2657
      %2659 = vmatmul.f32.gmra.mxu0 %v2548
      %v2660 = vpop.f32.mrf.mxu0
      %v2661 = vadd.f32 0.0, %v2660
      %2662 = vmatmul.f32.gmra.mxu0 %v2551
      %v2663 = vpop.f32.mrf.mxu0
      %v2664 = vadd.f32 0.0, %v2663
      %2665 = vmatmul.f32.gmra.mxu0 %v2554
      %v2666 = vpop.f32.mrf.mxu0
      %v2667 = vadd.f32 0.0, %v2666
      %2668 = vmatmul.f32.gmra.mxu0 %v2557
      %v2669 = vpop.f32.mrf.mxu0
      %v2670 = vadd.f32 0.0, %v2669
      %2671 = vmatmul.f32.gmra.mxu0 %v2560
      %v2672 = vpop.f32.mrf.mxu0
      %v2673 = vadd.f32 0.0, %v2672
      %2674 = vmatmul.f32.gmra.mxu0 %v2563
      %v2675 = vpop.f32.mrf.mxu0
      %v2676 = vadd.f32 0.0, %v2675
      %2677 = vmatmul.f32.gmra.mxu0 %v2566
      %v2678 = vpop.f32.mrf.mxu0
      %v2679 = vadd.f32 0.0, %v2678
      %2680 = vmatmul.f32.gmra.mxu0 %v2569
      %v2681 = vpop.f32.mrf.mxu0
      %v2682 = vadd.f32 0.0, %v2681
      %2683 = vmatmul.f32.gmra.mxu0 %v2572
      %v2684 = vpop.f32.mrf.mxu0
      %v2685 = vadd.f32 0.0, %v2684
      %2686 = vmatmul.f32.gmra.mxu0 %v2575
      %v2687 = vpop.f32.mrf.mxu0
      %v2688 = vadd.f32 0.0, %v2687
      %2689 = vmatmul.f32.gmra.mxu0 %v2578
      %v2690 = vpop.f32.mrf.mxu0
      %v2691 = vadd.f32 0.0, %v2690
      %2692 = vmatmul.f32.gmra.mxu0 %v2581
      %v2693 = vpop.f32.mrf.mxu0
      %v2694 = vadd.f32 0.0, %v2693
      %2695 = vmatmul.f32.gmra.mxu0 %v2584
      %v2696 = vpop.f32.mrf.mxu0
      %v2697 = vadd.f32 0.0, %v2696
      %2698 = vmatmul.f32.gmra.mxu0 %v2587
      %v2699 = vpop.f32.mrf.mxu0
      %v2700 = vadd.f32 0.0, %v2699
      %2701 = vmatmul.f32.gmra.mxu0 %v2590
      %v2702 = vpop.f32.mrf.mxu0
      %v2703 = vadd.f32 0.0, %v2702
      %2704 = vmatmul.f32.gmra.mxu0 %v2593
      %v2705 = vpop.f32.mrf.mxu0
      %v2706 = vadd.f32 0.0, %v2705
      %2707 = vmatmul.f32.gmra.mxu0 %v2596
      %v2708 = vpop.f32.mrf.mxu0
      %v2709 = vadd.f32 0.0, %v2708
      %2710 = vmatmul.f32.gmra.mxu0 %v2599
      %v2711 = vpop.f32.mrf.mxu0
      %v2712 = vadd.f32 0.0, %v2711
      %2713 = vmatmul.f32.gmra.mxu0 %v2602
      %v2714 = vpop.f32.mrf.mxu0
      %v2715 = vadd.f32 0.0, %v2714
      %2716 = vmatmul.f32.gmra.mxu0 %v2605
      %v2717 = vpop.f32.mrf.mxu0
      %v2718 = vadd.f32 0.0, %v2717
      %2719 = vmatmul.f32.gmra.mxu0 %v2608
      %v2720 = vpop.f32.mrf.mxu0
      %v2721 = vadd.f32 0.0, %v2720
      %2722 = vmatmul.f32.gmra.mxu0 %v2611
      %v2723 = vpop.f32.mrf.mxu0
      %v2724 = vadd.f32 0.0, %v2723
      %2725 = vmatmul.f32.gmra.mxu0 %v2614
      %v2726 = vpop.f32.mrf.mxu0
      %v2727 = vadd.f32 0.0, %v2726
      %2728 = vmatmul.f32.gmra.mxu0 %v2617
      %v2729 = vpop.f32.mrf.mxu0
      %v2730 = vadd.f32 0.0, %v2729
      %2731 = vmatmul.f32.gmra.mxu0 %v2620
      %v2732 = vpop.f32.mrf.mxu0
      %v2733 = vadd.f32 0.0, %v2732
      %2734 = vmatmul.f32.gmra.mxu0 %v2623
      %v2735 = vpop.f32.mrf.mxu0
      %v2736 = vadd.f32 0.0, %v2735
      %2737 = vmatmul.f32.gmra.mxu0 %v2626
      %v2738 = vpop.f32.mrf.mxu0
      %v2739 = vadd.f32 0.0, %v2738
      %2740 = vmatmul.f32.gmra.mxu0 %v2629
      %v2741 = vpop.f32.mrf.mxu0
      %v2742 = vadd.f32 0.0, %v2741
      %2743 = vmatmul.f32.gmra.mxu0 %v2632
      %v2744 = vpop.f32.mrf.mxu0
      %v2745 = vadd.f32 0.0, %v2744
      %2746 = vmatmul.f32.gmra.mxu0 %v2635
      %v2747 = vpop.f32.mrf.mxu0
      %v2748 = vadd.f32 0.0, %v2747
      %2749 = vmatmul.f32.gmra.mxu0 %v2638
      %v2750 = vpop.f32.mrf.mxu0
      %v2751 = vadd.f32 0.0, %v2750
      %2752 = vdwg.mxu0
      %v2753 = vadd.f32 %v2475, %v2658
      %v2754 = vadd.f32 %v2476, %v2661
      %v2755 = vadd.f32 %v2477, %v2664
      %v2756 = vadd.f32 %v2478, %v2667
      %v2757 = vadd.f32 %v2479, %v2670
      %v2758 = vadd.f32 %v2480, %v2673
      %v2759 = vadd.f32 %v2481, %v2676
      %v2760 = vadd.f32 %v2482, %v2679
      %v2761 = vadd.f32 %v2483, %v2682
      %v2762 = vadd.f32 %v2484, %v2685
      %v2763 = vadd.f32 %v2485, %v2688
      %v2764 = vadd.f32 %v2486, %v2691
      %v2765 = vadd.f32 %v2487, %v2694
      %v2766 = vadd.f32 %v2488, %v2697
      %v2767 = vadd.f32 %v2489, %v2700
      %v2768 = vadd.f32 %v2490, %v2703
      %v2769 = vadd.f32 %v2491, %v2706
      %v2770 = vadd.f32 %v2492, %v2709
      %v2771 = vadd.f32 %v2493, %v2712
      %v2772 = vadd.f32 %v2494, %v2715
      %v2773 = vadd.f32 %v2495, %v2718
      %v2774 = vadd.f32 %v2496, %v2721
      %v2775 = vadd.f32 %v2497, %v2724
      %v2776 = vadd.f32 %v2498, %v2727
      %v2777 = vadd.f32 %v2499, %v2730
      %v2778 = vadd.f32 %v2500, %v2733
      %v2779 = vadd.f32 %v2501, %v2736
      %v2780 = vadd.f32 %v2502, %v2739
      %v2781 = vadd.f32 %v2503, %v2742
      %v2782 = vadd.f32 %v2504, %v2745
      %v2783 = vadd.f32 %v2505, %v2748
      %v2784 = vadd.f32 %v2506, %v2751
      %v2785 = vld [vmem:[%s2] sm:$0x1]
      %v2787 = vperm.slane %v2785, 0
      %v2789 = vadd.f32 %v2753, %v2787
      %v2790 = vadd.f32 %v2754, %v2787
      %v2791 = vadd.f32 %v2755, %v2787
      %v2792 = vadd.f32 %v2756, %v2787
      %v2793 = vadd.f32 %v2757, %v2787
      %v2794 = vadd.f32 %v2758, %v2787
      %v2795 = vadd.f32 %v2759, %v2787
      %v2796 = vadd.f32 %v2760, %v2787
      %v2797 = vadd.f32 %v2761, %v2787
      %v2798 = vadd.f32 %v2762, %v2787
      %v2799 = vadd.f32 %v2763, %v2787
      %v2800 = vadd.f32 %v2764, %v2787
      %v2801 = vadd.f32 %v2765, %v2787
      %v2802 = vadd.f32 %v2766, %v2787
      %v2803 = vadd.f32 %v2767, %v2787
      %v2804 = vadd.f32 %v2768, %v2787
      %v2805 = vadd.f32 %v2769, %v2787
      %v2806 = vadd.f32 %v2770, %v2787
      %v2807 = vadd.f32 %v2771, %v2787
      %v2808 = vadd.f32 %v2772, %v2787
      %v2809 = vadd.f32 %v2773, %v2787
      %v2810 = vadd.f32 %v2774, %v2787
      %v2811 = vadd.f32 %v2775, %v2787
      %v2812 = vadd.f32 %v2776, %v2787
      %v2813 = vadd.f32 %v2777, %v2787
      %v2814 = vadd.f32 %v2778, %v2787
      %v2815 = vadd.f32 %v2779, %v2787
      %v2816 = vadd.f32 %v2780, %v2787
      %v2817 = vadd.f32 %v2781, %v2787
      %v2818 = vadd.f32 %v2782, %v2787
      %v2819 = vadd.f32 %v2783, %v2787
      %v2820 = vadd.f32 %v2784, %v2787
      %v2821 = vmax.f32 %v2789, 0.0
      %v2822 = vmax.f32 %v2790, 0.0
      %v2823 = vmax.f32 %v2791, 0.0
      %v2824 = vmax.f32 %v2792, 0.0
      %v2825 = vmax.f32 %v2793, 0.0
      %v2826 = vmax.f32 %v2794, 0.0
      %v2827 = vmax.f32 %v2795, 0.0
      %v2828 = vmax.f32 %v2796, 0.0
      %v2829 = vmax.f32 %v2797, 0.0
      %v2830 = vmax.f32 %v2798, 0.0
      %v2831 = vmax.f32 %v2799, 0.0
      %v2832 = vmax.f32 %v2800, 0.0
      %v2833 = vmax.f32 %v2801, 0.0
      %v2834 = vmax.f32 %v2802, 0.0
      %v2835 = vmax.f32 %v2803, 0.0
      %v2836 = vmax.f32 %v2804, 0.0
      %v2837 = vmax.f32 %v2805, 0.0
      %v2838 = vmax.f32 %v2806, 0.0
      %v2839 = vmax.f32 %v2807, 0.0
      %v2840 = vmax.f32 %v2808, 0.0
      %v2841 = vmax.f32 %v2809, 0.0
      %v2842 = vmax.f32 %v2810, 0.0
      %v2843 = vmax.f32 %v2811, 0.0
      %v2844 = vmax.f32 %v2812, 0.0
      %v2845 = vmax.f32 %v2813, 0.0
      %v2846 = vmax.f32 %v2814, 0.0
      %v2847 = vmax.f32 %v2815, 0.0
      %v2848 = vmax.f32 %v2816, 0.0
      %v2849 = vmax.f32 %v2817, 0.0
      %v2850 = vmax.f32 %v2818, 0.0
      %v2851 = vmax.f32 %v2819, 0.0
      %v2852 = vmax.f32 %v2820, 0.0
      %2885 = vrot.lane.b32.xlu0 %v2821, 8
      %v2886 = vpop.permute.xlu0 %2885
      %2887 = vrot.lane.b32.xlu0 %v2822, 8
      %v2888 = vpop.permute.xlu0 %2887
      %2889 = vrot.lane.b32.xlu0 %v2823, 8
      %v2890 = vpop.permute.xlu0 %2889
      %2891 = vrot.lane.b32.xlu0 %v2824, 8
      %v2892 = vpop.permute.xlu0 %2891
      %2893 = vrot.lane.b32.xlu0 %v2825, 8
      %v2894 = vpop.permute.xlu0 %2893
      %2895 = vrot.lane.b32.xlu0 %v2826, 8
      %v2896 = vpop.permute.xlu0 %2895
      %2897 = vrot.lane.b32.xlu0 %v2827, 8
      %v2898 = vpop.permute.xlu0 %2897
      %2899 = vrot.lane.b32.xlu0 %v2828, 8
      %v2900 = vpop.permute.xlu0 %2899
      %2901 = vrot.lane.b32.xlu0 %v2829, 8
      %v2902 = vpop.permute.xlu0 %2901
      %2903 = vrot.lane.b32.xlu0 %v2830, 8
      %v2904 = vpop.permute.xlu0 %2903
      %2905 = vrot.lane.b32.xlu0 %v2831, 8
      %v2906 = vpop.permute.xlu0 %2905
      %2907 = vrot.lane.b32.xlu0 %v2832, 8
      %v2908 = vpop.permute.xlu0 %2907
      %2909 = vrot.lane.b32.xlu0 %v2833, 8
      %v2910 = vpop.permute.xlu0 %2909
      %2911 = vrot.lane.b32.xlu0 %v2834, 8
      %v2912 = vpop.permute.xlu0 %2911
      %2913 = vrot.lane.b32.xlu0 %v2835, 8
      %v2914 = vpop.permute.xlu0 %2913
      %2915 = vrot.lane.b32.xlu0 %v2836, 8
      %v2916 = vpop.permute.xlu0 %2915
      %2917 = vrot.lane.b32.xlu0 %v2837, 8
      %v2918 = vpop.permute.xlu0 %2917
      %2919 = vrot.lane.b32.xlu0 %v2838, 8
      %v2920 = vpop.permute.xlu0 %2919
      %2921 = vrot.lane.b32.xlu0 %v2839, 8
      %v2922 = vpop.permute.xlu0 %2921
      %2923 = vrot.lane.b32.xlu0 %v2840, 8
      %v2924 = vpop.permute.xlu0 %2923
      %2925 = vrot.lane.b32.xlu0 %v2841, 8
      %v2926 = vpop.permute.xlu0 %2925
      %2927 = vrot.lane.b32.xlu0 %v2842, 8
      %v2928 = vpop.permute.xlu0 %2927
      %2929 = vrot.lane.b32.xlu0 %v2843, 8
      %v2930 = vpop.permute.xlu0 %2929
      %2931 = vrot.lane.b32.xlu0 %v2844, 8
      %v2932 = vpop.permute.xlu0 %2931
      %2933 = vrot.lane.b32.xlu0 %v2845, 8
      %v2934 = vpop.permute.xlu0 %2933
      %2935 = vrot.lane.b32.xlu0 %v2846, 8
      %v2936 = vpop.permute.xlu0 %2935
      %2937 = vrot.lane.b32.xlu0 %v2847, 8
      %v2938 = vpop.permute.xlu0 %2937
      %2939 = vrot.lane.b32.xlu0 %v2848, 8
      %v2940 = vpop.permute.xlu0 %2939
      %2941 = vrot.lane.b32.xlu0 %v2849, 8
      %v2942 = vpop.permute.xlu0 %2941
      %2943 = vrot.lane.b32.xlu0 %v2850, 8
      %v2944 = vpop.permute.xlu0 %2943
      %2945 = vrot.lane.b32.xlu0 %v2851, 8
      %v2946 = vpop.permute.xlu0 %2945
      %2947 = vrot.lane.b32.xlu0 %v2852, 8
      %v2948 = vpop.permute.xlu0 %2947
      %vm2981 = vcmask 130112
      %2982 = vst.msk [vmem:[%s313 + $0x1] sm:$0xff] %vm2981, %v2886
      %2983 = vst.msk [vmem:[%s313 + $0x9] sm:$0xff] %vm2981, %v2888
      %2984 = vst.msk [vmem:[%s313 + $0x19] sm:$0xff] %vm2981, %v2890
      %2985 = vst.msk [vmem:[%s313 + $0x21] sm:$0xff] %vm2981, %v2892
      %2986 = vst.msk [vmem:[%s313 + $0x31] sm:$0xff] %vm2981, %v2894
      %2987 = vst.msk [vmem:[%s313 + $0x39] sm:$0xff] %vm2981, %v2896
      %2988 = vst.msk [vmem:[%s313 + $0x49] sm:$0xff] %vm2981, %v2898
      %2989 = vst.msk [vmem:[%s313 + $0x51] sm:$0xff] %vm2981, %v2900
      %2990 = vst.msk [vmem:[%s313 + $0x61] sm:$0xff] %vm2981, %v2902
      %2991 = vst.msk [vmem:[%s313 + $0x69] sm:$0xff] %vm2981, %v2904
      %2992 = vst.msk [vmem:[%s313 + $0x79] sm:$0xff] %vm2981, %v2906
      %2993 = vst.msk [vmem:[%s313 + $0x81] sm:$0xff] %vm2981, %v2908
      %2994 = vst.msk [vmem:[%s313 + $0x91] sm:$0xff] %vm2981, %v2910
      %2995 = vst.msk [vmem:[%s313 + $0x99] sm:$0xff] %vm2981, %v2912
      %2996 = vst.msk [vmem:[%s313 + $0xa9] sm:$0xff] %vm2981, %v2914
      %2997 = vst.msk [vmem:[%s313 + $0xb1] sm:$0xff] %vm2981, %v2916
      %2998 = vst.msk [vmem:[%s313 + $0xc1] sm:$0xff] %vm2981, %v2918
      %2999 = vst.msk [vmem:[%s313 + $0xc9] sm:$0xff] %vm2981, %v2920
      %3000 = vst.msk [vmem:[%s313 + $0xd9] sm:$0xff] %vm2981, %v2922
      %3001 = vst.msk [vmem:[%s313 + $0xe1] sm:$0xff] %vm2981, %v2924
      %3002 = vst.msk [vmem:[%s313 + $0xf1] sm:$0xff] %vm2981, %v2926
      %3003 = vst.msk [vmem:[%s313 + $0xf9] sm:$0xff] %vm2981, %v2928
      %3004 = vst.msk [vmem:[%s313 + $0x109] sm:$0xff] %vm2981, %v2930
      %3005 = vst.msk [vmem:[%s313 + $0x111] sm:$0xff] %vm2981, %v2932
      %3006 = vst.msk [vmem:[%s313 + $0x121] sm:$0xff] %vm2981, %v2934
      %3007 = vst.msk [vmem:[%s313 + $0x129] sm:$0xff] %vm2981, %v2936
      %3008 = vst.msk [vmem:[%s313 + $0x139] sm:$0xff] %vm2981, %v2938
      %3009 = vst.msk [vmem:[%s313 + $0x141] sm:$0xff] %vm2981, %v2940
      %3010 = vst.msk [vmem:[%s313 + $0x151] sm:$0xff] %vm2981, %v2942
      %3011 = vst.msk [vmem:[%s313 + $0x159] sm:$0xff] %vm2981, %v2944
      %3012 = vst.msk [vmem:[%s313 + $0x169] sm:$0xff] %vm2981, %v2946
      %3013 = vst.msk [vmem:[%s313 + $0x171] sm:$0xff] %vm2981, %v2948
      %v3014 = vld [vmem:[#allocation2] sm:$0xff]
      %v3015 = vld [vmem:[#allocation2 + $0x8] sm:$0xff]
      %v3016 = vld [vmem:[#allocation2 + $0x18] sm:$0xff]
      %v3017 = vld [vmem:[#allocation2 + $0x20] sm:$0xff]
      %v3018 = vld [vmem:[#allocation2 + $0x30] sm:$0xff]
      %v3019 = vld [vmem:[#allocation2 + $0x38] sm:$0xff]
      %v3020 = vld [vmem:[#allocation2 + $0x48] sm:$0xff]
      %v3021 = vld [vmem:[#allocation2 + $0x50] sm:$0xff]
      %v3022 = vld [vmem:[#allocation2 + $0x60] sm:$0xff]
      %v3023 = vld [vmem:[#allocation2 + $0x68] sm:$0xff]
      %v3024 = vld [vmem:[#allocation2 + $0x78] sm:$0xff]
      %v3025 = vld [vmem:[#allocation2 + $0x80] sm:$0xff]
      %v3026 = vld [vmem:[#allocation2 + $0x90] sm:$0xff]
      %v3027 = vld [vmem:[#allocation2 + $0x98] sm:$0xff]
      %v3028 = vld [vmem:[#allocation2 + $0xa8] sm:$0xff]
      %v3029 = vld [vmem:[#allocation2 + $0xb0] sm:$0xff]
      %v3030 = vld [vmem:[#allocation2 + $0xc0] sm:$0xff]
      %v3031 = vld [vmem:[#allocation2 + $0xc8] sm:$0xff]
      %v3032 = vld [vmem:[#allocation2 + $0xd8] sm:$0xff]
      %v3033 = vld [vmem:[#allocation2 + $0xe0] sm:$0xff]
      %v3034 = vld [vmem:[#allocation2 + $0xf0] sm:$0xff]
      %v3035 = vld [vmem:[#allocation2 + $0xf8] sm:$0xff]
      %v3036 = vld [vmem:[#allocation2 + $0x108] sm:$0xff]
      %v3037 = vld [vmem:[#allocation2 + $0x110] sm:$0xff]
      %v3038 = vld [vmem:[#allocation2 + $0x120] sm:$0xff]
      %v3039 = vld [vmem:[#allocation2 + $0x128] sm:$0xff]
      %v3040 = vld [vmem:[#allocation2 + $0x138] sm:$0xff]
      %v3041 = vld [vmem:[#allocation2 + $0x140] sm:$0xff]
      %v3042 = vld [vmem:[#allocation2 + $0x150] sm:$0xff]
      %v3043 = vld [vmem:[#allocation2 + $0x158] sm:$0xff]
      %v3044 = vld [vmem:[#allocation2 + $0x168] sm:$0xff]
      %v3045 = vld [vmem:[#allocation2 + $0x170] sm:$0xff]
      %s3046 = scalar_lea.vmem %s1, 288
      %v3047 = vld [vmem:[%s3046] sm:$0xff]
      %v3048 = vld [vmem:[%s3046 + $0x8] sm:$0xff]
      %v3049 = vld [vmem:[%s3046 + $0x10] sm:$0xff]
      %v3050 = vld [vmem:[%s3046 + $0x18] sm:$0xff]
      %v3051 = vld [vmem:[#allocation2 + $0x1] sm:$0xff]
      %v3052 = vld [vmem:[#allocation2 + $0x9] sm:$0xff]
      %v3053 = vld [vmem:[#allocation2 + $0x19] sm:$0xff]
      %v3054 = vld [vmem:[#allocation2 + $0x21] sm:$0xff]
      %v3055 = vld [vmem:[#allocation2 + $0x31] sm:$0xff]
      %v3056 = vld [vmem:[#allocation2 + $0x39] sm:$0xff]
      %v3057 = vld [vmem:[#allocation2 + $0x49] sm:$0xff]
      %v3058 = vld [vmem:[#allocation2 + $0x51] sm:$0xff]
      %v3059 = vld [vmem:[#allocation2 + $0x61] sm:$0xff]
      %v3060 = vld [vmem:[#allocation2 + $0x69] sm:$0xff]
      %v3061 = vld [vmem:[#allocation2 + $0x79] sm:$0xff]
      %v3062 = vld [vmem:[#allocation2 + $0x81] sm:$0xff]
      %v3063 = vld [vmem:[#allocation2 + $0x91] sm:$0xff]
      %v3064 = vld [vmem:[#allocation2 + $0x99] sm:$0xff]
      %v3065 = vld [vmem:[#allocation2 + $0xa9] sm:$0xff]
      %v3066 = vld [vmem:[#allocation2 + $0xb1] sm:$0xff]
      %v3067 = vld [vmem:[#allocation2 + $0xc1] sm:$0xff]
      %v3068 = vld [vmem:[#allocation2 + $0xc9] sm:$0xff]
      %v3069 = vld [vmem:[#allocation2 + $0xd9] sm:$0xff]
      %v3070 = vld [vmem:[#allocation2 + $0xe1] sm:$0xff]
      %v3071 = vld [vmem:[#allocation2 + $0xf1] sm:$0xff]
      %v3072 = vld [vmem:[#allocation2 + $0xf9] sm:$0xff]
      %v3073 = vld [vmem:[#allocation2 + $0x109] sm:$0xff]
      %v3074 = vld [vmem:[#allocation2 + $0x111] sm:$0xff]
      %v3075 = vld [vmem:[#allocation2 + $0x121] sm:$0xff]
      %v3076 = vld [vmem:[#allocation2 + $0x129] sm:$0xff]
      %v3077 = vld [vmem:[#allocation2 + $0x139] sm:$0xff]
      %v3078 = vld [vmem:[#allocation2 + $0x141] sm:$0xff]
      %v3079 = vld [vmem:[#allocation2 + $0x151] sm:$0xff]
      %v3080 = vld [vmem:[#allocation2 + $0x159] sm:$0xff]
      %v3081 = vld [vmem:[#allocation2 + $0x169] sm:$0xff]
      %v3082 = vld [vmem:[#allocation2 + $0x171] sm:$0xff]
      %s3083 = scalar_lea.vmem %s1, 320
      %v3084 = vld [vmem:[%s3083] sm:$0xff]
      %v3085 = vld [vmem:[%s3083 + $0x8] sm:$0xff]
      %v3086 = vld [vmem:[%s3083 + $0x10] sm:$0xff]
      %v3087 = vld [vmem:[%s3083 + $0x18] sm:$0xff]
      %v3089 = vsel %vm225, %v3051, 0
      %v3092 = vsel %vm225, %v3052, 0
      %v3095 = vsel %vm225, %v3053, 0
      %v3098 = vsel %vm225, %v3054, 0
      %v3101 = vsel %vm225, %v3055, 0
      %v3104 = vsel %vm225, %v3056, 0
      %v3107 = vsel %vm225, %v3057, 0
      %v3110 = vsel %vm225, %v3058, 0
      %v3113 = vsel %vm225, %v3059, 0
      %v3116 = vsel %vm225, %v3060, 0
      %v3119 = vsel %vm225, %v3061, 0
      %v3122 = vsel %vm225, %v3062, 0
      %v3125 = vsel %vm225, %v3063, 0
      %v3128 = vsel %vm225, %v3064, 0
      %v3131 = vsel %vm225, %v3065, 0
      %v3134 = vsel %vm225, %v3066, 0
      %v3137 = vsel %vm225, %v3067, 0
      %v3140 = vsel %vm225, %v3068, 0
      %v3143 = vsel %vm225, %v3069, 0
      %v3146 = vsel %vm225, %v3070, 0
      %v3149 = vsel %vm225, %v3071, 0
      %v3152 = vsel %vm225, %v3072, 0
      %v3155 = vsel %vm225, %v3073, 0
      %v3158 = vsel %vm225, %v3074, 0
      %v3161 = vsel %vm225, %v3075, 0
      %v3164 = vsel %vm225, %v3076, 0
      %v3167 = vsel %vm225, %v3077, 0
      %v3170 = vsel %vm225, %v3078, 0
      %v3173 = vsel %vm225, %v3079, 0
      %v3176 = vsel %vm225, %v3080, 0
      %v3179 = vsel %vm225, %v3081, 0
      %v3182 = vsel %vm225, %v3082, 0
      %3184 = vmatpush.msra.mxu0 0.0
      %3185 = vmatpush.msra.mxu0 0.0
      %3186 = vmatpush.msra.mxu0 0.0
      %3187 = vmatpush.msra.mxu0 0.0
      %3188 = vmatpush.msra.mxu0 0.0
      %3189 = vmatpush.msra.mxu0 0.0
      %3190 = vmatpush.msra.mxu0 0.0
      %3191 = vmatpush.msra.mxu0 0.0
      %3192 = vmatpush.msra.mxu0 0.0
      %3193 = vmatpush.msra.mxu0 0.0
      %3194 = vmatpush.msra.mxu0 0.0
      %3195 = vmatpush.msra.mxu0 0.0
      %3196 = vmatpush.msra.mxu0 %v3087
      %3197 = vmatpush.msra.mxu0 %v3086
      %3198 = vmatpush.msra.mxu0 %v3085
      %3199 = vmatpush.msra.mxu0 %v3084
      %3200 = vmatmul.f32.gmra.mxu0 %v3089
      %v3201 = vpop.f32.mrf.mxu0
      %v3202 = vadd.f32 0.0, %v3201
      %3203 = vmatmul.f32.gmra.mxu0 %v3092
      %v3204 = vpop.f32.mrf.mxu0
      %v3205 = vadd.f32 0.0, %v3204
      %3206 = vmatmul.f32.gmra.mxu0 %v3095
      %v3207 = vpop.f32.mrf.mxu0
      %v3208 = vadd.f32 0.0, %v3207
      %3209 = vmatmul.f32.gmra.mxu0 %v3098
      %v3210 = vpop.f32.mrf.mxu0
      %v3211 = vadd.f32 0.0, %v3210
      %3212 = vmatmul.f32.gmra.mxu0 %v3101
      %v3213 = vpop.f32.mrf.mxu0
      %v3214 = vadd.f32 0.0, %v3213
      %3215 = vmatmul.f32.gmra.mxu0 %v3104
      %v3216 = vpop.f32.mrf.mxu0
      %v3217 = vadd.f32 0.0, %v3216
      %3218 = vmatmul.f32.gmra.mxu0 %v3107
      %v3219 = vpop.f32.mrf.mxu0
      %v3220 = vadd.f32 0.0, %v3219
      %3221 = vmatmul.f32.gmra.mxu0 %v3110
      %v3222 = vpop.f32.mrf.mxu0
      %v3223 = vadd.f32 0.0, %v3222
      %3224 = vmatmul.f32.gmra.mxu0 %v3113
      %v3225 = vpop.f32.mrf.mxu0
      %v3226 = vadd.f32 0.0, %v3225
      %3227 = vmatmul.f32.gmra.mxu0 %v3116
      %v3228 = vpop.f32.mrf.mxu0
      %v3229 = vadd.f32 0.0, %v3228
      %3230 = vmatmul.f32.gmra.mxu0 %v3119
      %v3231 = vpop.f32.mrf.mxu0
      %v3232 = vadd.f32 0.0, %v3231
      %3233 = vmatmul.f32.gmra.mxu0 %v3122
      %v3234 = vpop.f32.mrf.mxu0
      %v3235 = vadd.f32 0.0, %v3234
      %3236 = vmatmul.f32.gmra.mxu0 %v3125
      %v3237 = vpop.f32.mrf.mxu0
      %v3238 = vadd.f32 0.0, %v3237
      %3239 = vmatmul.f32.gmra.mxu0 %v3128
      %v3240 = vpop.f32.mrf.mxu0
      %v3241 = vadd.f32 0.0, %v3240
      %3242 = vmatmul.f32.gmra.mxu0 %v3131
      %v3243 = vpop.f32.mrf.mxu0
      %v3244 = vadd.f32 0.0, %v3243
      %3245 = vmatmul.f32.gmra.mxu0 %v3134
      %v3246 = vpop.f32.mrf.mxu0
      %v3247 = vadd.f32 0.0, %v3246
      %3248 = vmatmul.f32.gmra.mxu0 %v3137
      %v3249 = vpop.f32.mrf.mxu0
      %v3250 = vadd.f32 0.0, %v3249
      %3251 = vmatmul.f32.gmra.mxu0 %v3140
      %v3252 = vpop.f32.mrf.mxu0
      %v3253 = vadd.f32 0.0, %v3252
      %3254 = vmatmul.f32.gmra.mxu0 %v3143
      %v3255 = vpop.f32.mrf.mxu0
      %v3256 = vadd.f32 0.0, %v3255
      %3257 = vmatmul.f32.gmra.mxu0 %v3146
      %v3258 = vpop.f32.mrf.mxu0
      %v3259 = vadd.f32 0.0, %v3258
      %3260 = vmatmul.f32.gmra.mxu0 %v3149
      %v3261 = vpop.f32.mrf.mxu0
      %v3262 = vadd.f32 0.0, %v3261
      %3263 = vmatmul.f32.gmra.mxu0 %v3152
      %v3264 = vpop.f32.mrf.mxu0
      %v3265 = vadd.f32 0.0, %v3264
      %3266 = vmatmul.f32.gmra.mxu0 %v3155
      %v3267 = vpop.f32.mrf.mxu0
      %v3268 = vadd.f32 0.0, %v3267
      %3269 = vmatmul.f32.gmra.mxu0 %v3158
      %v3270 = vpop.f32.mrf.mxu0
      %v3271 = vadd.f32 0.0, %v3270
      %3272 = vmatmul.f32.gmra.mxu0 %v3161
      %v3273 = vpop.f32.mrf.mxu0
      %v3274 = vadd.f32 0.0, %v3273
      %3275 = vmatmul.f32.gmra.mxu0 %v3164
      %v3276 = vpop.f32.mrf.mxu0
      %v3277 = vadd.f32 0.0, %v3276
      %3278 = vmatmul.f32.gmra.mxu0 %v3167
      %v3279 = vpop.f32.mrf.mxu0
      %v3280 = vadd.f32 0.0, %v3279
      %3281 = vmatmul.f32.gmra.mxu0 %v3170
      %v3282 = vpop.f32.mrf.mxu0
      %v3283 = vadd.f32 0.0, %v3282
      %3284 = vmatmul.f32.gmra.mxu0 %v3173
      %v3285 = vpop.f32.mrf.mxu0
      %v3286 = vadd.f32 0.0, %v3285
      %3287 = vmatmul.f32.gmra.mxu0 %v3176
      %v3288 = vpop.f32.mrf.mxu0
      %v3289 = vadd.f32 0.0, %v3288
      %3290 = vmatmul.f32.gmra.mxu0 %v3179
      %v3291 = vpop.f32.mrf.mxu0
      %v3292 = vadd.f32 0.0, %v3291
      %3293 = vmatmul.f32.gmra.mxu0 %v3182
      %v3294 = vpop.f32.mrf.mxu0
      %v3295 = vadd.f32 0.0, %v3294
      %3296 = vdwg.mxu0
      %v3298 = vsel %vm225, %v3014, 0
      %v3301 = vsel %vm225, %v3015, 0
      %v3304 = vsel %vm225, %v3016, 0
      %v3307 = vsel %vm225, %v3017, 0
      %v3310 = vsel %vm225, %v3018, 0
      %v3313 = vsel %vm225, %v3019, 0
      %v3316 = vsel %vm225, %v3020, 0
      %v3319 = vsel %vm225, %v3021, 0
      %v3322 = vsel %vm225, %v3022, 0
      %v3325 = vsel %vm225, %v3023, 0
      %v3328 = vsel %vm225, %v3024, 0
      %v3331 = vsel %vm225, %v3025, 0
      %v3334 = vsel %vm225, %v3026, 0
      %v3337 = vsel %vm225, %v3027, 0
      %v3340 = vsel %vm225, %v3028, 0
      %v3343 = vsel %vm225, %v3029, 0
      %v3346 = vsel %vm225, %v3030, 0
      %v3349 = vsel %vm225, %v3031, 0
      %v3352 = vsel %vm225, %v3032, 0
      %v3355 = vsel %vm225, %v3033, 0
      %v3358 = vsel %vm225, %v3034, 0
      %v3361 = vsel %vm225, %v3035, 0
      %v3364 = vsel %vm225, %v3036, 0
      %v3367 = vsel %vm225, %v3037, 0
      %v3370 = vsel %vm225, %v3038, 0
      %v3373 = vsel %vm225, %v3039, 0
      %v3376 = vsel %vm225, %v3040, 0
      %v3379 = vsel %vm225, %v3041, 0
      %v3382 = vsel %vm225, %v3042, 0
      %v3385 = vsel %vm225, %v3043, 0
      %v3388 = vsel %vm225, %v3044, 0
      %v3391 = vsel %vm225, %v3045, 0
      %3393 = vmatpush.msra.mxu0 0.0
      %3394 = vmatpush.msra.mxu0 0.0
      %3395 = vmatpush.msra.mxu0 0.0
      %3396 = vmatpush.msra.mxu0 0.0
      %3397 = vmatpush.msra.mxu0 0.0
      %3398 = vmatpush.msra.mxu0 0.0
      %3399 = vmatpush.msra.mxu0 0.0
      %3400 = vmatpush.msra.mxu0 0.0
      %3401 = vmatpush.msra.mxu0 0.0
      %3402 = vmatpush.msra.mxu0 0.0
      %3403 = vmatpush.msra.mxu0 0.0
      %3404 = vmatpush.msra.mxu0 0.0
      %3405 = vmatpush.msra.mxu0 %v3050
      %3406 = vmatpush.msra.mxu0 %v3049
      %3407 = vmatpush.msra.mxu0 %v3048
      %3408 = vmatpush.msra.mxu0 %v3047
      %3409 = vmatmul.f32.gmra.mxu0 %v3298
      %v3410 = vpop.f32.mrf.mxu0
      %v3411 = vadd.f32 %v3202, %v3410
      %3412 = vmatmul.f32.gmra.mxu0 %v3301
      %v3413 = vpop.f32.mrf.mxu0
      %v3414 = vadd.f32 %v3205, %v3413
      %3415 = vmatmul.f32.gmra.mxu0 %v3304
      %v3416 = vpop.f32.mrf.mxu0
      %v3417 = vadd.f32 %v3208, %v3416
      %3418 = vmatmul.f32.gmra.mxu0 %v3307
      %v3419 = vpop.f32.mrf.mxu0
      %v3420 = vadd.f32 %v3211, %v3419
      %3421 = vmatmul.f32.gmra.mxu0 %v3310
      %v3422 = vpop.f32.mrf.mxu0
      %v3423 = vadd.f32 %v3214, %v3422
      %3424 = vmatmul.f32.gmra.mxu0 %v3313
      %v3425 = vpop.f32.mrf.mxu0
      %v3426 = vadd.f32 %v3217, %v3425
      %3427 = vmatmul.f32.gmra.mxu0 %v3316
      %v3428 = vpop.f32.mrf.mxu0
      %v3429 = vadd.f32 %v3220, %v3428
      %3430 = vmatmul.f32.gmra.mxu0 %v3319
      %v3431 = vpop.f32.mrf.mxu0
      %v3432 = vadd.f32 %v3223, %v3431
      %3433 = vmatmul.f32.gmra.mxu0 %v3322
      %v3434 = vpop.f32.mrf.mxu0
      %v3435 = vadd.f32 %v3226, %v3434
      %3436 = vmatmul.f32.gmra.mxu0 %v3325
      %v3437 = vpop.f32.mrf.mxu0
      %v3438 = vadd.f32 %v3229, %v3437
      %3439 = vmatmul.f32.gmra.mxu0 %v3328
      %v3440 = vpop.f32.mrf.mxu0
      %v3441 = vadd.f32 %v3232, %v3440
      %3442 = vmatmul.f32.gmra.mxu0 %v3331
      %v3443 = vpop.f32.mrf.mxu0
      %v3444 = vadd.f32 %v3235, %v3443
      %3445 = vmatmul.f32.gmra.mxu0 %v3334
      %v3446 = vpop.f32.mrf.mxu0
      %v3447 = vadd.f32 %v3238, %v3446
      %3448 = vmatmul.f32.gmra.mxu0 %v3337
      %v3449 = vpop.f32.mrf.mxu0
      %v3450 = vadd.f32 %v3241, %v3449
      %3451 = vmatmul.f32.gmra.mxu0 %v3340
      %v3452 = vpop.f32.mrf.mxu0
      %v3453 = vadd.f32 %v3244, %v3452
      %3454 = vmatmul.f32.gmra.mxu0 %v3343
      %v3455 = vpop.f32.mrf.mxu0
      %v3456 = vadd.f32 %v3247, %v3455
      %3457 = vmatmul.f32.gmra.mxu0 %v3346
      %v3458 = vpop.f32.mrf.mxu0
      %v3459 = vadd.f32 %v3250, %v3458
      %3460 = vmatmul.f32.gmra.mxu0 %v3349
      %v3461 = vpop.f32.mrf.mxu0
      %v3462 = vadd.f32 %v3253, %v3461
      %3463 = vmatmul.f32.gmra.mxu0 %v3352
      %v3464 = vpop.f32.mrf.mxu0
      %v3465 = vadd.f32 %v3256, %v3464
      %3466 = vmatmul.f32.gmra.mxu0 %v3355
      %v3467 = vpop.f32.mrf.mxu0
      %v3468 = vadd.f32 %v3259, %v3467
      %3469 = vmatmul.f32.gmra.mxu0 %v3358
      %v3470 = vpop.f32.mrf.mxu0
      %v3471 = vadd.f32 %v3262, %v3470
      %3472 = vmatmul.f32.gmra.mxu0 %v3361
      %v3473 = vpop.f32.mrf.mxu0
      %v3474 = vadd.f32 %v3265, %v3473
      %3475 = vmatmul.f32.gmra.mxu0 %v3364
      %v3476 = vpop.f32.mrf.mxu0
      %v3477 = vadd.f32 %v3268, %v3476
      %3478 = vmatmul.f32.gmra.mxu0 %v3367
      %v3479 = vpop.f32.mrf.mxu0
      %v3480 = vadd.f32 %v3271, %v3479
      %3481 = vmatmul.f32.gmra.mxu0 %v3370
      %v3482 = vpop.f32.mrf.mxu0
      %v3483 = vadd.f32 %v3274, %v3482
      %3484 = vmatmul.f32.gmra.mxu0 %v3373
      %v3485 = vpop.f32.mrf.mxu0
      %v3486 = vadd.f32 %v3277, %v3485
      %3487 = vmatmul.f32.gmra.mxu0 %v3376
      %v3488 = vpop.f32.mrf.mxu0
      %v3489 = vadd.f32 %v3280, %v3488
      %3490 = vmatmul.f32.gmra.mxu0 %v3379
      %v3491 = vpop.f32.mrf.mxu0
      %v3492 = vadd.f32 %v3283, %v3491
      %3493 = vmatmul.f32.gmra.mxu0 %v3382
      %v3494 = vpop.f32.mrf.mxu0
      %v3495 = vadd.f32 %v3286, %v3494
      %3496 = vmatmul.f32.gmra.mxu0 %v3385
      %v3497 = vpop.f32.mrf.mxu0
      %v3498 = vadd.f32 %v3289, %v3497
      %3499 = vmatmul.f32.gmra.mxu0 %v3388
      %v3500 = vpop.f32.mrf.mxu0
      %v3501 = vadd.f32 %v3292, %v3500
      %3502 = vmatmul.f32.gmra.mxu0 %v3391
      %v3503 = vpop.f32.mrf.mxu0
      %v3504 = vadd.f32 %v3295, %v3503
      %3505 = vdwg.mxu0
      %v3506 = vld [vmem:[#allocation2 + $0x2] sm:$0xff]
      %v3507 = vld [vmem:[#allocation2 + $0xa] sm:$0xff]
      %v3508 = vld [vmem:[#allocation2 + $0x1a] sm:$0xff]
      %v3509 = vld [vmem:[#allocation2 + $0x22] sm:$0xff]
      %v3510 = vld [vmem:[#allocation2 + $0x32] sm:$0xff]
      %v3511 = vld [vmem:[#allocation2 + $0x3a] sm:$0xff]
      %v3512 = vld [vmem:[#allocation2 + $0x4a] sm:$0xff]
      %v3513 = vld [vmem:[#allocation2 + $0x52] sm:$0xff]
      %v3514 = vld [vmem:[#allocation2 + $0x62] sm:$0xff]
      %v3515 = vld [vmem:[#allocation2 + $0x6a] sm:$0xff]
      %v3516 = vld [vmem:[#allocation2 + $0x7a] sm:$0xff]
      %v3517 = vld [vmem:[#allocation2 + $0x82] sm:$0xff]
      %v3518 = vld [vmem:[#allocation2 + $0x92] sm:$0xff]
      %v3519 = vld [vmem:[#allocation2 + $0x9a] sm:$0xff]
      %v3520 = vld [vmem:[#allocation2 + $0xaa] sm:$0xff]
      %v3521 = vld [vmem:[#allocation2 + $0xb2] sm:$0xff]
      %v3522 = vld [vmem:[#allocation2 + $0xc2] sm:$0xff]
      %v3523 = vld [vmem:[#allocation2 + $0xca] sm:$0xff]
      %v3524 = vld [vmem:[#allocation2 + $0xda] sm:$0xff]
      %v3525 = vld [vmem:[#allocation2 + $0xe2] sm:$0xff]
      %v3526 = vld [vmem:[#allocation2 + $0xf2] sm:$0xff]
      %v3527 = vld [vmem:[#allocation2 + $0xfa] sm:$0xff]
      %v3528 = vld [vmem:[#allocation2 + $0x10a] sm:$0xff]
      %v3529 = vld [vmem:[#allocation2 + $0x112] sm:$0xff]
      %v3530 = vld [vmem:[#allocation2 + $0x122] sm:$0xff]
      %v3531 = vld [vmem:[#allocation2 + $0x12a] sm:$0xff]
      %v3532 = vld [vmem:[#allocation2 + $0x13a] sm:$0xff]
      %v3533 = vld [vmem:[#allocation2 + $0x142] sm:$0xff]
      %v3534 = vld [vmem:[#allocation2 + $0x152] sm:$0xff]
      %v3535 = vld [vmem:[#allocation2 + $0x15a] sm:$0xff]
      %v3536 = vld [vmem:[#allocation2 + $0x16a] sm:$0xff]
      %v3537 = vld [vmem:[#allocation2 + $0x172] sm:$0xff]
      %s3538 = scalar_lea.vmem %s1, 352
      %v3539 = vld [vmem:[%s3538] sm:$0xff]
      %v3540 = vld [vmem:[%s3538 + $0x8] sm:$0xff]
      %v3541 = vld [vmem:[%s3538 + $0x10] sm:$0xff]
      %v3542 = vld [vmem:[%s3538 + $0x18] sm:$0xff]
      %v3544 = vsel %vm225, %v3506, 0
      %v3547 = vsel %vm225, %v3507, 0
      %v3550 = vsel %vm225, %v3508, 0
      %v3553 = vsel %vm225, %v3509, 0
      %v3556 = vsel %vm225, %v3510, 0
      %v3559 = vsel %vm225, %v3511, 0
      %v3562 = vsel %vm225, %v3512, 0
      %v3565 = vsel %vm225, %v3513, 0
      %v3568 = vsel %vm225, %v3514, 0
      %v3571 = vsel %vm225, %v3515, 0
      %v3574 = vsel %vm225, %v3516, 0
      %v3577 = vsel %vm225, %v3517, 0
      %v3580 = vsel %vm225, %v3518, 0
      %v3583 = vsel %vm225, %v3519, 0
      %v3586 = vsel %vm225, %v3520, 0
      %v3589 = vsel %vm225, %v3521, 0
      %v3592 = vsel %vm225, %v3522, 0
      %v3595 = vsel %vm225, %v3523, 0
      %v3598 = vsel %vm225, %v3524, 0
      %v3601 = vsel %vm225, %v3525, 0
      %v3604 = vsel %vm225, %v3526, 0
      %v3607 = vsel %vm225, %v3527, 0
      %v3610 = vsel %vm225, %v3528, 0
      %v3613 = vsel %vm225, %v3529, 0
      %v3616 = vsel %vm225, %v3530, 0
      %v3619 = vsel %vm225, %v3531, 0
      %v3622 = vsel %vm225, %v3532, 0
      %v3625 = vsel %vm225, %v3533, 0
      %v3628 = vsel %vm225, %v3534, 0
      %v3631 = vsel %vm225, %v3535, 0
      %v3634 = vsel %vm225, %v3536, 0
      %v3637 = vsel %vm225, %v3537, 0
      %3639 = vmatpush.msra.mxu0 0.0
      %3640 = vmatpush.msra.mxu0 0.0
      %3641 = vmatpush.msra.mxu0 0.0
      %3642 = vmatpush.msra.mxu0 0.0
      %3643 = vmatpush.msra.mxu0 0.0
      %3644 = vmatpush.msra.mxu0 0.0
      %3645 = vmatpush.msra.mxu0 0.0
      %3646 = vmatpush.msra.mxu0 0.0
      %3647 = vmatpush.msra.mxu0 0.0
      %3648 = vmatpush.msra.mxu0 0.0
      %3649 = vmatpush.msra.mxu0 0.0
      %3650 = vmatpush.msra.mxu0 0.0
      %3651 = vmatpush.msra.mxu0 %v3542
      %3652 = vmatpush.msra.mxu0 %v3541
      %3653 = vmatpush.msra.mxu0 %v3540
      %3654 = vmatpush.msra.mxu0 %v3539
      %3655 = vmatmul.f32.gmra.mxu0 %v3544
      %v3656 = vpop.f32.mrf.mxu0
      %v3657 = vadd.f32 0.0, %v3656
      %3658 = vmatmul.f32.gmra.mxu0 %v3547
      %v3659 = vpop.f32.mrf.mxu0
      %v3660 = vadd.f32 0.0, %v3659
      %3661 = vmatmul.f32.gmra.mxu0 %v3550
      %v3662 = vpop.f32.mrf.mxu0
      %v3663 = vadd.f32 0.0, %v3662
      %3664 = vmatmul.f32.gmra.mxu0 %v3553
      %v3665 = vpop.f32.mrf.mxu0
      %v3666 = vadd.f32 0.0, %v3665
      %3667 = vmatmul.f32.gmra.mxu0 %v3556
      %v3668 = vpop.f32.mrf.mxu0
      %v3669 = vadd.f32 0.0, %v3668
      %3670 = vmatmul.f32.gmra.mxu0 %v3559
      %v3671 = vpop.f32.mrf.mxu0
      %v3672 = vadd.f32 0.0, %v3671
      %3673 = vmatmul.f32.gmra.mxu0 %v3562
      %v3674 = vpop.f32.mrf.mxu0
      %v3675 = vadd.f32 0.0, %v3674
      %3676 = vmatmul.f32.gmra.mxu0 %v3565
      %v3677 = vpop.f32.mrf.mxu0
      %v3678 = vadd.f32 0.0, %v3677
      %3679 = vmatmul.f32.gmra.mxu0 %v3568
      %v3680 = vpop.f32.mrf.mxu0
      %v3681 = vadd.f32 0.0, %v3680
      %3682 = vmatmul.f32.gmra.mxu0 %v3571
      %v3683 = vpop.f32.mrf.mxu0
      %v3684 = vadd.f32 0.0, %v3683
      %3685 = vmatmul.f32.gmra.mxu0 %v3574
      %v3686 = vpop.f32.mrf.mxu0
      %v3687 = vadd.f32 0.0, %v3686
      %3688 = vmatmul.f32.gmra.mxu0 %v3577
      %v3689 = vpop.f32.mrf.mxu0
      %v3690 = vadd.f32 0.0, %v3689
      %3691 = vmatmul.f32.gmra.mxu0 %v3580
      %v3692 = vpop.f32.mrf.mxu0
      %v3693 = vadd.f32 0.0, %v3692
      %3694 = vmatmul.f32.gmra.mxu0 %v3583
      %v3695 = vpop.f32.mrf.mxu0
      %v3696 = vadd.f32 0.0, %v3695
      %3697 = vmatmul.f32.gmra.mxu0 %v3586
      %v3698 = vpop.f32.mrf.mxu0
      %v3699 = vadd.f32 0.0, %v3698
      %3700 = vmatmul.f32.gmra.mxu0 %v3589
      %v3701 = vpop.f32.mrf.mxu0
      %v3702 = vadd.f32 0.0, %v3701
      %3703 = vmatmul.f32.gmra.mxu0 %v3592
      %v3704 = vpop.f32.mrf.mxu0
      %v3705 = vadd.f32 0.0, %v3704
      %3706 = vmatmul.f32.gmra.mxu0 %v3595
      %v3707 = vpop.f32.mrf.mxu0
      %v3708 = vadd.f32 0.0, %v3707
      %3709 = vmatmul.f32.gmra.mxu0 %v3598
      %v3710 = vpop.f32.mrf.mxu0
      %v3711 = vadd.f32 0.0, %v3710
      %3712 = vmatmul.f32.gmra.mxu0 %v3601
      %v3713 = vpop.f32.mrf.mxu0
      %v3714 = vadd.f32 0.0, %v3713
      %3715 = vmatmul.f32.gmra.mxu0 %v3604
      %v3716 = vpop.f32.mrf.mxu0
      %v3717 = vadd.f32 0.0, %v3716
      %3718 = vmatmul.f32.gmra.mxu0 %v3607
      %v3719 = vpop.f32.mrf.mxu0
      %v3720 = vadd.f32 0.0, %v3719
      %3721 = vmatmul.f32.gmra.mxu0 %v3610
      %v3722 = vpop.f32.mrf.mxu0
      %v3723 = vadd.f32 0.0, %v3722
      %3724 = vmatmul.f32.gmra.mxu0 %v3613
      %v3725 = vpop.f32.mrf.mxu0
      %v3726 = vadd.f32 0.0, %v3725
      %3727 = vmatmul.f32.gmra.mxu0 %v3616
      %v3728 = vpop.f32.mrf.mxu0
      %v3729 = vadd.f32 0.0, %v3728
      %3730 = vmatmul.f32.gmra.mxu0 %v3619
      %v3731 = vpop.f32.mrf.mxu0
      %v3732 = vadd.f32 0.0, %v3731
      %3733 = vmatmul.f32.gmra.mxu0 %v3622
      %v3734 = vpop.f32.mrf.mxu0
      %v3735 = vadd.f32 0.0, %v3734
      %3736 = vmatmul.f32.gmra.mxu0 %v3625
      %v3737 = vpop.f32.mrf.mxu0
      %v3738 = vadd.f32 0.0, %v3737
      %3739 = vmatmul.f32.gmra.mxu0 %v3628
      %v3740 = vpop.f32.mrf.mxu0
      %v3741 = vadd.f32 0.0, %v3740
      %3742 = vmatmul.f32.gmra.mxu0 %v3631
      %v3743 = vpop.f32.mrf.mxu0
      %v3744 = vadd.f32 0.0, %v3743
      %3745 = vmatmul.f32.gmra.mxu0 %v3634
      %v3746 = vpop.f32.mrf.mxu0
      %v3747 = vadd.f32 0.0, %v3746
      %3748 = vmatmul.f32.gmra.mxu0 %v3637
      %v3749 = vpop.f32.mrf.mxu0
      %v3750 = vadd.f32 0.0, %v3749
      %3751 = vdwg.mxu0
      %v3752 = vadd.f32 %v3411, %v3657
      %v3753 = vadd.f32 %v3414, %v3660
      %v3754 = vadd.f32 %v3417, %v3663
      %v3755 = vadd.f32 %v3420, %v3666
      %v3756 = vadd.f32 %v3423, %v3669
      %v3757 = vadd.f32 %v3426, %v3672
      %v3758 = vadd.f32 %v3429, %v3675
      %v3759 = vadd.f32 %v3432, %v3678
      %v3760 = vadd.f32 %v3435, %v3681
      %v3761 = vadd.f32 %v3438, %v3684
      %v3762 = vadd.f32 %v3441, %v3687
      %v3763 = vadd.f32 %v3444, %v3690
      %v3764 = vadd.f32 %v3447, %v3693
      %v3765 = vadd.f32 %v3450, %v3696
      %v3766 = vadd.f32 %v3453, %v3699
      %v3767 = vadd.f32 %v3456, %v3702
      %v3768 = vadd.f32 %v3459, %v3705
      %v3769 = vadd.f32 %v3462, %v3708
      %v3770 = vadd.f32 %v3465, %v3711
      %v3771 = vadd.f32 %v3468, %v3714
      %v3772 = vadd.f32 %v3471, %v3717
      %v3773 = vadd.f32 %v3474, %v3720
      %v3774 = vadd.f32 %v3477, %v3723
      %v3775 = vadd.f32 %v3480, %v3726
      %v3776 = vadd.f32 %v3483, %v3729
      %v3777 = vadd.f32 %v3486, %v3732
      %v3778 = vadd.f32 %v3489, %v3735
      %v3779 = vadd.f32 %v3492, %v3738
      %v3780 = vadd.f32 %v3495, %v3741
      %v3781 = vadd.f32 %v3498, %v3744
      %v3782 = vadd.f32 %v3501, %v3747
      %v3783 = vadd.f32 %v3504, %v3750
      %v3784 = vld [vmem:[%s313] sm:$0xff]
      %v3785 = vld [vmem:[%s313 + $0x8] sm:$0xff]
      %v3786 = vld [vmem:[%s313 + $0x18] sm:$0xff]
      %v3787 = vld [vmem:[%s313 + $0x20] sm:$0xff]
      %v3788 = vld [vmem:[%s313 + $0x30] sm:$0xff]
      %v3789 = vld [vmem:[%s313 + $0x38] sm:$0xff]
      %v3790 = vld [vmem:[%s313 + $0x48] sm:$0xff]
      %v3791 = vld [vmem:[%s313 + $0x50] sm:$0xff]
      %v3792 = vld [vmem:[%s313 + $0x60] sm:$0xff]
      %v3793 = vld [vmem:[%s313 + $0x68] sm:$0xff]
      %v3794 = vld [vmem:[%s313 + $0x78] sm:$0xff]
      %v3795 = vld [vmem:[%s313 + $0x80] sm:$0xff]
      %v3796 = vld [vmem:[%s313 + $0x90] sm:$0xff]
      %v3797 = vld [vmem:[%s313 + $0x98] sm:$0xff]
      %v3798 = vld [vmem:[%s313 + $0xa8] sm:$0xff]
      %v3799 = vld [vmem:[%s313 + $0xb0] sm:$0xff]
      %v3800 = vld [vmem:[%s313 + $0xc0] sm:$0xff]
      %v3801 = vld [vmem:[%s313 + $0xc8] sm:$0xff]
      %v3802 = vld [vmem:[%s313 + $0xd8] sm:$0xff]
      %v3803 = vld [vmem:[%s313 + $0xe0] sm:$0xff]
      %v3804 = vld [vmem:[%s313 + $0xf0] sm:$0xff]
      %v3805 = vld [vmem:[%s313 + $0xf8] sm:$0xff]
      %v3806 = vld [vmem:[%s313 + $0x108] sm:$0xff]
      %v3807 = vld [vmem:[%s313 + $0x110] sm:$0xff]
      %v3808 = vld [vmem:[%s313 + $0x120] sm:$0xff]
      %v3809 = vld [vmem:[%s313 + $0x128] sm:$0xff]
      %v3810 = vld [vmem:[%s313 + $0x138] sm:$0xff]
      %v3811 = vld [vmem:[%s313 + $0x140] sm:$0xff]
      %v3812 = vld [vmem:[%s313 + $0x150] sm:$0xff]
      %v3813 = vld [vmem:[%s313 + $0x158] sm:$0xff]
      %v3814 = vld [vmem:[%s313 + $0x168] sm:$0xff]
      %v3815 = vld [vmem:[%s313 + $0x170] sm:$0xff]
      %s3816 = scalar_lea.vmem %s1, 384
      %v3817 = vld [vmem:[%s3816] sm:$0xff]
      %v3818 = vld [vmem:[%s3816 + $0x8] sm:$0xff]
      %v3819 = vld [vmem:[%s3816 + $0x10] sm:$0xff]
      %v3820 = vld [vmem:[%s3816 + $0x18] sm:$0xff]
      %v3822 = vsel %vm225, %v3784, 0
      %v3825 = vsel %vm225, %v3785, 0
      %v3828 = vsel %vm225, %v3786, 0
      %v3831 = vsel %vm225, %v3787, 0
      %v3834 = vsel %vm225, %v3788, 0
      %v3837 = vsel %vm225, %v3789, 0
      %v3840 = vsel %vm225, %v3790, 0
      %v3843 = vsel %vm225, %v3791, 0
      %v3846 = vsel %vm225, %v3792, 0
      %v3849 = vsel %vm225, %v3793, 0
      %v3852 = vsel %vm225, %v3794, 0
      %v3855 = vsel %vm225, %v3795, 0
      %v3858 = vsel %vm225, %v3796, 0
      %v3861 = vsel %vm225, %v3797, 0
      %v3864 = vsel %vm225, %v3798, 0
      %v3867 = vsel %vm225, %v3799, 0
      %v3870 = vsel %vm225, %v3800, 0
      %v3873 = vsel %vm225, %v3801, 0
      %v3876 = vsel %vm225, %v3802, 0
      %v3879 = vsel %vm225, %v3803, 0
      %v3882 = vsel %vm225, %v3804, 0
      %v3885 = vsel %vm225, %v3805, 0
      %v3888 = vsel %vm225, %v3806, 0
      %v3891 = vsel %vm225, %v3807, 0
      %v3894 = vsel %vm225, %v3808, 0
      %v3897 = vsel %vm225, %v3809, 0
      %v3900 = vsel %vm225, %v3810, 0
      %v3903 = vsel %vm225, %v3811, 0
      %v3906 = vsel %vm225, %v3812, 0
      %v3909 = vsel %vm225, %v3813, 0
      %v3912 = vsel %vm225, %v3814, 0
      %v3915 = vsel %vm225, %v3815, 0
      %3917 = vmatpush.msra.mxu0 0.0
      %3918 = vmatpush.msra.mxu0 0.0
      %3919 = vmatpush.msra.mxu0 0.0
      %3920 = vmatpush.msra.mxu0 0.0
      %3921 = vmatpush.msra.mxu0 0.0
      %3922 = vmatpush.msra.mxu0 0.0
      %3923 = vmatpush.msra.mxu0 0.0
      %3924 = vmatpush.msra.mxu0 0.0
      %3925 = vmatpush.msra.mxu0 0.0
      %3926 = vmatpush.msra.mxu0 0.0
      %3927 = vmatpush.msra.mxu0 0.0
      %3928 = vmatpush.msra.mxu0 0.0
      %3929 = vmatpush.msra.mxu0 %v3820
      %3930 = vmatpush.msra.mxu0 %v3819
      %3931 = vmatpush.msra.mxu0 %v3818
      %3932 = vmatpush.msra.mxu0 %v3817
      %3933 = vmatmul.f32.gmra.mxu0 %v3822
      %v3934 = vpop.f32.mrf.mxu0
      %v3935 = vadd.f32 0.0, %v3934
      %3936 = vmatmul.f32.gmra.mxu0 %v3825
      %v3937 = vpop.f32.mrf.mxu0
      %v3938 = vadd.f32 0.0, %v3937
      %3939 = vmatmul.f32.gmra.mxu0 %v3828
      %v3940 = vpop.f32.mrf.mxu0
      %v3941 = vadd.f32 0.0, %v3940
      %3942 = vmatmul.f32.gmra.mxu0 %v3831
      %v3943 = vpop.f32.mrf.mxu0
      %v3944 = vadd.f32 0.0, %v3943
      %3945 = vmatmul.f32.gmra.mxu0 %v3834
      %v3946 = vpop.f32.mrf.mxu0
      %v3947 = vadd.f32 0.0, %v3946
      %3948 = vmatmul.f32.gmra.mxu0 %v3837
      %v3949 = vpop.f32.mrf.mxu0
      %v3950 = vadd.f32 0.0, %v3949
      %3951 = vmatmul.f32.gmra.mxu0 %v3840
      %v3952 = vpop.f32.mrf.mxu0
      %v3953 = vadd.f32 0.0, %v3952
      %3954 = vmatmul.f32.gmra.mxu0 %v3843
      %v3955 = vpop.f32.mrf.mxu0
      %v3956 = vadd.f32 0.0, %v3955
      %3957 = vmatmul.f32.gmra.mxu0 %v3846
      %v3958 = vpop.f32.mrf.mxu0
      %v3959 = vadd.f32 0.0, %v3958
      %3960 = vmatmul.f32.gmra.mxu0 %v3849
      %v3961 = vpop.f32.mrf.mxu0
      %v3962 = vadd.f32 0.0, %v3961
      %3963 = vmatmul.f32.gmra.mxu0 %v3852
      %v3964 = vpop.f32.mrf.mxu0
      %v3965 = vadd.f32 0.0, %v3964
      %3966 = vmatmul.f32.gmra.mxu0 %v3855
      %v3967 = vpop.f32.mrf.mxu0
      %v3968 = vadd.f32 0.0, %v3967
      %3969 = vmatmul.f32.gmra.mxu0 %v3858
      %v3970 = vpop.f32.mrf.mxu0
      %v3971 = vadd.f32 0.0, %v3970
      %3972 = vmatmul.f32.gmra.mxu0 %v3861
      %v3973 = vpop.f32.mrf.mxu0
      %v3974 = vadd.f32 0.0, %v3973
      %3975 = vmatmul.f32.gmra.mxu0 %v3864
      %v3976 = vpop.f32.mrf.mxu0
      %v3977 = vadd.f32 0.0, %v3976
      %3978 = vmatmul.f32.gmra.mxu0 %v3867
      %v3979 = vpop.f32.mrf.mxu0
      %v3980 = vadd.f32 0.0, %v3979
      %3981 = vmatmul.f32.gmra.mxu0 %v3870
      %v3982 = vpop.f32.mrf.mxu0
      %v3983 = vadd.f32 0.0, %v3982
      %3984 = vmatmul.f32.gmra.mxu0 %v3873
      %v3985 = vpop.f32.mrf.mxu0
      %v3986 = vadd.f32 0.0, %v3985
      %3987 = vmatmul.f32.gmra.mxu0 %v3876
      %v3988 = vpop.f32.mrf.mxu0
      %v3989 = vadd.f32 0.0, %v3988
      %3990 = vmatmul.f32.gmra.mxu0 %v3879
      %v3991 = vpop.f32.mrf.mxu0
      %v3992 = vadd.f32 0.0, %v3991
      %3993 = vmatmul.f32.gmra.mxu0 %v3882
      %v3994 = vpop.f32.mrf.mxu0
      %v3995 = vadd.f32 0.0, %v3994
      %3996 = vmatmul.f32.gmra.mxu0 %v3885
      %v3997 = vpop.f32.mrf.mxu0
      %v3998 = vadd.f32 0.0, %v3997
      %3999 = vmatmul.f32.gmra.mxu0 %v3888
      %v4000 = vpop.f32.mrf.mxu0
      %v4001 = vadd.f32 0.0, %v4000
      %4002 = vmatmul.f32.gmra.mxu0 %v3891
      %v4003 = vpop.f32.mrf.mxu0
      %v4004 = vadd.f32 0.0, %v4003
      %4005 = vmatmul.f32.gmra.mxu0 %v3894
      %v4006 = vpop.f32.mrf.mxu0
      %v4007 = vadd.f32 0.0, %v4006
      %4008 = vmatmul.f32.gmra.mxu0 %v3897
      %v4009 = vpop.f32.mrf.mxu0
      %v4010 = vadd.f32 0.0, %v4009
      %4011 = vmatmul.f32.gmra.mxu0 %v3900
      %v4012 = vpop.f32.mrf.mxu0
      %v4013 = vadd.f32 0.0, %v4012
      %4014 = vmatmul.f32.gmra.mxu0 %v3903
      %v4015 = vpop.f32.mrf.mxu0
      %v4016 = vadd.f32 0.0, %v4015
      %4017 = vmatmul.f32.gmra.mxu0 %v3906
      %v4018 = vpop.f32.mrf.mxu0
      %v4019 = vadd.f32 0.0, %v4018
      %4020 = vmatmul.f32.gmra.mxu0 %v3909
      %v4021 = vpop.f32.mrf.mxu0
      %v4022 = vadd.f32 0.0, %v4021
      %4023 = vmatmul.f32.gmra.mxu0 %v3912
      %v4024 = vpop.f32.mrf.mxu0
      %v4025 = vadd.f32 0.0, %v4024
      %4026 = vmatmul.f32.gmra.mxu0 %v3915
      %v4027 = vpop.f32.mrf.mxu0
      %v4028 = vadd.f32 0.0, %v4027
      %4029 = vdwg.mxu0
      %v4030 = vadd.f32 %v3752, %v3935
      %v4031 = vadd.f32 %v3753, %v3938
      %v4032 = vadd.f32 %v3754, %v3941
      %v4033 = vadd.f32 %v3755, %v3944
      %v4034 = vadd.f32 %v3756, %v3947
      %v4035 = vadd.f32 %v3757, %v3950
      %v4036 = vadd.f32 %v3758, %v3953
      %v4037 = vadd.f32 %v3759, %v3956
      %v4038 = vadd.f32 %v3760, %v3959
      %v4039 = vadd.f32 %v3761, %v3962
      %v4040 = vadd.f32 %v3762, %v3965
      %v4041 = vadd.f32 %v3763, %v3968
      %v4042 = vadd.f32 %v3764, %v3971
      %v4043 = vadd.f32 %v3765, %v3974
      %v4044 = vadd.f32 %v3766, %v3977
      %v4045 = vadd.f32 %v3767, %v3980
      %v4046 = vadd.f32 %v3768, %v3983
      %v4047 = vadd.f32 %v3769, %v3986
      %v4048 = vadd.f32 %v3770, %v3989
      %v4049 = vadd.f32 %v3771, %v3992
      %v4050 = vadd.f32 %v3772, %v3995
      %v4051 = vadd.f32 %v3773, %v3998
      %v4052 = vadd.f32 %v3774, %v4001
      %v4053 = vadd.f32 %v3775, %v4004
      %v4054 = vadd.f32 %v3776, %v4007
      %v4055 = vadd.f32 %v3777, %v4010
      %v4056 = vadd.f32 %v3778, %v4013
      %v4057 = vadd.f32 %v3779, %v4016
      %v4058 = vadd.f32 %v3780, %v4019
      %v4059 = vadd.f32 %v3781, %v4022
      %v4060 = vadd.f32 %v3782, %v4025
      %v4061 = vadd.f32 %v3783, %v4028
      %v4062 = vld [vmem:[%s313 + $0x1] sm:$0xff]
      %v4063 = vld [vmem:[%s313 + $0x9] sm:$0xff]
      %v4064 = vld [vmem:[%s313 + $0x19] sm:$0xff]
      %v4065 = vld [vmem:[%s313 + $0x21] sm:$0xff]
      %v4066 = vld [vmem:[%s313 + $0x31] sm:$0xff]
      %v4067 = vld [vmem:[%s313 + $0x39] sm:$0xff]
      %v4068 = vld [vmem:[%s313 + $0x49] sm:$0xff]
      %v4069 = vld [vmem:[%s313 + $0x51] sm:$0xff]
      %v4070 = vld [vmem:[%s313 + $0x61] sm:$0xff]
      %v4071 = vld [vmem:[%s313 + $0x69] sm:$0xff]
      %v4072 = vld [vmem:[%s313 + $0x79] sm:$0xff]
      %v4073 = vld [vmem:[%s313 + $0x81] sm:$0xff]
      %v4074 = vld [vmem:[%s313 + $0x91] sm:$0xff]
      %v4075 = vld [vmem:[%s313 + $0x99] sm:$0xff]
      %v4076 = vld [vmem:[%s313 + $0xa9] sm:$0xff]
      %v4077 = vld [vmem:[%s313 + $0xb1] sm:$0xff]
      %v4078 = vld [vmem:[%s313 + $0xc1] sm:$0xff]
      %v4079 = vld [vmem:[%s313 + $0xc9] sm:$0xff]
      %v4080 = vld [vmem:[%s313 + $0xd9] sm:$0xff]
      %v4081 = vld [vmem:[%s313 + $0xe1] sm:$0xff]
      %v4082 = vld [vmem:[%s313 + $0xf1] sm:$0xff]
      %v4083 = vld [vmem:[%s313 + $0xf9] sm:$0xff]
      %v4084 = vld [vmem:[%s313 + $0x109] sm:$0xff]
      %v4085 = vld [vmem:[%s313 + $0x111] sm:$0xff]
      %v4086 = vld [vmem:[%s313 + $0x121] sm:$0xff]
      %v4087 = vld [vmem:[%s313 + $0x129] sm:$0xff]
      %v4088 = vld [vmem:[%s313 + $0x139] sm:$0xff]
      %v4089 = vld [vmem:[%s313 + $0x141] sm:$0xff]
      %v4090 = vld [vmem:[%s313 + $0x151] sm:$0xff]
      %v4091 = vld [vmem:[%s313 + $0x159] sm:$0xff]
      %v4092 = vld [vmem:[%s313 + $0x169] sm:$0xff]
      %v4093 = vld [vmem:[%s313 + $0x171] sm:$0xff]
      %s4094 = scalar_lea.vmem %s1, 416
      %v4095 = vld [vmem:[%s4094] sm:$0xff]
      %v4096 = vld [vmem:[%s4094 + $0x8] sm:$0xff]
      %v4097 = vld [vmem:[%s4094 + $0x10] sm:$0xff]
      %v4098 = vld [vmem:[%s4094 + $0x18] sm:$0xff]
      %v4100 = vsel %vm225, %v4062, 0
      %v4103 = vsel %vm225, %v4063, 0
      %v4106 = vsel %vm225, %v4064, 0
      %v4109 = vsel %vm225, %v4065, 0
      %v4112 = vsel %vm225, %v4066, 0
      %v4115 = vsel %vm225, %v4067, 0
      %v4118 = vsel %vm225, %v4068, 0
      %v4121 = vsel %vm225, %v4069, 0
      %v4124 = vsel %vm225, %v4070, 0
      %v4127 = vsel %vm225, %v4071, 0
      %v4130 = vsel %vm225, %v4072, 0
      %v4133 = vsel %vm225, %v4073, 0
      %v4136 = vsel %vm225, %v4074, 0
      %v4139 = vsel %vm225, %v4075, 0
      %v4142 = vsel %vm225, %v4076, 0
      %v4145 = vsel %vm225, %v4077, 0
      %v4148 = vsel %vm225, %v4078, 0
      %v4151 = vsel %vm225, %v4079, 0
      %v4154 = vsel %vm225, %v4080, 0
      %v4157 = vsel %vm225, %v4081, 0
      %v4160 = vsel %vm225, %v4082, 0
      %v4163 = vsel %vm225, %v4083, 0
      %v4166 = vsel %vm225, %v4084, 0
      %v4169 = vsel %vm225, %v4085, 0
      %v4172 = vsel %vm225, %v4086, 0
      %v4175 = vsel %vm225, %v4087, 0
      %v4178 = vsel %vm225, %v4088, 0
      %v4181 = vsel %vm225, %v4089, 0
      %v4184 = vsel %vm225, %v4090, 0
      %v4187 = vsel %vm225, %v4091, 0
      %v4190 = vsel %vm225, %v4092, 0
      %v4193 = vsel %vm225, %v4093, 0
      %4195 = vmatpush.msra.mxu0 0.0
      %4196 = vmatpush.msra.mxu0 0.0
      %4197 = vmatpush.msra.mxu0 0.0
      %4198 = vmatpush.msra.mxu0 0.0
      %4199 = vmatpush.msra.mxu0 0.0
      %4200 = vmatpush.msra.mxu0 0.0
      %4201 = vmatpush.msra.mxu0 0.0
      %4202 = vmatpush.msra.mxu0 0.0
      %4203 = vmatpush.msra.mxu0 0.0
      %4204 = vmatpush.msra.mxu0 0.0
      %4205 = vmatpush.msra.mxu0 0.0
      %4206 = vmatpush.msra.mxu0 0.0
      %4207 = vmatpush.msra.mxu0 %v4098
      %4208 = vmatpush.msra.mxu0 %v4097
      %4209 = vmatpush.msra.mxu0 %v4096
      %4210 = vmatpush.msra.mxu0 %v4095
      %4211 = vmatmul.f32.gmra.mxu0 %v4100
      %v4212 = vpop.f32.mrf.mxu0
      %v4213 = vadd.f32 0.0, %v4212
      %4214 = vmatmul.f32.gmra.mxu0 %v4103
      %v4215 = vpop.f32.mrf.mxu0
      %v4216 = vadd.f32 0.0, %v4215
      %4217 = vmatmul.f32.gmra.mxu0 %v4106
      %v4218 = vpop.f32.mrf.mxu0
      %v4219 = vadd.f32 0.0, %v4218
      %4220 = vmatmul.f32.gmra.mxu0 %v4109
      %v4221 = vpop.f32.mrf.mxu0
      %v4222 = vadd.f32 0.0, %v4221
      %4223 = vmatmul.f32.gmra.mxu0 %v4112
      %v4224 = vpop.f32.mrf.mxu0
      %v4225 = vadd.f32 0.0, %v4224
      %4226 = vmatmul.f32.gmra.mxu0 %v4115
      %v4227 = vpop.f32.mrf.mxu0
      %v4228 = vadd.f32 0.0, %v4227
      %4229 = vmatmul.f32.gmra.mxu0 %v4118
      %v4230 = vpop.f32.mrf.mxu0
      %v4231 = vadd.f32 0.0, %v4230
      %4232 = vmatmul.f32.gmra.mxu0 %v4121
      %v4233 = vpop.f32.mrf.mxu0
      %v4234 = vadd.f32 0.0, %v4233
      %4235 = vmatmul.f32.gmra.mxu0 %v4124
      %v4236 = vpop.f32.mrf.mxu0
      %v4237 = vadd.f32 0.0, %v4236
      %4238 = vmatmul.f32.gmra.mxu0 %v4127
      %v4239 = vpop.f32.mrf.mxu0
      %v4240 = vadd.f32 0.0, %v4239
      %4241 = vmatmul.f32.gmra.mxu0 %v4130
      %v4242 = vpop.f32.mrf.mxu0
      %v4243 = vadd.f32 0.0, %v4242
      %4244 = vmatmul.f32.gmra.mxu0 %v4133
      %v4245 = vpop.f32.mrf.mxu0
      %v4246 = vadd.f32 0.0, %v4245
      %4247 = vmatmul.f32.gmra.mxu0 %v4136
      %v4248 = vpop.f32.mrf.mxu0
      %v4249 = vadd.f32 0.0, %v4248
      %4250 = vmatmul.f32.gmra.mxu0 %v4139
      %v4251 = vpop.f32.mrf.mxu0
      %v4252 = vadd.f32 0.0, %v4251
      %4253 = vmatmul.f32.gmra.mxu0 %v4142
      %v4254 = vpop.f32.mrf.mxu0
      %v4255 = vadd.f32 0.0, %v4254
      %4256 = vmatmul.f32.gmra.mxu0 %v4145
      %v4257 = vpop.f32.mrf.mxu0
      %v4258 = vadd.f32 0.0, %v4257
      %4259 = vmatmul.f32.gmra.mxu0 %v4148
      %v4260 = vpop.f32.mrf.mxu0
      %v4261 = vadd.f32 0.0, %v4260
      %4262 = vmatmul.f32.gmra.mxu0 %v4151
      %v4263 = vpop.f32.mrf.mxu0
      %v4264 = vadd.f32 0.0, %v4263
      %4265 = vmatmul.f32.gmra.mxu0 %v4154
      %v4266 = vpop.f32.mrf.mxu0
      %v4267 = vadd.f32 0.0, %v4266
      %4268 = vmatmul.f32.gmra.mxu0 %v4157
      %v4269 = vpop.f32.mrf.mxu0
      %v4270 = vadd.f32 0.0, %v4269
      %4271 = vmatmul.f32.gmra.mxu0 %v4160
      %v4272 = vpop.f32.mrf.mxu0
      %v4273 = vadd.f32 0.0, %v4272
      %4274 = vmatmul.f32.gmra.mxu0 %v4163
      %v4275 = vpop.f32.mrf.mxu0
      %v4276 = vadd.f32 0.0, %v4275
      %4277 = vmatmul.f32.gmra.mxu0 %v4166
      %v4278 = vpop.f32.mrf.mxu0
      %v4279 = vadd.f32 0.0, %v4278
      %4280 = vmatmul.f32.gmra.mxu0 %v4169
      %v4281 = vpop.f32.mrf.mxu0
      %v4282 = vadd.f32 0.0, %v4281
      %4283 = vmatmul.f32.gmra.mxu0 %v4172
      %v4284 = vpop.f32.mrf.mxu0
      %v4285 = vadd.f32 0.0, %v4284
      %4286 = vmatmul.f32.gmra.mxu0 %v4175
      %v4287 = vpop.f32.mrf.mxu0
      %v4288 = vadd.f32 0.0, %v4287
      %4289 = vmatmul.f32.gmra.mxu0 %v4178
      %v4290 = vpop.f32.mrf.mxu0
      %v4291 = vadd.f32 0.0, %v4290
      %4292 = vmatmul.f32.gmra.mxu0 %v4181
      %v4293 = vpop.f32.mrf.mxu0
      %v4294 = vadd.f32 0.0, %v4293
      %4295 = vmatmul.f32.gmra.mxu0 %v4184
      %v4296 = vpop.f32.mrf.mxu0
      %v4297 = vadd.f32 0.0, %v4296
      %4298 = vmatmul.f32.gmra.mxu0 %v4187
      %v4299 = vpop.f32.mrf.mxu0
      %v4300 = vadd.f32 0.0, %v4299
      %4301 = vmatmul.f32.gmra.mxu0 %v4190
      %v4302 = vpop.f32.mrf.mxu0
      %v4303 = vadd.f32 0.0, %v4302
      %4304 = vmatmul.f32.gmra.mxu0 %v4193
      %v4305 = vpop.f32.mrf.mxu0
      %v4306 = vadd.f32 0.0, %v4305
      %4307 = vdwg.mxu0
      %v4308 = vadd.f32 %v4030, %v4213
      %v4309 = vadd.f32 %v4031, %v4216
      %v4310 = vadd.f32 %v4032, %v4219
      %v4311 = vadd.f32 %v4033, %v4222
      %v4312 = vadd.f32 %v4034, %v4225
      %v4313 = vadd.f32 %v4035, %v4228
      %v4314 = vadd.f32 %v4036, %v4231
      %v4315 = vadd.f32 %v4037, %v4234
      %v4316 = vadd.f32 %v4038, %v4237
      %v4317 = vadd.f32 %v4039, %v4240
      %v4318 = vadd.f32 %v4040, %v4243
      %v4319 = vadd.f32 %v4041, %v4246
      %v4320 = vadd.f32 %v4042, %v4249
      %v4321 = vadd.f32 %v4043, %v4252
      %v4322 = vadd.f32 %v4044, %v4255
      %v4323 = vadd.f32 %v4045, %v4258
      %v4324 = vadd.f32 %v4046, %v4261
      %v4325 = vadd.f32 %v4047, %v4264
      %v4326 = vadd.f32 %v4048, %v4267
      %v4327 = vadd.f32 %v4049, %v4270
      %v4328 = vadd.f32 %v4050, %v4273
      %v4329 = vadd.f32 %v4051, %v4276
      %v4330 = vadd.f32 %v4052, %v4279
      %v4331 = vadd.f32 %v4053, %v4282
      %v4332 = vadd.f32 %v4054, %v4285
      %v4333 = vadd.f32 %v4055, %v4288
      %v4334 = vadd.f32 %v4056, %v4291
      %v4335 = vadd.f32 %v4057, %v4294
      %v4336 = vadd.f32 %v4058, %v4297
      %v4337 = vadd.f32 %v4059, %v4300
      %v4338 = vadd.f32 %v4060, %v4303
      %v4339 = vadd.f32 %v4061, %v4306
      %v4340 = vld [vmem:[%s313 + $0x2] sm:$0xff]
      %v4341 = vld [vmem:[%s313 + $0xa] sm:$0xff]
      %v4342 = vld [vmem:[%s313 + $0x1a] sm:$0xff]
      %v4343 = vld [vmem:[%s313 + $0x22] sm:$0xff]
      %v4344 = vld [vmem:[%s313 + $0x32] sm:$0xff]
      %v4345 = vld [vmem:[%s313 + $0x3a] sm:$0xff]
      %v4346 = vld [vmem:[%s313 + $0x4a] sm:$0xff]
      %v4347 = vld [vmem:[%s313 + $0x52] sm:$0xff]
      %v4348 = vld [vmem:[%s313 + $0x62] sm:$0xff]
      %v4349 = vld [vmem:[%s313 + $0x6a] sm:$0xff]
      %v4350 = vld [vmem:[%s313 + $0x7a] sm:$0xff]
      %v4351 = vld [vmem:[%s313 + $0x82] sm:$0xff]
      %v4352 = vld [vmem:[%s313 + $0x92] sm:$0xff]
      %v4353 = vld [vmem:[%s313 + $0x9a] sm:$0xff]
      %v4354 = vld [vmem:[%s313 + $0xaa] sm:$0xff]
      %v4355 = vld [vmem:[%s313 + $0xb2] sm:$0xff]
      %v4356 = vld [vmem:[%s313 + $0xc2] sm:$0xff]
      %v4357 = vld [vmem:[%s313 + $0xca] sm:$0xff]
      %v4358 = vld [vmem:[%s313 + $0xda] sm:$0xff]
      %v4359 = vld [vmem:[%s313 + $0xe2] sm:$0xff]
      %v4360 = vld [vmem:[%s313 + $0xf2] sm:$0xff]
      %v4361 = vld [vmem:[%s313 + $0xfa] sm:$0xff]
      %v4362 = vld [vmem:[%s313 + $0x10a] sm:$0xff]
      %v4363 = vld [vmem:[%s313 + $0x112] sm:$0xff]
      %v4364 = vld [vmem:[%s313 + $0x122] sm:$0xff]
      %v4365 = vld [vmem:[%s313 + $0x12a] sm:$0xff]
      %v4366 = vld [vmem:[%s313 + $0x13a] sm:$0xff]
      %v4367 = vld [vmem:[%s313 + $0x142] sm:$0xff]
      %v4368 = vld [vmem:[%s313 + $0x152] sm:$0xff]
      %v4369 = vld [vmem:[%s313 + $0x15a] sm:$0xff]
      %v4370 = vld [vmem:[%s313 + $0x16a] sm:$0xff]
      %v4371 = vld [vmem:[%s313 + $0x172] sm:$0xff]
      %s4372 = scalar_lea.vmem %s1, 448
      %v4373 = vld [vmem:[%s4372] sm:$0xff]
      %v4374 = vld [vmem:[%s4372 + $0x8] sm:$0xff]
      %v4375 = vld [vmem:[%s4372 + $0x10] sm:$0xff]
      %v4376 = vld [vmem:[%s4372 + $0x18] sm:$0xff]
      %v4378 = vsel %vm225, %v4340, 0
      %v4381 = vsel %vm225, %v4341, 0
      %v4384 = vsel %vm225, %v4342, 0
      %v4387 = vsel %vm225, %v4343, 0
      %v4390 = vsel %vm225, %v4344, 0
      %v4393 = vsel %vm225, %v4345, 0
      %v4396 = vsel %vm225, %v4346, 0
      %v4399 = vsel %vm225, %v4347, 0
      %v4402 = vsel %vm225, %v4348, 0
      %v4405 = vsel %vm225, %v4349, 0
      %v4408 = vsel %vm225, %v4350, 0
      %v4411 = vsel %vm225, %v4351, 0
      %v4414 = vsel %vm225, %v4352, 0
      %v4417 = vsel %vm225, %v4353, 0
      %v4420 = vsel %vm225, %v4354, 0
      %v4423 = vsel %vm225, %v4355, 0
      %v4426 = vsel %vm225, %v4356, 0
      %v4429 = vsel %vm225, %v4357, 0
      %v4432 = vsel %vm225, %v4358, 0
      %v4435 = vsel %vm225, %v4359, 0
      %v4438 = vsel %vm225, %v4360, 0
      %v4441 = vsel %vm225, %v4361, 0
      %v4444 = vsel %vm225, %v4362, 0
      %v4447 = vsel %vm225, %v4363, 0
      %v4450 = vsel %vm225, %v4364, 0
      %v4453 = vsel %vm225, %v4365, 0
      %v4456 = vsel %vm225, %v4366, 0
      %v4459 = vsel %vm225, %v4367, 0
      %v4462 = vsel %vm225, %v4368, 0
      %v4465 = vsel %vm225, %v4369, 0
      %v4468 = vsel %vm225, %v4370, 0
      %v4471 = vsel %vm225, %v4371, 0
      %4473 = vmatpush.msra.mxu0 0.0
      %4474 = vmatpush.msra.mxu0 0.0
      %4475 = vmatpush.msra.mxu0 0.0
      %4476 = vmatpush.msra.mxu0 0.0
      %4477 = vmatpush.msra.mxu0 0.0
      %4478 = vmatpush.msra.mxu0 0.0
      %4479 = vmatpush.msra.mxu0 0.0
      %4480 = vmatpush.msra.mxu0 0.0
      %4481 = vmatpush.msra.mxu0 0.0
      %4482 = vmatpush.msra.mxu0 0.0
      %4483 = vmatpush.msra.mxu0 0.0
      %4484 = vmatpush.msra.mxu0 0.0
      %4485 = vmatpush.msra.mxu0 %v4376
      %4486 = vmatpush.msra.mxu0 %v4375
      %4487 = vmatpush.msra.mxu0 %v4374
      %4488 = vmatpush.msra.mxu0 %v4373
      %4489 = vmatmul.f32.gmra.mxu0 %v4378
      %v4490 = vpop.f32.mrf.mxu0
      %v4491 = vadd.f32 0.0, %v4490
      %4492 = vmatmul.f32.gmra.mxu0 %v4381
      %v4493 = vpop.f32.mrf.mxu0
      %v4494 = vadd.f32 0.0, %v4493
      %4495 = vmatmul.f32.gmra.mxu0 %v4384
      %v4496 = vpop.f32.mrf.mxu0
      %v4497 = vadd.f32 0.0, %v4496
      %4498 = vmatmul.f32.gmra.mxu0 %v4387
      %v4499 = vpop.f32.mrf.mxu0
      %v4500 = vadd.f32 0.0, %v4499
      %4501 = vmatmul.f32.gmra.mxu0 %v4390
      %v4502 = vpop.f32.mrf.mxu0
      %v4503 = vadd.f32 0.0, %v4502
      %4504 = vmatmul.f32.gmra.mxu0 %v4393
      %v4505 = vpop.f32.mrf.mxu0
      %v4506 = vadd.f32 0.0, %v4505
      %4507 = vmatmul.f32.gmra.mxu0 %v4396
      %v4508 = vpop.f32.mrf.mxu0
      %v4509 = vadd.f32 0.0, %v4508
      %4510 = vmatmul.f32.gmra.mxu0 %v4399
      %v4511 = vpop.f32.mrf.mxu0
      %v4512 = vadd.f32 0.0, %v4511
      %4513 = vmatmul.f32.gmra.mxu0 %v4402
      %v4514 = vpop.f32.mrf.mxu0
      %v4515 = vadd.f32 0.0, %v4514
      %4516 = vmatmul.f32.gmra.mxu0 %v4405
      %v4517 = vpop.f32.mrf.mxu0
      %v4518 = vadd.f32 0.0, %v4517
      %4519 = vmatmul.f32.gmra.mxu0 %v4408
      %v4520 = vpop.f32.mrf.mxu0
      %v4521 = vadd.f32 0.0, %v4520
      %4522 = vmatmul.f32.gmra.mxu0 %v4411
      %v4523 = vpop.f32.mrf.mxu0
      %v4524 = vadd.f32 0.0, %v4523
      %4525 = vmatmul.f32.gmra.mxu0 %v4414
      %v4526 = vpop.f32.mrf.mxu0
      %v4527 = vadd.f32 0.0, %v4526
      %4528 = vmatmul.f32.gmra.mxu0 %v4417
      %v4529 = vpop.f32.mrf.mxu0
      %v4530 = vadd.f32 0.0, %v4529
      %4531 = vmatmul.f32.gmra.mxu0 %v4420
      %v4532 = vpop.f32.mrf.mxu0
      %v4533 = vadd.f32 0.0, %v4532
      %4534 = vmatmul.f32.gmra.mxu0 %v4423
      %v4535 = vpop.f32.mrf.mxu0
      %v4536 = vadd.f32 0.0, %v4535
      %4537 = vmatmul.f32.gmra.mxu0 %v4426
      %v4538 = vpop.f32.mrf.mxu0
      %v4539 = vadd.f32 0.0, %v4538
      %4540 = vmatmul.f32.gmra.mxu0 %v4429
      %v4541 = vpop.f32.mrf.mxu0
      %v4542 = vadd.f32 0.0, %v4541
      %4543 = vmatmul.f32.gmra.mxu0 %v4432
      %v4544 = vpop.f32.mrf.mxu0
      %v4545 = vadd.f32 0.0, %v4544
      %4546 = vmatmul.f32.gmra.mxu0 %v4435
      %v4547 = vpop.f32.mrf.mxu0
      %v4548 = vadd.f32 0.0, %v4547
      %4549 = vmatmul.f32.gmra.mxu0 %v4438
      %v4550 = vpop.f32.mrf.mxu0
      %v4551 = vadd.f32 0.0, %v4550
      %4552 = vmatmul.f32.gmra.mxu0 %v4441
      %v4553 = vpop.f32.mrf.mxu0
      %v4554 = vadd.f32 0.0, %v4553
      %4555 = vmatmul.f32.gmra.mxu0 %v4444
      %v4556 = vpop.f32.mrf.mxu0
      %v4557 = vadd.f32 0.0, %v4556
      %4558 = vmatmul.f32.gmra.mxu0 %v4447
      %v4559 = vpop.f32.mrf.mxu0
      %v4560 = vadd.f32 0.0, %v4559
      %4561 = vmatmul.f32.gmra.mxu0 %v4450
      %v4562 = vpop.f32.mrf.mxu0
      %v4563 = vadd.f32 0.0, %v4562
      %4564 = vmatmul.f32.gmra.mxu0 %v4453
      %v4565 = vpop.f32.mrf.mxu0
      %v4566 = vadd.f32 0.0, %v4565
      %4567 = vmatmul.f32.gmra.mxu0 %v4456
      %v4568 = vpop.f32.mrf.mxu0
      %v4569 = vadd.f32 0.0, %v4568
      %4570 = vmatmul.f32.gmra.mxu0 %v4459
      %v4571 = vpop.f32.mrf.mxu0
      %v4572 = vadd.f32 0.0, %v4571
      %4573 = vmatmul.f32.gmra.mxu0 %v4462
      %v4574 = vpop.f32.mrf.mxu0
      %v4575 = vadd.f32 0.0, %v4574
      %4576 = vmatmul.f32.gmra.mxu0 %v4465
      %v4577 = vpop.f32.mrf.mxu0
      %v4578 = vadd.f32 0.0, %v4577
      %4579 = vmatmul.f32.gmra.mxu0 %v4468
      %v4580 = vpop.f32.mrf.mxu0
      %v4581 = vadd.f32 0.0, %v4580
      %4582 = vmatmul.f32.gmra.mxu0 %v4471
      %v4583 = vpop.f32.mrf.mxu0
      %v4584 = vadd.f32 0.0, %v4583
      %4585 = vdwg.mxu0
      %v4586 = vadd.f32 %v4308, %v4491
      %v4587 = vadd.f32 %v4309, %v4494
      %v4588 = vadd.f32 %v4310, %v4497
      %v4589 = vadd.f32 %v4311, %v4500
      %v4590 = vadd.f32 %v4312, %v4503
      %v4591 = vadd.f32 %v4313, %v4506
      %v4592 = vadd.f32 %v4314, %v4509
      %v4593 = vadd.f32 %v4315, %v4512
      %v4594 = vadd.f32 %v4316, %v4515
      %v4595 = vadd.f32 %v4317, %v4518
      %v4596 = vadd.f32 %v4318, %v4521
      %v4597 = vadd.f32 %v4319, %v4524
      %v4598 = vadd.f32 %v4320, %v4527
      %v4599 = vadd.f32 %v4321, %v4530
      %v4600 = vadd.f32 %v4322, %v4533
      %v4601 = vadd.f32 %v4323, %v4536
      %v4602 = vadd.f32 %v4324, %v4539
      %v4603 = vadd.f32 %v4325, %v4542
      %v4604 = vadd.f32 %v4326, %v4545
      %v4605 = vadd.f32 %v4327, %v4548
      %v4606 = vadd.f32 %v4328, %v4551
      %v4607 = vadd.f32 %v4329, %v4554
      %v4608 = vadd.f32 %v4330, %v4557
      %v4609 = vadd.f32 %v4331, %v4560
      %v4610 = vadd.f32 %v4332, %v4563
      %v4611 = vadd.f32 %v4333, %v4566
      %v4612 = vadd.f32 %v4334, %v4569
      %v4613 = vadd.f32 %v4335, %v4572
      %v4614 = vadd.f32 %v4336, %v4575
      %v4615 = vadd.f32 %v4337, %v4578
      %v4616 = vadd.f32 %v4338, %v4581
      %v4617 = vadd.f32 %v4339, %v4584
      %v4618 = vld [vmem:[%s1950] sm:$0xff]
      %v4619 = vld [vmem:[%s1950 + $0x8] sm:$0xff]
      %v4620 = vld [vmem:[%s1950 + $0x18] sm:$0xff]
      %v4621 = vld [vmem:[%s1950 + $0x20] sm:$0xff]
      %v4622 = vld [vmem:[%s1950 + $0x30] sm:$0xff]
      %v4623 = vld [vmem:[%s1950 + $0x38] sm:$0xff]
      %v4624 = vld [vmem:[%s1950 + $0x48] sm:$0xff]
      %v4625 = vld [vmem:[%s1950 + $0x50] sm:$0xff]
      %v4626 = vld [vmem:[%s1950 + $0x60] sm:$0xff]
      %v4627 = vld [vmem:[%s1950 + $0x68] sm:$0xff]
      %v4628 = vld [vmem:[%s1950 + $0x78] sm:$0xff]
      %v4629 = vld [vmem:[%s1950 + $0x80] sm:$0xff]
      %v4630 = vld [vmem:[%s1950 + $0x90] sm:$0xff]
      %v4631 = vld [vmem:[%s1950 + $0x98] sm:$0xff]
      %v4632 = vld [vmem:[%s1950 + $0xa8] sm:$0xff]
      %v4633 = vld [vmem:[%s1950 + $0xb0] sm:$0xff]
      %v4634 = vld [vmem:[%s1950 + $0xc0] sm:$0xff]
      %v4635 = vld [vmem:[%s1950 + $0xc8] sm:$0xff]
      %v4636 = vld [vmem:[%s1950 + $0xd8] sm:$0xff]
      %v4637 = vld [vmem:[%s1950 + $0xe0] sm:$0xff]
      %v4638 = vld [vmem:[%s1950 + $0xf0] sm:$0xff]
      %v4639 = vld [vmem:[%s1950 + $0xf8] sm:$0xff]
      %v4640 = vld [vmem:[%s1950 + $0x108] sm:$0xff]
      %v4641 = vld [vmem:[%s1950 + $0x110] sm:$0xff]
      %v4642 = vld [vmem:[%s1950 + $0x120] sm:$0xff]
      %v4643 = vld [vmem:[%s1950 + $0x128] sm:$0xff]
      %v4644 = vld [vmem:[%s1950 + $0x138] sm:$0xff]
      %v4645 = vld [vmem:[%s1950 + $0x140] sm:$0xff]
      %v4646 = vld [vmem:[%s1950 + $0x150] sm:$0xff]
      %v4647 = vld [vmem:[%s1950 + $0x158] sm:$0xff]
      %v4648 = vld [vmem:[%s1950 + $0x168] sm:$0xff]
      %v4649 = vld [vmem:[%s1950 + $0x170] sm:$0xff]
      %s4650 = scalar_lea.vmem %s1, 480
      %v4651 = vld [vmem:[%s4650] sm:$0xff]
      %v4652 = vld [vmem:[%s4650 + $0x8] sm:$0xff]
      %v4653 = vld [vmem:[%s4650 + $0x10] sm:$0xff]
      %v4654 = vld [vmem:[%s4650 + $0x18] sm:$0xff]
      %v4656 = vsel %vm225, %v4618, 0
      %v4659 = vsel %vm225, %v4619, 0
      %v4662 = vsel %vm225, %v4620, 0
      %v4665 = vsel %vm225, %v4621, 0
      %v4668 = vsel %vm225, %v4622, 0
      %v4671 = vsel %vm225, %v4623, 0
      %v4674 = vsel %vm225, %v4624, 0
      %v4677 = vsel %vm225, %v4625, 0
      %v4680 = vsel %vm225, %v4626, 0
      %v4683 = vsel %vm225, %v4627, 0
      %v4686 = vsel %vm225, %v4628, 0
      %v4689 = vsel %vm225, %v4629, 0
      %v4692 = vsel %vm225, %v4630, 0
      %v4695 = vsel %vm225, %v4631, 0
      %v4698 = vsel %vm225, %v4632, 0
      %v4701 = vsel %vm225, %v4633, 0
      %v4704 = vsel %vm225, %v4634, 0
      %v4707 = vsel %vm225, %v4635, 0
      %v4710 = vsel %vm225, %v4636, 0
      %v4713 = vsel %vm225, %v4637, 0
      %v4716 = vsel %vm225, %v4638, 0
      %v4719 = vsel %vm225, %v4639, 0
      %v4722 = vsel %vm225, %v4640, 0
      %v4725 = vsel %vm225, %v4641, 0
      %v4728 = vsel %vm225, %v4642, 0
      %v4731 = vsel %vm225, %v4643, 0
      %v4734 = vsel %vm225, %v4644, 0
      %v4737 = vsel %vm225, %v4645, 0
      %v4740 = vsel %vm225, %v4646, 0
      %v4743 = vsel %vm225, %v4647, 0
      %v4746 = vsel %vm225, %v4648, 0
      %v4749 = vsel %vm225, %v4649, 0
      %4751 = vmatpush.msra.mxu0 0.0
      %4752 = vmatpush.msra.mxu0 0.0
      %4753 = vmatpush.msra.mxu0 0.0
      %4754 = vmatpush.msra.mxu0 0.0
      %4755 = vmatpush.msra.mxu0 0.0
      %4756 = vmatpush.msra.mxu0 0.0
      %4757 = vmatpush.msra.mxu0 0.0
      %4758 = vmatpush.msra.mxu0 0.0
      %4759 = vmatpush.msra.mxu0 0.0
      %4760 = vmatpush.msra.mxu0 0.0
      %4761 = vmatpush.msra.mxu0 0.0
      %4762 = vmatpush.msra.mxu0 0.0
      %4763 = vmatpush.msra.mxu0 %v4654
      %4764 = vmatpush.msra.mxu0 %v4653
      %4765 = vmatpush.msra.mxu0 %v4652
      %4766 = vmatpush.msra.mxu0 %v4651
      %4767 = vmatmul.f32.gmra.mxu0 %v4656
      %v4768 = vpop.f32.mrf.mxu0
      %v4769 = vadd.f32 0.0, %v4768
      %4770 = vmatmul.f32.gmra.mxu0 %v4659
      %v4771 = vpop.f32.mrf.mxu0
      %v4772 = vadd.f32 0.0, %v4771
      %4773 = vmatmul.f32.gmra.mxu0 %v4662
      %v4774 = vpop.f32.mrf.mxu0
      %v4775 = vadd.f32 0.0, %v4774
      %4776 = vmatmul.f32.gmra.mxu0 %v4665
      %v4777 = vpop.f32.mrf.mxu0
      %v4778 = vadd.f32 0.0, %v4777
      %4779 = vmatmul.f32.gmra.mxu0 %v4668
      %v4780 = vpop.f32.mrf.mxu0
      %v4781 = vadd.f32 0.0, %v4780
      %4782 = vmatmul.f32.gmra.mxu0 %v4671
      %v4783 = vpop.f32.mrf.mxu0
      %v4784 = vadd.f32 0.0, %v4783
      %4785 = vmatmul.f32.gmra.mxu0 %v4674
      %v4786 = vpop.f32.mrf.mxu0
      %v4787 = vadd.f32 0.0, %v4786
      %4788 = vmatmul.f32.gmra.mxu0 %v4677
      %v4789 = vpop.f32.mrf.mxu0
      %v4790 = vadd.f32 0.0, %v4789
      %4791 = vmatmul.f32.gmra.mxu0 %v4680
      %v4792 = vpop.f32.mrf.mxu0
      %v4793 = vadd.f32 0.0, %v4792
      %4794 = vmatmul.f32.gmra.mxu0 %v4683
      %v4795 = vpop.f32.mrf.mxu0
      %v4796 = vadd.f32 0.0, %v4795
      %4797 = vmatmul.f32.gmra.mxu0 %v4686
      %v4798 = vpop.f32.mrf.mxu0
      %v4799 = vadd.f32 0.0, %v4798
      %4800 = vmatmul.f32.gmra.mxu0 %v4689
      %v4801 = vpop.f32.mrf.mxu0
      %v4802 = vadd.f32 0.0, %v4801
      %4803 = vmatmul.f32.gmra.mxu0 %v4692
      %v4804 = vpop.f32.mrf.mxu0
      %v4805 = vadd.f32 0.0, %v4804
      %4806 = vmatmul.f32.gmra.mxu0 %v4695
      %v4807 = vpop.f32.mrf.mxu0
      %v4808 = vadd.f32 0.0, %v4807
      %4809 = vmatmul.f32.gmra.mxu0 %v4698
      %v4810 = vpop.f32.mrf.mxu0
      %v4811 = vadd.f32 0.0, %v4810
      %4812 = vmatmul.f32.gmra.mxu0 %v4701
      %v4813 = vpop.f32.mrf.mxu0
      %v4814 = vadd.f32 0.0, %v4813
      %4815 = vmatmul.f32.gmra.mxu0 %v4704
      %v4816 = vpop.f32.mrf.mxu0
      %v4817 = vadd.f32 0.0, %v4816
      %4818 = vmatmul.f32.gmra.mxu0 %v4707
      %v4819 = vpop.f32.mrf.mxu0
      %v4820 = vadd.f32 0.0, %v4819
      %4821 = vmatmul.f32.gmra.mxu0 %v4710
      %v4822 = vpop.f32.mrf.mxu0
      %v4823 = vadd.f32 0.0, %v4822
      %4824 = vmatmul.f32.gmra.mxu0 %v4713
      %v4825 = vpop.f32.mrf.mxu0
      %v4826 = vadd.f32 0.0, %v4825
      %4827 = vmatmul.f32.gmra.mxu0 %v4716
      %v4828 = vpop.f32.mrf.mxu0
      %v4829 = vadd.f32 0.0, %v4828
      %4830 = vmatmul.f32.gmra.mxu0 %v4719
      %v4831 = vpop.f32.mrf.mxu0
      %v4832 = vadd.f32 0.0, %v4831
      %4833 = vmatmul.f32.gmra.mxu0 %v4722
      %v4834 = vpop.f32.mrf.mxu0
      %v4835 = vadd.f32 0.0, %v4834
      %4836 = vmatmul.f32.gmra.mxu0 %v4725
      %v4837 = vpop.f32.mrf.mxu0
      %v4838 = vadd.f32 0.0, %v4837
      %4839 = vmatmul.f32.gmra.mxu0 %v4728
      %v4840 = vpop.f32.mrf.mxu0
      %v4841 = vadd.f32 0.0, %v4840
      %4842 = vmatmul.f32.gmra.mxu0 %v4731
      %v4843 = vpop.f32.mrf.mxu0
      %v4844 = vadd.f32 0.0, %v4843
      %4845 = vmatmul.f32.gmra.mxu0 %v4734
      %v4846 = vpop.f32.mrf.mxu0
      %v4847 = vadd.f32 0.0, %v4846
      %4848 = vmatmul.f32.gmra.mxu0 %v4737
      %v4849 = vpop.f32.mrf.mxu0
      %v4850 = vadd.f32 0.0, %v4849
      %4851 = vmatmul.f32.gmra.mxu0 %v4740
      %v4852 = vpop.f32.mrf.mxu0
      %v4853 = vadd.f32 0.0, %v4852
      %4854 = vmatmul.f32.gmra.mxu0 %v4743
      %v4855 = vpop.f32.mrf.mxu0
      %v4856 = vadd.f32 0.0, %v4855
      %4857 = vmatmul.f32.gmra.mxu0 %v4746
      %v4858 = vpop.f32.mrf.mxu0
      %v4859 = vadd.f32 0.0, %v4858
      %4860 = vmatmul.f32.gmra.mxu0 %v4749
      %v4861 = vpop.f32.mrf.mxu0
      %v4862 = vadd.f32 0.0, %v4861
      %4863 = vdwg.mxu0
      %v4864 = vadd.f32 %v4586, %v4769
      %v4865 = vadd.f32 %v4587, %v4772
      %v4866 = vadd.f32 %v4588, %v4775
      %v4867 = vadd.f32 %v4589, %v4778
      %v4868 = vadd.f32 %v4590, %v4781
      %v4869 = vadd.f32 %v4591, %v4784
      %v4870 = vadd.f32 %v4592, %v4787
      %v4871 = vadd.f32 %v4593, %v4790
      %v4872 = vadd.f32 %v4594, %v4793
      %v4873 = vadd.f32 %v4595, %v4796
      %v4874 = vadd.f32 %v4596, %v4799
      %v4875 = vadd.f32 %v4597, %v4802
      %v4876 = vadd.f32 %v4598, %v4805
      %v4877 = vadd.f32 %v4599, %v4808
      %v4878 = vadd.f32 %v4600, %v4811
      %v4879 = vadd.f32 %v4601, %v4814
      %v4880 = vadd.f32 %v4602, %v4817
      %v4881 = vadd.f32 %v4603, %v4820
      %v4882 = vadd.f32 %v4604, %v4823
      %v4883 = vadd.f32 %v4605, %v4826
      %v4884 = vadd.f32 %v4606, %v4829
      %v4885 = vadd.f32 %v4607, %v4832
      %v4886 = vadd.f32 %v4608, %v4835
      %v4887 = vadd.f32 %v4609, %v4838
      %v4888 = vadd.f32 %v4610, %v4841
      %v4889 = vadd.f32 %v4611, %v4844
      %v4890 = vadd.f32 %v4612, %v4847
      %v4891 = vadd.f32 %v4613, %v4850
      %v4892 = vadd.f32 %v4614, %v4853
      %v4893 = vadd.f32 %v4615, %v4856
      %v4894 = vadd.f32 %v4616, %v4859
      %v4895 = vadd.f32 %v4617, %v4862
      %v4896 = vld [vmem:[%s1950 + $0x1] sm:$0xff]
      %v4897 = vld [vmem:[%s1950 + $0x9] sm:$0xff]
      %v4898 = vld [vmem:[%s1950 + $0x19] sm:$0xff]
      %v4899 = vld [vmem:[%s1950 + $0x21] sm:$0xff]
      %v4900 = vld [vmem:[%s1950 + $0x31] sm:$0xff]
      %v4901 = vld [vmem:[%s1950 + $0x39] sm:$0xff]
      %v4902 = vld [vmem:[%s1950 + $0x49] sm:$0xff]
      %v4903 = vld [vmem:[%s1950 + $0x51] sm:$0xff]
      %v4904 = vld [vmem:[%s1950 + $0x61] sm:$0xff]
      %v4905 = vld [vmem:[%s1950 + $0x69] sm:$0xff]
      %v4906 = vld [vmem:[%s1950 + $0x79] sm:$0xff]
      %v4907 = vld [vmem:[%s1950 + $0x81] sm:$0xff]
      %v4908 = vld [vmem:[%s1950 + $0x91] sm:$0xff]
      %v4909 = vld [vmem:[%s1950 + $0x99] sm:$0xff]
      %v4910 = vld [vmem:[%s1950 + $0xa9] sm:$0xff]
      %v4911 = vld [vmem:[%s1950 + $0xb1] sm:$0xff]
      %v4912 = vld [vmem:[%s1950 + $0xc1] sm:$0xff]
      %v4913 = vld [vmem:[%s1950 + $0xc9] sm:$0xff]
      %v4914 = vld [vmem:[%s1950 + $0xd9] sm:$0xff]
      %v4915 = vld [vmem:[%s1950 + $0xe1] sm:$0xff]
      %v4916 = vld [vmem:[%s1950 + $0xf1] sm:$0xff]
      %v4917 = vld [vmem:[%s1950 + $0xf9] sm:$0xff]
      %v4918 = vld [vmem:[%s1950 + $0x109] sm:$0xff]
      %v4919 = vld [vmem:[%s1950 + $0x111] sm:$0xff]
      %v4920 = vld [vmem:[%s1950 + $0x121] sm:$0xff]
      %v4921 = vld [vmem:[%s1950 + $0x129] sm:$0xff]
      %v4922 = vld [vmem:[%s1950 + $0x139] sm:$0xff]
      %v4923 = vld [vmem:[%s1950 + $0x141] sm:$0xff]
      %v4924 = vld [vmem:[%s1950 + $0x151] sm:$0xff]
      %v4925 = vld [vmem:[%s1950 + $0x159] sm:$0xff]
      %v4926 = vld [vmem:[%s1950 + $0x169] sm:$0xff]
      %v4927 = vld [vmem:[%s1950 + $0x171] sm:$0xff]
      %s4928 = scalar_lea.vmem %s1, 512
      %v4929 = vld [vmem:[%s4928] sm:$0xff]
      %v4930 = vld [vmem:[%s4928 + $0x8] sm:$0xff]
      %v4931 = vld [vmem:[%s4928 + $0x10] sm:$0xff]
      %v4932 = vld [vmem:[%s4928 + $0x18] sm:$0xff]
      %v4934 = vsel %vm225, %v4896, 0
      %v4937 = vsel %vm225, %v4897, 0
      %v4940 = vsel %vm225, %v4898, 0
      %v4943 = vsel %vm225, %v4899, 0
      %v4946 = vsel %vm225, %v4900, 0
      %v4949 = vsel %vm225, %v4901, 0
      %v4952 = vsel %vm225, %v4902, 0
      %v4955 = vsel %vm225, %v4903, 0
      %v4958 = vsel %vm225, %v4904, 0
      %v4961 = vsel %vm225, %v4905, 0
      %v4964 = vsel %vm225, %v4906, 0
      %v4967 = vsel %vm225, %v4907, 0
      %v4970 = vsel %vm225, %v4908, 0
      %v4973 = vsel %vm225, %v4909, 0
      %v4976 = vsel %vm225, %v4910, 0
      %v4979 = vsel %vm225, %v4911, 0
      %v4982 = vsel %vm225, %v4912, 0
      %v4985 = vsel %vm225, %v4913, 0
      %v4988 = vsel %vm225, %v4914, 0
      %v4991 = vsel %vm225, %v4915, 0
      %v4994 = vsel %vm225, %v4916, 0
      %v4997 = vsel %vm225, %v4917, 0
      %v5000 = vsel %vm225, %v4918, 0
      %v5003 = vsel %vm225, %v4919, 0
      %v5006 = vsel %vm225, %v4920, 0
      %v5009 = vsel %vm225, %v4921, 0
      %v5012 = vsel %vm225, %v4922, 0
      %v5015 = vsel %vm225, %v4923, 0
      %v5018 = vsel %vm225, %v4924, 0
      %v5021 = vsel %vm225, %v4925, 0
      %v5024 = vsel %vm225, %v4926, 0
      %v5027 = vsel %vm225, %v4927, 0
      %5029 = vmatpush.msra.mxu0 0.0
      %5030 = vmatpush.msra.mxu0 0.0
      %5031 = vmatpush.msra.mxu0 0.0
      %5032 = vmatpush.msra.mxu0 0.0
      %5033 = vmatpush.msra.mxu0 0.0
      %5034 = vmatpush.msra.mxu0 0.0
      %5035 = vmatpush.msra.mxu0 0.0
      %5036 = vmatpush.msra.mxu0 0.0
      %5037 = vmatpush.msra.mxu0 0.0
      %5038 = vmatpush.msra.mxu0 0.0
      %5039 = vmatpush.msra.mxu0 0.0
      %5040 = vmatpush.msra.mxu0 0.0
      %5041 = vmatpush.msra.mxu0 %v4932
      %5042 = vmatpush.msra.mxu0 %v4931
      %5043 = vmatpush.msra.mxu0 %v4930
      %5044 = vmatpush.msra.mxu0 %v4929
      %5045 = vmatmul.f32.gmra.mxu0 %v4934
      %v5046 = vpop.f32.mrf.mxu0
      %v5047 = vadd.f32 0.0, %v5046
      %5048 = vmatmul.f32.gmra.mxu0 %v4937
      %v5049 = vpop.f32.mrf.mxu0
      %v5050 = vadd.f32 0.0, %v5049
      %5051 = vmatmul.f32.gmra.mxu0 %v4940
      %v5052 = vpop.f32.mrf.mxu0
      %v5053 = vadd.f32 0.0, %v5052
      %5054 = vmatmul.f32.gmra.mxu0 %v4943
      %v5055 = vpop.f32.mrf.mxu0
      %v5056 = vadd.f32 0.0, %v5055
      %5057 = vmatmul.f32.gmra.mxu0 %v4946
      %v5058 = vpop.f32.mrf.mxu0
      %v5059 = vadd.f32 0.0, %v5058
      %5060 = vmatmul.f32.gmra.mxu0 %v4949
      %v5061 = vpop.f32.mrf.mxu0
      %v5062 = vadd.f32 0.0, %v5061
      %5063 = vmatmul.f32.gmra.mxu0 %v4952
      %v5064 = vpop.f32.mrf.mxu0
      %v5065 = vadd.f32 0.0, %v5064
      %5066 = vmatmul.f32.gmra.mxu0 %v4955
      %v5067 = vpop.f32.mrf.mxu0
      %v5068 = vadd.f32 0.0, %v5067
      %5069 = vmatmul.f32.gmra.mxu0 %v4958
      %v5070 = vpop.f32.mrf.mxu0
      %v5071 = vadd.f32 0.0, %v5070
      %5072 = vmatmul.f32.gmra.mxu0 %v4961
      %v5073 = vpop.f32.mrf.mxu0
      %v5074 = vadd.f32 0.0, %v5073
      %5075 = vmatmul.f32.gmra.mxu0 %v4964
      %v5076 = vpop.f32.mrf.mxu0
      %v5077 = vadd.f32 0.0, %v5076
      %5078 = vmatmul.f32.gmra.mxu0 %v4967
      %v5079 = vpop.f32.mrf.mxu0
      %v5080 = vadd.f32 0.0, %v5079
      %5081 = vmatmul.f32.gmra.mxu0 %v4970
      %v5082 = vpop.f32.mrf.mxu0
      %v5083 = vadd.f32 0.0, %v5082
      %5084 = vmatmul.f32.gmra.mxu0 %v4973
      %v5085 = vpop.f32.mrf.mxu0
      %v5086 = vadd.f32 0.0, %v5085
      %5087 = vmatmul.f32.gmra.mxu0 %v4976
      %v5088 = vpop.f32.mrf.mxu0
      %v5089 = vadd.f32 0.0, %v5088
      %5090 = vmatmul.f32.gmra.mxu0 %v4979
      %v5091 = vpop.f32.mrf.mxu0
      %v5092 = vadd.f32 0.0, %v5091
      %5093 = vmatmul.f32.gmra.mxu0 %v4982
      %v5094 = vpop.f32.mrf.mxu0
      %v5095 = vadd.f32 0.0, %v5094
      %5096 = vmatmul.f32.gmra.mxu0 %v4985
      %v5097 = vpop.f32.mrf.mxu0
      %v5098 = vadd.f32 0.0, %v5097
      %5099 = vmatmul.f32.gmra.mxu0 %v4988
      %v5100 = vpop.f32.mrf.mxu0
      %v5101 = vadd.f32 0.0, %v5100
      %5102 = vmatmul.f32.gmra.mxu0 %v4991
      %v5103 = vpop.f32.mrf.mxu0
      %v5104 = vadd.f32 0.0, %v5103
      %5105 = vmatmul.f32.gmra.mxu0 %v4994
      %v5106 = vpop.f32.mrf.mxu0
      %v5107 = vadd.f32 0.0, %v5106
      %5108 = vmatmul.f32.gmra.mxu0 %v4997
      %v5109 = vpop.f32.mrf.mxu0
      %v5110 = vadd.f32 0.0, %v5109
      %5111 = vmatmul.f32.gmra.mxu0 %v5000
      %v5112 = vpop.f32.mrf.mxu0
      %v5113 = vadd.f32 0.0, %v5112
      %5114 = vmatmul.f32.gmra.mxu0 %v5003
      %v5115 = vpop.f32.mrf.mxu0
      %v5116 = vadd.f32 0.0, %v5115
      %5117 = vmatmul.f32.gmra.mxu0 %v5006
      %v5118 = vpop.f32.mrf.mxu0
      %v5119 = vadd.f32 0.0, %v5118
      %5120 = vmatmul.f32.gmra.mxu0 %v5009
      %v5121 = vpop.f32.mrf.mxu0
      %v5122 = vadd.f32 0.0, %v5121
      %5123 = vmatmul.f32.gmra.mxu0 %v5012
      %v5124 = vpop.f32.mrf.mxu0
      %v5125 = vadd.f32 0.0, %v5124
      %5126 = vmatmul.f32.gmra.mxu0 %v5015
      %v5127 = vpop.f32.mrf.mxu0
      %v5128 = vadd.f32 0.0, %v5127
      %5129 = vmatmul.f32.gmra.mxu0 %v5018
      %v5130 = vpop.f32.mrf.mxu0
      %v5131 = vadd.f32 0.0, %v5130
      %5132 = vmatmul.f32.gmra.mxu0 %v5021
      %v5133 = vpop.f32.mrf.mxu0
      %v5134 = vadd.f32 0.0, %v5133
      %5135 = vmatmul.f32.gmra.mxu0 %v5024
      %v5136 = vpop.f32.mrf.mxu0
      %v5137 = vadd.f32 0.0, %v5136
      %5138 = vmatmul.f32.gmra.mxu0 %v5027
      %v5139 = vpop.f32.mrf.mxu0
      %v5140 = vadd.f32 0.0, %v5139
      %5141 = vdwg.mxu0
      %v5142 = vadd.f32 %v4864, %v5047
      %v5143 = vadd.f32 %v4865, %v5050
      %v5144 = vadd.f32 %v4866, %v5053
      %v5145 = vadd.f32 %v4867, %v5056
      %v5146 = vadd.f32 %v4868, %v5059
      %v5147 = vadd.f32 %v4869, %v5062
      %v5148 = vadd.f32 %v4870, %v5065
      %v5149 = vadd.f32 %v4871, %v5068
      %v5150 = vadd.f32 %v4872, %v5071
      %v5151 = vadd.f32 %v4873, %v5074
      %v5152 = vadd.f32 %v4874, %v5077
      %v5153 = vadd.f32 %v4875, %v5080
      %v5154 = vadd.f32 %v4876, %v5083
      %v5155 = vadd.f32 %v4877, %v5086
      %v5156 = vadd.f32 %v4878, %v5089
      %v5157 = vadd.f32 %v4879, %v5092
      %v5158 = vadd.f32 %v4880, %v5095
      %v5159 = vadd.f32 %v4881, %v5098
      %v5160 = vadd.f32 %v4882, %v5101
      %v5161 = vadd.f32 %v4883, %v5104
      %v5162 = vadd.f32 %v4884, %v5107
      %v5163 = vadd.f32 %v4885, %v5110
      %v5164 = vadd.f32 %v4886, %v5113
      %v5165 = vadd.f32 %v4887, %v5116
      %v5166 = vadd.f32 %v4888, %v5119
      %v5167 = vadd.f32 %v4889, %v5122
      %v5168 = vadd.f32 %v4890, %v5125
      %v5169 = vadd.f32 %v4891, %v5128
      %v5170 = vadd.f32 %v4892, %v5131
      %v5171 = vadd.f32 %v4893, %v5134
      %v5172 = vadd.f32 %v4894, %v5137
      %v5173 = vadd.f32 %v4895, %v5140
      %v5174 = vld [vmem:[%s1950 + $0x2] sm:$0xff]
      %v5175 = vld [vmem:[%s1950 + $0xa] sm:$0xff]
      %v5176 = vld [vmem:[%s1950 + $0x1a] sm:$0xff]
      %v5177 = vld [vmem:[%s1950 + $0x22] sm:$0xff]
      %v5178 = vld [vmem:[%s1950 + $0x32] sm:$0xff]
      %v5179 = vld [vmem:[%s1950 + $0x3a] sm:$0xff]
      %v5180 = vld [vmem:[%s1950 + $0x4a] sm:$0xff]
      %v5181 = vld [vmem:[%s1950 + $0x52] sm:$0xff]
      %v5182 = vld [vmem:[%s1950 + $0x62] sm:$0xff]
      %v5183 = vld [vmem:[%s1950 + $0x6a] sm:$0xff]
      %v5184 = vld [vmem:[%s1950 + $0x7a] sm:$0xff]
      %v5185 = vld [vmem:[%s1950 + $0x82] sm:$0xff]
      %v5186 = vld [vmem:[%s1950 + $0x92] sm:$0xff]
      %v5187 = vld [vmem:[%s1950 + $0x9a] sm:$0xff]
      %v5188 = vld [vmem:[%s1950 + $0xaa] sm:$0xff]
      %v5189 = vld [vmem:[%s1950 + $0xb2] sm:$0xff]
      %v5190 = vld [vmem:[%s1950 + $0xc2] sm:$0xff]
      %v5191 = vld [vmem:[%s1950 + $0xca] sm:$0xff]
      %v5192 = vld [vmem:[%s1950 + $0xda] sm:$0xff]
      %v5193 = vld [vmem:[%s1950 + $0xe2] sm:$0xff]
      %v5194 = vld [vmem:[%s1950 + $0xf2] sm:$0xff]
      %v5195 = vld [vmem:[%s1950 + $0xfa] sm:$0xff]
      %v5196 = vld [vmem:[%s1950 + $0x10a] sm:$0xff]
      %v5197 = vld [vmem:[%s1950 + $0x112] sm:$0xff]
      %v5198 = vld [vmem:[%s1950 + $0x122] sm:$0xff]
      %v5199 = vld [vmem:[%s1950 + $0x12a] sm:$0xff]
      %v5200 = vld [vmem:[%s1950 + $0x13a] sm:$0xff]
      %v5201 = vld [vmem:[%s1950 + $0x142] sm:$0xff]
      %v5202 = vld [vmem:[%s1950 + $0x152] sm:$0xff]
      %v5203 = vld [vmem:[%s1950 + $0x15a] sm:$0xff]
      %v5204 = vld [vmem:[%s1950 + $0x16a] sm:$0xff]
      %v5205 = vld [vmem:[%s1950 + $0x172] sm:$0xff]
      %s5206 = scalar_lea.vmem %s1, 544
      %v5207 = vld [vmem:[%s5206] sm:$0xff]
      %v5208 = vld [vmem:[%s5206 + $0x8] sm:$0xff]
      %v5209 = vld [vmem:[%s5206 + $0x10] sm:$0xff]
      %v5210 = vld [vmem:[%s5206 + $0x18] sm:$0xff]
      %v5212 = vsel %vm225, %v5174, 0
      %v5215 = vsel %vm225, %v5175, 0
      %v5218 = vsel %vm225, %v5176, 0
      %v5221 = vsel %vm225, %v5177, 0
      %v5224 = vsel %vm225, %v5178, 0
      %v5227 = vsel %vm225, %v5179, 0
      %v5230 = vsel %vm225, %v5180, 0
      %v5233 = vsel %vm225, %v5181, 0
      %v5236 = vsel %vm225, %v5182, 0
      %v5239 = vsel %vm225, %v5183, 0
      %v5242 = vsel %vm225, %v5184, 0
      %v5245 = vsel %vm225, %v5185, 0
      %v5248 = vsel %vm225, %v5186, 0
      %v5251 = vsel %vm225, %v5187, 0
      %v5254 = vsel %vm225, %v5188, 0
      %v5257 = vsel %vm225, %v5189, 0
      %v5260 = vsel %vm225, %v5190, 0
      %v5263 = vsel %vm225, %v5191, 0
      %v5266 = vsel %vm225, %v5192, 0
      %v5269 = vsel %vm225, %v5193, 0
      %v5272 = vsel %vm225, %v5194, 0
      %v5275 = vsel %vm225, %v5195, 0
      %v5278 = vsel %vm225, %v5196, 0
      %v5281 = vsel %vm225, %v5197, 0
      %v5284 = vsel %vm225, %v5198, 0
      %v5287 = vsel %vm225, %v5199, 0
      %v5290 = vsel %vm225, %v5200, 0
      %v5293 = vsel %vm225, %v5201, 0
      %v5296 = vsel %vm225, %v5202, 0
      %v5299 = vsel %vm225, %v5203, 0
      %v5302 = vsel %vm225, %v5204, 0
      %v5305 = vsel %vm225, %v5205, 0
      %5307 = vmatpush.msra.mxu0 0.0
      %5308 = vmatpush.msra.mxu0 0.0
      %5309 = vmatpush.msra.mxu0 0.0
      %5310 = vmatpush.msra.mxu0 0.0
      %5311 = vmatpush.msra.mxu0 0.0
      %5312 = vmatpush.msra.mxu0 0.0
      %5313 = vmatpush.msra.mxu0 0.0
      %5314 = vmatpush.msra.mxu0 0.0
      %5315 = vmatpush.msra.mxu0 0.0
      %5316 = vmatpush.msra.mxu0 0.0
      %5317 = vmatpush.msra.mxu0 0.0
      %5318 = vmatpush.msra.mxu0 0.0
      %5319 = vmatpush.msra.mxu0 %v5210
      %5320 = vmatpush.msra.mxu0 %v5209
      %5321 = vmatpush.msra.mxu0 %v5208
      %5322 = vmatpush.msra.mxu0 %v5207
      %5323 = vmatmul.f32.gmra.mxu0 %v5212
      %v5324 = vpop.f32.mrf.mxu0
      %v5325 = vadd.f32 0.0, %v5324
      %5326 = vmatmul.f32.gmra.mxu0 %v5215
      %v5327 = vpop.f32.mrf.mxu0
      %v5328 = vadd.f32 0.0, %v5327
      %5329 = vmatmul.f32.gmra.mxu0 %v5218
      %v5330 = vpop.f32.mrf.mxu0
      %v5331 = vadd.f32 0.0, %v5330
      %5332 = vmatmul.f32.gmra.mxu0 %v5221
      %v5333 = vpop.f32.mrf.mxu0
      %v5334 = vadd.f32 0.0, %v5333
      %5335 = vmatmul.f32.gmra.mxu0 %v5224
      %v5336 = vpop.f32.mrf.mxu0
      %v5337 = vadd.f32 0.0, %v5336
      %5338 = vmatmul.f32.gmra.mxu0 %v5227
      %v5339 = vpop.f32.mrf.mxu0
      %v5340 = vadd.f32 0.0, %v5339
      %5341 = vmatmul.f32.gmra.mxu0 %v5230
      %v5342 = vpop.f32.mrf.mxu0
      %v5343 = vadd.f32 0.0, %v5342
      %5344 = vmatmul.f32.gmra.mxu0 %v5233
      %v5345 = vpop.f32.mrf.mxu0
      %v5346 = vadd.f32 0.0, %v5345
      %5347 = vmatmul.f32.gmra.mxu0 %v5236
      %v5348 = vpop.f32.mrf.mxu0
      %v5349 = vadd.f32 0.0, %v5348
      %5350 = vmatmul.f32.gmra.mxu0 %v5239
      %v5351 = vpop.f32.mrf.mxu0
      %v5352 = vadd.f32 0.0, %v5351
      %5353 = vmatmul.f32.gmra.mxu0 %v5242
      %v5354 = vpop.f32.mrf.mxu0
      %v5355 = vadd.f32 0.0, %v5354
      %5356 = vmatmul.f32.gmra.mxu0 %v5245
      %v5357 = vpop.f32.mrf.mxu0
      %v5358 = vadd.f32 0.0, %v5357
      %5359 = vmatmul.f32.gmra.mxu0 %v5248
      %v5360 = vpop.f32.mrf.mxu0
      %v5361 = vadd.f32 0.0, %v5360
      %5362 = vmatmul.f32.gmra.mxu0 %v5251
      %v5363 = vpop.f32.mrf.mxu0
      %v5364 = vadd.f32 0.0, %v5363
      %5365 = vmatmul.f32.gmra.mxu0 %v5254
      %v5366 = vpop.f32.mrf.mxu0
      %v5367 = vadd.f32 0.0, %v5366
      %5368 = vmatmul.f32.gmra.mxu0 %v5257
      %v5369 = vpop.f32.mrf.mxu0
      %v5370 = vadd.f32 0.0, %v5369
      %5371 = vmatmul.f32.gmra.mxu0 %v5260
      %v5372 = vpop.f32.mrf.mxu0
      %v5373 = vadd.f32 0.0, %v5372
      %5374 = vmatmul.f32.gmra.mxu0 %v5263
      %v5375 = vpop.f32.mrf.mxu0
      %v5376 = vadd.f32 0.0, %v5375
      %5377 = vmatmul.f32.gmra.mxu0 %v5266
      %v5378 = vpop.f32.mrf.mxu0
      %v5379 = vadd.f32 0.0, %v5378
      %5380 = vmatmul.f32.gmra.mxu0 %v5269
      %v5381 = vpop.f32.mrf.mxu0
      %v5382 = vadd.f32 0.0, %v5381
      %5383 = vmatmul.f32.gmra.mxu0 %v5272
      %v5384 = vpop.f32.mrf.mxu0
      %v5385 = vadd.f32 0.0, %v5384
      %5386 = vmatmul.f32.gmra.mxu0 %v5275
      %v5387 = vpop.f32.mrf.mxu0
      %v5388 = vadd.f32 0.0, %v5387
      %5389 = vmatmul.f32.gmra.mxu0 %v5278
      %v5390 = vpop.f32.mrf.mxu0
      %v5391 = vadd.f32 0.0, %v5390
      %5392 = vmatmul.f32.gmra.mxu0 %v5281
      %v5393 = vpop.f32.mrf.mxu0
      %v5394 = vadd.f32 0.0, %v5393
      %5395 = vmatmul.f32.gmra.mxu0 %v5284
      %v5396 = vpop.f32.mrf.mxu0
      %v5397 = vadd.f32 0.0, %v5396
      %5398 = vmatmul.f32.gmra.mxu0 %v5287
      %v5399 = vpop.f32.mrf.mxu0
      %v5400 = vadd.f32 0.0, %v5399
      %5401 = vmatmul.f32.gmra.mxu0 %v5290
      %v5402 = vpop.f32.mrf.mxu0
      %v5403 = vadd.f32 0.0, %v5402
      %5404 = vmatmul.f32.gmra.mxu0 %v5293
      %v5405 = vpop.f32.mrf.mxu0
      %v5406 = vadd.f32 0.0, %v5405
      %5407 = vmatmul.f32.gmra.mxu0 %v5296
      %v5408 = vpop.f32.mrf.mxu0
      %v5409 = vadd.f32 0.0, %v5408
      %5410 = vmatmul.f32.gmra.mxu0 %v5299
      %v5411 = vpop.f32.mrf.mxu0
      %v5412 = vadd.f32 0.0, %v5411
      %5413 = vmatmul.f32.gmra.mxu0 %v5302
      %v5414 = vpop.f32.mrf.mxu0
      %v5415 = vadd.f32 0.0, %v5414
      %5416 = vmatmul.f32.gmra.mxu0 %v5305
      %v5417 = vpop.f32.mrf.mxu0
      %v5418 = vadd.f32 0.0, %v5417
      %5419 = vdwg.mxu0
      %v5420 = vadd.f32 %v5142, %v5325
      %v5421 = vadd.f32 %v5143, %v5328
      %v5422 = vadd.f32 %v5144, %v5331
      %v5423 = vadd.f32 %v5145, %v5334
      %v5424 = vadd.f32 %v5146, %v5337
      %v5425 = vadd.f32 %v5147, %v5340
      %v5426 = vadd.f32 %v5148, %v5343
      %v5427 = vadd.f32 %v5149, %v5346
      %v5428 = vadd.f32 %v5150, %v5349
      %v5429 = vadd.f32 %v5151, %v5352
      %v5430 = vadd.f32 %v5152, %v5355
      %v5431 = vadd.f32 %v5153, %v5358
      %v5432 = vadd.f32 %v5154, %v5361
      %v5433 = vadd.f32 %v5155, %v5364
      %v5434 = vadd.f32 %v5156, %v5367
      %v5435 = vadd.f32 %v5157, %v5370
      %v5436 = vadd.f32 %v5158, %v5373
      %v5437 = vadd.f32 %v5159, %v5376
      %v5438 = vadd.f32 %v5160, %v5379
      %v5439 = vadd.f32 %v5161, %v5382
      %v5440 = vadd.f32 %v5162, %v5385
      %v5441 = vadd.f32 %v5163, %v5388
      %v5442 = vadd.f32 %v5164, %v5391
      %v5443 = vadd.f32 %v5165, %v5394
      %v5444 = vadd.f32 %v5166, %v5397
      %v5445 = vadd.f32 %v5167, %v5400
      %v5446 = vadd.f32 %v5168, %v5403
      %v5447 = vadd.f32 %v5169, %v5406
      %v5448 = vadd.f32 %v5170, %v5409
      %v5449 = vadd.f32 %v5171, %v5412
      %v5450 = vadd.f32 %v5172, %v5415
      %v5451 = vadd.f32 %v5173, %v5418
      %s5452 = scalar_lea.vmem %s2, 1
      %v5453 = vld [vmem:[%s5452] sm:$0x1]
      %v5455 = vperm.slane %v5453, 0
      %v5457 = vadd.f32 %v5420, %v5455
      %v5458 = vadd.f32 %v5421, %v5455
      %v5459 = vadd.f32 %v5422, %v5455
      %v5460 = vadd.f32 %v5423, %v5455
      %v5461 = vadd.f32 %v5424, %v5455
      %v5462 = vadd.f32 %v5425, %v5455
      %v5463 = vadd.f32 %v5426, %v5455
      %v5464 = vadd.f32 %v5427, %v5455
      %v5465 = vadd.f32 %v5428, %v5455
      %v5466 = vadd.f32 %v5429, %v5455
      %v5467 = vadd.f32 %v5430, %v5455
      %v5468 = vadd.f32 %v5431, %v5455
      %v5469 = vadd.f32 %v5432, %v5455
      %v5470 = vadd.f32 %v5433, %v5455
      %v5471 = vadd.f32 %v5434, %v5455
      %v5472 = vadd.f32 %v5435, %v5455
      %v5473 = vadd.f32 %v5436, %v5455
      %v5474 = vadd.f32 %v5437, %v5455
      %v5475 = vadd.f32 %v5438, %v5455
      %v5476 = vadd.f32 %v5439, %v5455
      %v5477 = vadd.f32 %v5440, %v5455
      %v5478 = vadd.f32 %v5441, %v5455
      %v5479 = vadd.f32 %v5442, %v5455
      %v5480 = vadd.f32 %v5443, %v5455
      %v5481 = vadd.f32 %v5444, %v5455
      %v5482 = vadd.f32 %v5445, %v5455
      %v5483 = vadd.f32 %v5446, %v5455
      %v5484 = vadd.f32 %v5447, %v5455
      %v5485 = vadd.f32 %v5448, %v5455
      %v5486 = vadd.f32 %v5449, %v5455
      %v5487 = vadd.f32 %v5450, %v5455
      %v5488 = vadd.f32 %v5451, %v5455
      %v5489 = vmax.f32 %v5457, 0.0
      %v5490 = vmax.f32 %v5458, 0.0
      %v5491 = vmax.f32 %v5459, 0.0
      %v5492 = vmax.f32 %v5460, 0.0
      %v5493 = vmax.f32 %v5461, 0.0
      %v5494 = vmax.f32 %v5462, 0.0
      %v5495 = vmax.f32 %v5463, 0.0
      %v5496 = vmax.f32 %v5464, 0.0
      %v5497 = vmax.f32 %v5465, 0.0
      %v5498 = vmax.f32 %v5466, 0.0
      %v5499 = vmax.f32 %v5467, 0.0
      %v5500 = vmax.f32 %v5468, 0.0
      %v5501 = vmax.f32 %v5469, 0.0
      %v5502 = vmax.f32 %v5470, 0.0
      %v5503 = vmax.f32 %v5471, 0.0
      %v5504 = vmax.f32 %v5472, 0.0
      %v5505 = vmax.f32 %v5473, 0.0
      %v5506 = vmax.f32 %v5474, 0.0
      %v5507 = vmax.f32 %v5475, 0.0
      %v5508 = vmax.f32 %v5476, 0.0
      %v5509 = vmax.f32 %v5477, 0.0
      %v5510 = vmax.f32 %v5478, 0.0
      %v5511 = vmax.f32 %v5479, 0.0
      %v5512 = vmax.f32 %v5480, 0.0
      %v5513 = vmax.f32 %v5481, 0.0
      %v5514 = vmax.f32 %v5482, 0.0
      %v5515 = vmax.f32 %v5483, 0.0
      %v5516 = vmax.f32 %v5484, 0.0
      %v5517 = vmax.f32 %v5485, 0.0
      %v5518 = vmax.f32 %v5486, 0.0
      %v5519 = vmax.f32 %v5487, 0.0
      %v5520 = vmax.f32 %v5488, 0.0
      %5553 = vrot.lane.b32.xlu0 %v5489, 16
      %v5554 = vpop.permute.xlu0 %5553
      %5555 = vrot.lane.b32.xlu0 %v5490, 16
      %v5556 = vpop.permute.xlu0 %5555
      %5557 = vrot.lane.b32.xlu0 %v5491, 16
      %v5558 = vpop.permute.xlu0 %5557
      %5559 = vrot.lane.b32.xlu0 %v5492, 16
      %v5560 = vpop.permute.xlu0 %5559
      %5561 = vrot.lane.b32.xlu0 %v5493, 16
      %v5562 = vpop.permute.xlu0 %5561
      %5563 = vrot.lane.b32.xlu0 %v5494, 16
      %v5564 = vpop.permute.xlu0 %5563
      %5565 = vrot.lane.b32.xlu0 %v5495, 16
      %v5566 = vpop.permute.xlu0 %5565
      %5567 = vrot.lane.b32.xlu0 %v5496, 16
      %v5568 = vpop.permute.xlu0 %5567
      %5569 = vrot.lane.b32.xlu0 %v5497, 16
      %v5570 = vpop.permute.xlu0 %5569
      %5571 = vrot.lane.b32.xlu0 %v5498, 16
      %v5572 = vpop.permute.xlu0 %5571
      %5573 = vrot.lane.b32.xlu0 %v5499, 16
      %v5574 = vpop.permute.xlu0 %5573
      %5575 = vrot.lane.b32.xlu0 %v5500, 16
      %v5576 = vpop.permute.xlu0 %5575
      %5577 = vrot.lane.b32.xlu0 %v5501, 16
      %v5578 = vpop.permute.xlu0 %5577
      %5579 = vrot.lane.b32.xlu0 %v5502, 16
      %v5580 = vpop.permute.xlu0 %5579
      %5581 = vrot.lane.b32.xlu0 %v5503, 16
      %v5582 = vpop.permute.xlu0 %5581
      %5583 = vrot.lane.b32.xlu0 %v5504, 16
      %v5584 = vpop.permute.xlu0 %5583
      %5585 = vrot.lane.b32.xlu0 %v5505, 16
      %v5586 = vpop.permute.xlu0 %5585
      %5587 = vrot.lane.b32.xlu0 %v5506, 16
      %v5588 = vpop.permute.xlu0 %5587
      %5589 = vrot.lane.b32.xlu0 %v5507, 16
      %v5590 = vpop.permute.xlu0 %5589
      %5591 = vrot.lane.b32.xlu0 %v5508, 16
      %v5592 = vpop.permute.xlu0 %5591
      %5593 = vrot.lane.b32.xlu0 %v5509, 16
      %v5594 = vpop.permute.xlu0 %5593
      %5595 = vrot.lane.b32.xlu0 %v5510, 16
      %v5596 = vpop.permute.xlu0 %5595
      %5597 = vrot.lane.b32.xlu0 %v5511, 16
      %v5598 = vpop.permute.xlu0 %5597
      %5599 = vrot.lane.b32.xlu0 %v5512, 16
      %v5600 = vpop.permute.xlu0 %5599
      %5601 = vrot.lane.b32.xlu0 %v5513, 16
      %v5602 = vpop.permute.xlu0 %5601
      %5603 = vrot.lane.b32.xlu0 %v5514, 16
      %v5604 = vpop.permute.xlu0 %5603
      %5605 = vrot.lane.b32.xlu0 %v5515, 16
      %v5606 = vpop.permute.xlu0 %5605
      %5607 = vrot.lane.b32.xlu0 %v5516, 16
      %v5608 = vpop.permute.xlu0 %5607
      %5609 = vrot.lane.b32.xlu0 %v5517, 16
      %v5610 = vpop.permute.xlu0 %5609
      %5611 = vrot.lane.b32.xlu0 %v5518, 16
      %v5612 = vpop.permute.xlu0 %5611
      %5613 = vrot.lane.b32.xlu0 %v5519, 16
      %v5614 = vpop.permute.xlu0 %5613
      %5615 = vrot.lane.b32.xlu0 %v5520, 16
      %v5616 = vpop.permute.xlu0 %5615
      %vm5649 = vcmask 195712
      %5650 = vst.msk [vmem:[%s313 + $0x1] sm:$0xff] %vm5649, %v5554
      %5651 = vst.msk [vmem:[%s313 + $0x9] sm:$0xff] %vm5649, %v5556
      %5652 = vst.msk [vmem:[%s313 + $0x19] sm:$0xff] %vm5649, %v5558
      %5653 = vst.msk [vmem:[%s313 + $0x21] sm:$0xff] %vm5649, %v5560
      %5654 = vst.msk [vmem:[%s313 + $0x31] sm:$0xff] %vm5649, %v5562
      %5655 = vst.msk [vmem:[%s313 + $0x39] sm:$0xff] %vm5649, %v5564
      %5656 = vst.msk [vmem:[%s313 + $0x49] sm:$0xff] %vm5649, %v5566
      %5657 = vst.msk [vmem:[%s313 + $0x51] sm:$0xff] %vm5649, %v5568
      %5658 = vst.msk [vmem:[%s313 + $0x61] sm:$0xff] %vm5649, %v5570
      %5659 = vst.msk [vmem:[%s313 + $0x69] sm:$0xff] %vm5649, %v5572
      %5660 = vst.msk [vmem:[%s313 + $0x79] sm:$0xff] %vm5649, %v5574
      %5661 = vst.msk [vmem:[%s313 + $0x81] sm:$0xff] %vm5649, %v5576
      %5662 = vst.msk [vmem:[%s313 + $0x91] sm:$0xff] %vm5649, %v5578
      %5663 = vst.msk [vmem:[%s313 + $0x99] sm:$0xff] %vm5649, %v5580
      %5664 = vst.msk [vmem:[%s313 + $0xa9] sm:$0xff] %vm5649, %v5582
      %5665 = vst.msk [vmem:[%s313 + $0xb1] sm:$0xff] %vm5649, %v5584
      %5666 = vst.msk [vmem:[%s313 + $0xc1] sm:$0xff] %vm5649, %v5586
      %5667 = vst.msk [vmem:[%s313 + $0xc9] sm:$0xff] %vm5649, %v5588
      %5668 = vst.msk [vmem:[%s313 + $0xd9] sm:$0xff] %vm5649, %v5590
      %5669 = vst.msk [vmem:[%s313 + $0xe1] sm:$0xff] %vm5649, %v5592
      %5670 = vst.msk [vmem:[%s313 + $0xf1] sm:$0xff] %vm5649, %v5594
      %5671 = vst.msk [vmem:[%s313 + $0xf9] sm:$0xff] %vm5649, %v5596
      %5672 = vst.msk [vmem:[%s313 + $0x109] sm:$0xff] %vm5649, %v5598
      %5673 = vst.msk [vmem:[%s313 + $0x111] sm:$0xff] %vm5649, %v5600
      %5674 = vst.msk [vmem:[%s313 + $0x121] sm:$0xff] %vm5649, %v5602
      %5675 = vst.msk [vmem:[%s313 + $0x129] sm:$0xff] %vm5649, %v5604
      %5676 = vst.msk [vmem:[%s313 + $0x139] sm:$0xff] %vm5649, %v5606
      %5677 = vst.msk [vmem:[%s313 + $0x141] sm:$0xff] %vm5649, %v5608
      %5678 = vst.msk [vmem:[%s313 + $0x151] sm:$0xff] %vm5649, %v5610
      %5679 = vst.msk [vmem:[%s313 + $0x159] sm:$0xff] %vm5649, %v5612
      %5680 = vst.msk [vmem:[%s313 + $0x169] sm:$0xff] %vm5649, %v5614
      %5681 = vst.msk [vmem:[%s313 + $0x171] sm:$0xff] %vm5649, %v5616
      %v5682 = vld [vmem:[#allocation2] sm:$0xff]
      %v5683 = vld [vmem:[#allocation2 + $0x8] sm:$0xff]
      %v5684 = vld [vmem:[#allocation2 + $0x18] sm:$0xff]
      %v5685 = vld [vmem:[#allocation2 + $0x20] sm:$0xff]
      %v5686 = vld [vmem:[#allocation2 + $0x30] sm:$0xff]
      %v5687 = vld [vmem:[#allocation2 + $0x38] sm:$0xff]
      %v5688 = vld [vmem:[#allocation2 + $0x48] sm:$0xff]
      %v5689 = vld [vmem:[#allocation2 + $0x50] sm:$0xff]
      %v5690 = vld [vmem:[#allocation2 + $0x60] sm:$0xff]
      %v5691 = vld [vmem:[#allocation2 + $0x68] sm:$0xff]
      %v5692 = vld [vmem:[#allocation2 + $0x78] sm:$0xff]
      %v5693 = vld [vmem:[#allocation2 + $0x80] sm:$0xff]
      %v5694 = vld [vmem:[#allocation2 + $0x90] sm:$0xff]
      %v5695 = vld [vmem:[#allocation2 + $0x98] sm:$0xff]
      %v5696 = vld [vmem:[#allocation2 + $0xa8] sm:$0xff]
      %v5697 = vld [vmem:[#allocation2 + $0xb0] sm:$0xff]
      %v5698 = vld [vmem:[#allocation2 + $0xc0] sm:$0xff]
      %v5699 = vld [vmem:[#allocation2 + $0xc8] sm:$0xff]
      %v5700 = vld [vmem:[#allocation2 + $0xd8] sm:$0xff]
      %v5701 = vld [vmem:[#allocation2 + $0xe0] sm:$0xff]
      %v5702 = vld [vmem:[#allocation2 + $0xf0] sm:$0xff]
      %v5703 = vld [vmem:[#allocation2 + $0xf8] sm:$0xff]
      %v5704 = vld [vmem:[#allocation2 + $0x108] sm:$0xff]
      %v5705 = vld [vmem:[#allocation2 + $0x110] sm:$0xff]
      %v5706 = vld [vmem:[#allocation2 + $0x120] sm:$0xff]
      %v5707 = vld [vmem:[#allocation2 + $0x128] sm:$0xff]
      %v5708 = vld [vmem:[#allocation2 + $0x138] sm:$0xff]
      %v5709 = vld [vmem:[#allocation2 + $0x140] sm:$0xff]
      %v5710 = vld [vmem:[#allocation2 + $0x150] sm:$0xff]
      %v5711 = vld [vmem:[#allocation2 + $0x158] sm:$0xff]
      %v5712 = vld [vmem:[#allocation2 + $0x168] sm:$0xff]
      %v5713 = vld [vmem:[#allocation2 + $0x170] sm:$0xff]
      %s5714 = scalar_lea.vmem %s1, 576
      %v5715 = vld [vmem:[%s5714] sm:$0xff]
      %v5716 = vld [vmem:[%s5714 + $0x8] sm:$0xff]
      %v5717 = vld [vmem:[%s5714 + $0x10] sm:$0xff]
      %v5718 = vld [vmem:[%s5714 + $0x18] sm:$0xff]
      %v5719 = vld [vmem:[#allocation2 + $0x1] sm:$0xff]
      %v5720 = vld [vmem:[#allocation2 + $0x9] sm:$0xff]
      %v5721 = vld [vmem:[#allocation2 + $0x19] sm:$0xff]
      %v5722 = vld [vmem:[#allocation2 + $0x21] sm:$0xff]
      %v5723 = vld [vmem:[#allocation2 + $0x31] sm:$0xff]
      %v5724 = vld [vmem:[#allocation2 + $0x39] sm:$0xff]
      %v5725 = vld [vmem:[#allocation2 + $0x49] sm:$0xff]
      %v5726 = vld [vmem:[#allocation2 + $0x51] sm:$0xff]
      %v5727 = vld [vmem:[#allocation2 + $0x61] sm:$0xff]
      %v5728 = vld [vmem:[#allocation2 + $0x69] sm:$0xff]
      %v5729 = vld [vmem:[#allocation2 + $0x79] sm:$0xff]
      %v5730 = vld [vmem:[#allocation2 + $0x81] sm:$0xff]
      %v5731 = vld [vmem:[#allocation2 + $0x91] sm:$0xff]
      %v5732 = vld [vmem:[#allocation2 + $0x99] sm:$0xff]
      %v5733 = vld [vmem:[#allocation2 + $0xa9] sm:$0xff]
      %v5734 = vld [vmem:[#allocation2 + $0xb1] sm:$0xff]
      %v5735 = vld [vmem:[#allocation2 + $0xc1] sm:$0xff]
      %v5736 = vld [vmem:[#allocation2 + $0xc9] sm:$0xff]
      %v5737 = vld [vmem:[#allocation2 + $0xd9] sm:$0xff]
      %v5738 = vld [vmem:[#allocation2 + $0xe1] sm:$0xff]
      %v5739 = vld [vmem:[#allocation2 + $0xf1] sm:$0xff]
      %v5740 = vld [vmem:[#allocation2 + $0xf9] sm:$0xff]
      %v5741 = vld [vmem:[#allocation2 + $0x109] sm:$0xff]
      %v5742 = vld [vmem:[#allocation2 + $0x111] sm:$0xff]
      %v5743 = vld [vmem:[#allocation2 + $0x121] sm:$0xff]
      %v5744 = vld [vmem:[#allocation2 + $0x129] sm:$0xff]
      %v5745 = vld [vmem:[#allocation2 + $0x139] sm:$0xff]
      %v5746 = vld [vmem:[#allocation2 + $0x141] sm:$0xff]
      %v5747 = vld [vmem:[#allocation2 + $0x151] sm:$0xff]
      %v5748 = vld [vmem:[#allocation2 + $0x159] sm:$0xff]
      %v5749 = vld [vmem:[#allocation2 + $0x169] sm:$0xff]
      %v5750 = vld [vmem:[#allocation2 + $0x171] sm:$0xff]
      %s5751 = scalar_lea.vmem %s1, 608
      %v5752 = vld [vmem:[%s5751] sm:$0xff]
      %v5753 = vld [vmem:[%s5751 + $0x8] sm:$0xff]
      %v5754 = vld [vmem:[%s5751 + $0x10] sm:$0xff]
      %v5755 = vld [vmem:[%s5751 + $0x18] sm:$0xff]
      %v5757 = vsel %vm225, %v5719, 0
      %v5760 = vsel %vm225, %v5720, 0
      %v5763 = vsel %vm225, %v5721, 0
      %v5766 = vsel %vm225, %v5722, 0
      %v5769 = vsel %vm225, %v5723, 0
      %v5772 = vsel %vm225, %v5724, 0
      %v5775 = vsel %vm225, %v5725, 0
      %v5778 = vsel %vm225, %v5726, 0
      %v5781 = vsel %vm225, %v5727, 0
      %v5784 = vsel %vm225, %v5728, 0
      %v5787 = vsel %vm225, %v5729, 0
      %v5790 = vsel %vm225, %v5730, 0
      %v5793 = vsel %vm225, %v5731, 0
      %v5796 = vsel %vm225, %v5732, 0
      %v5799 = vsel %vm225, %v5733, 0
      %v5802 = vsel %vm225, %v5734, 0
      %v5805 = vsel %vm225, %v5735, 0
      %v5808 = vsel %vm225, %v5736, 0
      %v5811 = vsel %vm225, %v5737, 0
      %v5814 = vsel %vm225, %v5738, 0
      %v5817 = vsel %vm225, %v5739, 0
      %v5820 = vsel %vm225, %v5740, 0
      %v5823 = vsel %vm225, %v5741, 0
      %v5826 = vsel %vm225, %v5742, 0
      %v5829 = vsel %vm225, %v5743, 0
      %v5832 = vsel %vm225, %v5744, 0
      %v5835 = vsel %vm225, %v5745, 0
      %v5838 = vsel %vm225, %v5746, 0
      %v5841 = vsel %vm225, %v5747, 0
      %v5844 = vsel %vm225, %v5748, 0
      %v5847 = vsel %vm225, %v5749, 0
      %v5850 = vsel %vm225, %v5750, 0
      %5852 = vmatpush.msra.mxu0 0.0
      %5853 = vmatpush.msra.mxu0 0.0
      %5854 = vmatpush.msra.mxu0 0.0
      %5855 = vmatpush.msra.mxu0 0.0
      %5856 = vmatpush.msra.mxu0 0.0
      %5857 = vmatpush.msra.mxu0 0.0
      %5858 = vmatpush.msra.mxu0 0.0
      %5859 = vmatpush.msra.mxu0 0.0
      %5860 = vmatpush.msra.mxu0 0.0
      %5861 = vmatpush.msra.mxu0 0.0
      %5862 = vmatpush.msra.mxu0 0.0
      %5863 = vmatpush.msra.mxu0 0.0
      %5864 = vmatpush.msra.mxu0 %v5755
      %5865 = vmatpush.msra.mxu0 %v5754
      %5866 = vmatpush.msra.mxu0 %v5753
      %5867 = vmatpush.msra.mxu0 %v5752
      %5868 = vmatmul.f32.gmra.mxu0 %v5757
      %v5869 = vpop.f32.mrf.mxu0
      %v5870 = vadd.f32 0.0, %v5869
      %5871 = vmatmul.f32.gmra.mxu0 %v5760
      %v5872 = vpop.f32.mrf.mxu0
      %v5873 = vadd.f32 0.0, %v5872
      %5874 = vmatmul.f32.gmra.mxu0 %v5763
      %v5875 = vpop.f32.mrf.mxu0
      %v5876 = vadd.f32 0.0, %v5875
      %5877 = vmatmul.f32.gmra.mxu0 %v5766
      %v5878 = vpop.f32.mrf.mxu0
      %v5879 = vadd.f32 0.0, %v5878
      %5880 = vmatmul.f32.gmra.mxu0 %v5769
      %v5881 = vpop.f32.mrf.mxu0
      %v5882 = vadd.f32 0.0, %v5881
      %5883 = vmatmul.f32.gmra.mxu0 %v5772
      %v5884 = vpop.f32.mrf.mxu0
      %v5885 = vadd.f32 0.0, %v5884
      %5886 = vmatmul.f32.gmra.mxu0 %v5775
      %v5887 = vpop.f32.mrf.mxu0
      %v5888 = vadd.f32 0.0, %v5887
      %5889 = vmatmul.f32.gmra.mxu0 %v5778
      %v5890 = vpop.f32.mrf.mxu0
      %v5891 = vadd.f32 0.0, %v5890
      %5892 = vmatmul.f32.gmra.mxu0 %v5781
      %v5893 = vpop.f32.mrf.mxu0
      %v5894 = vadd.f32 0.0, %v5893
      %5895 = vmatmul.f32.gmra.mxu0 %v5784
      %v5896 = vpop.f32.mrf.mxu0
      %v5897 = vadd.f32 0.0, %v5896
      %5898 = vmatmul.f32.gmra.mxu0 %v5787
      %v5899 = vpop.f32.mrf.mxu0
      %v5900 = vadd.f32 0.0, %v5899
      %5901 = vmatmul.f32.gmra.mxu0 %v5790
      %v5902 = vpop.f32.mrf.mxu0
      %v5903 = vadd.f32 0.0, %v5902
      %5904 = vmatmul.f32.gmra.mxu0 %v5793
      %v5905 = vpop.f32.mrf.mxu0
      %v5906 = vadd.f32 0.0, %v5905
      %5907 = vmatmul.f32.gmra.mxu0 %v5796
      %v5908 = vpop.f32.mrf.mxu0
      %v5909 = vadd.f32 0.0, %v5908
      %5910 = vmatmul.f32.gmra.mxu0 %v5799
      %v5911 = vpop.f32.mrf.mxu0
      %v5912 = vadd.f32 0.0, %v5911
      %5913 = vmatmul.f32.gmra.mxu0 %v5802
      %v5914 = vpop.f32.mrf.mxu0
      %v5915 = vadd.f32 0.0, %v5914
      %5916 = vmatmul.f32.gmra.mxu0 %v5805
      %v5917 = vpop.f32.mrf.mxu0
      %v5918 = vadd.f32 0.0, %v5917
      %5919 = vmatmul.f32.gmra.mxu0 %v5808
      %v5920 = vpop.f32.mrf.mxu0
      %v5921 = vadd.f32 0.0, %v5920
      %5922 = vmatmul.f32.gmra.mxu0 %v5811
      %v5923 = vpop.f32.mrf.mxu0
      %v5924 = vadd.f32 0.0, %v5923
      %5925 = vmatmul.f32.gmra.mxu0 %v5814
      %v5926 = vpop.f32.mrf.mxu0
      %v5927 = vadd.f32 0.0, %v5926
      %5928 = vmatmul.f32.gmra.mxu0 %v5817
      %v5929 = vpop.f32.mrf.mxu0
      %v5930 = vadd.f32 0.0, %v5929
      %5931 = vmatmul.f32.gmra.mxu0 %v5820
      %v5932 = vpop.f32.mrf.mxu0
      %v5933 = vadd.f32 0.0, %v5932
      %5934 = vmatmul.f32.gmra.mxu0 %v5823
      %v5935 = vpop.f32.mrf.mxu0
      %v5936 = vadd.f32 0.0, %v5935
      %5937 = vmatmul.f32.gmra.mxu0 %v5826
      %v5938 = vpop.f32.mrf.mxu0
      %v5939 = vadd.f32 0.0, %v5938
      %5940 = vmatmul.f32.gmra.mxu0 %v5829
      %v5941 = vpop.f32.mrf.mxu0
      %v5942 = vadd.f32 0.0, %v5941
      %5943 = vmatmul.f32.gmra.mxu0 %v5832
      %v5944 = vpop.f32.mrf.mxu0
      %v5945 = vadd.f32 0.0, %v5944
      %5946 = vmatmul.f32.gmra.mxu0 %v5835
      %v5947 = vpop.f32.mrf.mxu0
      %v5948 = vadd.f32 0.0, %v5947
      %5949 = vmatmul.f32.gmra.mxu0 %v5838
      %v5950 = vpop.f32.mrf.mxu0
      %v5951 = vadd.f32 0.0, %v5950
      %5952 = vmatmul.f32.gmra.mxu0 %v5841
      %v5953 = vpop.f32.mrf.mxu0
      %v5954 = vadd.f32 0.0, %v5953
      %5955 = vmatmul.f32.gmra.mxu0 %v5844
      %v5956 = vpop.f32.mrf.mxu0
      %v5957 = vadd.f32 0.0, %v5956
      %5958 = vmatmul.f32.gmra.mxu0 %v5847
      %v5959 = vpop.f32.mrf.mxu0
      %v5960 = vadd.f32 0.0, %v5959
      %5961 = vmatmul.f32.gmra.mxu0 %v5850
      %v5962 = vpop.f32.mrf.mxu0
      %v5963 = vadd.f32 0.0, %v5962
      %5964 = vdwg.mxu0
      %v5966 = vsel %vm225, %v5682, 0
      %v5969 = vsel %vm225, %v5683, 0
      %v5972 = vsel %vm225, %v5684, 0
      %v5975 = vsel %vm225, %v5685, 0
      %v5978 = vsel %vm225, %v5686, 0
      %v5981 = vsel %vm225, %v5687, 0
      %v5984 = vsel %vm225, %v5688, 0
      %v5987 = vsel %vm225, %v5689, 0
      %v5990 = vsel %vm225, %v5690, 0
      %v5993 = vsel %vm225, %v5691, 0
      %v5996 = vsel %vm225, %v5692, 0
      %v5999 = vsel %vm225, %v5693, 0
      %v6002 = vsel %vm225, %v5694, 0
      %v6005 = vsel %vm225, %v5695, 0
      %v6008 = vsel %vm225, %v5696, 0
      %v6011 = vsel %vm225, %v5697, 0
      %v6014 = vsel %vm225, %v5698, 0
      %v6017 = vsel %vm225, %v5699, 0
      %v6020 = vsel %vm225, %v5700, 0
      %v6023 = vsel %vm225, %v5701, 0
      %v6026 = vsel %vm225, %v5702, 0
      %v6029 = vsel %vm225, %v5703, 0
      %v6032 = vsel %vm225, %v5704, 0
      %v6035 = vsel %vm225, %v5705, 0
      %v6038 = vsel %vm225, %v5706, 0
      %v6041 = vsel %vm225, %v5707, 0
      %v6044 = vsel %vm225, %v5708, 0
      %v6047 = vsel %vm225, %v5709, 0
      %v6050 = vsel %vm225, %v5710, 0
      %v6053 = vsel %vm225, %v5711, 0
      %v6056 = vsel %vm225, %v5712, 0
      %v6059 = vsel %vm225, %v5713, 0
      %6061 = vmatpush.msra.mxu0 0.0
      %6062 = vmatpush.msra.mxu0 0.0
      %6063 = vmatpush.msra.mxu0 0.0
      %6064 = vmatpush.msra.mxu0 0.0
      %6065 = vmatpush.msra.mxu0 0.0
      %6066 = vmatpush.msra.mxu0 0.0
      %6067 = vmatpush.msra.mxu0 0.0
      %6068 = vmatpush.msra.mxu0 0.0
      %6069 = vmatpush.msra.mxu0 0.0
      %6070 = vmatpush.msra.mxu0 0.0
      %6071 = vmatpush.msra.mxu0 0.0
      %6072 = vmatpush.msra.mxu0 0.0
      %6073 = vmatpush.msra.mxu0 %v5718
      %6074 = vmatpush.msra.mxu0 %v5717
      %6075 = vmatpush.msra.mxu0 %v5716
      %6076 = vmatpush.msra.mxu0 %v5715
      %6077 = vmatmul.f32.gmra.mxu0 %v5966
      %v6078 = vpop.f32.mrf.mxu0
      %v6079 = vadd.f32 %v5870, %v6078
      %6080 = vmatmul.f32.gmra.mxu0 %v5969
      %v6081 = vpop.f32.mrf.mxu0
      %v6082 = vadd.f32 %v5873, %v6081
      %6083 = vmatmul.f32.gmra.mxu0 %v5972
      %v6084 = vpop.f32.mrf.mxu0
      %v6085 = vadd.f32 %v5876, %v6084
      %6086 = vmatmul.f32.gmra.mxu0 %v5975
      %v6087 = vpop.f32.mrf.mxu0
      %v6088 = vadd.f32 %v5879, %v6087
      %6089 = vmatmul.f32.gmra.mxu0 %v5978
      %v6090 = vpop.f32.mrf.mxu0
      %v6091 = vadd.f32 %v5882, %v6090
      %6092 = vmatmul.f32.gmra.mxu0 %v5981
      %v6093 = vpop.f32.mrf.mxu0
      %v6094 = vadd.f32 %v5885, %v6093
      %6095 = vmatmul.f32.gmra.mxu0 %v5984
      %v6096 = vpop.f32.mrf.mxu0
      %v6097 = vadd.f32 %v5888, %v6096
      %6098 = vmatmul.f32.gmra.mxu0 %v5987
      %v6099 = vpop.f32.mrf.mxu0
      %v6100 = vadd.f32 %v5891, %v6099
      %6101 = vmatmul.f32.gmra.mxu0 %v5990
      %v6102 = vpop.f32.mrf.mxu0
      %v6103 = vadd.f32 %v5894, %v6102
      %6104 = vmatmul.f32.gmra.mxu0 %v5993
      %v6105 = vpop.f32.mrf.mxu0
      %v6106 = vadd.f32 %v5897, %v6105
      %6107 = vmatmul.f32.gmra.mxu0 %v5996
      %v6108 = vpop.f32.mrf.mxu0
      %v6109 = vadd.f32 %v5900, %v6108
      %6110 = vmatmul.f32.gmra.mxu0 %v5999
      %v6111 = vpop.f32.mrf.mxu0
      %v6112 = vadd.f32 %v5903, %v6111
      %6113 = vmatmul.f32.gmra.mxu0 %v6002
      %v6114 = vpop.f32.mrf.mxu0
      %v6115 = vadd.f32 %v5906, %v6114
      %6116 = vmatmul.f32.gmra.mxu0 %v6005
      %v6117 = vpop.f32.mrf.mxu0
      %v6118 = vadd.f32 %v5909, %v6117
      %6119 = vmatmul.f32.gmra.mxu0 %v6008
      %v6120 = vpop.f32.mrf.mxu0
      %v6121 = vadd.f32 %v5912, %v6120
      %6122 = vmatmul.f32.gmra.mxu0 %v6011
      %v6123 = vpop.f32.mrf.mxu0
      %v6124 = vadd.f32 %v5915, %v6123
      %6125 = vmatmul.f32.gmra.mxu0 %v6014
      %v6126 = vpop.f32.mrf.mxu0
      %v6127 = vadd.f32 %v5918, %v6126
      %6128 = vmatmul.f32.gmra.mxu0 %v6017
      %v6129 = vpop.f32.mrf.mxu0
      %v6130 = vadd.f32 %v5921, %v6129
      %6131 = vmatmul.f32.gmra.mxu0 %v6020
      %v6132 = vpop.f32.mrf.mxu0
      %v6133 = vadd.f32 %v5924, %v6132
      %6134 = vmatmul.f32.gmra.mxu0 %v6023
      %v6135 = vpop.f32.mrf.mxu0
      %v6136 = vadd.f32 %v5927, %v6135
      %6137 = vmatmul.f32.gmra.mxu0 %v6026
      %v6138 = vpop.f32.mrf.mxu0
      %v6139 = vadd.f32 %v5930, %v6138
      %6140 = vmatmul.f32.gmra.mxu0 %v6029
      %v6141 = vpop.f32.mrf.mxu0
      %v6142 = vadd.f32 %v5933, %v6141
      %6143 = vmatmul.f32.gmra.mxu0 %v6032
      %v6144 = vpop.f32.mrf.mxu0
      %v6145 = vadd.f32 %v5936, %v6144
      %6146 = vmatmul.f32.gmra.mxu0 %v6035
      %v6147 = vpop.f32.mrf.mxu0
      %v6148 = vadd.f32 %v5939, %v6147
      %6149 = vmatmul.f32.gmra.mxu0 %v6038
      %v6150 = vpop.f32.mrf.mxu0
      %v6151 = vadd.f32 %v5942, %v6150
      %6152 = vmatmul.f32.gmra.mxu0 %v6041
      %v6153 = vpop.f32.mrf.mxu0
      %v6154 = vadd.f32 %v5945, %v6153
      %6155 = vmatmul.f32.gmra.mxu0 %v6044
      %v6156 = vpop.f32.mrf.mxu0
      %v6157 = vadd.f32 %v5948, %v6156
      %6158 = vmatmul.f32.gmra.mxu0 %v6047
      %v6159 = vpop.f32.mrf.mxu0
      %v6160 = vadd.f32 %v5951, %v6159
      %6161 = vmatmul.f32.gmra.mxu0 %v6050
      %v6162 = vpop.f32.mrf.mxu0
      %v6163 = vadd.f32 %v5954, %v6162
      %6164 = vmatmul.f32.gmra.mxu0 %v6053
      %v6165 = vpop.f32.mrf.mxu0
      %v6166 = vadd.f32 %v5957, %v6165
      %6167 = vmatmul.f32.gmra.mxu0 %v6056
      %v6168 = vpop.f32.mrf.mxu0
      %v6169 = vadd.f32 %v5960, %v6168
      %6170 = vmatmul.f32.gmra.mxu0 %v6059
      %v6171 = vpop.f32.mrf.mxu0
      %v6172 = vadd.f32 %v5963, %v6171
      %6173 = vdwg.mxu0
      %v6174 = vld [vmem:[#allocation2 + $0x2] sm:$0xff]
      %v6175 = vld [vmem:[#allocation2 + $0xa] sm:$0xff]
      %v6176 = vld [vmem:[#allocation2 + $0x1a] sm:$0xff]
      %v6177 = vld [vmem:[#allocation2 + $0x22] sm:$0xff]
      %v6178 = vld [vmem:[#allocation2 + $0x32] sm:$0xff]
      %v6179 = vld [vmem:[#allocation2 + $0x3a] sm:$0xff]
      %v6180 = vld [vmem:[#allocation2 + $0x4a] sm:$0xff]
      %v6181 = vld [vmem:[#allocation2 + $0x52] sm:$0xff]
      %v6182 = vld [vmem:[#allocation2 + $0x62] sm:$0xff]
      %v6183 = vld [vmem:[#allocation2 + $0x6a] sm:$0xff]
      %v6184 = vld [vmem:[#allocation2 + $0x7a] sm:$0xff]
      %v6185 = vld [vmem:[#allocation2 + $0x82] sm:$0xff]
      %v6186 = vld [vmem:[#allocation2 + $0x92] sm:$0xff]
      %v6187 = vld [vmem:[#allocation2 + $0x9a] sm:$0xff]
      %v6188 = vld [vmem:[#allocation2 + $0xaa] sm:$0xff]
      %v6189 = vld [vmem:[#allocation2 + $0xb2] sm:$0xff]
      %v6190 = vld [vmem:[#allocation2 + $0xc2] sm:$0xff]
      %v6191 = vld [vmem:[#allocation2 + $0xca] sm:$0xff]
      %v6192 = vld [vmem:[#allocation2 + $0xda] sm:$0xff]
      %v6193 = vld [vmem:[#allocation2 + $0xe2] sm:$0xff]
      %v6194 = vld [vmem:[#allocation2 + $0xf2] sm:$0xff]
      %v6195 = vld [vmem:[#allocation2 + $0xfa] sm:$0xff]
      %v6196 = vld [vmem:[#allocation2 + $0x10a] sm:$0xff]
      %v6197 = vld [vmem:[#allocation2 + $0x112] sm:$0xff]
      %v6198 = vld [vmem:[#allocation2 + $0x122] sm:$0xff]
      %v6199 = vld [vmem:[#allocation2 + $0x12a] sm:$0xff]
      %v6200 = vld [vmem:[#allocation2 + $0x13a] sm:$0xff]
      %v6201 = vld [vmem:[#allocation2 + $0x142] sm:$0xff]
      %v6202 = vld [vmem:[#allocation2 + $0x152] sm:$0xff]
      %v6203 = vld [vmem:[#allocation2 + $0x15a] sm:$0xff]
      %v6204 = vld [vmem:[#allocation2 + $0x16a] sm:$0xff]
      %v6205 = vld [vmem:[#allocation2 + $0x172] sm:$0xff]
      %s6206 = scalar_lea.vmem %s1, 640
      %v6207 = vld [vmem:[%s6206] sm:$0xff]
      %v6208 = vld [vmem:[%s6206 + $0x8] sm:$0xff]
      %v6209 = vld [vmem:[%s6206 + $0x10] sm:$0xff]
      %v6210 = vld [vmem:[%s6206 + $0x18] sm:$0xff]
      %v6212 = vsel %vm225, %v6174, 0
      %v6215 = vsel %vm225, %v6175, 0
      %v6218 = vsel %vm225, %v6176, 0
      %v6221 = vsel %vm225, %v6177, 0
      %v6224 = vsel %vm225, %v6178, 0
      %v6227 = vsel %vm225, %v6179, 0
      %v6230 = vsel %vm225, %v6180, 0
      %v6233 = vsel %vm225, %v6181, 0
      %v6236 = vsel %vm225, %v6182, 0
      %v6239 = vsel %vm225, %v6183, 0
      %v6242 = vsel %vm225, %v6184, 0
      %v6245 = vsel %vm225, %v6185, 0
      %v6248 = vsel %vm225, %v6186, 0
      %v6251 = vsel %vm225, %v6187, 0
      %v6254 = vsel %vm225, %v6188, 0
      %v6257 = vsel %vm225, %v6189, 0
      %v6260 = vsel %vm225, %v6190, 0
      %v6263 = vsel %vm225, %v6191, 0
      %v6266 = vsel %vm225, %v6192, 0
      %v6269 = vsel %vm225, %v6193, 0
      %v6272 = vsel %vm225, %v6194, 0
      %v6275 = vsel %vm225, %v6195, 0
      %v6278 = vsel %vm225, %v6196, 0
      %v6281 = vsel %vm225, %v6197, 0
      %v6284 = vsel %vm225, %v6198, 0
      %v6287 = vsel %vm225, %v6199, 0
      %v6290 = vsel %vm225, %v6200, 0
      %v6293 = vsel %vm225, %v6201, 0
      %v6296 = vsel %vm225, %v6202, 0
      %v6299 = vsel %vm225, %v6203, 0
      %v6302 = vsel %vm225, %v6204, 0
      %v6305 = vsel %vm225, %v6205, 0
      %6307 = vmatpush.msra.mxu0 0.0
      %6308 = vmatpush.msra.mxu0 0.0
      %6309 = vmatpush.msra.mxu0 0.0
      %6310 = vmatpush.msra.mxu0 0.0
      %6311 = vmatpush.msra.mxu0 0.0
      %6312 = vmatpush.msra.mxu0 0.0
      %6313 = vmatpush.msra.mxu0 0.0
      %6314 = vmatpush.msra.mxu0 0.0
      %6315 = vmatpush.msra.mxu0 0.0
      %6316 = vmatpush.msra.mxu0 0.0
      %6317 = vmatpush.msra.mxu0 0.0
      %6318 = vmatpush.msra.mxu0 0.0
      %6319 = vmatpush.msra.mxu0 %v6210
      %6320 = vmatpush.msra.mxu0 %v6209
      %6321 = vmatpush.msra.mxu0 %v6208
      %6322 = vmatpush.msra.mxu0 %v6207
      %6323 = vmatmul.f32.gmra.mxu0 %v6212
      %v6324 = vpop.f32.mrf.mxu0
      %v6325 = vadd.f32 0.0, %v6324
      %6326 = vmatmul.f32.gmra.mxu0 %v6215
      %v6327 = vpop.f32.mrf.mxu0
      %v6328 = vadd.f32 0.0, %v6327
      %6329 = vmatmul.f32.gmra.mxu0 %v6218
      %v6330 = vpop.f32.mrf.mxu0
      %v6331 = vadd.f32 0.0, %v6330
      %6332 = vmatmul.f32.gmra.mxu0 %v6221
      %v6333 = vpop.f32.mrf.mxu0
      %v6334 = vadd.f32 0.0, %v6333
      %6335 = vmatmul.f32.gmra.mxu0 %v6224
      %v6336 = vpop.f32.mrf.mxu0
      %v6337 = vadd.f32 0.0, %v6336
      %6338 = vmatmul.f32.gmra.mxu0 %v6227
      %v6339 = vpop.f32.mrf.mxu0
      %v6340 = vadd.f32 0.0, %v6339
      %6341 = vmatmul.f32.gmra.mxu0 %v6230
      %v6342 = vpop.f32.mrf.mxu0
      %v6343 = vadd.f32 0.0, %v6342
      %6344 = vmatmul.f32.gmra.mxu0 %v6233
      %v6345 = vpop.f32.mrf.mxu0
      %v6346 = vadd.f32 0.0, %v6345
      %6347 = vmatmul.f32.gmra.mxu0 %v6236
      %v6348 = vpop.f32.mrf.mxu0
      %v6349 = vadd.f32 0.0, %v6348
      %6350 = vmatmul.f32.gmra.mxu0 %v6239
      %v6351 = vpop.f32.mrf.mxu0
      %v6352 = vadd.f32 0.0, %v6351
      %6353 = vmatmul.f32.gmra.mxu0 %v6242
      %v6354 = vpop.f32.mrf.mxu0
      %v6355 = vadd.f32 0.0, %v6354
      %6356 = vmatmul.f32.gmra.mxu0 %v6245
      %v6357 = vpop.f32.mrf.mxu0
      %v6358 = vadd.f32 0.0, %v6357
      %6359 = vmatmul.f32.gmra.mxu0 %v6248
      %v6360 = vpop.f32.mrf.mxu0
      %v6361 = vadd.f32 0.0, %v6360
      %6362 = vmatmul.f32.gmra.mxu0 %v6251
      %v6363 = vpop.f32.mrf.mxu0
      %v6364 = vadd.f32 0.0, %v6363
      %6365 = vmatmul.f32.gmra.mxu0 %v6254
      %v6366 = vpop.f32.mrf.mxu0
      %v6367 = vadd.f32 0.0, %v6366
      %6368 = vmatmul.f32.gmra.mxu0 %v6257
      %v6369 = vpop.f32.mrf.mxu0
      %v6370 = vadd.f32 0.0, %v6369
      %6371 = vmatmul.f32.gmra.mxu0 %v6260
      %v6372 = vpop.f32.mrf.mxu0
      %v6373 = vadd.f32 0.0, %v6372
      %6374 = vmatmul.f32.gmra.mxu0 %v6263
      %v6375 = vpop.f32.mrf.mxu0
      %v6376 = vadd.f32 0.0, %v6375
      %6377 = vmatmul.f32.gmra.mxu0 %v6266
      %v6378 = vpop.f32.mrf.mxu0
      %v6379 = vadd.f32 0.0, %v6378
      %6380 = vmatmul.f32.gmra.mxu0 %v6269
      %v6381 = vpop.f32.mrf.mxu0
      %v6382 = vadd.f32 0.0, %v6381
      %6383 = vmatmul.f32.gmra.mxu0 %v6272
      %v6384 = vpop.f32.mrf.mxu0
      %v6385 = vadd.f32 0.0, %v6384
      %6386 = vmatmul.f32.gmra.mxu0 %v6275
      %v6387 = vpop.f32.mrf.mxu0
      %v6388 = vadd.f32 0.0, %v6387
      %6389 = vmatmul.f32.gmra.mxu0 %v6278
      %v6390 = vpop.f32.mrf.mxu0
      %v6391 = vadd.f32 0.0, %v6390
      %6392 = vmatmul.f32.gmra.mxu0 %v6281
      %v6393 = vpop.f32.mrf.mxu0
      %v6394 = vadd.f32 0.0, %v6393
      %6395 = vmatmul.f32.gmra.mxu0 %v6284
      %v6396 = vpop.f32.mrf.mxu0
      %v6397 = vadd.f32 0.0, %v6396
      %6398 = vmatmul.f32.gmra.mxu0 %v6287
      %v6399 = vpop.f32.mrf.mxu0
      %v6400 = vadd.f32 0.0, %v6399
      %6401 = vmatmul.f32.gmra.mxu0 %v6290
      %v6402 = vpop.f32.mrf.mxu0
      %v6403 = vadd.f32 0.0, %v6402
      %6404 = vmatmul.f32.gmra.mxu0 %v6293
      %v6405 = vpop.f32.mrf.mxu0
      %v6406 = vadd.f32 0.0, %v6405
      %6407 = vmatmul.f32.gmra.mxu0 %v6296
      %v6408 = vpop.f32.mrf.mxu0
      %v6409 = vadd.f32 0.0, %v6408
      %6410 = vmatmul.f32.gmra.mxu0 %v6299
      %v6411 = vpop.f32.mrf.mxu0
      %v6412 = vadd.f32 0.0, %v6411
      %6413 = vmatmul.f32.gmra.mxu0 %v6302
      %v6414 = vpop.f32.mrf.mxu0
      %v6415 = vadd.f32 0.0, %v6414
      %6416 = vmatmul.f32.gmra.mxu0 %v6305
      %v6417 = vpop.f32.mrf.mxu0
      %v6418 = vadd.f32 0.0, %v6417
      %6419 = vdwg.mxu0
      %v6420 = vadd.f32 %v6079, %v6325
      %v6421 = vadd.f32 %v6082, %v6328
      %v6422 = vadd.f32 %v6085, %v6331
      %v6423 = vadd.f32 %v6088, %v6334
      %v6424 = vadd.f32 %v6091, %v6337
      %v6425 = vadd.f32 %v6094, %v6340
      %v6426 = vadd.f32 %v6097, %v6343
      %v6427 = vadd.f32 %v6100, %v6346
      %v6428 = vadd.f32 %v6103, %v6349
      %v6429 = vadd.f32 %v6106, %v6352
      %v6430 = vadd.f32 %v6109, %v6355
      %v6431 = vadd.f32 %v6112, %v6358
      %v6432 = vadd.f32 %v6115, %v6361
      %v6433 = vadd.f32 %v6118, %v6364
      %v6434 = vadd.f32 %v6121, %v6367
      %v6435 = vadd.f32 %v6124, %v6370
      %v6436 = vadd.f32 %v6127, %v6373
      %v6437 = vadd.f32 %v6130, %v6376
      %v6438 = vadd.f32 %v6133, %v6379
      %v6439 = vadd.f32 %v6136, %v6382
      %v6440 = vadd.f32 %v6139, %v6385
      %v6441 = vadd.f32 %v6142, %v6388
      %v6442 = vadd.f32 %v6145, %v6391
      %v6443 = vadd.f32 %v6148, %v6394
      %v6444 = vadd.f32 %v6151, %v6397
      %v6445 = vadd.f32 %v6154, %v6400
      %v6446 = vadd.f32 %v6157, %v6403
      %v6447 = vadd.f32 %v6160, %v6406
      %v6448 = vadd.f32 %v6163, %v6409
      %v6449 = vadd.f32 %v6166, %v6412
      %v6450 = vadd.f32 %v6169, %v6415
      %v6451 = vadd.f32 %v6172, %v6418
      %v6452 = vld [vmem:[%s313] sm:$0xff]
      %v6453 = vld [vmem:[%s313 + $0x8] sm:$0xff]
      %v6454 = vld [vmem:[%s313 + $0x18] sm:$0xff]
      %v6455 = vld [vmem:[%s313 + $0x20] sm:$0xff]
      %v6456 = vld [vmem:[%s313 + $0x30] sm:$0xff]
      %v6457 = vld [vmem:[%s313 + $0x38] sm:$0xff]
      %v6458 = vld [vmem:[%s313 + $0x48] sm:$0xff]
      %v6459 = vld [vmem:[%s313 + $0x50] sm:$0xff]
      %v6460 = vld [vmem:[%s313 + $0x60] sm:$0xff]
      %v6461 = vld [vmem:[%s313 + $0x68] sm:$0xff]
      %v6462 = vld [vmem:[%s313 + $0x78] sm:$0xff]
      %v6463 = vld [vmem:[%s313 + $0x80] sm:$0xff]
      %v6464 = vld [vmem:[%s313 + $0x90] sm:$0xff]
      %v6465 = vld [vmem:[%s313 + $0x98] sm:$0xff]
      %v6466 = vld [vmem:[%s313 + $0xa8] sm:$0xff]
      %v6467 = vld [vmem:[%s313 + $0xb0] sm:$0xff]
      %v6468 = vld [vmem:[%s313 + $0xc0] sm:$0xff]
      %v6469 = vld [vmem:[%s313 + $0xc8] sm:$0xff]
      %v6470 = vld [vmem:[%s313 + $0xd8] sm:$0xff]
      %v6471 = vld [vmem:[%s313 + $0xe0] sm:$0xff]
      %v6472 = vld [vmem:[%s313 + $0xf0] sm:$0xff]
      %v6473 = vld [vmem:[%s313 + $0xf8] sm:$0xff]
      %v6474 = vld [vmem:[%s313 + $0x108] sm:$0xff]
      %v6475 = vld [vmem:[%s313 + $0x110] sm:$0xff]
      %v6476 = vld [vmem:[%s313 + $0x120] sm:$0xff]
      %v6477 = vld [vmem:[%s313 + $0x128] sm:$0xff]
      %v6478 = vld [vmem:[%s313 + $0x138] sm:$0xff]
      %v6479 = vld [vmem:[%s313 + $0x140] sm:$0xff]
      %v6480 = vld [vmem:[%s313 + $0x150] sm:$0xff]
      %v6481 = vld [vmem:[%s313 + $0x158] sm:$0xff]
      %v6482 = vld [vmem:[%s313 + $0x168] sm:$0xff]
      %v6483 = vld [vmem:[%s313 + $0x170] sm:$0xff]
      %s6484 = scalar_lea.vmem %s1, 672
      %v6485 = vld [vmem:[%s6484] sm:$0xff]
      %v6486 = vld [vmem:[%s6484 + $0x8] sm:$0xff]
      %v6487 = vld [vmem:[%s6484 + $0x10] sm:$0xff]
      %v6488 = vld [vmem:[%s6484 + $0x18] sm:$0xff]
      %v6490 = vsel %vm225, %v6452, 0
      %v6493 = vsel %vm225, %v6453, 0
      %v6496 = vsel %vm225, %v6454, 0
      %v6499 = vsel %vm225, %v6455, 0
      %v6502 = vsel %vm225, %v6456, 0
      %v6505 = vsel %vm225, %v6457, 0
      %v6508 = vsel %vm225, %v6458, 0
      %v6511 = vsel %vm225, %v6459, 0
      %v6514 = vsel %vm225, %v6460, 0
      %v6517 = vsel %vm225, %v6461, 0
      %v6520 = vsel %vm225, %v6462, 0
      %v6523 = vsel %vm225, %v6463, 0
      %v6526 = vsel %vm225, %v6464, 0
      %v6529 = vsel %vm225, %v6465, 0
      %v6532 = vsel %vm225, %v6466, 0
      %v6535 = vsel %vm225, %v6467, 0
      %v6538 = vsel %vm225, %v6468, 0
      %v6541 = vsel %vm225, %v6469, 0
      %v6544 = vsel %vm225, %v6470, 0
      %v6547 = vsel %vm225, %v6471, 0
      %v6550 = vsel %vm225, %v6472, 0
      %v6553 = vsel %vm225, %v6473, 0
      %v6556 = vsel %vm225, %v6474, 0
      %v6559 = vsel %vm225, %v6475, 0
      %v6562 = vsel %vm225, %v6476, 0
      %v6565 = vsel %vm225, %v6477, 0
      %v6568 = vsel %vm225, %v6478, 0
      %v6571 = vsel %vm225, %v6479, 0
      %v6574 = vsel %vm225, %v6480, 0
      %v6577 = vsel %vm225, %v6481, 0
      %v6580 = vsel %vm225, %v6482, 0
      %v6583 = vsel %vm225, %v6483, 0
      %6585 = vmatpush.msra.mxu0 0.0
      %6586 = vmatpush.msra.mxu0 0.0
      %6587 = vmatpush.msra.mxu0 0.0
      %6588 = vmatpush.msra.mxu0 0.0
      %6589 = vmatpush.msra.mxu0 0.0
      %6590 = vmatpush.msra.mxu0 0.0
      %6591 = vmatpush.msra.mxu0 0.0
      %6592 = vmatpush.msra.mxu0 0.0
      %6593 = vmatpush.msra.mxu0 0.0
      %6594 = vmatpush.msra.mxu0 0.0
      %6595 = vmatpush.msra.mxu0 0.0
      %6596 = vmatpush.msra.mxu0 0.0
      %6597 = vmatpush.msra.mxu0 %v6488
      %6598 = vmatpush.msra.mxu0 %v6487
      %6599 = vmatpush.msra.mxu0 %v6486
      %6600 = vmatpush.msra.mxu0 %v6485
      %6601 = vmatmul.f32.gmra.mxu0 %v6490
      %v6602 = vpop.f32.mrf.mxu0
      %v6603 = vadd.f32 0.0, %v6602
      %6604 = vmatmul.f32.gmra.mxu0 %v6493
      %v6605 = vpop.f32.mrf.mxu0
      %v6606 = vadd.f32 0.0, %v6605
      %6607 = vmatmul.f32.gmra.mxu0 %v6496
      %v6608 = vpop.f32.mrf.mxu0
      %v6609 = vadd.f32 0.0, %v6608
      %6610 = vmatmul.f32.gmra.mxu0 %v6499
      %v6611 = vpop.f32.mrf.mxu0
      %v6612 = vadd.f32 0.0, %v6611
      %6613 = vmatmul.f32.gmra.mxu0 %v6502
      %v6614 = vpop.f32.mrf.mxu0
      %v6615 = vadd.f32 0.0, %v6614
      %6616 = vmatmul.f32.gmra.mxu0 %v6505
      %v6617 = vpop.f32.mrf.mxu0
      %v6618 = vadd.f32 0.0, %v6617
      %6619 = vmatmul.f32.gmra.mxu0 %v6508
      %v6620 = vpop.f32.mrf.mxu0
      %v6621 = vadd.f32 0.0, %v6620
      %6622 = vmatmul.f32.gmra.mxu0 %v6511
      %v6623 = vpop.f32.mrf.mxu0
      %v6624 = vadd.f32 0.0, %v6623
      %6625 = vmatmul.f32.gmra.mxu0 %v6514
      %v6626 = vpop.f32.mrf.mxu0
      %v6627 = vadd.f32 0.0, %v6626
      %6628 = vmatmul.f32.gmra.mxu0 %v6517
      %v6629 = vpop.f32.mrf.mxu0
      %v6630 = vadd.f32 0.0, %v6629
      %6631 = vmatmul.f32.gmra.mxu0 %v6520
      %v6632 = vpop.f32.mrf.mxu0
      %v6633 = vadd.f32 0.0, %v6632
      %6634 = vmatmul.f32.gmra.mxu0 %v6523
      %v6635 = vpop.f32.mrf.mxu0
      %v6636 = vadd.f32 0.0, %v6635
      %6637 = vmatmul.f32.gmra.mxu0 %v6526
      %v6638 = vpop.f32.mrf.mxu0
      %v6639 = vadd.f32 0.0, %v6638
      %6640 = vmatmul.f32.gmra.mxu0 %v6529
      %v6641 = vpop.f32.mrf.mxu0
      %v6642 = vadd.f32 0.0, %v6641
      %6643 = vmatmul.f32.gmra.mxu0 %v6532
      %v6644 = vpop.f32.mrf.mxu0
      %v6645 = vadd.f32 0.0, %v6644
      %6646 = vmatmul.f32.gmra.mxu0 %v6535
      %v6647 = vpop.f32.mrf.mxu0
      %v6648 = vadd.f32 0.0, %v6647
      %6649 = vmatmul.f32.gmra.mxu0 %v6538
      %v6650 = vpop.f32.mrf.mxu0
      %v6651 = vadd.f32 0.0, %v6650
      %6652 = vmatmul.f32.gmra.mxu0 %v6541
      %v6653 = vpop.f32.mrf.mxu0
      %v6654 = vadd.f32 0.0, %v6653
      %6655 = vmatmul.f32.gmra.mxu0 %v6544
      %v6656 = vpop.f32.mrf.mxu0
      %v6657 = vadd.f32 0.0, %v6656
      %6658 = vmatmul.f32.gmra.mxu0 %v6547
      %v6659 = vpop.f32.mrf.mxu0
      %v6660 = vadd.f32 0.0, %v6659
      %6661 = vmatmul.f32.gmra.mxu0 %v6550
      %v6662 = vpop.f32.mrf.mxu0
      %v6663 = vadd.f32 0.0, %v6662
      %6664 = vmatmul.f32.gmra.mxu0 %v6553
      %v6665 = vpop.f32.mrf.mxu0
      %v6666 = vadd.f32 0.0, %v6665
      %6667 = vmatmul.f32.gmra.mxu0 %v6556
      %v6668 = vpop.f32.mrf.mxu0
      %v6669 = vadd.f32 0.0, %v6668
      %6670 = vmatmul.f32.gmra.mxu0 %v6559
      %v6671 = vpop.f32.mrf.mxu0
      %v6672 = vadd.f32 0.0, %v6671
      %6673 = vmatmul.f32.gmra.mxu0 %v6562
      %v6674 = vpop.f32.mrf.mxu0
      %v6675 = vadd.f32 0.0, %v6674
      %6676 = vmatmul.f32.gmra.mxu0 %v6565
      %v6677 = vpop.f32.mrf.mxu0
      %v6678 = vadd.f32 0.0, %v6677
      %6679 = vmatmul.f32.gmra.mxu0 %v6568
      %v6680 = vpop.f32.mrf.mxu0
      %v6681 = vadd.f32 0.0, %v6680
      %6682 = vmatmul.f32.gmra.mxu0 %v6571
      %v6683 = vpop.f32.mrf.mxu0
      %v6684 = vadd.f32 0.0, %v6683
      %6685 = vmatmul.f32.gmra.mxu0 %v6574
      %v6686 = vpop.f32.mrf.mxu0
      %v6687 = vadd.f32 0.0, %v6686
      %6688 = vmatmul.f32.gmra.mxu0 %v6577
      %v6689 = vpop.f32.mrf.mxu0
      %v6690 = vadd.f32 0.0, %v6689
      %6691 = vmatmul.f32.gmra.mxu0 %v6580
      %v6692 = vpop.f32.mrf.mxu0
      %v6693 = vadd.f32 0.0, %v6692
      %6694 = vmatmul.f32.gmra.mxu0 %v6583
      %v6695 = vpop.f32.mrf.mxu0
      %v6696 = vadd.f32 0.0, %v6695
      %6697 = vdwg.mxu0
      %v6698 = vadd.f32 %v6420, %v6603
      %v6699 = vadd.f32 %v6421, %v6606
      %v6700 = vadd.f32 %v6422, %v6609
      %v6701 = vadd.f32 %v6423, %v6612
      %v6702 = vadd.f32 %v6424, %v6615
      %v6703 = vadd.f32 %v6425, %v6618
      %v6704 = vadd.f32 %v6426, %v6621
      %v6705 = vadd.f32 %v6427, %v6624
      %v6706 = vadd.f32 %v6428, %v6627
      %v6707 = vadd.f32 %v6429, %v6630
      %v6708 = vadd.f32 %v6430, %v6633
      %v6709 = vadd.f32 %v6431, %v6636
      %v6710 = vadd.f32 %v6432, %v6639
      %v6711 = vadd.f32 %v6433, %v6642
      %v6712 = vadd.f32 %v6434, %v6645
      %v6713 = vadd.f32 %v6435, %v6648
      %v6714 = vadd.f32 %v6436, %v6651
      %v6715 = vadd.f32 %v6437, %v6654
      %v6716 = vadd.f32 %v6438, %v6657
      %v6717 = vadd.f32 %v6439, %v6660
      %v6718 = vadd.f32 %v6440, %v6663
      %v6719 = vadd.f32 %v6441, %v6666
      %v6720 = vadd.f32 %v6442, %v6669
      %v6721 = vadd.f32 %v6443, %v6672
      %v6722 = vadd.f32 %v6444, %v6675
      %v6723 = vadd.f32 %v6445, %v6678
      %v6724 = vadd.f32 %v6446, %v6681
      %v6725 = vadd.f32 %v6447, %v6684
      %v6726 = vadd.f32 %v6448, %v6687
      %v6727 = vadd.f32 %v6449, %v6690
      %v6728 = vadd.f32 %v6450, %v6693
      %v6729 = vadd.f32 %v6451, %v6696
      %v6730 = vld [vmem:[%s313 + $0x1] sm:$0xff]
      %v6731 = vld [vmem:[%s313 + $0x9] sm:$0xff]
      %v6732 = vld [vmem:[%s313 + $0x19] sm:$0xff]
      %v6733 = vld [vmem:[%s313 + $0x21] sm:$0xff]
      %v6734 = vld [vmem:[%s313 + $0x31] sm:$0xff]
      %v6735 = vld [vmem:[%s313 + $0x39] sm:$0xff]
      %v6736 = vld [vmem:[%s313 + $0x49] sm:$0xff]
      %v6737 = vld [vmem:[%s313 + $0x51] sm:$0xff]
      %v6738 = vld [vmem:[%s313 + $0x61] sm:$0xff]
      %v6739 = vld [vmem:[%s313 + $0x69] sm:$0xff]
      %v6740 = vld [vmem:[%s313 + $0x79] sm:$0xff]
      %v6741 = vld [vmem:[%s313 + $0x81] sm:$0xff]
      %v6742 = vld [vmem:[%s313 + $0x91] sm:$0xff]
      %v6743 = vld [vmem:[%s313 + $0x99] sm:$0xff]
      %v6744 = vld [vmem:[%s313 + $0xa9] sm:$0xff]
      %v6745 = vld [vmem:[%s313 + $0xb1] sm:$0xff]
      %v6746 = vld [vmem:[%s313 + $0xc1] sm:$0xff]
      %v6747 = vld [vmem:[%s313 + $0xc9] sm:$0xff]
      %v6748 = vld [vmem:[%s313 + $0xd9] sm:$0xff]
      %v6749 = vld [vmem:[%s313 + $0xe1] sm:$0xff]
      %v6750 = vld [vmem:[%s313 + $0xf1] sm:$0xff]
      %v6751 = vld [vmem:[%s313 + $0xf9] sm:$0xff]
      %v6752 = vld [vmem:[%s313 + $0x109] sm:$0xff]
      %v6753 = vld [vmem:[%s313 + $0x111] sm:$0xff]
      %v6754 = vld [vmem:[%s313 + $0x121] sm:$0xff]
      %v6755 = vld [vmem:[%s313 + $0x129] sm:$0xff]
      %v6756 = vld [vmem:[%s313 + $0x139] sm:$0xff]
      %v6757 = vld [vmem:[%s313 + $0x141] sm:$0xff]
      %v6758 = vld [vmem:[%s313 + $0x151] sm:$0xff]
      %v6759 = vld [vmem:[%s313 + $0x159] sm:$0xff]
      %v6760 = vld [vmem:[%s313 + $0x169] sm:$0xff]
      %v6761 = vld [vmem:[%s313 + $0x171] sm:$0xff]
      %s6762 = scalar_lea.vmem %s1, 704
      %v6763 = vld [vmem:[%s6762] sm:$0xff]
      %v6764 = vld [vmem:[%s6762 + $0x8] sm:$0xff]
      %v6765 = vld [vmem:[%s6762 + $0x10] sm:$0xff]
      %v6766 = vld [vmem:[%s6762 + $0x18] sm:$0xff]
      %v6768 = vsel %vm225, %v6730, 0
      %v6771 = vsel %vm225, %v6731, 0
      %v6774 = vsel %vm225, %v6732, 0
      %v6777 = vsel %vm225, %v6733, 0
      %v6780 = vsel %vm225, %v6734, 0
      %v6783 = vsel %vm225, %v6735, 0
      %v6786 = vsel %vm225, %v6736, 0
      %v6789 = vsel %vm225, %v6737, 0
      %v6792 = vsel %vm225, %v6738, 0
      %v6795 = vsel %vm225, %v6739, 0
      %v6798 = vsel %vm225, %v6740, 0
      %v6801 = vsel %vm225, %v6741, 0
      %v6804 = vsel %vm225, %v6742, 0
      %v6807 = vsel %vm225, %v6743, 0
      %v6810 = vsel %vm225, %v6744, 0
      %v6813 = vsel %vm225, %v6745, 0
      %v6816 = vsel %vm225, %v6746, 0
      %v6819 = vsel %vm225, %v6747, 0
      %v6822 = vsel %vm225, %v6748, 0
      %v6825 = vsel %vm225, %v6749, 0
      %v6828 = vsel %vm225, %v6750, 0
      %v6831 = vsel %vm225, %v6751, 0
      %v6834 = vsel %vm225, %v6752, 0
      %v6837 = vsel %vm225, %v6753, 0
      %v6840 = vsel %vm225, %v6754, 0
      %v6843 = vsel %vm225, %v6755, 0
      %v6846 = vsel %vm225, %v6756, 0
      %v6849 = vsel %vm225, %v6757, 0
      %v6852 = vsel %vm225, %v6758, 0
      %v6855 = vsel %vm225, %v6759, 0
      %v6858 = vsel %vm225, %v6760, 0
      %v6861 = vsel %vm225, %v6761, 0
      %6863 = vmatpush.msra.mxu0 0.0
      %6864 = vmatpush.msra.mxu0 0.0
      %6865 = vmatpush.msra.mxu0 0.0
      %6866 = vmatpush.msra.mxu0 0.0
      %6867 = vmatpush.msra.mxu0 0.0
      %6868 = vmatpush.msra.mxu0 0.0
      %6869 = vmatpush.msra.mxu0 0.0
      %6870 = vmatpush.msra.mxu0 0.0
      %6871 = vmatpush.msra.mxu0 0.0
      %6872 = vmatpush.msra.mxu0 0.0
      %6873 = vmatpush.msra.mxu0 0.0
      %6874 = vmatpush.msra.mxu0 0.0
      %6875 = vmatpush.msra.mxu0 %v6766
      %6876 = vmatpush.msra.mxu0 %v6765
      %6877 = vmatpush.msra.mxu0 %v6764
      %6878 = vmatpush.msra.mxu0 %v6763
      %6879 = vmatmul.f32.gmra.mxu0 %v6768
      %v6880 = vpop.f32.mrf.mxu0
      %v6881 = vadd.f32 0.0, %v6880
      %6882 = vmatmul.f32.gmra.mxu0 %v6771
      %v6883 = vpop.f32.mrf.mxu0
      %v6884 = vadd.f32 0.0, %v6883
      %6885 = vmatmul.f32.gmra.mxu0 %v6774
      %v6886 = vpop.f32.mrf.mxu0
      %v6887 = vadd.f32 0.0, %v6886
      %6888 = vmatmul.f32.gmra.mxu0 %v6777
      %v6889 = vpop.f32.mrf.mxu0
      %v6890 = vadd.f32 0.0, %v6889
      %6891 = vmatmul.f32.gmra.mxu0 %v6780
      %v6892 = vpop.f32.mrf.mxu0
      %v6893 = vadd.f32 0.0, %v6892
      %6894 = vmatmul.f32.gmra.mxu0 %v6783
      %v6895 = vpop.f32.mrf.mxu0
      %v6896 = vadd.f32 0.0, %v6895
      %6897 = vmatmul.f32.gmra.mxu0 %v6786
      %v6898 = vpop.f32.mrf.mxu0
      %v6899 = vadd.f32 0.0, %v6898
      %6900 = vmatmul.f32.gmra.mxu0 %v6789
      %v6901 = vpop.f32.mrf.mxu0
      %v6902 = vadd.f32 0.0, %v6901
      %6903 = vmatmul.f32.gmra.mxu0 %v6792
      %v6904 = vpop.f32.mrf.mxu0
      %v6905 = vadd.f32 0.0, %v6904
      %6906 = vmatmul.f32.gmra.mxu0 %v6795
      %v6907 = vpop.f32.mrf.mxu0
      %v6908 = vadd.f32 0.0, %v6907
      %6909 = vmatmul.f32.gmra.mxu0 %v6798
      %v6910 = vpop.f32.mrf.mxu0
      %v6911 = vadd.f32 0.0, %v6910
      %6912 = vmatmul.f32.gmra.mxu0 %v6801
      %v6913 = vpop.f32.mrf.mxu0
      %v6914 = vadd.f32 0.0, %v6913
      %6915 = vmatmul.f32.gmra.mxu0 %v6804
      %v6916 = vpop.f32.mrf.mxu0
      %v6917 = vadd.f32 0.0, %v6916
      %6918 = vmatmul.f32.gmra.mxu0 %v6807
      %v6919 = vpop.f32.mrf.mxu0
      %v6920 = vadd.f32 0.0, %v6919
      %6921 = vmatmul.f32.gmra.mxu0 %v6810
      %v6922 = vpop.f32.mrf.mxu0
      %v6923 = vadd.f32 0.0, %v6922
      %6924 = vmatmul.f32.gmra.mxu0 %v6813
      %v6925 = vpop.f32.mrf.mxu0
      %v6926 = vadd.f32 0.0, %v6925
      %6927 = vmatmul.f32.gmra.mxu0 %v6816
      %v6928 = vpop.f32.mrf.mxu0
      %v6929 = vadd.f32 0.0, %v6928
      %6930 = vmatmul.f32.gmra.mxu0 %v6819
      %v6931 = vpop.f32.mrf.mxu0
      %v6932 = vadd.f32 0.0, %v6931
      %6933 = vmatmul.f32.gmra.mxu0 %v6822
      %v6934 = vpop.f32.mrf.mxu0
      %v6935 = vadd.f32 0.0, %v6934
      %6936 = vmatmul.f32.gmra.mxu0 %v6825
      %v6937 = vpop.f32.mrf.mxu0
      %v6938 = vadd.f32 0.0, %v6937
      %6939 = vmatmul.f32.gmra.mxu0 %v6828
      %v6940 = vpop.f32.mrf.mxu0
      %v6941 = vadd.f32 0.0, %v6940
      %6942 = vmatmul.f32.gmra.mxu0 %v6831
      %v6943 = vpop.f32.mrf.mxu0
      %v6944 = vadd.f32 0.0, %v6943
      %6945 = vmatmul.f32.gmra.mxu0 %v6834
      %v6946 = vpop.f32.mrf.mxu0
      %v6947 = vadd.f32 0.0, %v6946
      %6948 = vmatmul.f32.gmra.mxu0 %v6837
      %v6949 = vpop.f32.mrf.mxu0
      %v6950 = vadd.f32 0.0, %v6949
      %6951 = vmatmul.f32.gmra.mxu0 %v6840
      %v6952 = vpop.f32.mrf.mxu0
      %v6953 = vadd.f32 0.0, %v6952
      %6954 = vmatmul.f32.gmra.mxu0 %v6843
      %v6955 = vpop.f32.mrf.mxu0
      %v6956 = vadd.f32 0.0, %v6955
      %6957 = vmatmul.f32.gmra.mxu0 %v6846
      %v6958 = vpop.f32.mrf.mxu0
      %v6959 = vadd.f32 0.0, %v6958
      %6960 = vmatmul.f32.gmra.mxu0 %v6849
      %v6961 = vpop.f32.mrf.mxu0
      %v6962 = vadd.f32 0.0, %v6961
      %6963 = vmatmul.f32.gmra.mxu0 %v6852
      %v6964 = vpop.f32.mrf.mxu0
      %v6965 = vadd.f32 0.0, %v6964
      %6966 = vmatmul.f32.gmra.mxu0 %v6855
      %v6967 = vpop.f32.mrf.mxu0
      %v6968 = vadd.f32 0.0, %v6967
      %6969 = vmatmul.f32.gmra.mxu0 %v6858
      %v6970 = vpop.f32.mrf.mxu0
      %v6971 = vadd.f32 0.0, %v6970
      %6972 = vmatmul.f32.gmra.mxu0 %v6861
      %v6973 = vpop.f32.mrf.mxu0
      %v6974 = vadd.f32 0.0, %v6973
      %6975 = vdwg.mxu0
      %v6976 = vadd.f32 %v6698, %v6881
      %v6977 = vadd.f32 %v6699, %v6884
      %v6978 = vadd.f32 %v6700, %v6887
      %v6979 = vadd.f32 %v6701, %v6890
      %v6980 = vadd.f32 %v6702, %v6893
      %v6981 = vadd.f32 %v6703, %v6896
      %v6982 = vadd.f32 %v6704, %v6899
      %v6983 = vadd.f32 %v6705, %v6902
      %v6984 = vadd.f32 %v6706, %v6905
      %v6985 = vadd.f32 %v6707, %v6908
      %v6986 = vadd.f32 %v6708, %v6911
      %v6987 = vadd.f32 %v6709, %v6914
      %v6988 = vadd.f32 %v6710, %v6917
      %v6989 = vadd.f32 %v6711, %v6920
      %v6990 = vadd.f32 %v6712, %v6923
      %v6991 = vadd.f32 %v6713, %v6926
      %v6992 = vadd.f32 %v6714, %v6929
      %v6993 = vadd.f32 %v6715, %v6932
      %v6994 = vadd.f32 %v6716, %v6935
      %v6995 = vadd.f32 %v6717, %v6938
      %v6996 = vadd.f32 %v6718, %v6941
      %v6997 = vadd.f32 %v6719, %v6944
      %v6998 = vadd.f32 %v6720, %v6947
      %v6999 = vadd.f32 %v6721, %v6950
      %v7000 = vadd.f32 %v6722, %v6953
      %v7001 = vadd.f32 %v6723, %v6956
      %v7002 = vadd.f32 %v6724, %v6959
      %v7003 = vadd.f32 %v6725, %v6962
      %v7004 = vadd.f32 %v6726, %v6965
      %v7005 = vadd.f32 %v6727, %v6968
      %v7006 = vadd.f32 %v6728, %v6971
      %v7007 = vadd.f32 %v6729, %v6974
      %v7008 = vld [vmem:[%s313 + $0x2] sm:$0xff]
      %v7009 = vld [vmem:[%s313 + $0xa] sm:$0xff]
      %v7010 = vld [vmem:[%s313 + $0x1a] sm:$0xff]
      %v7011 = vld [vmem:[%s313 + $0x22] sm:$0xff]
      %v7012 = vld [vmem:[%s313 + $0x32] sm:$0xff]
      %v7013 = vld [vmem:[%s313 + $0x3a] sm:$0xff]
      %v7014 = vld [vmem:[%s313 + $0x4a] sm:$0xff]
      %v7015 = vld [vmem:[%s313 + $0x52] sm:$0xff]
      %v7016 = vld [vmem:[%s313 + $0x62] sm:$0xff]
      %v7017 = vld [vmem:[%s313 + $0x6a] sm:$0xff]
      %v7018 = vld [vmem:[%s313 + $0x7a] sm:$0xff]
      %v7019 = vld [vmem:[%s313 + $0x82] sm:$0xff]
      %v7020 = vld [vmem:[%s313 + $0x92] sm:$0xff]
      %v7021 = vld [vmem:[%s313 + $0x9a] sm:$0xff]
      %v7022 = vld [vmem:[%s313 + $0xaa] sm:$0xff]
      %v7023 = vld [vmem:[%s313 + $0xb2] sm:$0xff]
      %v7024 = vld [vmem:[%s313 + $0xc2] sm:$0xff]
      %v7025 = vld [vmem:[%s313 + $0xca] sm:$0xff]
      %v7026 = vld [vmem:[%s313 + $0xda] sm:$0xff]
      %v7027 = vld [vmem:[%s313 + $0xe2] sm:$0xff]
      %v7028 = vld [vmem:[%s313 + $0xf2] sm:$0xff]
      %v7029 = vld [vmem:[%s313 + $0xfa] sm:$0xff]
      %v7030 = vld [vmem:[%s313 + $0x10a] sm:$0xff]
      %v7031 = vld [vmem:[%s313 + $0x112] sm:$0xff]
      %v7032 = vld [vmem:[%s313 + $0x122] sm:$0xff]
      %v7033 = vld [vmem:[%s313 + $0x12a] sm:$0xff]
      %v7034 = vld [vmem:[%s313 + $0x13a] sm:$0xff]
      %v7035 = vld [vmem:[%s313 + $0x142] sm:$0xff]
      %v7036 = vld [vmem:[%s313 + $0x152] sm:$0xff]
      %v7037 = vld [vmem:[%s313 + $0x15a] sm:$0xff]
      %v7038 = vld [vmem:[%s313 + $0x16a] sm:$0xff]
      %v7039 = vld [vmem:[%s313 + $0x172] sm:$0xff]
      %s7040 = scalar_lea.vmem %s1, 736
      %v7041 = vld [vmem:[%s7040] sm:$0xff]
      %v7042 = vld [vmem:[%s7040 + $0x8] sm:$0xff]
      %v7043 = vld [vmem:[%s7040 + $0x10] sm:$0xff]
      %v7044 = vld [vmem:[%s7040 + $0x18] sm:$0xff]
      %v7046 = vsel %vm225, %v7008, 0
      %v7049 = vsel %vm225, %v7009, 0
      %v7052 = vsel %vm225, %v7010, 0
      %v7055 = vsel %vm225, %v7011, 0
      %v7058 = vsel %vm225, %v7012, 0
      %v7061 = vsel %vm225, %v7013, 0
      %v7064 = vsel %vm225, %v7014, 0
      %v7067 = vsel %vm225, %v7015, 0
      %v7070 = vsel %vm225, %v7016, 0
      %v7073 = vsel %vm225, %v7017, 0
      %v7076 = vsel %vm225, %v7018, 0
      %v7079 = vsel %vm225, %v7019, 0
      %v7082 = vsel %vm225, %v7020, 0
      %v7085 = vsel %vm225, %v7021, 0
      %v7088 = vsel %vm225, %v7022, 0
      %v7091 = vsel %vm225, %v7023, 0
      %v7094 = vsel %vm225, %v7024, 0
      %v7097 = vsel %vm225, %v7025, 0
      %v7100 = vsel %vm225, %v7026, 0
      %v7103 = vsel %vm225, %v7027, 0
      %v7106 = vsel %vm225, %v7028, 0
      %v7109 = vsel %vm225, %v7029, 0
      %v7112 = vsel %vm225, %v7030, 0
      %v7115 = vsel %vm225, %v7031, 0
      %v7118 = vsel %vm225, %v7032, 0
      %v7121 = vsel %vm225, %v7033, 0
      %v7124 = vsel %vm225, %v7034, 0
      %v7127 = vsel %vm225, %v7035, 0
      %v7130 = vsel %vm225, %v7036, 0
      %v7133 = vsel %vm225, %v7037, 0
      %v7136 = vsel %vm225, %v7038, 0
      %v7139 = vsel %vm225, %v7039, 0
      %7141 = vmatpush.msra.mxu0 0.0
      %7142 = vmatpush.msra.mxu0 0.0
      %7143 = vmatpush.msra.mxu0 0.0
      %7144 = vmatpush.msra.mxu0 0.0
      %7145 = vmatpush.msra.mxu0 0.0
      %7146 = vmatpush.msra.mxu0 0.0
      %7147 = vmatpush.msra.mxu0 0.0
      %7148 = vmatpush.msra.mxu0 0.0
      %7149 = vmatpush.msra.mxu0 0.0
      %7150 = vmatpush.msra.mxu0 0.0
      %7151 = vmatpush.msra.mxu0 0.0
      %7152 = vmatpush.msra.mxu0 0.0
      %7153 = vmatpush.msra.mxu0 %v7044
      %7154 = vmatpush.msra.mxu0 %v7043
      %7155 = vmatpush.msra.mxu0 %v7042
      %7156 = vmatpush.msra.mxu0 %v7041
      %7157 = vmatmul.f32.gmra.mxu0 %v7046
      %v7158 = vpop.f32.mrf.mxu0
      %v7159 = vadd.f32 0.0, %v7158
      %7160 = vmatmul.f32.gmra.mxu0 %v7049
      %v7161 = vpop.f32.mrf.mxu0
      %v7162 = vadd.f32 0.0, %v7161
      %7163 = vmatmul.f32.gmra.mxu0 %v7052
      %v7164 = vpop.f32.mrf.mxu0
      %v7165 = vadd.f32 0.0, %v7164
      %7166 = vmatmul.f32.gmra.mxu0 %v7055
      %v7167 = vpop.f32.mrf.mxu0
      %v7168 = vadd.f32 0.0, %v7167
      %7169 = vmatmul.f32.gmra.mxu0 %v7058
      %v7170 = vpop.f32.mrf.mxu0
      %v7171 = vadd.f32 0.0, %v7170
      %7172 = vmatmul.f32.gmra.mxu0 %v7061
      %v7173 = vpop.f32.mrf.mxu0
      %v7174 = vadd.f32 0.0, %v7173
      %7175 = vmatmul.f32.gmra.mxu0 %v7064
      %v7176 = vpop.f32.mrf.mxu0
      %v7177 = vadd.f32 0.0, %v7176
      %7178 = vmatmul.f32.gmra.mxu0 %v7067
      %v7179 = vpop.f32.mrf.mxu0
      %v7180 = vadd.f32 0.0, %v7179
      %7181 = vmatmul.f32.gmra.mxu0 %v7070
      %v7182 = vpop.f32.mrf.mxu0
      %v7183 = vadd.f32 0.0, %v7182
      %7184 = vmatmul.f32.gmra.mxu0 %v7073
      %v7185 = vpop.f32.mrf.mxu0
      %v7186 = vadd.f32 0.0, %v7185
      %7187 = vmatmul.f32.gmra.mxu0 %v7076
      %v7188 = vpop.f32.mrf.mxu0
      %v7189 = vadd.f32 0.0, %v7188
      %7190 = vmatmul.f32.gmra.mxu0 %v7079
      %v7191 = vpop.f32.mrf.mxu0
      %v7192 = vadd.f32 0.0, %v7191
      %7193 = vmatmul.f32.gmra.mxu0 %v7082
      %v7194 = vpop.f32.mrf.mxu0
      %v7195 = vadd.f32 0.0, %v7194
      %7196 = vmatmul.f32.gmra.mxu0 %v7085
      %v7197 = vpop.f32.mrf.mxu0
      %v7198 = vadd.f32 0.0, %v7197
      %7199 = vmatmul.f32.gmra.mxu0 %v7088
      %v7200 = vpop.f32.mrf.mxu0
      %v7201 = vadd.f32 0.0, %v7200
      %7202 = vmatmul.f32.gmra.mxu0 %v7091
      %v7203 = vpop.f32.mrf.mxu0
      %v7204 = vadd.f32 0.0, %v7203
      %7205 = vmatmul.f32.gmra.mxu0 %v7094
      %v7206 = vpop.f32.mrf.mxu0
      %v7207 = vadd.f32 0.0, %v7206
      %7208 = vmatmul.f32.gmra.mxu0 %v7097
      %v7209 = vpop.f32.mrf.mxu0
      %v7210 = vadd.f32 0.0, %v7209
      %7211 = vmatmul.f32.gmra.mxu0 %v7100
      %v7212 = vpop.f32.mrf.mxu0
      %v7213 = vadd.f32 0.0, %v7212
      %7214 = vmatmul.f32.gmra.mxu0 %v7103
      %v7215 = vpop.f32.mrf.mxu0
      %v7216 = vadd.f32 0.0, %v7215
      %7217 = vmatmul.f32.gmra.mxu0 %v7106
      %v7218 = vpop.f32.mrf.mxu0
      %v7219 = vadd.f32 0.0, %v7218
      %7220 = vmatmul.f32.gmra.mxu0 %v7109
      %v7221 = vpop.f32.mrf.mxu0
      %v7222 = vadd.f32 0.0, %v7221
      %7223 = vmatmul.f32.gmra.mxu0 %v7112
      %v7224 = vpop.f32.mrf.mxu0
      %v7225 = vadd.f32 0.0, %v7224
      %7226 = vmatmul.f32.gmra.mxu0 %v7115
      %v7227 = vpop.f32.mrf.mxu0
      %v7228 = vadd.f32 0.0, %v7227
      %7229 = vmatmul.f32.gmra.mxu0 %v7118
      %v7230 = vpop.f32.mrf.mxu0
      %v7231 = vadd.f32 0.0, %v7230
      %7232 = vmatmul.f32.gmra.mxu0 %v7121
      %v7233 = vpop.f32.mrf.mxu0
      %v7234 = vadd.f32 0.0, %v7233
      %7235 = vmatmul.f32.gmra.mxu0 %v7124
      %v7236 = vpop.f32.mrf.mxu0
      %v7237 = vadd.f32 0.0, %v7236
      %7238 = vmatmul.f32.gmra.mxu0 %v7127
      %v7239 = vpop.f32.mrf.mxu0
      %v7240 = vadd.f32 0.0, %v7239
      %7241 = vmatmul.f32.gmra.mxu0 %v7130
      %v7242 = vpop.f32.mrf.mxu0
      %v7243 = vadd.f32 0.0, %v7242
      %7244 = vmatmul.f32.gmra.mxu0 %v7133
      %v7245 = vpop.f32.mrf.mxu0
      %v7246 = vadd.f32 0.0, %v7245
      %7247 = vmatmul.f32.gmra.mxu0 %v7136
      %v7248 = vpop.f32.mrf.mxu0
      %v7249 = vadd.f32 0.0, %v7248
      %7250 = vmatmul.f32.gmra.mxu0 %v7139
      %v7251 = vpop.f32.mrf.mxu0
      %v7252 = vadd.f32 0.0, %v7251
      %7253 = vdwg.mxu0
      %v7254 = vadd.f32 %v6976, %v7159
      %v7255 = vadd.f32 %v6977, %v7162
      %v7256 = vadd.f32 %v6978, %v7165
      %v7257 = vadd.f32 %v6979, %v7168
      %v7258 = vadd.f32 %v6980, %v7171
      %v7259 = vadd.f32 %v6981, %v7174
      %v7260 = vadd.f32 %v6982, %v7177
      %v7261 = vadd.f32 %v6983, %v7180
      %v7262 = vadd.f32 %v6984, %v7183
      %v7263 = vadd.f32 %v6985, %v7186
      %v7264 = vadd.f32 %v6986, %v7189
      %v7265 = vadd.f32 %v6987, %v7192
      %v7266 = vadd.f32 %v6988, %v7195
      %v7267 = vadd.f32 %v6989, %v7198
      %v7268 = vadd.f32 %v6990, %v7201
      %v7269 = vadd.f32 %v6991, %v7204
      %v7270 = vadd.f32 %v6992, %v7207
      %v7271 = vadd.f32 %v6993, %v7210
      %v7272 = vadd.f32 %v6994, %v7213
      %v7273 = vadd.f32 %v6995, %v7216
      %v7274 = vadd.f32 %v6996, %v7219
      %v7275 = vadd.f32 %v6997, %v7222
      %v7276 = vadd.f32 %v6998, %v7225
      %v7277 = vadd.f32 %v6999, %v7228
      %v7278 = vadd.f32 %v7000, %v7231
      %v7279 = vadd.f32 %v7001, %v7234
      %v7280 = vadd.f32 %v7002, %v7237
      %v7281 = vadd.f32 %v7003, %v7240
      %v7282 = vadd.f32 %v7004, %v7243
      %v7283 = vadd.f32 %v7005, %v7246
      %v7284 = vadd.f32 %v7006, %v7249
      %v7285 = vadd.f32 %v7007, %v7252
      %v7286 = vld [vmem:[%s1950] sm:$0xff]
      %v7287 = vld [vmem:[%s1950 + $0x8] sm:$0xff]
      %v7288 = vld [vmem:[%s1950 + $0x18] sm:$0xff]
      %v7289 = vld [vmem:[%s1950 + $0x20] sm:$0xff]
      %v7290 = vld [vmem:[%s1950 + $0x30] sm:$0xff]
      %v7291 = vld [vmem:[%s1950 + $0x38] sm:$0xff]
      %v7292 = vld [vmem:[%s1950 + $0x48] sm:$0xff]
      %v7293 = vld [vmem:[%s1950 + $0x50] sm:$0xff]
      %v7294 = vld [vmem:[%s1950 + $0x60] sm:$0xff]
      %v7295 = vld [vmem:[%s1950 + $0x68] sm:$0xff]
      %v7296 = vld [vmem:[%s1950 + $0x78] sm:$0xff]
      %v7297 = vld [vmem:[%s1950 + $0x80] sm:$0xff]
      %v7298 = vld [vmem:[%s1950 + $0x90] sm:$0xff]
      %v7299 = vld [vmem:[%s1950 + $0x98] sm:$0xff]
      %v7300 = vld [vmem:[%s1950 + $0xa8] sm:$0xff]
      %v7301 = vld [vmem:[%s1950 + $0xb0] sm:$0xff]
      %v7302 = vld [vmem:[%s1950 + $0xc0] sm:$0xff]
      %v7303 = vld [vmem:[%s1950 + $0xc8] sm:$0xff]
      %v7304 = vld [vmem:[%s1950 + $0xd8] sm:$0xff]
      %v7305 = vld [vmem:[%s1950 + $0xe0] sm:$0xff]
      %v7306 = vld [vmem:[%s1950 + $0xf0] sm:$0xff]
      %v7307 = vld [vmem:[%s1950 + $0xf8] sm:$0xff]
      %v7308 = vld [vmem:[%s1950 + $0x108] sm:$0xff]
      %v7309 = vld [vmem:[%s1950 + $0x110] sm:$0xff]
      %v7310 = vld [vmem:[%s1950 + $0x120] sm:$0xff]
      %v7311 = vld [vmem:[%s1950 + $0x128] sm:$0xff]
      %v7312 = vld [vmem:[%s1950 + $0x138] sm:$0xff]
      %v7313 = vld [vmem:[%s1950 + $0x140] sm:$0xff]
      %v7314 = vld [vmem:[%s1950 + $0x150] sm:$0xff]
      %v7315 = vld [vmem:[%s1950 + $0x158] sm:$0xff]
      %v7316 = vld [vmem:[%s1950 + $0x168] sm:$0xff]
      %v7317 = vld [vmem:[%s1950 + $0x170] sm:$0xff]
      %s7318 = scalar_lea.vmem %s1, 768
      %v7319 = vld [vmem:[%s7318] sm:$0xff]
      %v7320 = vld [vmem:[%s7318 + $0x8] sm:$0xff]
      %v7321 = vld [vmem:[%s7318 + $0x10] sm:$0xff]
      %v7322 = vld [vmem:[%s7318 + $0x18] sm:$0xff]
      %v7324 = vsel %vm225, %v7286, 0
      %v7327 = vsel %vm225, %v7287, 0
      %v7330 = vsel %vm225, %v7288, 0
      %v7333 = vsel %vm225, %v7289, 0
      %v7336 = vsel %vm225, %v7290, 0
      %v7339 = vsel %vm225, %v7291, 0
      %v7342 = vsel %vm225, %v7292, 0
      %v7345 = vsel %vm225, %v7293, 0
      %v7348 = vsel %vm225, %v7294, 0
      %v7351 = vsel %vm225, %v7295, 0
      %v7354 = vsel %vm225, %v7296, 0
      %v7357 = vsel %vm225, %v7297, 0
      %v7360 = vsel %vm225, %v7298, 0
      %v7363 = vsel %vm225, %v7299, 0
      %v7366 = vsel %vm225, %v7300, 0
      %v7369 = vsel %vm225, %v7301, 0
      %v7372 = vsel %vm225, %v7302, 0
      %v7375 = vsel %vm225, %v7303, 0
      %v7378 = vsel %vm225, %v7304, 0
      %v7381 = vsel %vm225, %v7305, 0
      %v7384 = vsel %vm225, %v7306, 0
      %v7387 = vsel %vm225, %v7307, 0
      %v7390 = vsel %vm225, %v7308, 0
      %v7393 = vsel %vm225, %v7309, 0
      %v7396 = vsel %vm225, %v7310, 0
      %v7399 = vsel %vm225, %v7311, 0
      %v7402 = vsel %vm225, %v7312, 0
      %v7405 = vsel %vm225, %v7313, 0
      %v7408 = vsel %vm225, %v7314, 0
      %v7411 = vsel %vm225, %v7315, 0
      %v7414 = vsel %vm225, %v7316, 0
      %v7417 = vsel %vm225, %v7317, 0
      %7419 = vmatpush.msra.mxu0 0.0
      %7420 = vmatpush.msra.mxu0 0.0
      %7421 = vmatpush.msra.mxu0 0.0
      %7422 = vmatpush.msra.mxu0 0.0
      %7423 = vmatpush.msra.mxu0 0.0
      %7424 = vmatpush.msra.mxu0 0.0
      %7425 = vmatpush.msra.mxu0 0.0
      %7426 = vmatpush.msra.mxu0 0.0
      %7427 = vmatpush.msra.mxu0 0.0
      %7428 = vmatpush.msra.mxu0 0.0
      %7429 = vmatpush.msra.mxu0 0.0
      %7430 = vmatpush.msra.mxu0 0.0
      %7431 = vmatpush.msra.mxu0 %v7322
      %7432 = vmatpush.msra.mxu0 %v7321
      %7433 = vmatpush.msra.mxu0 %v7320
      %7434 = vmatpush.msra.mxu0 %v7319
      %7435 = vmatmul.f32.gmra.mxu0 %v7324
      %v7436 = vpop.f32.mrf.mxu0
      %v7437 = vadd.f32 0.0, %v7436
      %7438 = vmatmul.f32.gmra.mxu0 %v7327
      %v7439 = vpop.f32.mrf.mxu0
      %v7440 = vadd.f32 0.0, %v7439
      %7441 = vmatmul.f32.gmra.mxu0 %v7330
      %v7442 = vpop.f32.mrf.mxu0
      %v7443 = vadd.f32 0.0, %v7442
      %7444 = vmatmul.f32.gmra.mxu0 %v7333
      %v7445 = vpop.f32.mrf.mxu0
      %v7446 = vadd.f32 0.0, %v7445
      %7447 = vmatmul.f32.gmra.mxu0 %v7336
      %v7448 = vpop.f32.mrf.mxu0
      %v7449 = vadd.f32 0.0, %v7448
      %7450 = vmatmul.f32.gmra.mxu0 %v7339
      %v7451 = vpop.f32.mrf.mxu0
      %v7452 = vadd.f32 0.0, %v7451
      %7453 = vmatmul.f32.gmra.mxu0 %v7342
      %v7454 = vpop.f32.mrf.mxu0
      %v7455 = vadd.f32 0.0, %v7454
      %7456 = vmatmul.f32.gmra.mxu0 %v7345
      %v7457 = vpop.f32.mrf.mxu0
      %v7458 = vadd.f32 0.0, %v7457
      %7459 = vmatmul.f32.gmra.mxu0 %v7348
      %v7460 = vpop.f32.mrf.mxu0
      %v7461 = vadd.f32 0.0, %v7460
      %7462 = vmatmul.f32.gmra.mxu0 %v7351
      %v7463 = vpop.f32.mrf.mxu0
      %v7464 = vadd.f32 0.0, %v7463
      %7465 = vmatmul.f32.gmra.mxu0 %v7354
      %v7466 = vpop.f32.mrf.mxu0
      %v7467 = vadd.f32 0.0, %v7466
      %7468 = vmatmul.f32.gmra.mxu0 %v7357
      %v7469 = vpop.f32.mrf.mxu0
      %v7470 = vadd.f32 0.0, %v7469
      %7471 = vmatmul.f32.gmra.mxu0 %v7360
      %v7472 = vpop.f32.mrf.mxu0
      %v7473 = vadd.f32 0.0, %v7472
      %7474 = vmatmul.f32.gmra.mxu0 %v7363
      %v7475 = vpop.f32.mrf.mxu0
      %v7476 = vadd.f32 0.0, %v7475
      %7477 = vmatmul.f32.gmra.mxu0 %v7366
      %v7478 = vpop.f32.mrf.mxu0
      %v7479 = vadd.f32 0.0, %v7478
      %7480 = vmatmul.f32.gmra.mxu0 %v7369
      %v7481 = vpop.f32.mrf.mxu0
      %v7482 = vadd.f32 0.0, %v7481
      %7483 = vmatmul.f32.gmra.mxu0 %v7372
      %v7484 = vpop.f32.mrf.mxu0
      %v7485 = vadd.f32 0.0, %v7484
      %7486 = vmatmul.f32.gmra.mxu0 %v7375
      %v7487 = vpop.f32.mrf.mxu0
      %v7488 = vadd.f32 0.0, %v7487
      %7489 = vmatmul.f32.gmra.mxu0 %v7378
      %v7490 = vpop.f32.mrf.mxu0
      %v7491 = vadd.f32 0.0, %v7490
      %7492 = vmatmul.f32.gmra.mxu0 %v7381
      %v7493 = vpop.f32.mrf.mxu0
      %v7494 = vadd.f32 0.0, %v7493
      %7495 = vmatmul.f32.gmra.mxu0 %v7384
      %v7496 = vpop.f32.mrf.mxu0
      %v7497 = vadd.f32 0.0, %v7496
      %7498 = vmatmul.f32.gmra.mxu0 %v7387
      %v7499 = vpop.f32.mrf.mxu0
      %v7500 = vadd.f32 0.0, %v7499
      %7501 = vmatmul.f32.gmra.mxu0 %v7390
      %v7502 = vpop.f32.mrf.mxu0
      %v7503 = vadd.f32 0.0, %v7502
      %7504 = vmatmul.f32.gmra.mxu0 %v7393
      %v7505 = vpop.f32.mrf.mxu0
      %v7506 = vadd.f32 0.0, %v7505
      %7507 = vmatmul.f32.gmra.mxu0 %v7396
      %v7508 = vpop.f32.mrf.mxu0
      %v7509 = vadd.f32 0.0, %v7508
      %7510 = vmatmul.f32.gmra.mxu0 %v7399
      %v7511 = vpop.f32.mrf.mxu0
      %v7512 = vadd.f32 0.0, %v7511
      %7513 = vmatmul.f32.gmra.mxu0 %v7402
      %v7514 = vpop.f32.mrf.mxu0
      %v7515 = vadd.f32 0.0, %v7514
      %7516 = vmatmul.f32.gmra.mxu0 %v7405
      %v7517 = vpop.f32.mrf.mxu0
      %v7518 = vadd.f32 0.0, %v7517
      %7519 = vmatmul.f32.gmra.mxu0 %v7408
      %v7520 = vpop.f32.mrf.mxu0
      %v7521 = vadd.f32 0.0, %v7520
      %7522 = vmatmul.f32.gmra.mxu0 %v7411
      %v7523 = vpop.f32.mrf.mxu0
      %v7524 = vadd.f32 0.0, %v7523
      %7525 = vmatmul.f32.gmra.mxu0 %v7414
      %v7526 = vpop.f32.mrf.mxu0
      %v7527 = vadd.f32 0.0, %v7526
      %7528 = vmatmul.f32.gmra.mxu0 %v7417
      %v7529 = vpop.f32.mrf.mxu0
      %v7530 = vadd.f32 0.0, %v7529
      %7531 = vdwg.mxu0
      %v7532 = vadd.f32 %v7254, %v7437
      %v7533 = vadd.f32 %v7255, %v7440
      %v7534 = vadd.f32 %v7256, %v7443
      %v7535 = vadd.f32 %v7257, %v7446
      %v7536 = vadd.f32 %v7258, %v7449
      %v7537 = vadd.f32 %v7259, %v7452
      %v7538 = vadd.f32 %v7260, %v7455
      %v7539 = vadd.f32 %v7261, %v7458
      %v7540 = vadd.f32 %v7262, %v7461
      %v7541 = vadd.f32 %v7263, %v7464
      %v7542 = vadd.f32 %v7264, %v7467
      %v7543 = vadd.f32 %v7265, %v7470
      %v7544 = vadd.f32 %v7266, %v7473
      %v7545 = vadd.f32 %v7267, %v7476
      %v7546 = vadd.f32 %v7268, %v7479
      %v7547 = vadd.f32 %v7269, %v7482
      %v7548 = vadd.f32 %v7270, %v7485
      %v7549 = vadd.f32 %v7271, %v7488
      %v7550 = vadd.f32 %v7272, %v7491
      %v7551 = vadd.f32 %v7273, %v7494
      %v7552 = vadd.f32 %v7274, %v7497
      %v7553 = vadd.f32 %v7275, %v7500
      %v7554 = vadd.f32 %v7276, %v7503
      %v7555 = vadd.f32 %v7277, %v7506
      %v7556 = vadd.f32 %v7278, %v7509
      %v7557 = vadd.f32 %v7279, %v7512
      %v7558 = vadd.f32 %v7280, %v7515
      %v7559 = vadd.f32 %v7281, %v7518
      %v7560 = vadd.f32 %v7282, %v7521
      %v7561 = vadd.f32 %v7283, %v7524
      %v7562 = vadd.f32 %v7284, %v7527
      %v7563 = vadd.f32 %v7285, %v7530
      %v7564 = vld [vmem:[%s1950 + $0x1] sm:$0xff]
      %v7565 = vld [vmem:[%s1950 + $0x9] sm:$0xff]
      %v7566 = vld [vmem:[%s1950 + $0x19] sm:$0xff]
      %v7567 = vld [vmem:[%s1950 + $0x21] sm:$0xff]
      %v7568 = vld [vmem:[%s1950 + $0x31] sm:$0xff]
      %v7569 = vld [vmem:[%s1950 + $0x39] sm:$0xff]
      %v7570 = vld [vmem:[%s1950 + $0x49] sm:$0xff]
      %v7571 = vld [vmem:[%s1950 + $0x51] sm:$0xff]
      %v7572 = vld [vmem:[%s1950 + $0x61] sm:$0xff]
      %v7573 = vld [vmem:[%s1950 + $0x69] sm:$0xff]
      %v7574 = vld [vmem:[%s1950 + $0x79] sm:$0xff]
      %v7575 = vld [vmem:[%s1950 + $0x81] sm:$0xff]
      %v7576 = vld [vmem:[%s1950 + $0x91] sm:$0xff]
      %v7577 = vld [vmem:[%s1950 + $0x99] sm:$0xff]
      %v7578 = vld [vmem:[%s1950 + $0xa9] sm:$0xff]
      %v7579 = vld [vmem:[%s1950 + $0xb1] sm:$0xff]
      %v7580 = vld [vmem:[%s1950 + $0xc1] sm:$0xff]
      %v7581 = vld [vmem:[%s1950 + $0xc9] sm:$0xff]
      %v7582 = vld [vmem:[%s1950 + $0xd9] sm:$0xff]
      %v7583 = vld [vmem:[%s1950 + $0xe1] sm:$0xff]
      %v7584 = vld [vmem:[%s1950 + $0xf1] sm:$0xff]
      %v7585 = vld [vmem:[%s1950 + $0xf9] sm:$0xff]
      %v7586 = vld [vmem:[%s1950 + $0x109] sm:$0xff]
      %v7587 = vld [vmem:[%s1950 + $0x111] sm:$0xff]
      %v7588 = vld [vmem:[%s1950 + $0x121] sm:$0xff]
      %v7589 = vld [vmem:[%s1950 + $0x129] sm:$0xff]
      %v7590 = vld [vmem:[%s1950 + $0x139] sm:$0xff]
      %v7591 = vld [vmem:[%s1950 + $0x141] sm:$0xff]
      %v7592 = vld [vmem:[%s1950 + $0x151] sm:$0xff]
      %v7593 = vld [vmem:[%s1950 + $0x159] sm:$0xff]
      %v7594 = vld [vmem:[%s1950 + $0x169] sm:$0xff]
      %v7595 = vld [vmem:[%s1950 + $0x171] sm:$0xff]
      %s7596 = scalar_lea.vmem %s1, 800
      %v7597 = vld [vmem:[%s7596] sm:$0xff]
      %v7598 = vld [vmem:[%s7596 + $0x8] sm:$0xff]
      %v7599 = vld [vmem:[%s7596 + $0x10] sm:$0xff]
      %v7600 = vld [vmem:[%s7596 + $0x18] sm:$0xff]
      %v7602 = vsel %vm225, %v7564, 0
      %v7605 = vsel %vm225, %v7565, 0
      %v7608 = vsel %vm225, %v7566, 0
      %v7611 = vsel %vm225, %v7567, 0
      %v7614 = vsel %vm225, %v7568, 0
      %v7617 = vsel %vm225, %v7569, 0
      %v7620 = vsel %vm225, %v7570, 0
      %v7623 = vsel %vm225, %v7571, 0
      %v7626 = vsel %vm225, %v7572, 0
      %v7629 = vsel %vm225, %v7573, 0
      %v7632 = vsel %vm225, %v7574, 0
      %v7635 = vsel %vm225, %v7575, 0
      %v7638 = vsel %vm225, %v7576, 0
      %v7641 = vsel %vm225, %v7577, 0
      %v7644 = vsel %vm225, %v7578, 0
      %v7647 = vsel %vm225, %v7579, 0
      %v7650 = vsel %vm225, %v7580, 0
      %v7653 = vsel %vm225, %v7581, 0
      %v7656 = vsel %vm225, %v7582, 0
      %v7659 = vsel %vm225, %v7583, 0
      %v7662 = vsel %vm225, %v7584, 0
      %v7665 = vsel %vm225, %v7585, 0
      %v7668 = vsel %vm225, %v7586, 0
      %v7671 = vsel %vm225, %v7587, 0
      %v7674 = vsel %vm225, %v7588, 0
      %v7677 = vsel %vm225, %v7589, 0
      %v7680 = vsel %vm225, %v7590, 0
      %v7683 = vsel %vm225, %v7591, 0
      %v7686 = vsel %vm225, %v7592, 0
      %v7689 = vsel %vm225, %v7593, 0
      %v7692 = vsel %vm225, %v7594, 0
      %v7695 = vsel %vm225, %v7595, 0
      %7697 = vmatpush.msra.mxu0 0.0
      %7698 = vmatpush.msra.mxu0 0.0
      %7699 = vmatpush.msra.mxu0 0.0
      %7700 = vmatpush.msra.mxu0 0.0
      %7701 = vmatpush.msra.mxu0 0.0
      %7702 = vmatpush.msra.mxu0 0.0
      %7703 = vmatpush.msra.mxu0 0.0
      %7704 = vmatpush.msra.mxu0 0.0
      %7705 = vmatpush.msra.mxu0 0.0
      %7706 = vmatpush.msra.mxu0 0.0
      %7707 = vmatpush.msra.mxu0 0.0
      %7708 = vmatpush.msra.mxu0 0.0
      %7709 = vmatpush.msra.mxu0 %v7600
      %7710 = vmatpush.msra.mxu0 %v7599
      %7711 = vmatpush.msra.mxu0 %v7598
      %7712 = vmatpush.msra.mxu0 %v7597
      %7713 = vmatmul.f32.gmra.mxu0 %v7602
      %v7714 = vpop.f32.mrf.mxu0
      %v7715 = vadd.f32 0.0, %v7714
      %7716 = vmatmul.f32.gmra.mxu0 %v7605
      %v7717 = vpop.f32.mrf.mxu0
      %v7718 = vadd.f32 0.0, %v7717
      %7719 = vmatmul.f32.gmra.mxu0 %v7608
      %v7720 = vpop.f32.mrf.mxu0
      %v7721 = vadd.f32 0.0, %v7720
      %7722 = vmatmul.f32.gmra.mxu0 %v7611
      %v7723 = vpop.f32.mrf.mxu0
      %v7724 = vadd.f32 0.0, %v7723
      %7725 = vmatmul.f32.gmra.mxu0 %v7614
      %v7726 = vpop.f32.mrf.mxu0
      %v7727 = vadd.f32 0.0, %v7726
      %7728 = vmatmul.f32.gmra.mxu0 %v7617
      %v7729 = vpop.f32.mrf.mxu0
      %v7730 = vadd.f32 0.0, %v7729
      %7731 = vmatmul.f32.gmra.mxu0 %v7620
      %v7732 = vpop.f32.mrf.mxu0
      %v7733 = vadd.f32 0.0, %v7732
      %7734 = vmatmul.f32.gmra.mxu0 %v7623
      %v7735 = vpop.f32.mrf.mxu0
      %v7736 = vadd.f32 0.0, %v7735
      %7737 = vmatmul.f32.gmra.mxu0 %v7626
      %v7738 = vpop.f32.mrf.mxu0
      %v7739 = vadd.f32 0.0, %v7738
      %7740 = vmatmul.f32.gmra.mxu0 %v7629
      %v7741 = vpop.f32.mrf.mxu0
      %v7742 = vadd.f32 0.0, %v7741
      %7743 = vmatmul.f32.gmra.mxu0 %v7632
      %v7744 = vpop.f32.mrf.mxu0
      %v7745 = vadd.f32 0.0, %v7744
      %7746 = vmatmul.f32.gmra.mxu0 %v7635
      %v7747 = vpop.f32.mrf.mxu0
      %v7748 = vadd.f32 0.0, %v7747
      %7749 = vmatmul.f32.gmra.mxu0 %v7638
      %v7750 = vpop.f32.mrf.mxu0
      %v7751 = vadd.f32 0.0, %v7750
      %7752 = vmatmul.f32.gmra.mxu0 %v7641
      %v7753 = vpop.f32.mrf.mxu0
      %v7754 = vadd.f32 0.0, %v7753
      %7755 = vmatmul.f32.gmra.mxu0 %v7644
      %v7756 = vpop.f32.mrf.mxu0
      %v7757 = vadd.f32 0.0, %v7756
      %7758 = vmatmul.f32.gmra.mxu0 %v7647
      %v7759 = vpop.f32.mrf.mxu0
      %v7760 = vadd.f32 0.0, %v7759
      %7761 = vmatmul.f32.gmra.mxu0 %v7650
      %v7762 = vpop.f32.mrf.mxu0
      %v7763 = vadd.f32 0.0, %v7762
      %7764 = vmatmul.f32.gmra.mxu0 %v7653
      %v7765 = vpop.f32.mrf.mxu0
      %v7766 = vadd.f32 0.0, %v7765
      %7767 = vmatmul.f32.gmra.mxu0 %v7656
      %v7768 = vpop.f32.mrf.mxu0
      %v7769 = vadd.f32 0.0, %v7768
      %7770 = vmatmul.f32.gmra.mxu0 %v7659
      %v7771 = vpop.f32.mrf.mxu0
      %v7772 = vadd.f32 0.0, %v7771
      %7773 = vmatmul.f32.gmra.mxu0 %v7662
      %v7774 = vpop.f32.mrf.mxu0
      %v7775 = vadd.f32 0.0, %v7774
      %7776 = vmatmul.f32.gmra.mxu0 %v7665
      %v7777 = vpop.f32.mrf.mxu0
      %v7778 = vadd.f32 0.0, %v7777
      %7779 = vmatmul.f32.gmra.mxu0 %v7668
      %v7780 = vpop.f32.mrf.mxu0
      %v7781 = vadd.f32 0.0, %v7780
      %7782 = vmatmul.f32.gmra.mxu0 %v7671
      %v7783 = vpop.f32.mrf.mxu0
      %v7784 = vadd.f32 0.0, %v7783
      %7785 = vmatmul.f32.gmra.mxu0 %v7674
      %v7786 = vpop.f32.mrf.mxu0
      %v7787 = vadd.f32 0.0, %v7786
      %7788 = vmatmul.f32.gmra.mxu0 %v7677
      %v7789 = vpop.f32.mrf.mxu0
      %v7790 = vadd.f32 0.0, %v7789
      %7791 = vmatmul.f32.gmra.mxu0 %v7680
      %v7792 = vpop.f32.mrf.mxu0
      %v7793 = vadd.f32 0.0, %v7792
      %7794 = vmatmul.f32.gmra.mxu0 %v7683
      %v7795 = vpop.f32.mrf.mxu0
      %v7796 = vadd.f32 0.0, %v7795
      %7797 = vmatmul.f32.gmra.mxu0 %v7686
      %v7798 = vpop.f32.mrf.mxu0
      %v7799 = vadd.f32 0.0, %v7798
      %7800 = vmatmul.f32.gmra.mxu0 %v7689
      %v7801 = vpop.f32.mrf.mxu0
      %v7802 = vadd.f32 0.0, %v7801
      %7803 = vmatmul.f32.gmra.mxu0 %v7692
      %v7804 = vpop.f32.mrf.mxu0
      %v7805 = vadd.f32 0.0, %v7804
      %7806 = vmatmul.f32.gmra.mxu0 %v7695
      %v7807 = vpop.f32.mrf.mxu0
      %v7808 = vadd.f32 0.0, %v7807
      %7809 = vdwg.mxu0
      %v7810 = vadd.f32 %v7532, %v7715
      %v7811 = vadd.f32 %v7533, %v7718
      %v7812 = vadd.f32 %v7534, %v7721
      %v7813 = vadd.f32 %v7535, %v7724
      %v7814 = vadd.f32 %v7536, %v7727
      %v7815 = vadd.f32 %v7537, %v7730
      %v7816 = vadd.f32 %v7538, %v7733
      %v7817 = vadd.f32 %v7539, %v7736
      %v7818 = vadd.f32 %v7540, %v7739
      %v7819 = vadd.f32 %v7541, %v7742
      %v7820 = vadd.f32 %v7542, %v7745
      %v7821 = vadd.f32 %v7543, %v7748
      %v7822 = vadd.f32 %v7544, %v7751
      %v7823 = vadd.f32 %v7545, %v7754
      %v7824 = vadd.f32 %v7546, %v7757
      %v7825 = vadd.f32 %v7547, %v7760
      %v7826 = vadd.f32 %v7548, %v7763
      %v7827 = vadd.f32 %v7549, %v7766
      %v7828 = vadd.f32 %v7550, %v7769
      %v7829 = vadd.f32 %v7551, %v7772
      %v7830 = vadd.f32 %v7552, %v7775
      %v7831 = vadd.f32 %v7553, %v7778
      %v7832 = vadd.f32 %v7554, %v7781
      %v7833 = vadd.f32 %v7555, %v7784
      %v7834 = vadd.f32 %v7556, %v7787
      %v7835 = vadd.f32 %v7557, %v7790
      %v7836 = vadd.f32 %v7558, %v7793
      %v7837 = vadd.f32 %v7559, %v7796
      %v7838 = vadd.f32 %v7560, %v7799
      %v7839 = vadd.f32 %v7561, %v7802
      %v7840 = vadd.f32 %v7562, %v7805
      %v7841 = vadd.f32 %v7563, %v7808
      %v7842 = vld [vmem:[%s1950 + $0x2] sm:$0xff]
      %v7843 = vld [vmem:[%s1950 + $0xa] sm:$0xff]
      %v7844 = vld [vmem:[%s1950 + $0x1a] sm:$0xff]
      %v7845 = vld [vmem:[%s1950 + $0x22] sm:$0xff]
      %v7846 = vld [vmem:[%s1950 + $0x32] sm:$0xff]
      %v7847 = vld [vmem:[%s1950 + $0x3a] sm:$0xff]
      %v7848 = vld [vmem:[%s1950 + $0x4a] sm:$0xff]
      %v7849 = vld [vmem:[%s1950 + $0x52] sm:$0xff]
      %v7850 = vld [vmem:[%s1950 + $0x62] sm:$0xff]
      %v7851 = vld [vmem:[%s1950 + $0x6a] sm:$0xff]
      %v7852 = vld [vmem:[%s1950 + $0x7a] sm:$0xff]
      %v7853 = vld [vmem:[%s1950 + $0x82] sm:$0xff]
      %v7854 = vld [vmem:[%s1950 + $0x92] sm:$0xff]
      %v7855 = vld [vmem:[%s1950 + $0x9a] sm:$0xff]
      %v7856 = vld [vmem:[%s1950 + $0xaa] sm:$0xff]
      %v7857 = vld [vmem:[%s1950 + $0xb2] sm:$0xff]
      %v7858 = vld [vmem:[%s1950 + $0xc2] sm:$0xff]
      %v7859 = vld [vmem:[%s1950 + $0xca] sm:$0xff]
      %v7860 = vld [vmem:[%s1950 + $0xda] sm:$0xff]
      %v7861 = vld [vmem:[%s1950 + $0xe2] sm:$0xff]
      %v7862 = vld [vmem:[%s1950 + $0xf2] sm:$0xff]
      %v7863 = vld [vmem:[%s1950 + $0xfa] sm:$0xff]
      %v7864 = vld [vmem:[%s1950 + $0x10a] sm:$0xff]
      %v7865 = vld [vmem:[%s1950 + $0x112] sm:$0xff]
      %v7866 = vld [vmem:[%s1950 + $0x122] sm:$0xff]
      %v7867 = vld [vmem:[%s1950 + $0x12a] sm:$0xff]
      %v7868 = vld [vmem:[%s1950 + $0x13a] sm:$0xff]
      %v7869 = vld [vmem:[%s1950 + $0x142] sm:$0xff]
      %v7870 = vld [vmem:[%s1950 + $0x152] sm:$0xff]
      %v7871 = vld [vmem:[%s1950 + $0x15a] sm:$0xff]
      %v7872 = vld [vmem:[%s1950 + $0x16a] sm:$0xff]
      %v7873 = vld [vmem:[%s1950 + $0x172] sm:$0xff]
      %s7874 = scalar_lea.vmem %s1, 832
      %v7875 = vld [vmem:[%s7874] sm:$0xff]
      %v7876 = vld [vmem:[%s7874 + $0x8] sm:$0xff]
      %v7877 = vld [vmem:[%s7874 + $0x10] sm:$0xff]
      %v7878 = vld [vmem:[%s7874 + $0x18] sm:$0xff]
      %v7880 = vsel %vm225, %v7842, 0
      %v7883 = vsel %vm225, %v7843, 0
      %v7886 = vsel %vm225, %v7844, 0
      %v7889 = vsel %vm225, %v7845, 0
      %v7892 = vsel %vm225, %v7846, 0
      %v7895 = vsel %vm225, %v7847, 0
      %v7898 = vsel %vm225, %v7848, 0
      %v7901 = vsel %vm225, %v7849, 0
      %v7904 = vsel %vm225, %v7850, 0
      %v7907 = vsel %vm225, %v7851, 0
      %v7910 = vsel %vm225, %v7852, 0
      %v7913 = vsel %vm225, %v7853, 0
      %v7916 = vsel %vm225, %v7854, 0
      %v7919 = vsel %vm225, %v7855, 0
      %v7922 = vsel %vm225, %v7856, 0
      %v7925 = vsel %vm225, %v7857, 0
      %v7928 = vsel %vm225, %v7858, 0
      %v7931 = vsel %vm225, %v7859, 0
      %v7934 = vsel %vm225, %v7860, 0
      %v7937 = vsel %vm225, %v7861, 0
      %v7940 = vsel %vm225, %v7862, 0
      %v7943 = vsel %vm225, %v7863, 0
      %v7946 = vsel %vm225, %v7864, 0
      %v7949 = vsel %vm225, %v7865, 0
      %v7952 = vsel %vm225, %v7866, 0
      %v7955 = vsel %vm225, %v7867, 0
      %v7958 = vsel %vm225, %v7868, 0
      %v7961 = vsel %vm225, %v7869, 0
      %v7964 = vsel %vm225, %v7870, 0
      %v7967 = vsel %vm225, %v7871, 0
      %v7970 = vsel %vm225, %v7872, 0
      %v7973 = vsel %vm225, %v7873, 0
      %7975 = vmatpush.msra.mxu0 0.0
      %7976 = vmatpush.msra.mxu0 0.0
      %7977 = vmatpush.msra.mxu0 0.0
      %7978 = vmatpush.msra.mxu0 0.0
      %7979 = vmatpush.msra.mxu0 0.0
      %7980 = vmatpush.msra.mxu0 0.0
      %7981 = vmatpush.msra.mxu0 0.0
      %7982 = vmatpush.msra.mxu0 0.0
      %7983 = vmatpush.msra.mxu0 0.0
      %7984 = vmatpush.msra.mxu0 0.0
      %7985 = vmatpush.msra.mxu0 0.0
      %7986 = vmatpush.msra.mxu0 0.0
      %7987 = vmatpush.msra.mxu0 %v7878
      %7988 = vmatpush.msra.mxu0 %v7877
      %7989 = vmatpush.msra.mxu0 %v7876
      %7990 = vmatpush.msra.mxu0 %v7875
      %7991 = vmatmul.f32.gmra.mxu0 %v7880
      %v7992 = vpop.f32.mrf.mxu0
      %v7993 = vadd.f32 0.0, %v7992
      %7994 = vmatmul.f32.gmra.mxu0 %v7883
      %v7995 = vpop.f32.mrf.mxu0
      %v7996 = vadd.f32 0.0, %v7995
      %7997 = vmatmul.f32.gmra.mxu0 %v7886
      %v7998 = vpop.f32.mrf.mxu0
      %v7999 = vadd.f32 0.0, %v7998
      %8000 = vmatmul.f32.gmra.mxu0 %v7889
      %v8001 = vpop.f32.mrf.mxu0
      %v8002 = vadd.f32 0.0, %v8001
      %8003 = vmatmul.f32.gmra.mxu0 %v7892
      %v8004 = vpop.f32.mrf.mxu0
      %v8005 = vadd.f32 0.0, %v8004
      %8006 = vmatmul.f32.gmra.mxu0 %v7895
      %v8007 = vpop.f32.mrf.mxu0
      %v8008 = vadd.f32 0.0, %v8007
      %8009 = vmatmul.f32.gmra.mxu0 %v7898
      %v8010 = vpop.f32.mrf.mxu0
      %v8011 = vadd.f32 0.0, %v8010
      %8012 = vmatmul.f32.gmra.mxu0 %v7901
      %v8013 = vpop.f32.mrf.mxu0
      %v8014 = vadd.f32 0.0, %v8013
      %8015 = vmatmul.f32.gmra.mxu0 %v7904
      %v8016 = vpop.f32.mrf.mxu0
      %v8017 = vadd.f32 0.0, %v8016
      %8018 = vmatmul.f32.gmra.mxu0 %v7907
      %v8019 = vpop.f32.mrf.mxu0
      %v8020 = vadd.f32 0.0, %v8019
      %8021 = vmatmul.f32.gmra.mxu0 %v7910
      %v8022 = vpop.f32.mrf.mxu0
      %v8023 = vadd.f32 0.0, %v8022
      %8024 = vmatmul.f32.gmra.mxu0 %v7913
      %v8025 = vpop.f32.mrf.mxu0
      %v8026 = vadd.f32 0.0, %v8025
      %8027 = vmatmul.f32.gmra.mxu0 %v7916
      %v8028 = vpop.f32.mrf.mxu0
      %v8029 = vadd.f32 0.0, %v8028
      %8030 = vmatmul.f32.gmra.mxu0 %v7919
      %v8031 = vpop.f32.mrf.mxu0
      %v8032 = vadd.f32 0.0, %v8031
      %8033 = vmatmul.f32.gmra.mxu0 %v7922
      %v8034 = vpop.f32.mrf.mxu0
      %v8035 = vadd.f32 0.0, %v8034
      %8036 = vmatmul.f32.gmra.mxu0 %v7925
      %v8037 = vpop.f32.mrf.mxu0
      %v8038 = vadd.f32 0.0, %v8037
      %8039 = vmatmul.f32.gmra.mxu0 %v7928
      %v8040 = vpop.f32.mrf.mxu0
      %v8041 = vadd.f32 0.0, %v8040
      %8042 = vmatmul.f32.gmra.mxu0 %v7931
      %v8043 = vpop.f32.mrf.mxu0
      %v8044 = vadd.f32 0.0, %v8043
      %8045 = vmatmul.f32.gmra.mxu0 %v7934
      %v8046 = vpop.f32.mrf.mxu0
      %v8047 = vadd.f32 0.0, %v8046
      %8048 = vmatmul.f32.gmra.mxu0 %v7937
      %v8049 = vpop.f32.mrf.mxu0
      %v8050 = vadd.f32 0.0, %v8049
      %8051 = vmatmul.f32.gmra.mxu0 %v7940
      %v8052 = vpop.f32.mrf.mxu0
      %v8053 = vadd.f32 0.0, %v8052
      %8054 = vmatmul.f32.gmra.mxu0 %v7943
      %v8055 = vpop.f32.mrf.mxu0
      %v8056 = vadd.f32 0.0, %v8055
      %8057 = vmatmul.f32.gmra.mxu0 %v7946
      %v8058 = vpop.f32.mrf.mxu0
      %v8059 = vadd.f32 0.0, %v8058
      %8060 = vmatmul.f32.gmra.mxu0 %v7949
      %v8061 = vpop.f32.mrf.mxu0
      %v8062 = vadd.f32 0.0, %v8061
      %8063 = vmatmul.f32.gmra.mxu0 %v7952
      %v8064 = vpop.f32.mrf.mxu0
      %v8065 = vadd.f32 0.0, %v8064
      %8066 = vmatmul.f32.gmra.mxu0 %v7955
      %v8067 = vpop.f32.mrf.mxu0
      %v8068 = vadd.f32 0.0, %v8067
      %8069 = vmatmul.f32.gmra.mxu0 %v7958
      %v8070 = vpop.f32.mrf.mxu0
      %v8071 = vadd.f32 0.0, %v8070
      %8072 = vmatmul.f32.gmra.mxu0 %v7961
      %v8073 = vpop.f32.mrf.mxu0
      %v8074 = vadd.f32 0.0, %v8073
      %8075 = vmatmul.f32.gmra.mxu0 %v7964
      %v8076 = vpop.f32.mrf.mxu0
      %v8077 = vadd.f32 0.0, %v8076
      %8078 = vmatmul.f32.gmra.mxu0 %v7967
      %v8079 = vpop.f32.mrf.mxu0
      %v8080 = vadd.f32 0.0, %v8079
      %8081 = vmatmul.f32.gmra.mxu0 %v7970
      %v8082 = vpop.f32.mrf.mxu0
      %v8083 = vadd.f32 0.0, %v8082
      %8084 = vmatmul.f32.gmra.mxu0 %v7973
      %v8085 = vpop.f32.mrf.mxu0
      %v8086 = vadd.f32 0.0, %v8085
      %8087 = vdwg.mxu0
      %v8088 = vadd.f32 %v7810, %v7993
      %v8089 = vadd.f32 %v7811, %v7996
      %v8090 = vadd.f32 %v7812, %v7999
      %v8091 = vadd.f32 %v7813, %v8002
      %v8092 = vadd.f32 %v7814, %v8005
      %v8093 = vadd.f32 %v7815, %v8008
      %v8094 = vadd.f32 %v7816, %v8011
      %v8095 = vadd.f32 %v7817, %v8014
      %v8096 = vadd.f32 %v7818, %v8017
      %v8097 = vadd.f32 %v7819, %v8020
      %v8098 = vadd.f32 %v7820, %v8023
      %v8099 = vadd.f32 %v7821, %v8026
      %v8100 = vadd.f32 %v7822, %v8029
      %v8101 = vadd.f32 %v7823, %v8032
      %v8102 = vadd.f32 %v7824, %v8035
      %v8103 = vadd.f32 %v7825, %v8038
      %v8104 = vadd.f32 %v7826, %v8041
      %v8105 = vadd.f32 %v7827, %v8044
      %v8106 = vadd.f32 %v7828, %v8047
      %v8107 = vadd.f32 %v7829, %v8050
      %v8108 = vadd.f32 %v7830, %v8053
      %v8109 = vadd.f32 %v7831, %v8056
      %v8110 = vadd.f32 %v7832, %v8059
      %v8111 = vadd.f32 %v7833, %v8062
      %v8112 = vadd.f32 %v7834, %v8065
      %v8113 = vadd.f32 %v7835, %v8068
      %v8114 = vadd.f32 %v7836, %v8071
      %v8115 = vadd.f32 %v7837, %v8074
      %v8116 = vadd.f32 %v7838, %v8077
      %v8117 = vadd.f32 %v7839, %v8080
      %v8118 = vadd.f32 %v7840, %v8083
      %v8119 = vadd.f32 %v7841, %v8086
      %s8120 = scalar_lea.vmem %s2, 2
      %v8121 = vld [vmem:[%s8120] sm:$0x1]
      %v8123 = vperm.slane %v8121, 0
      %v8125 = vadd.f32 %v8088, %v8123
      %v8126 = vadd.f32 %v8089, %v8123
      %v8127 = vadd.f32 %v8090, %v8123
      %v8128 = vadd.f32 %v8091, %v8123
      %v8129 = vadd.f32 %v8092, %v8123
      %v8130 = vadd.f32 %v8093, %v8123
      %v8131 = vadd.f32 %v8094, %v8123
      %v8132 = vadd.f32 %v8095, %v8123
      %v8133 = vadd.f32 %v8096, %v8123
      %v8134 = vadd.f32 %v8097, %v8123
      %v8135 = vadd.f32 %v8098, %v8123
      %v8136 = vadd.f32 %v8099, %v8123
      %v8137 = vadd.f32 %v8100, %v8123
      %v8138 = vadd.f32 %v8101, %v8123
      %v8139 = vadd.f32 %v8102, %v8123
      %v8140 = vadd.f32 %v8103, %v8123
      %v8141 = vadd.f32 %v8104, %v8123
      %v8142 = vadd.f32 %v8105, %v8123
      %v8143 = vadd.f32 %v8106, %v8123
      %v8144 = vadd.f32 %v8107, %v8123
      %v8145 = vadd.f32 %v8108, %v8123
      %v8146 = vadd.f32 %v8109, %v8123
      %v8147 = vadd.f32 %v8110, %v8123
      %v8148 = vadd.f32 %v8111, %v8123
      %v8149 = vadd.f32 %v8112, %v8123
      %v8150 = vadd.f32 %v8113, %v8123
      %v8151 = vadd.f32 %v8114, %v8123
      %v8152 = vadd.f32 %v8115, %v8123
      %v8153 = vadd.f32 %v8116, %v8123
      %v8154 = vadd.f32 %v8117, %v8123
      %v8155 = vadd.f32 %v8118, %v8123
      %v8156 = vadd.f32 %v8119, %v8123
      %v8157 = vmax.f32 %v8125, 0.0
      %v8158 = vmax.f32 %v8126, 0.0
      %v8159 = vmax.f32 %v8127, 0.0
      %v8160 = vmax.f32 %v8128, 0.0
      %v8161 = vmax.f32 %v8129, 0.0
      %v8162 = vmax.f32 %v8130, 0.0
      %v8163 = vmax.f32 %v8131, 0.0
      %v8164 = vmax.f32 %v8132, 0.0
      %v8165 = vmax.f32 %v8133, 0.0
      %v8166 = vmax.f32 %v8134, 0.0
      %v8167 = vmax.f32 %v8135, 0.0
      %v8168 = vmax.f32 %v8136, 0.0
      %v8169 = vmax.f32 %v8137, 0.0
      %v8170 = vmax.f32 %v8138, 0.0
      %v8171 = vmax.f32 %v8139, 0.0
      %v8172 = vmax.f32 %v8140, 0.0
      %v8173 = vmax.f32 %v8141, 0.0
      %v8174 = vmax.f32 %v8142, 0.0
      %v8175 = vmax.f32 %v8143, 0.0
      %v8176 = vmax.f32 %v8144, 0.0
      %v8177 = vmax.f32 %v8145, 0.0
      %v8178 = vmax.f32 %v8146, 0.0
      %v8179 = vmax.f32 %v8147, 0.0
      %v8180 = vmax.f32 %v8148, 0.0
      %v8181 = vmax.f32 %v8149, 0.0
      %v8182 = vmax.f32 %v8150, 0.0
      %v8183 = vmax.f32 %v8151, 0.0
      %v8184 = vmax.f32 %v8152, 0.0
      %v8185 = vmax.f32 %v8153, 0.0
      %v8186 = vmax.f32 %v8154, 0.0
      %v8187 = vmax.f32 %v8155, 0.0
      %v8188 = vmax.f32 %v8156, 0.0
      %8221 = vrot.lane.b32.xlu0 %v8157, 24
      %v8222 = vpop.permute.xlu0 %8221
      %8223 = vrot.lane.b32.xlu0 %v8158, 24
      %v8224 = vpop.permute.xlu0 %8223
      %8225 = vrot.lane.b32.xlu0 %v8159, 24
      %v8226 = vpop.permute.xlu0 %8225
      %8227 = vrot.lane.b32.xlu0 %v8160, 24
      %v8228 = vpop.permute.xlu0 %8227
      %8229 = vrot.lane.b32.xlu0 %v8161, 24
      %v8230 = vpop.permute.xlu0 %8229
      %8231 = vrot.lane.b32.xlu0 %v8162, 24
      %v8232 = vpop.permute.xlu0 %8231
      %8233 = vrot.lane.b32.xlu0 %v8163, 24
      %v8234 = vpop.permute.xlu0 %8233
      %8235 = vrot.lane.b32.xlu0 %v8164, 24
      %v8236 = vpop.permute.xlu0 %8235
      %8237 = vrot.lane.b32.xlu0 %v8165, 24
      %v8238 = vpop.permute.xlu0 %8237
      %8239 = vrot.lane.b32.xlu0 %v8166, 24
      %v8240 = vpop.permute.xlu0 %8239
      %8241 = vrot.lane.b32.xlu0 %v8167, 24
      %v8242 = vpop.permute.xlu0 %8241
      %8243 = vrot.lane.b32.xlu0 %v8168, 24
      %v8244 = vpop.permute.xlu0 %8243
      %8245 = vrot.lane.b32.xlu0 %v8169, 24
      %v8246 = vpop.permute.xlu0 %8245
      %8247 = vrot.lane.b32.xlu0 %v8170, 24
      %v8248 = vpop.permute.xlu0 %8247
      %8249 = vrot.lane.b32.xlu0 %v8171, 24
      %v8250 = vpop.permute.xlu0 %8249
      %8251 = vrot.lane.b32.xlu0 %v8172, 24
      %v8252 = vpop.permute.xlu0 %8251
      %8253 = vrot.lane.b32.xlu0 %v8173, 24
      %v8254 = vpop.permute.xlu0 %8253
      %8255 = vrot.lane.b32.xlu0 %v8174, 24
      %v8256 = vpop.permute.xlu0 %8255
      %8257 = vrot.lane.b32.xlu0 %v8175, 24
      %v8258 = vpop.permute.xlu0 %8257
      %8259 = vrot.lane.b32.xlu0 %v8176, 24
      %v8260 = vpop.permute.xlu0 %8259
      %8261 = vrot.lane.b32.xlu0 %v8177, 24
      %v8262 = vpop.permute.xlu0 %8261
      %8263 = vrot.lane.b32.xlu0 %v8178, 24
      %v8264 = vpop.permute.xlu0 %8263
      %8265 = vrot.lane.b32.xlu0 %v8179, 24
      %v8266 = vpop.permute.xlu0 %8265
      %8267 = vrot.lane.b32.xlu0 %v8180, 24
      %v8268 = vpop.permute.xlu0 %8267
      %8269 = vrot.lane.b32.xlu0 %v8181, 24
      %v8270 = vpop.permute.xlu0 %8269
      %8271 = vrot.lane.b32.xlu0 %v8182, 24
      %v8272 = vpop.permute.xlu0 %8271
      %8273 = vrot.lane.b32.xlu0 %v8183, 24
      %v8274 = vpop.permute.xlu0 %8273
      %8275 = vrot.lane.b32.xlu0 %v8184, 24
      %v8276 = vpop.permute.xlu0 %8275
      %8277 = vrot.lane.b32.xlu0 %v8185, 24
      %v8278 = vpop.permute.xlu0 %8277
      %8279 = vrot.lane.b32.xlu0 %v8186, 24
      %v8280 = vpop.permute.xlu0 %8279
      %8281 = vrot.lane.b32.xlu0 %v8187, 24
      %v8282 = vpop.permute.xlu0 %8281
      %8283 = vrot.lane.b32.xlu0 %v8188, 24
      %v8284 = vpop.permute.xlu0 %8283
      %vm8317 = vcmask 261312
      %8318 = vst.msk [vmem:[%s313 + $0x1] sm:$0xff] %vm8317, %v8222
      %8319 = vst.msk [vmem:[%s313 + $0x9] sm:$0xff] %vm8317, %v8224
      %8320 = vst.msk [vmem:[%s313 + $0x19] sm:$0xff] %vm8317, %v8226
      %8321 = vst.msk [vmem:[%s313 + $0x21] sm:$0xff] %vm8317, %v8228
      %8322 = vst.msk [vmem:[%s313 + $0x31] sm:$0xff] %vm8317, %v8230
      %8323 = vst.msk [vmem:[%s313 + $0x39] sm:$0xff] %vm8317, %v8232
      %8324 = vst.msk [vmem:[%s313 + $0x49] sm:$0xff] %vm8317, %v8234
      %8325 = vst.msk [vmem:[%s313 + $0x51] sm:$0xff] %vm8317, %v8236
      %8326 = vst.msk [vmem:[%s313 + $0x61] sm:$0xff] %vm8317, %v8238
      %8327 = vst.msk [vmem:[%s313 + $0x69] sm:$0xff] %vm8317, %v8240
      %8328 = vst.msk [vmem:[%s313 + $0x79] sm:$0xff] %vm8317, %v8242
      %8329 = vst.msk [vmem:[%s313 + $0x81] sm:$0xff] %vm8317, %v8244
      %8330 = vst.msk [vmem:[%s313 + $0x91] sm:$0xff] %vm8317, %v8246
      %8331 = vst.msk [vmem:[%s313 + $0x99] sm:$0xff] %vm8317, %v8248
      %8332 = vst.msk [vmem:[%s313 + $0xa9] sm:$0xff] %vm8317, %v8250
      %8333 = vst.msk [vmem:[%s313 + $0xb1] sm:$0xff] %vm8317, %v8252
      %8334 = vst.msk [vmem:[%s313 + $0xc1] sm:$0xff] %vm8317, %v8254
      %8335 = vst.msk [vmem:[%s313 + $0xc9] sm:$0xff] %vm8317, %v8256
      %8336 = vst.msk [vmem:[%s313 + $0xd9] sm:$0xff] %vm8317, %v8258
      %8337 = vst.msk [vmem:[%s313 + $0xe1] sm:$0xff] %vm8317, %v8260
      %8338 = vst.msk [vmem:[%s313 + $0xf1] sm:$0xff] %vm8317, %v8262
      %8339 = vst.msk [vmem:[%s313 + $0xf9] sm:$0xff] %vm8317, %v8264
      %8340 = vst.msk [vmem:[%s313 + $0x109] sm:$0xff] %vm8317, %v8266
      %8341 = vst.msk [vmem:[%s313 + $0x111] sm:$0xff] %vm8317, %v8268
      %8342 = vst.msk [vmem:[%s313 + $0x121] sm:$0xff] %vm8317, %v8270
      %8343 = vst.msk [vmem:[%s313 + $0x129] sm:$0xff] %vm8317, %v8272
      %8344 = vst.msk [vmem:[%s313 + $0x139] sm:$0xff] %vm8317, %v8274
      %8345 = vst.msk [vmem:[%s313 + $0x141] sm:$0xff] %vm8317, %v8276
      %8346 = vst.msk [vmem:[%s313 + $0x151] sm:$0xff] %vm8317, %v8278
      %8347 = vst.msk [vmem:[%s313 + $0x159] sm:$0xff] %vm8317, %v8280
      %8348 = vst.msk [vmem:[%s313 + $0x169] sm:$0xff] %vm8317, %v8282
      %8349 = vst.msk [vmem:[%s313 + $0x171] sm:$0xff] %vm8317, %v8284
      %v8350 = vld [vmem:[%s313 + $0x1] sm:$0xff]
      %v8351 = vld [vmem:[%s313 + $0x9] sm:$0xff]
      %v8352 = vld [vmem:[%s313 + $0x19] sm:$0xff]
      %v8353 = vld [vmem:[%s313 + $0x21] sm:$0xff]
      %v8354 = vld [vmem:[%s313 + $0x31] sm:$0xff]
      %v8355 = vld [vmem:[%s313 + $0x39] sm:$0xff]
      %v8356 = vld [vmem:[%s313 + $0x49] sm:$0xff]
      %v8357 = vld [vmem:[%s313 + $0x51] sm:$0xff]
      %v8358 = vld [vmem:[%s313 + $0x61] sm:$0xff]
      %v8359 = vld [vmem:[%s313 + $0x69] sm:$0xff]
      %v8360 = vld [vmem:[%s313 + $0x79] sm:$0xff]
      %v8361 = vld [vmem:[%s313 + $0x81] sm:$0xff]
      %v8362 = vld [vmem:[%s313 + $0x91] sm:$0xff]
      %v8363 = vld [vmem:[%s313 + $0x99] sm:$0xff]
      %v8364 = vld [vmem:[%s313 + $0xa9] sm:$0xff]
      %v8365 = vld [vmem:[%s313 + $0xb1] sm:$0xff]
      %v8366 = vld [vmem:[%s313 + $0xc1] sm:$0xff]
      %v8367 = vld [vmem:[%s313 + $0xc9] sm:$0xff]
      %v8368 = vld [vmem:[%s313 + $0xd9] sm:$0xff]
      %v8369 = vld [vmem:[%s313 + $0xe1] sm:$0xff]
      %v8370 = vld [vmem:[%s313 + $0xf1] sm:$0xff]
      %v8371 = vld [vmem:[%s313 + $0xf9] sm:$0xff]
      %v8372 = vld [vmem:[%s313 + $0x109] sm:$0xff]
      %v8373 = vld [vmem:[%s313 + $0x111] sm:$0xff]
      %v8374 = vld [vmem:[%s313 + $0x121] sm:$0xff]
      %v8375 = vld [vmem:[%s313 + $0x129] sm:$0xff]
      %v8376 = vld [vmem:[%s313 + $0x139] sm:$0xff]
      %v8377 = vld [vmem:[%s313 + $0x141] sm:$0xff]
      %v8378 = vld [vmem:[%s313 + $0x151] sm:$0xff]
      %v8379 = vld [vmem:[%s313 + $0x159] sm:$0xff]
      %v8380 = vld [vmem:[%s313 + $0x169] sm:$0xff]
      %v8381 = vld [vmem:[%s313 + $0x171] sm:$0xff]
      %v8382 = vld [vmem:[%s3] sm:$0xff]
      %v8383 = vld [vmem:[%s3 + $0x8] sm:$0xff]
      %v8384 = vld [vmem:[%s3 + $0x10] sm:$0xff]
      %v8385 = vld [vmem:[%s3 + $0x18] sm:$0xff]
      %v8386 = vld [vmem:[%s4] sm:$0x1]
      %v8388 = vperm.slane %v8386, 0
      %v8391 = vsel %vm225, %v8350, 0
      %v8394 = vsel %vm225, %v8351, 0
      %v8397 = vsel %vm225, %v8352, 0
      %v8400 = vsel %vm225, %v8353, 0
      %v8403 = vsel %vm225, %v8354, 0
      %v8406 = vsel %vm225, %v8355, 0
      %v8409 = vsel %vm225, %v8356, 0
      %v8412 = vsel %vm225, %v8357, 0
      %v8415 = vsel %vm225, %v8358, 0
      %v8418 = vsel %vm225, %v8359, 0
      %v8421 = vsel %vm225, %v8360, 0
      %v8424 = vsel %vm225, %v8361, 0
      %v8427 = vsel %vm225, %v8362, 0
      %v8430 = vsel %vm225, %v8363, 0
      %v8433 = vsel %vm225, %v8364, 0
      %v8436 = vsel %vm225, %v8365, 0
      %v8439 = vsel %vm225, %v8366, 0
      %v8442 = vsel %vm225, %v8367, 0
      %v8445 = vsel %vm225, %v8368, 0
      %v8448 = vsel %vm225, %v8369, 0
      %v8451 = vsel %vm225, %v8370, 0
      %v8454 = vsel %vm225, %v8371, 0
      %v8457 = vsel %vm225, %v8372, 0
      %v8460 = vsel %vm225, %v8373, 0
      %v8463 = vsel %vm225, %v8374, 0
      %v8466 = vsel %vm225, %v8375, 0
      %v8469 = vsel %vm225, %v8376, 0
      %v8472 = vsel %vm225, %v8377, 0
      %v8475 = vsel %vm225, %v8378, 0
      %v8478 = vsel %vm225, %v8379, 0
      %v8481 = vsel %vm225, %v8380, 0
      %v8484 = vsel %vm225, %v8381, 0
      %8486 = vmatpush.msra.mxu0 0.0
      %8487 = vmatpush.msra.mxu0 0.0
      %8488 = vmatpush.msra.mxu0 0.0
      %8489 = vmatpush.msra.mxu0 0.0
      %8490 = vmatpush.msra.mxu0 0.0
      %8491 = vmatpush.msra.mxu0 0.0
      %8492 = vmatpush.msra.mxu0 0.0
      %8493 = vmatpush.msra.mxu0 0.0
      %8494 = vmatpush.msra.mxu0 0.0
      %8495 = vmatpush.msra.mxu0 0.0
      %8496 = vmatpush.msra.mxu0 0.0
      %8497 = vmatpush.msra.mxu0 0.0
      %8498 = vmatpush.msra.mxu0 %v8385
      %8499 = vmatpush.msra.mxu0 %v8384
      %8500 = vmatpush.msra.mxu0 %v8383
      %8501 = vmatpush.msra.mxu0 %v8382
      %8502 = vmatmul.f32.gmra.mxu0 %v8391
      %v8503 = vpop.f32.mrf.mxu0
      %v8504 = vadd.f32 %v8388, %v8503
      %8505 = vmatmul.f32.gmra.mxu0 %v8394
      %v8506 = vpop.f32.mrf.mxu0
      %v8507 = vadd.f32 %v8388, %v8506
      %8508 = vmatmul.f32.gmra.mxu0 %v8397
      %v8509 = vpop.f32.mrf.mxu0
      %v8510 = vadd.f32 %v8388, %v8509
      %8511 = vmatmul.f32.gmra.mxu0 %v8400
      %v8512 = vpop.f32.mrf.mxu0
      %v8513 = vadd.f32 %v8388, %v8512
      %8514 = vmatmul.f32.gmra.mxu0 %v8403
      %v8515 = vpop.f32.mrf.mxu0
      %v8516 = vadd.f32 %v8388, %v8515
      %8517 = vmatmul.f32.gmra.mxu0 %v8406
      %v8518 = vpop.f32.mrf.mxu0
      %v8519 = vadd.f32 %v8388, %v8518
      %8520 = vmatmul.f32.gmra.mxu0 %v8409
      %v8521 = vpop.f32.mrf.mxu0
      %v8522 = vadd.f32 %v8388, %v8521
      %8523 = vmatmul.f32.gmra.mxu0 %v8412
      %v8524 = vpop.f32.mrf.mxu0
      %v8525 = vadd.f32 %v8388, %v8524
      %8526 = vmatmul.f32.gmra.mxu0 %v8415
      %v8527 = vpop.f32.mrf.mxu0
      %v8528 = vadd.f32 %v8388, %v8527
      %8529 = vmatmul.f32.gmra.mxu0 %v8418
      %v8530 = vpop.f32.mrf.mxu0
      %v8531 = vadd.f32 %v8388, %v8530
      %8532 = vmatmul.f32.gmra.mxu0 %v8421
      %v8533 = vpop.f32.mrf.mxu0
      %v8534 = vadd.f32 %v8388, %v8533
      %8535 = vmatmul.f32.gmra.mxu0 %v8424
      %v8536 = vpop.f32.mrf.mxu0
      %v8537 = vadd.f32 %v8388, %v8536
      %8538 = vmatmul.f32.gmra.mxu0 %v8427
      %v8539 = vpop.f32.mrf.mxu0
      %v8540 = vadd.f32 %v8388, %v8539
      %8541 = vmatmul.f32.gmra.mxu0 %v8430
      %v8542 = vpop.f32.mrf.mxu0
      %v8543 = vadd.f32 %v8388, %v8542
      %8544 = vmatmul.f32.gmra.mxu0 %v8433
      %v8545 = vpop.f32.mrf.mxu0
      %v8546 = vadd.f32 %v8388, %v8545
      %8547 = vmatmul.f32.gmra.mxu0 %v8436
      %v8548 = vpop.f32.mrf.mxu0
      %v8549 = vadd.f32 %v8388, %v8548
      %8550 = vmatmul.f32.gmra.mxu0 %v8439
      %v8551 = vpop.f32.mrf.mxu0
      %v8552 = vadd.f32 %v8388, %v8551
      %8553 = vmatmul.f32.gmra.mxu0 %v8442
      %v8554 = vpop.f32.mrf.mxu0
      %v8555 = vadd.f32 %v8388, %v8554
      %8556 = vmatmul.f32.gmra.mxu0 %v8445
      %v8557 = vpop.f32.mrf.mxu0
      %v8558 = vadd.f32 %v8388, %v8557
      %8559 = vmatmul.f32.gmra.mxu0 %v8448
      %v8560 = vpop.f32.mrf.mxu0
      %v8561 = vadd.f32 %v8388, %v8560
      %8562 = vmatmul.f32.gmra.mxu0 %v8451
      %v8563 = vpop.f32.mrf.mxu0
      %v8564 = vadd.f32 %v8388, %v8563
      %8565 = vmatmul.f32.gmra.mxu0 %v8454
      %v8566 = vpop.f32.mrf.mxu0
      %v8567 = vadd.f32 %v8388, %v8566
      %8568 = vmatmul.f32.gmra.mxu0 %v8457
      %v8569 = vpop.f32.mrf.mxu0
      %v8570 = vadd.f32 %v8388, %v8569
      %8571 = vmatmul.f32.gmra.mxu0 %v8460
      %v8572 = vpop.f32.mrf.mxu0
      %v8573 = vadd.f32 %v8388, %v8572
      %8574 = vmatmul.f32.gmra.mxu0 %v8463
      %v8575 = vpop.f32.mrf.mxu0
      %v8576 = vadd.f32 %v8388, %v8575
      %8577 = vmatmul.f32.gmra.mxu0 %v8466
      %v8578 = vpop.f32.mrf.mxu0
      %v8579 = vadd.f32 %v8388, %v8578
      %8580 = vmatmul.f32.gmra.mxu0 %v8469
      %v8581 = vpop.f32.mrf.mxu0
      %v8582 = vadd.f32 %v8388, %v8581
      %8583 = vmatmul.f32.gmra.mxu0 %v8472
      %v8584 = vpop.f32.mrf.mxu0
      %v8585 = vadd.f32 %v8388, %v8584
      %8586 = vmatmul.f32.gmra.mxu0 %v8475
      %v8587 = vpop.f32.mrf.mxu0
      %v8588 = vadd.f32 %v8388, %v8587
      %8589 = vmatmul.f32.gmra.mxu0 %v8478
      %v8590 = vpop.f32.mrf.mxu0
      %v8591 = vadd.f32 %v8388, %v8590
      %8592 = vmatmul.f32.gmra.mxu0 %v8481
      %v8593 = vpop.f32.mrf.mxu0
      %v8594 = vadd.f32 %v8388, %v8593
      %8595 = vmatmul.f32.gmra.mxu0 %v8484
      %v8596 = vpop.f32.mrf.mxu0
      %v8597 = vadd.f32 %v8388, %v8596
      %8598 = vdwg.mxu0
      %v8599 = vadd.f32 %v8504, %v8350
      %v8600 = vadd.f32 %v8507, %v8351
      %v8601 = vadd.f32 %v8510, %v8352
      %v8602 = vadd.f32 %v8513, %v8353
      %v8603 = vadd.f32 %v8516, %v8354
      %v8604 = vadd.f32 %v8519, %v8355
      %v8605 = vadd.f32 %v8522, %v8356
      %v8606 = vadd.f32 %v8525, %v8357
      %v8607 = vadd.f32 %v8528, %v8358
      %v8608 = vadd.f32 %v8531, %v8359
      %v8609 = vadd.f32 %v8534, %v8360
      %v8610 = vadd.f32 %v8537, %v8361
      %v8611 = vadd.f32 %v8540, %v8362
      %v8612 = vadd.f32 %v8543, %v8363
      %v8613 = vadd.f32 %v8546, %v8364
      %v8614 = vadd.f32 %v8549, %v8365
      %v8615 = vadd.f32 %v8552, %v8366
      %v8616 = vadd.f32 %v8555, %v8367
      %v8617 = vadd.f32 %v8558, %v8368
      %v8618 = vadd.f32 %v8561, %v8369
      %v8619 = vadd.f32 %v8564, %v8370
      %v8620 = vadd.f32 %v8567, %v8371
      %v8621 = vadd.f32 %v8570, %v8372
      %v8622 = vadd.f32 %v8573, %v8373
      %v8623 = vadd.f32 %v8576, %v8374
      %v8624 = vadd.f32 %v8579, %v8375
      %v8625 = vadd.f32 %v8582, %v8376
      %v8626 = vadd.f32 %v8585, %v8377
      %v8627 = vadd.f32 %v8588, %v8378
      %v8628 = vadd.f32 %v8591, %v8379
      %v8629 = vadd.f32 %v8594, %v8380
      %v8630 = vadd.f32 %v8597, %v8381
      %8631 = vst.msk [vmem:[%s224] sm:$0xff] %vm314, %v8599
      %8632 = vst.msk [vmem:[%s224 + $0x8] sm:$0xff] %vm314, %v8600
      %8633 = vst.msk [vmem:[%s224 + $0x10] sm:$0xff] %vm314, %v8601
      %8634 = vst.msk [vmem:[%s224 + $0x18] sm:$0xff] %vm314, %v8602
      %8635 = vst.msk [vmem:[%s224 + $0x20] sm:$0xff] %vm314, %v8603
      %8636 = vst.msk [vmem:[%s224 + $0x28] sm:$0xff] %vm314, %v8604
      %8637 = vst.msk [vmem:[%s224 + $0x30] sm:$0xff] %vm314, %v8605
      %8638 = vst.msk [vmem:[%s224 + $0x38] sm:$0xff] %vm314, %v8606
      %8639 = vst.msk [vmem:[%s224 + $0x40] sm:$0xff] %vm314, %v8607
      %8640 = vst.msk [vmem:[%s224 + $0x48] sm:$0xff] %vm314, %v8608
      %8641 = vst.msk [vmem:[%s224 + $0x50] sm:$0xff] %vm314, %v8609
      %8642 = vst.msk [vmem:[%s224 + $0x58] sm:$0xff] %vm314, %v8610
      %8643 = vst.msk [vmem:[%s224 + $0x60] sm:$0xff] %vm314, %v8611
      %8644 = vst.msk [vmem:[%s224 + $0x68] sm:$0xff] %vm314, %v8612
      %8645 = vst.msk [vmem:[%s224 + $0x70] sm:$0xff] %vm314, %v8613
      %8646 = vst.msk [vmem:[%s224 + $0x78] sm:$0xff] %vm314, %v8614
      %8647 = vst.msk [vmem:[%s224 + $0x80] sm:$0xff] %vm314, %v8615
      %8648 = vst.msk [vmem:[%s224 + $0x88] sm:$0xff] %vm314, %v8616
      %8649 = vst.msk [vmem:[%s224 + $0x90] sm:$0xff] %vm314, %v8617
      %8650 = vst.msk [vmem:[%s224 + $0x98] sm:$0xff] %vm314, %v8618
      %8651 = vst.msk [vmem:[%s224 + $0xa0] sm:$0xff] %vm314, %v8619
      %8652 = vst.msk [vmem:[%s224 + $0xa8] sm:$0xff] %vm314, %v8620
      %8653 = vst.msk [vmem:[%s224 + $0xb0] sm:$0xff] %vm314, %v8621
      %8654 = vst.msk [vmem:[%s224 + $0xb8] sm:$0xff] %vm314, %v8622
      %8655 = vst.msk [vmem:[%s224 + $0xc0] sm:$0xff] %vm314, %v8623
      %8656 = vst.msk [vmem:[%s224 + $0xc8] sm:$0xff] %vm314, %v8624
      %8657 = vst.msk [vmem:[%s224 + $0xd0] sm:$0xff] %vm314, %v8625
      %8658 = vst.msk [vmem:[%s224 + $0xd8] sm:$0xff] %vm314, %v8626
      %8659 = vst.msk [vmem:[%s224 + $0xe0] sm:$0xff] %vm314, %v8627
      %8660 = vst.msk [vmem:[%s224 + $0xe8] sm:$0xff] %vm314, %v8628
      %8661 = vst.msk [vmem:[%s224 + $0xf0] sm:$0xff] %vm314, %v8629
      %8662 = vst.msk [vmem:[%s224 + $0xf8] sm:$0xff] %vm314, %v8630
      %p8663 = scmp.lt.s32.totalorder %s16, 1
      %s8664 = scalar_select %p8663, %s16, 1
      %s8665 = smul.addr %s8664, 32
      %s8666 = smul.addr %s8665, 8
      %s8667 = scalar_lea.vmem %s5, %s8666
      // Predicated region
      $region41: #{rdb_forward.1} parent=39 // pred_check
        %p8668 = pneg %p144
      $region42: #{rdb_forward.1} parent=39 // pred_check_branch
        %8670 = sbr.rel (%p8668) target = $region44
      $region43: #{rdb_forward.1} parent=39 // pred_region
        _
      $region44: #{rdb_forward.1} parent=39 // pred_fallthru
        _
    $region40: #{rdb_forward.1} parent=5 // pred_fallthru
      _
    %p8671 = scmp.le.s32.totalorder 2, %s11
    // Predicated region
    $region45: #{rdb_forward.1} parent=5 // pred_check
      %p8672 = pneg %p8671
    $region46: #{rdb_forward.1} parent=5 // pred_check_branch
      %8674 = sbr.rel (%p8672) target = $region48
    $region47: #{rdb_forward.1} parent=5 // pred_region
      %s8675 = ssub.s32 %s11, 2
      // Predicated region
      $region49: #{rdb_forward.1} parent=47 // pred_check
        %p8676 = pneg %p150
      $region50: #{rdb_forward.1} parent=47 // pred_check_branch
        %8678 = sbr.rel (%p8676) target = $region52
      $region51: #{rdb_forward.1} parent=47 // pred_region
        %p8679 = scmp.lt.s32.totalorder %s17, 1
        %s8680 = scalar_select %p8679, %s17, 1
        %s8681 = smul.addr %s8680, 32
        %s8682 = smul.addr %s8681, 8
        %s8683 = scalar_lea.vmem %s5, %s8682
      $region52: #{rdb_forward.1} parent=47 // pred_fallthru
        _
    $region48: #{rdb_forward.1} parent=5 // pred_fallthru
      _
  $region6: #{rdb_forward.1} parent=0 // loop_footer
    %s15 = sadd.s32 1, %s11
  $region7: #{rdb_forward.1} parent=0 // loop_footer_branch
    %10 = sbr.rel target = $region3
  $region8: #{rdb_forward.1} parent=0 // loop_exit
    _

</llo_original>
